<compile_context>
chip_gen: v7x
topology: tpu7x:2x2x1
jax: 0.10.0
libtpu: 0.0.40
codegen_flags: <defaults>
</compile_context>

<pallas_src>
import functools

import jax
import jax.numpy as jnp
from jax.experimental import pallas as pl
from jax.experimental.pallas import tpu as pltpu

B, N = 2, 64            # batch (query count), points per cloud
# lin1 = Linear(2048+6, 256) in the torch module, but the encoder emits 1024 feats,
# so T must carry 2054-1024 = 1030 features for torch.cat([P_enc, T]) to type-check.
T_DIM = 2054 - 1024
HID = 256

# Packed-bias layout: lane offsets inside the single (1, BIAS_TOTAL) f32 array.
# Every offset is a multiple of 128 -> aligned, unmasked vector loads.
_BIAS_WIDTHS = (("c1", 128), ("c2", 256), ("c3", 512), ("c4", 1024),
                ("l1", 256), ("l2", 256), ("l3", 256), ("l4", 256),
                ("l5", 256), ("l6", 256), ("l7", 256), ("l8", 1))
BIAS_OFF = {}
_o = 0
for _name, _w in _BIAS_WIDTHS:
    BIAS_OFF[_name] = _o
    _o += _w
BIAS_TOTAL = _o  # 3713


# ------------------------------ fused kernel -------------------------------- #
def _fused_kernel(p_ref, t_ref,
                  c1w, c2w, c3gw, c3lw, c4w, bias_ref,
                  l1pw_hbm, l1tw_hbm, headw_hbm,
                  o_ref,
                  l1pw_buf, l1tw_buf, headw_buf, sems,
                  *, qb, npts):
    f32, bf16 = jnp.float32, jnp.bfloat16
    nrows = qb * npts

    # Kick off the head-weight prefetch immediately: ~1.8 MB HBM->VMEM overlapped
    # with the encoder matmuls below (waited just before the MLP head).
    cps = (pltpu.make_async_copy(l1pw_hbm, l1pw_buf, sems.at[0]),
           pltpu.make_async_copy(l1tw_hbm, l1tw_buf, sems.at[1]),
           pltpu.make_async_copy(headw_hbm, headw_buf, sems.at[2]))
    for cp in cps:
        cp.start()

    def mm(a, w_bf16):
        # bf16 x bf16 single-pass MXU matmul with f32 accumulation; only the dot
        # operand is cast to bf16, the residual/ReLU chain stays f32.
        return jnp.dot(a.astype(bf16), w_bf16, preferred_element_type=f32)

    def bias(name, width):
        off = BIAS_OFF[name]
        return bias_ref[:, off:off + width]            # (1, width) f32

    def stack_rows(row_list, width):
        """list of qb (1, width) rows -> (qb, width), without sublane concat."""
        out = jnp.broadcast_to(row_list[0], (qb, width))
        if qb > 1:
            ridx = jax.lax.broadcasted_iota(jnp.int32, (qb, 1), 0)
            for i in range(1, qb):
                out = jnp.where(ridx == i, row_list[i], out)
        return out

    def per_point(row_list, width):
        """list of qb (1, width) rows -> (qb*npts, width); row r gets row_list[r//npts]."""
        out = jnp.broadcast_to(row_list[0], (nrows, width))
        if qb > 1:
            pidx = jax.lax.broadcasted_iota(jnp.int32, (nrows, 1), 0)
            for i in range(1, qb):
                out = jnp.where(pidx >= i * npts, row_list[i], out)
        return out

    def seg_max(a):
        """per-cloud max over the npts rows of a (qb*npts, C) slab -> list of (1, C)."""
        return [jnp.max(a[i * npts:(i + 1) * npts], axis=0, keepdims=True)
                for i in range(qb)]

    # --------------- PointNetEncoder on the flattened (qb*npts, 3) slab ---------------
    x = p_ref[...]                                      # (nrows, 3) f32
    # first_conv[0]: K=3 contraction as three VPU broadcast-FMAs (keeps MXU free).
    # The astype here touches only 3x128 = 384 weight elems (one vreg), not a big temp.
    w1 = c1w[...].astype(f32)
    h = (x[:, 0:1] * w1[0:1, :] + x[:, 1:2] * w1[1:2, :] + x[:, 2:3] * w1[2:3, :]
         + bias("c1", 128))
    h = jnp.maximum(h, 0.0)                             # (nrows, 128)  first_conv ReLU
    feat = mm(h, c2w[...]) + bias("c2", 256)            # (nrows, 256)  first_conv[2], no ReLU

    g = stack_rows(seg_max(feat), 256)                  # (qb, 256) per-cloud global max
    gproj = mm(g, c3gw[...])                            # (qb, 512)   cat([global,local]) @ W3, global half
    local = mm(feat, c3lw[...]) + bias("c3", 512)       # (nrows, 512)                       local half
    h2 = jnp.maximum(
        local + per_point([gproj[i:i + 1] for i in range(qb)], 512), 0.0)
    feat2 = mm(h2, c4w[...]) + bias("c4", 1024)         # (nrows, 1024) second_conv[2], no ReLU
    penc = stack_rows(seg_max(feat2), 1024)             # (qb, 1024)

    # --------------- MLP head (weights arrive from the overlapped DMA) ---------------
    for cp in cps:
        cp.wait()
    # lin1: split matmul replaces torch.cat([p_enc, T]); NO ReLU (matches torch forward).
    hh = mm(penc, l1pw_buf[...]) + mm(t_ref[...], l1tw_buf[...]) + bias("l1", HID)
    for i, name in enumerate(("l2", "l3", "l4", "l5", "l6", "l7")):
        w = headw_buf[:, i * HID:(i + 1) * HID]         # (256, 256) bf16 slice of the pack
        hh = jnp.maximum(mm(hh, w) + bias(name, HID), 0.0)
    z = mm(hh, headw_buf[:, 6 * HID:6 * HID + 1]) + bias("l8", 1)   # (qb, 1)
    # softplus (PyTorch default: beta=1, threshold=20)
    zc = jnp.minimum(z, 20.0)
    o_ref[...] = jnp.where(z > 20.0, z, jnp.log1p(jnp.exp(zc)))


# --------------------------------- wrapper ----------------------------------- #
def _grasp_dist_field_impl(P, T, p):
    b, n, _ = P.shape
    qb = b if b <= 8 else 8                 # queries per grid step
    assert b % qb == 0, "batch must be a multiple of the query-block size"
    nblk = b // qb
    flat_p = P.reshape(b * n, 3)            # free reshape in XLA

    grid_spec = pltpu.PrefetchScalarGridSpec(
        num_scalar_prefetch=0,
        grid=(nblk,),
        in_specs=[
            # per-query-block data
            pl.BlockSpec((qb * n, 3), lambda q: (q, 0)),
            pl.BlockSpec((qb, T_DIM), lambda q: (q, 0)),
            # encoder weights + packed biases: constant index_map -> fetched once,
            # VMEM-resident across all query blocks.
            pl.BlockSpec((3, 128), lambda q: (0, 0)),
            pl.BlockSpec((128, 256), lambda q: (0, 0)),
            pl.BlockSpec((256, 512), lambda q: (0, 0)),
            pl.BlockSpec((256, 512), lambda q: (0, 0)),
            pl.BlockSpec((512, 1024), lambda q: (0, 0)),
            pl.BlockSpec((1, BIAS_TOTAL), lambda q: (0, 0)),
            # head weights stay in HBM; manually prefetched inside the kernel so
            # their DMA hides behind the encoder compute.
            pl.BlockSpec(memory_space=pl.ANY),   # lin1, p_enc half   (1024, 256)
            pl.BlockSpec(memory_space=pl.ANY),   # lin1, T half       (1030, 256)
            pl.BlockSpec(memory_space=pl.ANY),   # lin2..lin8 packed  (256, 1537)
        ],
        out_specs=pl.BlockSpec((qb, 1), lambda q: (q, 0)),
        scratch_shapes=[
            pltpu.VMEM((1024, HID), jnp.bfloat16),
            pltpu.VMEM((T_DIM, HID), jnp.bfloat16),
            pltpu.VMEM((HID, 6 * HID + 1), jnp.bfloat16),
            pltpu.SemaphoreType.DMA((3,)),
        ],
    )
    return pl.pallas_call(
        functools.partial(_fused_kernel, qb=qb, npts=n),
        out_shape=jax.ShapeDtypeStruct((b, 1), jnp.float32),
        grid_spec=grid_spec,
        compiler_params=pltpu.CompilerParams(
            dimension_semantics=("parallel",),          # v7x: split query blocks across TCs
            vmem_limit_bytes=16 * 1024 * 1024,
        ),
    )(flat_p, T,
      p["c1_w"], p["c2_w"], p["c3g_w"], p["c3l_w"], p["c4_w"], p["bias"],
      p["l1p_w"], p["l1t_w"], p["head_w"])


grasp_dist_field = jax.jit(_grasp_dist_field_impl)


# ------------------------------ parameter init ------------------------------- #
def init_params(key):
    ks = jax.random.split(key, 24)
    bf16 = jnp.bfloat16

    def lin(kw, kb, fan_in, fan_out):
        bound = 1.0 / (fan_in ** 0.5)
        w = jax.random.uniform(kw, (fan_in, fan_out), jnp.float32, -bound, bound)
        b = jax.random.uniform(kb, (fan_out,), jnp.float32, -bound, bound)
        return w, b

    c1w, c1b = lin(ks[0], ks[1], 3, 128)
    c2w, c2b = lin(ks[2], ks[3], 128, 256)
    c3w, c3b = lin(ks[4], ks[5], 512, 512)
    c4w, c4b = lin(ks[6], ks[7], 512, 1024)
    l1w, l1b = lin(ks[8], ks[9], 2048 + 6, HID)
    head_ws, head_bs = [], []
    for j in range(10, 22, 2):
        w, b_ = lin(ks[j], ks[j + 1], HID, HID)
        head_ws.append(w)
        head_bs.append(b_)
    l8w, l8b = lin(ks[22], ks[23], HID, 1)

    return {
        # encoder weights (second_conv input is cat([global, local]); rows [:256] = global)
        "c1_w": c1w.astype(bf16),
        "c2_w": c2w.astype(bf16),
        "c3g_w": c3w[:256].astype(bf16),
        "c3l_w": c3w[256:].astype(bf16),
        "c4_w": c4w.astype(bf16),
        # lin1 input is cat([p_enc, T]); rows [:1024] hit the encoder feature
        "l1p_w": l1w[:1024].astype(bf16),
        "l1t_w": l1w[1024:].astype(bf16),
        # lin2..lin7 (256x256) + lin8 (256x1) packed along lanes -> (256, 1537)
        "head_w": jnp.concatenate(head_ws + [l8w], axis=1).astype(bf16),
        # all 13 biases packed into one lane-aligned f32 row -> (1, 3713)
        "bias": jnp.concatenate([c1b, c2b, c3b, c4b, l1b] + head_bs + [l8b]).reshape(1, -1),
    }


# ----------------------------- pure-JAX reference ----------------------------- #
def reference(P, T, p):
    f32, bf16 = jnp.float32, jnp.bfloat16

    def mm(a, w):
        return jnp.dot(a.astype(bf16), w, preferred_element_type=f32)

    bias = p["bias"][0]

    def b(name, width):
        return bias[BIAS_OFF[name]:BIAS_OFF[name] + width]

    h = jnp.maximum(P @ p["c1_w"].astype(f32) + b("c1", 128), 0.0)          # (B,N,128)
    feat = mm(h, p["c2_w"]) + b("c2", 256)                                   # (B,N,256)
    g = jnp.max(feat, axis=1, keepdims=True)                                 # (B,1,256)
    h2 = jnp.maximum(mm(g, p["c3g_w"]) + mm(feat, p["c3l_w"]) + b("c3", 512), 0.0)
    feat2 = mm(h2, p["c4_w"]) + b("c4", 1024)                                # (B,N,1024)
    penc = jnp.max(feat2, axis=1)                                            # (B,1024)
    x = mm(penc, p["l1p_w"]) + mm(T, p["l1t_w"]) + b("l1", HID)              # lin1, no ReLU
    for i, name in enumerate(("l2", "l3", "l4", "l5", "l6", "l7")):
        x = jnp.maximum(mm(x, p["head_w"][:, i * HID:(i + 1) * HID]) + b(name, HID), 0.0)
    z = mm(x, p["head_w"][:, 6 * HID:6 * HID + 1]) + b("l8", 1)
    return jnp.where(z > 20.0, z, jnp.log1p(jnp.exp(jnp.minimum(z, 20.0))))


if __name__ == "__main__":
    key = jax.random.PRNGKey(0)
    k_p, k_t, k_params = jax.random.split(key, 3)
    P = jax.random.normal(k_p, (B, N, 3), jnp.float32)
    T = jax.random.normal(k_t, (B, T_DIM), jnp.float32)
    params = init_params(k_params)

    out = jax.block_until_ready(grasp_dist_field(P, T, params))
    ref = reference(P, T, params)

    assert out.shape == (B, 1), out.shape
    assert bool(jnp.all(out >= 0.0))                     # softplus output is non-negative
    assert jnp.allclose(out, ref, atol=2e-3, rtol=2e-3), (out, ref)
    print("KERNEL_OK")
</pallas_src>

<mosaic_0001>
module attributes {stable_mosaic.version = 11 : i64} {
  func.func @_fused_kernel(%arg0: i32, %arg1: memref<128x3xf32, #tpu.memory_space<vmem>>, %arg2: memref<2x1030xf32, #tpu.memory_space<vmem>>, %arg3: memref<3x128xbf16, #tpu.memory_space<vmem>>, %arg4: memref<128x256xbf16, #tpu.memory_space<vmem>>, %arg5: memref<256x512xbf16, #tpu.memory_space<vmem>>, %arg6: memref<256x512xbf16, #tpu.memory_space<vmem>>, %arg7: memref<512x1024xbf16, #tpu.memory_space<vmem>>, %arg8: memref<1x3713xf32, #tpu.memory_space<vmem>>, %arg9: memref<1024x256xbf16, #tpu.memory_space<any>>, %arg10: memref<1030x256xbf16, #tpu.memory_space<any>>, %arg11: memref<256x1537xbf16, #tpu.memory_space<any>>, %arg12: memref<2x1xf32, #tpu.memory_space<vmem>>, %arg13: memref<1024x256xbf16, #tpu.memory_space<vmem>>, %arg14: memref<1030x256xbf16, #tpu.memory_space<vmem>>, %arg15: memref<256x1537xbf16, #tpu.memory_space<vmem>>, %arg16: memref<3x!tpu.dma_semaphore, #tpu.memory_space<semaphore_mem>>) attributes {dimension_semantics = [#tpu.dimension_semantics<parallel>], iteration_bounds = array<i64: 1>, scalar_prefetch = 0 : i64, scratch_operands = 4 : i64, tpu.core_type = #tpu.core_type<tc>, window_params = [{transform_indices = @transform_0, window_bounds = array<i64: 128, 3>}, {transform_indices = @transform_1, window_bounds = array<i64: 2, 1030>}, {pipeline_mode = #tpu.pipeline_mode<synchronous>, transform_indices = @transform_2, window_bounds = array<i64: 3, 128>}, {pipeline_mode = #tpu.pipeline_mode<synchronous>, transform_indices = @transform_3, window_bounds = array<i64: 128, 256>}, {pipeline_mode = #tpu.pipeline_mode<synchronous>, transform_indices = @transform_4, window_bounds = array<i64: 256, 512>}, {pipeline_mode = #tpu.pipeline_mode<synchronous>, transform_indices = @transform_5, window_bounds = array<i64: 256, 512>}, {pipeline_mode = #tpu.pipeline_mode<synchronous>, transform_indices = @transform_6, window_bounds = array<i64: 512, 1024>}, {pipeline_mode = #tpu.pipeline_mode<synchronous>, transform_indices = @transform_7, window_bounds = array<i64: 1, 3713>}, {}, {}, {}, {transform_indices = @transform_11, window_bounds = array<i64: 2, 1>}]} {
    %c0_i32 = arith.constant 0 : i32
    %0 = tpu.memref_slice %arg16[%c0_i32] : memref<3x!tpu.dma_semaphore, #tpu.memory_space<semaphore_mem>> -> memref<1x!tpu.dma_semaphore, #tpu.memory_space<semaphore_mem>>
    %1 = tpu.memref_squeeze %0 : memref<1x!tpu.dma_semaphore, #tpu.memory_space<semaphore_mem>> -> memref<!tpu.dma_semaphore, #tpu.memory_space<semaphore_mem>>
    tpu.enqueue_dma source(%arg9 : memref<1024x256xbf16, #tpu.memory_space<any>>) target(%arg13 : memref<1024x256xbf16, #tpu.memory_space<vmem>>) target_semaphore(%1 : memref<!tpu.dma_semaphore, #tpu.memory_space<semaphore_mem>>)
    %c1_i32 = arith.constant 1 : i32
    %2 = tpu.memref_slice %arg16[%c1_i32] : memref<3x!tpu.dma_semaphore, #tpu.memory_space<semaphore_mem>> -> memref<1x!tpu.dma_semaphore, #tpu.memory_space<semaphore_mem>>
    %3 = tpu.memref_squeeze %2 : memref<1x!tpu.dma_semaphore, #tpu.memory_space<semaphore_mem>> -> memref<!tpu.dma_semaphore, #tpu.memory_space<semaphore_mem>>
    tpu.enqueue_dma source(%arg10 : memref<1030x256xbf16, #tpu.memory_space<any>>) target(%arg14 : memref<1030x256xbf16, #tpu.memory_space<vmem>>) target_semaphore(%3 : memref<!tpu.dma_semaphore, #tpu.memory_space<semaphore_mem>>)
    %c2_i32 = arith.constant 2 : i32
    %4 = tpu.memref_slice %arg16[%c2_i32] : memref<3x!tpu.dma_semaphore, #tpu.memory_space<semaphore_mem>> -> memref<1x!tpu.dma_semaphore, #tpu.memory_space<semaphore_mem>>
    %5 = tpu.memref_squeeze %4 : memref<1x!tpu.dma_semaphore, #tpu.memory_space<semaphore_mem>> -> memref<!tpu.dma_semaphore, #tpu.memory_space<semaphore_mem>>
    tpu.enqueue_dma source(%arg11 : memref<256x1537xbf16, #tpu.memory_space<any>>) target(%arg15 : memref<256x1537xbf16, #tpu.memory_space<vmem>>) target_semaphore(%5 : memref<!tpu.dma_semaphore, #tpu.memory_space<semaphore_mem>>)
    %c0 = arith.constant 0 : index
    %c0_0 = arith.constant 0 : index
    %6 = vector.load %arg1[%c0, %c0_0] : memref<128x3xf32, #tpu.memory_space<vmem>>, vector<128x3xf32>
    %c0_1 = arith.constant 0 : index
    %c0_2 = arith.constant 0 : index
    %7 = vector.load %arg3[%c0_1, %c0_2] : memref<3x128xbf16, #tpu.memory_space<vmem>>, vector<3x128xbf16>
    %8 = arith.extf %7 : vector<3x128xbf16> to vector<3x128xf32>
    %9 = vector.extract_strided_slice %6 {offsets = [0, 0], sizes = [128, 1], strides = [1, 1]} : vector<128x3xf32> to vector<128x1xf32>
    %10 = vector.extract_strided_slice %8 {offsets = [0, 0], sizes = [1, 128], strides = [1, 1]} : vector<3x128xf32> to vector<1x128xf32>
    %11 = vector.broadcast %9 : vector<128x1xf32> to vector<128x128xf32>
    %12 = vector.broadcast %10 : vector<1x128xf32> to vector<128x128xf32>
    %13 = arith.mulf %11, %12 : vector<128x128xf32>
    %14 = vector.extract_strided_slice %6 {offsets = [0, 1], sizes = [128, 1], strides = [1, 1]} : vector<128x3xf32> to vector<128x1xf32>
    %15 = vector.extract_strided_slice %8 {offsets = [1, 0], sizes = [1, 128], strides = [1, 1]} : vector<3x128xf32> to vector<1x128xf32>
    %16 = vector.broadcast %14 : vector<128x1xf32> to vector<128x128xf32>
    %17 = vector.broadcast %15 : vector<1x128xf32> to vector<128x128xf32>
    %18 = arith.mulf %16, %17 : vector<128x128xf32>
    %19 = arith.addf %13, %18 : vector<128x128xf32>
    %20 = vector.extract_strided_slice %6 {offsets = [0, 2], sizes = [128, 1], strides = [1, 1]} : vector<128x3xf32> to vector<128x1xf32>
    %21 = vector.extract_strided_slice %8 {offsets = [2, 0], sizes = [1, 128], strides = [1, 1]} : vector<3x128xf32> to vector<1x128xf32>
    %22 = vector.broadcast %20 : vector<128x1xf32> to vector<128x128xf32>
    %23 = vector.broadcast %21 : vector<1x128xf32> to vector<128x128xf32>
    %24 = arith.mulf %22, %23 : vector<128x128xf32>
    %25 = arith.addf %19, %24 : vector<128x128xf32>
    %c0_3 = arith.constant 0 : index
    %c0_4 = arith.constant 0 : index
    %26 = vector.load %arg8[%c0_3, %c0_4] : memref<1x3713xf32, #tpu.memory_space<vmem>>, vector<1x128xf32>
    %27 = vector.broadcast %26 : vector<1x128xf32> to vector<128x128xf32>
    %28 = arith.addf %25, %27 : vector<128x128xf32>
    %cst = arith.constant 0.000000e+00 : f32
    %29 = vector.broadcast %cst : f32 to vector<128x128xf32>
    %30 = arith.maximumf %28, %29 : vector<128x128xf32>
    %c0_5 = arith.constant 0 : index
    %c0_6 = arith.constant 0 : index
    %31 = vector.load %arg4[%c0_5, %c0_6] : memref<128x256xbf16, #tpu.memory_space<vmem>>, vector<128x256xbf16>
    %32 = arith.truncf %30 : vector<128x128xf32> to vector<128x128xbf16>
    %cst_7 = arith.constant dense<0.000000e+00> : vector<128x256xf32>
    %33 = tpu.matmul %32, %31, %cst_7 {dimension_numbers = #tpu.dot_dimension_numbers<[1], [0], [0], [1], [0, 0, 1, 1], [], []>} : vector<128x128xbf16>, vector<128x256xbf16>, vector<128x256xf32> -> vector<128x256xf32>
    %c0_8 = arith.constant 0 : index
    %c128 = arith.constant 128 : index
    %34 = vector.load %arg8[%c0_8, %c128] : memref<1x3713xf32, #tpu.memory_space<vmem>>, vector<1x256xf32>
    %35 = vector.broadcast %34 : vector<1x256xf32> to vector<128x256xf32>
    %36 = arith.addf %33, %35 : vector<128x256xf32>
    %37 = vector.extract_strided_slice %36 {offsets = [0, 0], sizes = [64, 256], strides = [1, 1]} : vector<128x256xf32> to vector<64x256xf32>
    %cst_9 = arith.constant dense<0xFF800000> : vector<256xf32>
    %38 = vector.multi_reduction <maximumf>, %37, %cst_9 [0] : vector<64x256xf32> to vector<256xf32>
    %39 = vector.shape_cast %38 : vector<256xf32> to vector<1x256xf32>
    %40 = vector.extract_strided_slice %36 {offsets = [64, 0], sizes = [64, 256], strides = [1, 1]} : vector<128x256xf32> to vector<64x256xf32>
    %cst_10 = arith.constant dense<0xFF800000> : vector<256xf32>
    %41 = vector.multi_reduction <maximumf>, %40, %cst_10 [0] : vector<64x256xf32> to vector<256xf32>
    %42 = vector.shape_cast %41 : vector<256xf32> to vector<1x256xf32>
    %43 = vector.shape_cast %39 : vector<1x256xf32> to vector<1x256xf32>
    %44 = vector.broadcast %43 : vector<1x256xf32> to vector<2x256xf32>
    %45 = tpu.iota {dimensions = array<i32: 0>} : vector<2x1xi32>
    %c1_i32_11 = arith.constant 1 : i32
    %46 = vector.broadcast %c1_i32_11 : i32 to vector<2x1xi32>
    %47 = arith.cmpi eq, %45, %46 : vector<2x1xi32>
    %48 = vector.shape_cast %47 : vector<2x1xi1> to vector<2x1xi1>
    %49 = vector.broadcast %48 : vector<2x1xi1> to vector<2x256xi1>
    %50 = vector.shape_cast %42 : vector<1x256xf32> to vector<1x256xf32>
    %51 = vector.broadcast %50 : vector<1x256xf32> to vector<2x256xf32>
    %52 = arith.select %49, %51, %44 : vector<2x256xi1>, vector<2x256xf32>
    %c0_12 = arith.constant 0 : index
    %c0_13 = arith.constant 0 : index
    %53 = vector.load %arg5[%c0_12, %c0_13] : memref<256x512xbf16, #tpu.memory_space<vmem>>, vector<256x512xbf16>
    %54 = arith.truncf %52 : vector<2x256xf32> to vector<2x256xbf16>
    %cst_14 = arith.constant dense<0.000000e+00> : vector<2x512xf32>
    %55 = tpu.matmul %54, %53, %cst_14 {dimension_numbers = #tpu.dot_dimension_numbers<[1], [0], [0], [1], [0, 0, 1, 1], [], []>} : vector<2x256xbf16>, vector<256x512xbf16>, vector<2x512xf32> -> vector<2x512xf32>
    %c0_15 = arith.constant 0 : index
    %c0_16 = arith.constant 0 : index
    %56 = vector.load %arg6[%c0_15, %c0_16] : memref<256x512xbf16, #tpu.memory_space<vmem>>, vector<256x512xbf16>
    %57 = arith.truncf %36 : vector<128x256xf32> to vector<128x256xbf16>
    %cst_17 = arith.constant dense<0.000000e+00> : vector<128x512xf32>
    %58 = tpu.matmul %57, %56, %cst_17 {dimension_numbers = #tpu.dot_dimension_numbers<[1], [0], [0], [1], [0, 0, 1, 1], [], []>} : vector<128x256xbf16>, vector<256x512xbf16>, vector<128x512xf32> -> vector<128x512xf32>
    %c0_18 = arith.constant 0 : index
    %c384 = arith.constant 384 : index
    %59 = vector.load %arg8[%c0_18, %c384] : memref<1x3713xf32, #tpu.memory_space<vmem>>, vector<1x512xf32>
    %60 = vector.broadcast %59 : vector<1x512xf32> to vector<128x512xf32>
    %61 = arith.addf %58, %60 : vector<128x512xf32>
    %62 = vector.extract_strided_slice %55 {offsets = [0, 0], sizes = [1, 512], strides = [1, 1]} : vector<2x512xf32> to vector<1x512xf32>
    %63 = vector.extract_strided_slice %55 {offsets = [1, 0], sizes = [1, 512], strides = [1, 1]} : vector<2x512xf32> to vector<1x512xf32>
    %64 = vector.shape_cast %62 : vector<1x512xf32> to vector<1x512xf32>
    %65 = vector.broadcast %64 : vector<1x512xf32> to vector<128x512xf32>
    %66 = tpu.iota {dimensions = array<i32: 0>} : vector<128x1xi32>
    %c64_i32 = arith.constant 64 : i32
    %67 = vector.broadcast %c64_i32 : i32 to vector<128x1xi32>
    %68 = arith.cmpi sge, %66, %67 : vector<128x1xi32>
    %69 = vector.shape_cast %68 : vector<128x1xi1> to vector<128x1xi1>
    %70 = vector.broadcast %69 : vector<128x1xi1> to vector<128x512xi1>
    %71 = vector.shape_cast %63 : vector<1x512xf32> to vector<1x512xf32>
    %72 = vector.broadcast %71 : vector<1x512xf32> to vector<128x512xf32>
    %73 = arith.select %70, %72, %65 : vector<128x512xi1>, vector<128x512xf32>
    %74 = arith.addf %61, %73 : vector<128x512xf32>
    %cst_19 = arith.constant 0.000000e+00 : f32
    %75 = vector.broadcast %cst_19 : f32 to vector<128x512xf32>
    %76 = arith.maximumf %74, %75 : vector<128x512xf32>
    %c0_20 = arith.constant 0 : index
    %c0_21 = arith.constant 0 : index
    %77 = vector.load %arg7[%c0_20, %c0_21] : memref<512x1024xbf16, #tpu.memory_space<vmem>>, vector<512x1024xbf16>
    %78 = arith.truncf %76 : vector<128x512xf32> to vector<128x512xbf16>
    %cst_22 = arith.constant dense<0.000000e+00> : vector<128x1024xf32>
    %79 = tpu.matmul %78, %77, %cst_22 {dimension_numbers = #tpu.dot_dimension_numbers<[1], [0], [0], [1], [0, 0, 1, 1], [], []>} : vector<128x512xbf16>, vector<512x1024xbf16>, vector<128x1024xf32> -> vector<128x1024xf32>
    %c0_23 = arith.constant 0 : index
    %c896 = arith.constant 896 : index
    %80 = vector.load %arg8[%c0_23, %c896] : memref<1x3713xf32, #tpu.memory_space<vmem>>, vector<1x1024xf32>
    %81 = vector.broadcast %80 : vector<1x1024xf32> to vector<128x1024xf32>
    %82 = arith.addf %79, %81 : vector<128x1024xf32>
    %83 = vector.extract_strided_slice %82 {offsets = [0, 0], sizes = [64, 1024], strides = [1, 1]} : vector<128x1024xf32> to vector<64x1024xf32>
    %cst_24 = arith.constant dense<0xFF800000> : vector<1024xf32>
    %84 = vector.multi_reduction <maximumf>, %83, %cst_24 [0] : vector<64x1024xf32> to vector<1024xf32>
    %85 = vector.shape_cast %84 : vector<1024xf32> to vector<1x1024xf32>
    %86 = vector.extract_strided_slice %82 {offsets = [64, 0], sizes = [64, 1024], strides = [1, 1]} : vector<128x1024xf32> to vector<64x1024xf32>
    %cst_25 = arith.constant dense<0xFF800000> : vector<1024xf32>
    %87 = vector.multi_reduction <maximumf>, %86, %cst_25 [0] : vector<64x1024xf32> to vector<1024xf32>
    %88 = vector.shape_cast %87 : vector<1024xf32> to vector<1x1024xf32>
    %89 = vector.shape_cast %85 : vector<1x1024xf32> to vector<1x1024xf32>
    %90 = vector.broadcast %89 : vector<1x1024xf32> to vector<2x1024xf32>
    %91 = tpu.iota {dimensions = array<i32: 0>} : vector<2x1xi32>
    %c1_i32_26 = arith.constant 1 : i32
    %92 = vector.broadcast %c1_i32_26 : i32 to vector<2x1xi32>
    %93 = arith.cmpi eq, %91, %92 : vector<2x1xi32>
    %94 = vector.shape_cast %93 : vector<2x1xi1> to vector<2x1xi1>
    %95 = vector.broadcast %94 : vector<2x1xi1> to vector<2x1024xi1>
    %96 = vector.shape_cast %88 : vector<1x1024xf32> to vector<1x1024xf32>
    %97 = vector.broadcast %96 : vector<1x1024xf32> to vector<2x1024xf32>
    %98 = arith.select %95, %97, %90 : vector<2x1024xi1>, vector<2x1024xf32>
    %c0_i32_27 = arith.constant 0 : i32
    %99 = tpu.memref_slice %arg16[%c0_i32_27] : memref<3x!tpu.dma_semaphore, #tpu.memory_space<semaphore_mem>> -> memref<1x!tpu.dma_semaphore, #tpu.memory_space<semaphore_mem>>
    %100 = tpu.memref_squeeze %99 : memref<1x!tpu.dma_semaphore, #tpu.memory_space<semaphore_mem>> -> memref<!tpu.dma_semaphore, #tpu.memory_space<semaphore_mem>>
    tpu.wait_dma2 semaphore(%100 : memref<!tpu.dma_semaphore, #tpu.memory_space<semaphore_mem>>) src(%arg9 : memref<1024x256xbf16, #tpu.memory_space<any>>) dst(%arg13 : memref<1024x256xbf16, #tpu.memory_space<vmem>>)
    %c1_i32_28 = arith.constant 1 : i32
    %101 = tpu.memref_slice %arg16[%c1_i32_28] : memref<3x!tpu.dma_semaphore, #tpu.memory_space<semaphore_mem>> -> memref<1x!tpu.dma_semaphore, #tpu.memory_space<semaphore_mem>>
    %102 = tpu.memref_squeeze %101 : memref<1x!tpu.dma_semaphore, #tpu.memory_space<semaphore_mem>> -> memref<!tpu.dma_semaphore, #tpu.memory_space<semaphore_mem>>
    tpu.wait_dma2 semaphore(%102 : memref<!tpu.dma_semaphore, #tpu.memory_space<semaphore_mem>>) src(%arg10 : memref<1030x256xbf16, #tpu.memory_space<any>>) dst(%arg14 : memref<1030x256xbf16, #tpu.memory_space<vmem>>)
    %c2_i32_29 = arith.constant 2 : i32
    %103 = tpu.memref_slice %arg16[%c2_i32_29] : memref<3x!tpu.dma_semaphore, #tpu.memory_space<semaphore_mem>> -> memref<1x!tpu.dma_semaphore, #tpu.memory_space<semaphore_mem>>
    %104 = tpu.memref_squeeze %103 : memref<1x!tpu.dma_semaphore, #tpu.memory_space<semaphore_mem>> -> memref<!tpu.dma_semaphore, #tpu.memory_space<semaphore_mem>>
    tpu.wait_dma2 semaphore(%104 : memref<!tpu.dma_semaphore, #tpu.memory_space<semaphore_mem>>) src(%arg11 : memref<256x1537xbf16, #tpu.memory_space<any>>) dst(%arg15 : memref<256x1537xbf16, #tpu.memory_space<vmem>>)
    %c0_30 = arith.constant 0 : index
    %c0_31 = arith.constant 0 : index
    %105 = vector.load %arg13[%c0_30, %c0_31] : memref<1024x256xbf16, #tpu.memory_space<vmem>>, vector<1024x256xbf16>
    %106 = arith.truncf %98 : vector<2x1024xf32> to vector<2x1024xbf16>
    %cst_32 = arith.constant dense<0.000000e+00> : vector<2x256xf32>
    %107 = tpu.matmul %106, %105, %cst_32 {dimension_numbers = #tpu.dot_dimension_numbers<[1], [0], [0], [1], [0, 0, 1, 1], [], []>} : vector<2x1024xbf16>, vector<1024x256xbf16>, vector<2x256xf32> -> vector<2x256xf32>
    %c0_33 = arith.constant 0 : index
    %c0_34 = arith.constant 0 : index
    %108 = vector.load %arg2[%c0_33, %c0_34] : memref<2x1030xf32, #tpu.memory_space<vmem>>, vector<2x1030xf32>
    %c0_35 = arith.constant 0 : index
    %c0_36 = arith.constant 0 : index
    %109 = vector.load %arg14[%c0_35, %c0_36] : memref<1030x256xbf16, #tpu.memory_space<vmem>>, vector<1030x256xbf16>
    %110 = arith.truncf %108 : vector<2x1030xf32> to vector<2x1030xbf16>
    %cst_37 = arith.constant dense<0.000000e+00> : vector<2x256xf32>
    %111 = tpu.matmul %110, %109, %cst_37 {dimension_numbers = #tpu.dot_dimension_numbers<[1], [0], [0], [1], [0, 0, 1, 1], [], []>} : vector<2x1030xbf16>, vector<1030x256xbf16>, vector<2x256xf32> -> vector<2x256xf32>
    %112 = arith.addf %107, %111 : vector<2x256xf32>
    %c0_38 = arith.constant 0 : index
    %c1920 = arith.constant 1920 : index
    %113 = vector.load %arg8[%c0_38, %c1920] : memref<1x3713xf32, #tpu.memory_space<vmem>>, vector<1x256xf32>
    %114 = vector.broadcast %113 : vector<1x256xf32> to vector<2x256xf32>
    %115 = arith.addf %112, %114 : vector<2x256xf32>
    %c0_39 = arith.constant 0 : index
    %c0_40 = arith.constant 0 : index
    %116 = vector.load %arg15[%c0_39, %c0_40] : memref<256x1537xbf16, #tpu.memory_space<vmem>>, vector<256x256xbf16>
    %117 = arith.truncf %115 : vector<2x256xf32> to vector<2x256xbf16>
    %cst_41 = arith.constant dense<0.000000e+00> : vector<2x256xf32>
    %118 = tpu.matmul %117, %116, %cst_41 {dimension_numbers = #tpu.dot_dimension_numbers<[1], [0], [0], [1], [0, 0, 1, 1], [], []>} : vector<2x256xbf16>, vector<256x256xbf16>, vector<2x256xf32> -> vector<2x256xf32>
    %c0_42 = arith.constant 0 : index
    %c2176 = arith.constant 2176 : index
    %119 = vector.load %arg8[%c0_42, %c2176] : memref<1x3713xf32, #tpu.memory_space<vmem>>, vector<1x256xf32>
    %120 = vector.broadcast %119 : vector<1x256xf32> to vector<2x256xf32>
    %121 = arith.addf %118, %120 : vector<2x256xf32>
    %cst_43 = arith.constant 0.000000e+00 : f32
    %122 = vector.broadcast %cst_43 : f32 to vector<2x256xf32>
    %123 = arith.maximumf %121, %122 : vector<2x256xf32>
    %c0_44 = arith.constant 0 : index
    %c256 = arith.constant 256 : index
    %124 = vector.load %arg15[%c0_44, %c256] : memref<256x1537xbf16, #tpu.memory_space<vmem>>, vector<256x256xbf16>
    %125 = arith.truncf %123 : vector<2x256xf32> to vector<2x256xbf16>
    %cst_45 = arith.constant dense<0.000000e+00> : vector<2x256xf32>
    %126 = tpu.matmul %125, %124, %cst_45 {dimension_numbers = #tpu.dot_dimension_numbers<[1], [0], [0], [1], [0, 0, 1, 1], [], []>} : vector<2x256xbf16>, vector<256x256xbf16>, vector<2x256xf32> -> vector<2x256xf32>
    %c0_46 = arith.constant 0 : index
    %c2432 = arith.constant 2432 : index
    %127 = vector.load %arg8[%c0_46, %c2432] : memref<1x3713xf32, #tpu.memory_space<vmem>>, vector<1x256xf32>
    %128 = vector.broadcast %127 : vector<1x256xf32> to vector<2x256xf32>
    %129 = arith.addf %126, %128 : vector<2x256xf32>
    %cst_47 = arith.constant 0.000000e+00 : f32
    %130 = vector.broadcast %cst_47 : f32 to vector<2x256xf32>
    %131 = arith.maximumf %129, %130 : vector<2x256xf32>
    %c0_48 = arith.constant 0 : index
    %c512 = arith.constant 512 : index
    %132 = vector.load %arg15[%c0_48, %c512] : memref<256x1537xbf16, #tpu.memory_space<vmem>>, vector<256x256xbf16>
    %133 = arith.truncf %131 : vector<2x256xf32> to vector<2x256xbf16>
    %cst_49 = arith.constant dense<0.000000e+00> : vector<2x256xf32>
    %134 = tpu.matmul %133, %132, %cst_49 {dimension_numbers = #tpu.dot_dimension_numbers<[1], [0], [0], [1], [0, 0, 1, 1], [], []>} : vector<2x256xbf16>, vector<256x256xbf16>, vector<2x256xf32> -> vector<2x256xf32>
    %c0_50 = arith.constant 0 : index
    %c2688 = arith.constant 2688 : index
    %135 = vector.load %arg8[%c0_50, %c2688] : memref<1x3713xf32, #tpu.memory_space<vmem>>, vector<1x256xf32>
    %136 = vector.broadcast %135 : vector<1x256xf32> to vector<2x256xf32>
    %137 = arith.addf %134, %136 : vector<2x256xf32>
    %cst_51 = arith.constant 0.000000e+00 : f32
    %138 = vector.broadcast %cst_51 : f32 to vector<2x256xf32>
    %139 = arith.maximumf %137, %138 : vector<2x256xf32>
    %c0_52 = arith.constant 0 : index
    %c768 = arith.constant 768 : index
    %140 = vector.load %arg15[%c0_52, %c768] : memref<256x1537xbf16, #tpu.memory_space<vmem>>, vector<256x256xbf16>
    %141 = arith.truncf %139 : vector<2x256xf32> to vector<2x256xbf16>
    %cst_53 = arith.constant dense<0.000000e+00> : vector<2x256xf32>
    %142 = tpu.matmul %141, %140, %cst_53 {dimension_numbers = #tpu.dot_dimension_numbers<[1], [0], [0], [1], [0, 0, 1, 1], [], []>} : vector<2x256xbf16>, vector<256x256xbf16>, vector<2x256xf32> -> vector<2x256xf32>
    %c0_54 = arith.constant 0 : index
    %c2944 = arith.constant 2944 : index
    %143 = vector.load %arg8[%c0_54, %c2944] : memref<1x3713xf32, #tpu.memory_space<vmem>>, vector<1x256xf32>
    %144 = vector.broadcast %143 : vector<1x256xf32> to vector<2x256xf32>
    %145 = arith.addf %142, %144 : vector<2x256xf32>
    %cst_55 = arith.constant 0.000000e+00 : f32
    %146 = vector.broadcast %cst_55 : f32 to vector<2x256xf32>
    %147 = arith.maximumf %145, %146 : vector<2x256xf32>
    %c0_56 = arith.constant 0 : index
    %c1024 = arith.constant 1024 : index
    %148 = vector.load %arg15[%c0_56, %c1024] : memref<256x1537xbf16, #tpu.memory_space<vmem>>, vector<256x256xbf16>
    %149 = arith.truncf %147 : vector<2x256xf32> to vector<2x256xbf16>
    %cst_57 = arith.constant dense<0.000000e+00> : vector<2x256xf32>
    %150 = tpu.matmul %149, %148, %cst_57 {dimension_numbers = #tpu.dot_dimension_numbers<[1], [0], [0], [1], [0, 0, 1, 1], [], []>} : vector<2x256xbf16>, vector<256x256xbf16>, vector<2x256xf32> -> vector<2x256xf32>
    %c0_58 = arith.constant 0 : index
    %c3200 = arith.constant 3200 : index
    %151 = vector.load %arg8[%c0_58, %c3200] : memref<1x3713xf32, #tpu.memory_space<vmem>>, vector<1x256xf32>
    %152 = vector.broadcast %151 : vector<1x256xf32> to vector<2x256xf32>
    %153 = arith.addf %150, %152 : vector<2x256xf32>
    %cst_59 = arith.constant 0.000000e+00 : f32
    %154 = vector.broadcast %cst_59 : f32 to vector<2x256xf32>
    %155 = arith.maximumf %153, %154 : vector<2x256xf32>
    %c0_60 = arith.constant 0 : index
    %c1280 = arith.constant 1280 : index
    %156 = vector.load %arg15[%c0_60, %c1280] : memref<256x1537xbf16, #tpu.memory_space<vmem>>, vector<256x256xbf16>
    %157 = arith.truncf %155 : vector<2x256xf32> to vector<2x256xbf16>
    %cst_61 = arith.constant dense<0.000000e+00> : vector<2x256xf32>
    %158 = tpu.matmul %157, %156, %cst_61 {dimension_numbers = #tpu.dot_dimension_numbers<[1], [0], [0], [1], [0, 0, 1, 1], [], []>} : vector<2x256xbf16>, vector<256x256xbf16>, vector<2x256xf32> -> vector<2x256xf32>
    %c0_62 = arith.constant 0 : index
    %c3456 = arith.constant 3456 : index
    %159 = vector.load %arg8[%c0_62, %c3456] : memref<1x3713xf32, #tpu.memory_space<vmem>>, vector<1x256xf32>
    %160 = vector.broadcast %159 : vector<1x256xf32> to vector<2x256xf32>
    %161 = arith.addf %158, %160 : vector<2x256xf32>
    %cst_63 = arith.constant 0.000000e+00 : f32
    %162 = vector.broadcast %cst_63 : f32 to vector<2x256xf32>
    %163 = arith.maximumf %161, %162 : vector<2x256xf32>
    %c0_64 = arith.constant 0 : index
    %c1536 = arith.constant 1536 : index
    %164 = vector.load %arg15[%c0_64, %c1536] : memref<256x1537xbf16, #tpu.memory_space<vmem>>, vector<256x1xbf16>
    %165 = arith.truncf %163 : vector<2x256xf32> to vector<2x256xbf16>
    %cst_65 = arith.constant dense<0.000000e+00> : vector<2x1xf32>
    %166 = tpu.matmul %165, %164, %cst_65 {dimension_numbers = #tpu.dot_dimension_numbers<[1], [0], [0], [1], [0, 0, 1, 1], [], []>} : vector<2x256xbf16>, vector<256x1xbf16>, vector<2x1xf32> -> vector<2x1xf32>
    %c0_66 = arith.constant 0 : index
    %c3712 = arith.constant 3712 : index
    %167 = vector.load %arg8[%c0_66, %c3712] : memref<1x3713xf32, #tpu.memory_space<vmem>>, vector<1x1xf32>
    %168 = vector.broadcast %167 : vector<1x1xf32> to vector<2x1xf32>
    %169 = arith.addf %166, %168 : vector<2x1xf32>
    %cst_67 = arith.constant 2.000000e+01 : f32
    %170 = vector.broadcast %cst_67 : f32 to vector<2x1xf32>
    %171 = arith.minimumf %169, %170 : vector<2x1xf32>
    %cst_68 = arith.constant 2.000000e+01 : f32
    %172 = vector.broadcast %cst_68 : f32 to vector<2x1xf32>
    %173 = arith.cmpf ogt, %169, %172 : vector<2x1xf32>
    %174 = math.exp %171 : vector<2x1xf32>
    %175 = math.log1p %174 : vector<2x1xf32>
    %176 = arith.select %173, %169, %175 : vector<2x1xi1>, vector<2x1xf32>
    %c0_69 = arith.constant 0 : index
    %c0_70 = arith.constant 0 : index
    %177 = vector.load %arg12[%c0_69, %c0_70] : memref<2x1xf32, #tpu.memory_space<vmem>>, vector<2x1xf32>
    tpu.vector_store %arg12[%c0_69, %c0_70], %176 {strides = array<i32>} : memref<2x1xf32, #tpu.memory_space<vmem>>, vector<2x1xf32>,
    return
  }
  func.func @transform_0(%arg0: i32) -> (i32, i32) {
    %c0_i32 = arith.constant 0 : i32
    %c0_i32_0 = arith.constant 0 : i32
    return %arg0, %c0_i32 : i32, i32
  }
  func.func @transform_1(%arg0: i32) -> (i32, i32) {
    %c0_i32 = arith.constant 0 : i32
    %c0_i32_0 = arith.constant 0 : i32
    return %arg0, %c0_i32 : i32, i32
  }
  func.func @transform_2(%arg0: i32) -> (i32, i32) {
    %c0_i32 = arith.constant 0 : i32
    %c0_i32_0 = arith.constant 0 : i32
    %c0_i32_1 = arith.constant 0 : i32
    return %c0_i32, %c0_i32_0 : i32, i32
  }
  func.func @transform_3(%arg0: i32) -> (i32, i32) {
    %c0_i32 = arith.constant 0 : i32
    %c0_i32_0 = arith.constant 0 : i32
    %c0_i32_1 = arith.constant 0 : i32
    return %c0_i32, %c0_i32_0 : i32, i32
  }
  func.func @transform_4(%arg0: i32) -> (i32, i32) {
    %c0_i32 = arith.constant 0 : i32
    %c0_i32_0 = arith.constant 0 : i32
    %c0_i32_1 = arith.constant 0 : i32
    return %c0_i32, %c0_i32_0 : i32, i32
  }
  func.func @transform_5(%arg0: i32) -> (i32, i32) {
    %c0_i32 = arith.constant 0 : i32
    %c0_i32_0 = arith.constant 0 : i32
    %c0_i32_1 = arith.constant 0 : i32
    return %c0_i32, %c0_i32_0 : i32, i32
  }
  func.func @transform_6(%arg0: i32) -> (i32, i32) {
    %c0_i32 = arith.constant 0 : i32
    %c0_i32_0 = arith.constant 0 : i32
    %c0_i32_1 = arith.constant 0 : i32
    return %c0_i32, %c0_i32_0 : i32, i32
  }
  func.func @transform_7(%arg0: i32) -> (i32, i32) {
    %c0_i32 = arith.constant 0 : i32
    %c0_i32_0 = arith.constant 0 : i32
    %c0_i32_1 = arith.constant 0 : i32
    return %c0_i32, %c0_i32_0 : i32, i32
  }
  func.func @transform_11(%arg0: i32) -> (i32, i32) {
    %c0_i32 = arith.constant 0 : i32
    %c0_i32_0 = arith.constant 0 : i32
    return %arg0, %c0_i32 : i32, i32
  }
}

</mosaic_0001>

<llo_original>
// kernel: _grasp_dist_field_impl.1
$region0: #{_grasp_dist_field_impl.1}
  #allocation0 [shape = 'u32[]', space=smem, size = 0x4, offset = 0x4, fixed_abs, tag = 'smem constant byte address 0x4 - core index']
  #allocation1 [shape = 'u32[144,128]{1,0:T(1,128)}', space=vmem, size = 0x12000, scoped, tag = 'internal scratch']
  #allocation2 [shape = 'bf16[1024,256]{1,0:T(16,128)(2,1)}', space=vmem, size = 0x80000, scoped, tag = 'scratch operand']
  #allocation3 [shape = 'bf16[1030,256]{1,0:T(8,128)(2,1)}', space=vmem, size = 0x81000, scoped, tag = 'scratch operand']
  #allocation4 [shape = 'bf16[256,1537]{1,0:T(16,128)(2,1)}', space=vmem, size = 0xd0000, scoped, tag = 'scratch operand']
  #allocation5 [shape = 's32[3]{0}', space=sflag, size = 0xc, scoped, tag = 'scratch operand']
  #allocation10 [shape = 's32[]', space=sflag, size = 0x4, offset = 0, fixed_abs, tag = 'sflag constant byte address 0x0 - dummy sync flag']
  #allocation12 [shape = 's32[]', space=sflag, size = 0x4, offset = 0, fixed_abs, tag = 'sflag constant byte address 0x0 - dummy sync flag']
  #allocation13 [shape = 's32[]', space=sflag, size = 0x4, offset = 0, fixed_abs, tag = 'sflag constant byte address 0x0 - dummy sync flag']
  %s0 = inlined_call_operand.vmem [shape: f32[128,3], index: 0, kind: input, shape index: {}]
  %s1 = inlined_call_operand.vmem [shape: f32[2,1030], index: 1, kind: input, shape index: {}]
  %s2 = inlined_call_operand.vmem [shape: bf16[3,128], index: 2, kind: input, shape index: {}]
  %s3 = inlined_call_operand.vmem [shape: bf16[128,256], index: 3, kind: input, shape index: {}]
  %s4 = inlined_call_operand.hbm [shape: bf16[256,512], index: 4, kind: input, shape index: {}]
  %s5 = inlined_call_operand.hbm [shape: bf16[256,512], index: 5, kind: input, shape index: {}]
  %s6 = inlined_call_operand.vmem [shape: bf16[512,1024], index: 6, kind: input, shape index: {}]
  %s7 = inlined_call_operand.vmem [shape: f32[1,3713], index: 7, kind: input, shape index: {}]
  %s8 = inlined_call_operand.hbm [shape: bf16[1024,256], index: 8, kind: input, shape index: {}]
  %s9 = inlined_call_operand.vmem [shape: bf16[1030,256], index: 9, kind: input, shape index: {}]
  %s10 = inlined_call_operand.vmem [shape: bf16[256,1537], index: 10, kind: input, shape index: {}]
  %s11 = inlined_call_operand.vmem [shape: f32[2,1], index: 11, kind: output, shape index: {}]
  %s12 = sld [smem:[#allocation0]]
  $region121: #{_grasp_dist_field_impl.1} parent=0
    _
  %s14 = ssub.s32 1, %s12
  %s15 = scalar_select 0, %s14, %s12
  $region1: #{_grasp_dist_field_impl.1} parent=0
    #allocation6 [shape = 'u8[262144]{0}', space=vmem, size = 0x40000, scoped, tag = 'input window, operand 4, single buffered']
    #allocation7 [shape = 's32[1]{0}', space=sflag, size = 0x4, scoped, tag = 'scoped memory for _grasp_dist_field_impl.1']
    #allocation8 [shape = 'u8[262144]{0}', space=vmem, size = 0x40000, scoped, tag = 'input window, operand 5, single buffered']
    #allocation9 [shape = 's32[1]{0}', space=sflag, size = 0x4, scoped, tag = 'scoped memory for _grasp_dist_field_impl.1']
    #allocation11 [shape = 'u32[9]{0}', space=smem, size = 0x24, scoped, tag = 'DMA stride descriptor']
    %16 = vsyncpa [#allocation7], 0
    %17 = vsyncpa [#allocation9], 0
    // Predicated region
    $region2: #{_grasp_dist_field_impl.1} parent=1 // pred_check
      _
    $region3: #{_grasp_dist_field_impl.1} parent=1 // pred_check_branch
      %19 = sbr.rel (0) target = $region5
    $region4: #{_grasp_dist_field_impl.1} parent=1 // pred_region
      _
    $region5: #{_grasp_dist_field_impl.1} parent=1 // pred_fallthru
      _
    // Predicated region
    $region6: #{_grasp_dist_field_impl.1} parent=1 // pred_check
      _
    $region7: #{_grasp_dist_field_impl.1} parent=1 // pred_check_branch
      %21 = sbr.rel (0) target = $region9
    $region8: #{_grasp_dist_field_impl.1} parent=1 // pred_region
      _
    $region9: #{_grasp_dist_field_impl.1} parent=1 // pred_fallthru
      _
    // Predicated region
    $region10: #{_grasp_dist_field_impl.1} parent=1 // pred_check
      _
    $region11: #{_grasp_dist_field_impl.1} parent=1 // pred_check_branch
      %23 = sbr.rel (0) target = $region13
    $region12: #{_grasp_dist_field_impl.1} parent=1 // pred_region
      _
    $region13: #{_grasp_dist_field_impl.1} parent=1 // pred_fallthru
      _
    // Predicated region
    $region14: #{_grasp_dist_field_impl.1} parent=1 // pred_check
      _
    $region15: #{_grasp_dist_field_impl.1} parent=1 // pred_check_branch
      %25 = sbr.rel (0) target = $region17
    $region16: #{_grasp_dist_field_impl.1} parent=1 // pred_region
      _
    $region17: #{_grasp_dist_field_impl.1} parent=1 // pred_fallthru
      _
    // Predicated region
    $region18: #{_grasp_dist_field_impl.1} parent=1 // pred_check
      _
    $region19: #{_grasp_dist_field_impl.1} parent=1 // pred_check_branch
      %27 = sbr.rel (0) target = $region21
    $region20: #{_grasp_dist_field_impl.1} parent=1 // pred_region
      %s29 = ssub.s32 8192, 8192
      %30 = vsyncadd [#allocation7], %s29
      %s31 = sshll.u32 [#allocation6], 4
      %s32 = int_to_ptr.vmem [resolvable:$true] %s31
      %37 = dma.hbm_to_vmem [thread:$0]  %s4, 8192, %s32, [#allocation7], 256, 256, 16
    $region21: #{_grasp_dist_field_impl.1} parent=1 // pred_fallthru
      _
    // Predicated region
    $region22: #{_grasp_dist_field_impl.1} parent=1 // pred_check
      _
    $region23: #{_grasp_dist_field_impl.1} parent=1 // pred_check_branch
      %39 = sbr.rel (0) target = $region25
    $region24: #{_grasp_dist_field_impl.1} parent=1 // pred_region
      %s41 = ssub.s32 8192, 8192
      %42 = vsyncadd [#allocation9], %s41
      %s43 = sshll.u32 [#allocation8], 4
      %s44 = int_to_ptr.vmem [resolvable:$true] %s43
      %49 = dma.hbm_to_vmem [thread:$0]  %s5, 8192, %s44, [#allocation9], 256, 256, 16
    $region25: #{_grasp_dist_field_impl.1} parent=1 // pred_fallthru
      _
    // Predicated region
    $region26: #{_grasp_dist_field_impl.1} parent=1 // pred_check
      _
    $region27: #{_grasp_dist_field_impl.1} parent=1 // pred_check_branch
      %51 = sbr.rel (0) target = $region29
    $region28: #{_grasp_dist_field_impl.1} parent=1 // pred_region
      _
    $region29: #{_grasp_dist_field_impl.1} parent=1 // pred_fallthru
      _
    // Predicated region
    $region30: #{_grasp_dist_field_impl.1} parent=1 // pred_check
      _
    $region31: #{_grasp_dist_field_impl.1} parent=1 // pred_check_branch
      %53 = sbr.rel (0) target = $region33
    $region32: #{_grasp_dist_field_impl.1} parent=1 // pred_region
      _
    $region33: #{_grasp_dist_field_impl.1} parent=1 // pred_fallthru
      _
    // Predicated region
    $region34: #{_grasp_dist_field_impl.1} parent=1 // pred_check
      _
    $region35: #{_grasp_dist_field_impl.1} parent=1 // pred_check_branch
      %55 = sbr.rel (0) target = $region37
    $region36: #{_grasp_dist_field_impl.1} parent=1 // pred_region
      %56 = dma.done [#allocation7], 8192
    $region37: #{_grasp_dist_field_impl.1} parent=1 // pred_fallthru
      _
    // Predicated region
    $region38: #{_grasp_dist_field_impl.1} parent=1 // pred_check
      _
    $region39: #{_grasp_dist_field_impl.1} parent=1 // pred_check_branch
      %58 = sbr.rel (0) target = $region41
    $region40: #{_grasp_dist_field_impl.1} parent=1 // pred_region
      %59 = dma.done [#allocation9], 8192
    $region41: #{_grasp_dist_field_impl.1} parent=1 // pred_fallthru
      _
    %s62 = sshll.u32 1, 14
    %s63 = sxor.u32 4294967295, %s62
    %s65 = sld [smem:[#allocation0]]
    %s66 = sadd.s32 2, %s65
    %s68 = sshll.u32 7, 26
    %s69 = sxor.u32 4294967295, %s68
    %s70 = sand.u32 0, %s69
    %s71 = sshll.u32 %s66, 26
    %s72 = sor.u32 %s70, %s71
    %s73 = sshll.u32 [#allocation2], 4
    %s74 = int_to_ptr.vmem [resolvable:$true] %s73
    %77 = sst [smem:[#allocation11]] 256
    %s78 = scalar_lea.smem [#allocation11], 1
    %79 = sst [smem:[%s78]] 256
    %s80 = scalar_lea.smem [#allocation11], 2
    %81 = sst [smem:[%s80]] 2
    %s82 = scalar_lea.smem [#allocation11], 3
    %83 = sst [smem:[%s82]] 64
    %s84 = scalar_lea.smem [#allocation11], 4
    %85 = sst [smem:[%s84]] 128
    %s86 = scalar_lea.smem [#allocation11], 5
    %87 = sst [smem:[%s86]] 2
    %s88 = scalar_lea.smem [#allocation11], 6
    %89 = sst [smem:[%s88]] 128
    %s90 = scalar_lea.smem [#allocation11], 7
    %91 = sst [smem:[%s90]] 64
    %s92 = scalar_lea.smem [#allocation11], 8
    %93 = sst [smem:[%s92]] 4
    %95 = dma.general %s8, 16384, %s74, [#allocation5], [#allocation10], [#allocation11], %s72, 0
    %s96 = scalar_lea.sflag [#allocation5], 1
    %p98 = scmp.lt.u32.totalorder 1032, 8
    %p99 = pneg %p98
    // Predicated region
    $region42: #{_grasp_dist_field_impl.1} parent=1 // pred_check
      _
    $region43: #{_grasp_dist_field_impl.1} parent=1 // pred_check_branch
      %101 = sbr.rel (%p98) target = $region45
    $region44: #{_grasp_dist_field_impl.1} parent=1 // pred_region
      %s116 = sand.u32 1032, 7
      %p117 = scmp.eq.s32.totalorder %s116, 0
      // Predicated region
      $region57: #{_grasp_dist_field_impl.1} parent=44 // pred_check
        %p118 = pneg %p117
      $region58: #{_grasp_dist_field_impl.1} parent=44 // pred_check_branch
        %120 = sbr.rel (%p118) target = $region60
      $region59: #{_grasp_dist_field_impl.1} parent=44 // pred_region
        loop: start=0, step=1, limit=1
        $region61: #{_grasp_dist_field_impl.1} parent=59 // loop_pre_header
          _
        $region62: #{_grasp_dist_field_impl.1} parent=59 // loop_header
          %s122 = sphi 0, %s126
          %p123 = scmp.ge.s32.totalorder %s122, 1
          %s127 = sphi %s9, %s9
          %s128 = sphi [#allocation3], [#allocation3]
        $region63: #{_grasp_dist_field_impl.1} parent=59 // loop_header_branch
          %125 = sbr.rel (%p123) target = $region67
        $region64: #{_grasp_dist_field_impl.1} parent=59 // loop_body
          %v129 = vld [vmem:[%s127] sm:$0xff]
          %130 = vst [vmem:[%s128] sm:$0xff] %v129
          %v131 = vld [vmem:[%s127 + $0x8] sm:$0xff]
          %132 = vst [vmem:[%s128 + $0x8] sm:$0xff] %v131
          %v133 = vld [vmem:[%s127 + $0x10] sm:$0xff]
          %134 = vst [vmem:[%s128 + $0x10] sm:$0xff] %v133
          %v135 = vld [vmem:[%s127 + $0x18] sm:$0xff]
          %136 = vst [vmem:[%s128 + $0x18] sm:$0xff] %v135
          %v137 = vld [vmem:[%s127 + $0x20] sm:$0xff]
          %138 = vst [vmem:[%s128 + $0x20] sm:$0xff] %v137
          %v139 = vld [vmem:[%s127 + $0x28] sm:$0xff]
          %140 = vst [vmem:[%s128 + $0x28] sm:$0xff] %v139
          %v141 = vld [vmem:[%s127 + $0x30] sm:$0xff]
          %142 = vst [vmem:[%s128 + $0x30] sm:$0xff] %v141
          %v143 = vld [vmem:[%s127 + $0x38] sm:$0xff]
          %144 = vst [vmem:[%s128 + $0x38] sm:$0xff] %v143
          %v145 = vld [vmem:[%s127 + $0x40] sm:$0xff]
          %146 = vst [vmem:[%s128 + $0x40] sm:$0xff] %v145
          %v147 = vld [vmem:[%s127 + $0x48] sm:$0xff]
          %148 = vst [vmem:[%s128 + $0x48] sm:$0xff] %v147
          %v149 = vld [vmem:[%s127 + $0x50] sm:$0xff]
          %150 = vst [vmem:[%s128 + $0x50] sm:$0xff] %v149
          %v151 = vld [vmem:[%s127 + $0x58] sm:$0xff]
          %152 = vst [vmem:[%s128 + $0x58] sm:$0xff] %v151
          %v153 = vld [vmem:[%s127 + $0x60] sm:$0xff]
          %154 = vst [vmem:[%s128 + $0x60] sm:$0xff] %v153
          %v155 = vld [vmem:[%s127 + $0x68] sm:$0xff]
          %156 = vst [vmem:[%s128 + $0x68] sm:$0xff] %v155
          %v157 = vld [vmem:[%s127 + $0x70] sm:$0xff]
          %158 = vst [vmem:[%s128 + $0x70] sm:$0xff] %v157
          %v159 = vld [vmem:[%s127 + $0x78] sm:$0xff]
          %160 = vst [vmem:[%s128 + $0x78] sm:$0xff] %v159
          %v161 = vld [vmem:[%s127 + $0x80] sm:$0xff]
          %162 = vst [vmem:[%s128 + $0x80] sm:$0xff] %v161
          %v163 = vld [vmem:[%s127 + $0x88] sm:$0xff]
          %164 = vst [vmem:[%s128 + $0x88] sm:$0xff] %v163
          %v165 = vld [vmem:[%s127 + $0x90] sm:$0xff]
          %166 = vst [vmem:[%s128 + $0x90] sm:$0xff] %v165
          %v167 = vld [vmem:[%s127 + $0x98] sm:$0xff]
          %168 = vst [vmem:[%s128 + $0x98] sm:$0xff] %v167
          %v169 = vld [vmem:[%s127 + $0xa0] sm:$0xff]
          %170 = vst [vmem:[%s128 + $0xa0] sm:$0xff] %v169
          %v171 = vld [vmem:[%s127 + $0xa8] sm:$0xff]
          %172 = vst [vmem:[%s128 + $0xa8] sm:$0xff] %v171
          %v173 = vld [vmem:[%s127 + $0xb0] sm:$0xff]
          %174 = vst [vmem:[%s128 + $0xb0] sm:$0xff] %v173
          %v175 = vld [vmem:[%s127 + $0xb8] sm:$0xff]
          %176 = vst [vmem:[%s128 + $0xb8] sm:$0xff] %v175
          %v177 = vld [vmem:[%s127 + $0xc0] sm:$0xff]
          %178 = vst [vmem:[%s128 + $0xc0] sm:$0xff] %v177
          %v179 = vld [vmem:[%s127 + $0xc8] sm:$0xff]
          %180 = vst [vmem:[%s128 + $0xc8] sm:$0xff] %v179
          %v181 = vld [vmem:[%s127 + $0xd0] sm:$0xff]
          %182 = vst [vmem:[%s128 + $0xd0] sm:$0xff] %v181
          %v183 = vld [vmem:[%s127 + $0xd8] sm:$0xff]
          %184 = vst [vmem:[%s128 + $0xd8] sm:$0xff] %v183
          %v185 = vld [vmem:[%s127 + $0xe0] sm:$0xff]
          %186 = vst [vmem:[%s128 + $0xe0] sm:$0xff] %v185
          %v187 = vld [vmem:[%s127 + $0xe8] sm:$0xff]
          %188 = vst [vmem:[%s128 + $0xe8] sm:$0xff] %v187
          %v189 = vld [vmem:[%s127 + $0xf0] sm:$0xff]
          %190 = vst [vmem:[%s128 + $0xf0] sm:$0xff] %v189
          %v191 = vld [vmem:[%s127 + $0xf8] sm:$0xff]
          %192 = vst [vmem:[%s128 + $0xf8] sm:$0xff] %v191
          %v193 = vld [vmem:[%s127 + $0x100] sm:$0xff]
          %194 = vst [vmem:[%s128 + $0x100] sm:$0xff] %v193
          %v195 = vld [vmem:[%s127 + $0x108] sm:$0xff]
          %196 = vst [vmem:[%s128 + $0x108] sm:$0xff] %v195
          %v197 = vld [vmem:[%s127 + $0x110] sm:$0xff]
          %198 = vst [vmem:[%s128 + $0x110] sm:$0xff] %v197
          %v199 = vld [vmem:[%s127 + $0x118] sm:$0xff]
          %200 = vst [vmem:[%s128 + $0x118] sm:$0xff] %v199
          %v201 = vld [vmem:[%s127 + $0x120] sm:$0xff]
          %202 = vst [vmem:[%s128 + $0x120] sm:$0xff] %v201
          %v203 = vld [vmem:[%s127 + $0x128] sm:$0xff]
          %204 = vst [vmem:[%s128 + $0x128] sm:$0xff] %v203
          %v205 = vld [vmem:[%s127 + $0x130] sm:$0xff]
          %206 = vst [vmem:[%s128 + $0x130] sm:$0xff] %v205
          %v207 = vld [vmem:[%s127 + $0x138] sm:$0xff]
          %208 = vst [vmem:[%s128 + $0x138] sm:$0xff] %v207
          %v209 = vld [vmem:[%s127 + $0x140] sm:$0xff]
          %210 = vst [vmem:[%s128 + $0x140] sm:$0xff] %v209
          %v211 = vld [vmem:[%s127 + $0x148] sm:$0xff]
          %212 = vst [vmem:[%s128 + $0x148] sm:$0xff] %v211
          %v213 = vld [vmem:[%s127 + $0x150] sm:$0xff]
          %214 = vst [vmem:[%s128 + $0x150] sm:$0xff] %v213
          %v215 = vld [vmem:[%s127 + $0x158] sm:$0xff]
          %216 = vst [vmem:[%s128 + $0x158] sm:$0xff] %v215
          %v217 = vld [vmem:[%s127 + $0x160] sm:$0xff]
          %218 = vst [vmem:[%s128 + $0x160] sm:$0xff] %v217
          %v219 = vld [vmem:[%s127 + $0x168] sm:$0xff]
          %220 = vst [vmem:[%s128 + $0x168] sm:$0xff] %v219
          %v221 = vld [vmem:[%s127 + $0x170] sm:$0xff]
          %222 = vst [vmem:[%s128 + $0x170] sm:$0xff] %v221
          %v223 = vld [vmem:[%s127 + $0x178] sm:$0xff]
          %224 = vst [vmem:[%s128 + $0x178] sm:$0xff] %v223
          %v225 = vld [vmem:[%s127 + $0x180] sm:$0xff]
          %226 = vst [vmem:[%s128 + $0x180] sm:$0xff] %v225
          %v227 = vld [vmem:[%s127 + $0x188] sm:$0xff]
          %228 = vst [vmem:[%s128 + $0x188] sm:$0xff] %v227
          %v229 = vld [vmem:[%s127 + $0x190] sm:$0xff]
          %230 = vst [vmem:[%s128 + $0x190] sm:$0xff] %v229
          %v231 = vld [vmem:[%s127 + $0x198] sm:$0xff]
          %232 = vst [vmem:[%s128 + $0x198] sm:$0xff] %v231
          %v233 = vld [vmem:[%s127 + $0x1a0] sm:$0xff]
          %234 = vst [vmem:[%s128 + $0x1a0] sm:$0xff] %v233
          %v235 = vld [vmem:[%s127 + $0x1a8] sm:$0xff]
          %236 = vst [vmem:[%s128 + $0x1a8] sm:$0xff] %v235
          %v237 = vld [vmem:[%s127 + $0x1b0] sm:$0xff]
          %238 = vst [vmem:[%s128 + $0x1b0] sm:$0xff] %v237
          %v239 = vld [vmem:[%s127 + $0x1b8] sm:$0xff]
          %240 = vst [vmem:[%s128 + $0x1b8] sm:$0xff] %v239
          %v241 = vld [vmem:[%s127 + $0x1c0] sm:$0xff]
          %242 = vst [vmem:[%s128 + $0x1c0] sm:$0xff] %v241
          %v243 = vld [vmem:[%s127 + $0x1c8] sm:$0xff]
          %244 = vst [vmem:[%s128 + $0x1c8] sm:$0xff] %v243
          %v245 = vld [vmem:[%s127 + $0x1d0] sm:$0xff]
          %246 = vst [vmem:[%s128 + $0x1d0] sm:$0xff] %v245
          %v247 = vld [vmem:[%s127 + $0x1d8] sm:$0xff]
          %248 = vst [vmem:[%s128 + $0x1d8] sm:$0xff] %v247
          %v249 = vld [vmem:[%s127 + $0x1e0] sm:$0xff]
          %250 = vst [vmem:[%s128 + $0x1e0] sm:$0xff] %v249
          %v251 = vld [vmem:[%s127 + $0x1e8] sm:$0xff]
          %252 = vst [vmem:[%s128 + $0x1e8] sm:$0xff] %v251
          %v253 = vld [vmem:[%s127 + $0x1f0] sm:$0xff]
          %254 = vst [vmem:[%s128 + $0x1f0] sm:$0xff] %v253
          %v255 = vld [vmem:[%s127 + $0x1f8] sm:$0xff]
          %256 = vst [vmem:[%s128 + $0x1f8] sm:$0xff] %v255
          %v257 = vld [vmem:[%s127 + $0x200] sm:$0xff]
          %258 = vst [vmem:[%s128 + $0x200] sm:$0xff] %v257
          %v259 = vld [vmem:[%s127 + $0x208] sm:$0xff]
          %260 = vst [vmem:[%s128 + $0x208] sm:$0xff] %v259
          %v261 = vld [vmem:[%s127 + $0x210] sm:$0xff]
          %262 = vst [vmem:[%s128 + $0x210] sm:$0xff] %v261
          %v263 = vld [vmem:[%s127 + $0x218] sm:$0xff]
          %264 = vst [vmem:[%s128 + $0x218] sm:$0xff] %v263
          %v265 = vld [vmem:[%s127 + $0x220] sm:$0xff]
          %266 = vst [vmem:[%s128 + $0x220] sm:$0xff] %v265
          %v267 = vld [vmem:[%s127 + $0x228] sm:$0xff]
          %268 = vst [vmem:[%s128 + $0x228] sm:$0xff] %v267
          %v269 = vld [vmem:[%s127 + $0x230] sm:$0xff]
          %270 = vst [vmem:[%s128 + $0x230] sm:$0xff] %v269
          %v271 = vld [vmem:[%s127 + $0x238] sm:$0xff]
          %272 = vst [vmem:[%s128 + $0x238] sm:$0xff] %v271
          %v273 = vld [vmem:[%s127 + $0x240] sm:$0xff]
          %274 = vst [vmem:[%s128 + $0x240] sm:$0xff] %v273
          %v275 = vld [vmem:[%s127 + $0x248] sm:$0xff]
          %276 = vst [vmem:[%s128 + $0x248] sm:$0xff] %v275
          %v277 = vld [vmem:[%s127 + $0x250] sm:$0xff]
          %278 = vst [vmem:[%s128 + $0x250] sm:$0xff] %v277
          %v279 = vld [vmem:[%s127 + $0x258] sm:$0xff]
          %280 = vst [vmem:[%s128 + $0x258] sm:$0xff] %v279
          %v281 = vld [vmem:[%s127 + $0x260] sm:$0xff]
          %282 = vst [vmem:[%s128 + $0x260] sm:$0xff] %v281
          %v283 = vld [vmem:[%s127 + $0x268] sm:$0xff]
          %284 = vst [vmem:[%s128 + $0x268] sm:$0xff] %v283
          %v285 = vld [vmem:[%s127 + $0x270] sm:$0xff]
          %286 = vst [vmem:[%s128 + $0x270] sm:$0xff] %v285
          %v287 = vld [vmem:[%s127 + $0x278] sm:$0xff]
          %288 = vst [vmem:[%s128 + $0x278] sm:$0xff] %v287
          %v289 = vld [vmem:[%s127 + $0x280] sm:$0xff]
          %290 = vst [vmem:[%s128 + $0x280] sm:$0xff] %v289
          %v291 = vld [vmem:[%s127 + $0x288] sm:$0xff]
          %292 = vst [vmem:[%s128 + $0x288] sm:$0xff] %v291
          %v293 = vld [vmem:[%s127 + $0x290] sm:$0xff]
          %294 = vst [vmem:[%s128 + $0x290] sm:$0xff] %v293
          %v295 = vld [vmem:[%s127 + $0x298] sm:$0xff]
          %296 = vst [vmem:[%s128 + $0x298] sm:$0xff] %v295
          %v297 = vld [vmem:[%s127 + $0x2a0] sm:$0xff]
          %298 = vst [vmem:[%s128 + $0x2a0] sm:$0xff] %v297
          %v299 = vld [vmem:[%s127 + $0x2a8] sm:$0xff]
          %300 = vst [vmem:[%s128 + $0x2a8] sm:$0xff] %v299
          %v301 = vld [vmem:[%s127 + $0x2b0] sm:$0xff]
          %302 = vst [vmem:[%s128 + $0x2b0] sm:$0xff] %v301
          %v303 = vld [vmem:[%s127 + $0x2b8] sm:$0xff]
          %304 = vst [vmem:[%s128 + $0x2b8] sm:$0xff] %v303
          %v305 = vld [vmem:[%s127 + $0x2c0] sm:$0xff]
          %306 = vst [vmem:[%s128 + $0x2c0] sm:$0xff] %v305
          %v307 = vld [vmem:[%s127 + $0x2c8] sm:$0xff]
          %308 = vst [vmem:[%s128 + $0x2c8] sm:$0xff] %v307
          %v309 = vld [vmem:[%s127 + $0x2d0] sm:$0xff]
          %310 = vst [vmem:[%s128 + $0x2d0] sm:$0xff] %v309
          %v311 = vld [vmem:[%s127 + $0x2d8] sm:$0xff]
          %312 = vst [vmem:[%s128 + $0x2d8] sm:$0xff] %v311
          %v313 = vld [vmem:[%s127 + $0x2e0] sm:$0xff]
          %314 = vst [vmem:[%s128 + $0x2e0] sm:$0xff] %v313
          %v315 = vld [vmem:[%s127 + $0x2e8] sm:$0xff]
          %316 = vst [vmem:[%s128 + $0x2e8] sm:$0xff] %v315
          %v317 = vld [vmem:[%s127 + $0x2f0] sm:$0xff]
          %318 = vst [vmem:[%s128 + $0x2f0] sm:$0xff] %v317
          %v319 = vld [vmem:[%s127 + $0x2f8] sm:$0xff]
          %320 = vst [vmem:[%s128 + $0x2f8] sm:$0xff] %v319
          %v321 = vld [vmem:[%s127 + $0x300] sm:$0xff]
          %322 = vst [vmem:[%s128 + $0x300] sm:$0xff] %v321
          %v323 = vld [vmem:[%s127 + $0x308] sm:$0xff]
          %324 = vst [vmem:[%s128 + $0x308] sm:$0xff] %v323
          %v325 = vld [vmem:[%s127 + $0x310] sm:$0xff]
          %326 = vst [vmem:[%s128 + $0x310] sm:$0xff] %v325
          %v327 = vld [vmem:[%s127 + $0x318] sm:$0xff]
          %328 = vst [vmem:[%s128 + $0x318] sm:$0xff] %v327
          %v329 = vld [vmem:[%s127 + $0x320] sm:$0xff]
          %330 = vst [vmem:[%s128 + $0x320] sm:$0xff] %v329
          %v331 = vld [vmem:[%s127 + $0x328] sm:$0xff]
          %332 = vst [vmem:[%s128 + $0x328] sm:$0xff] %v331
          %v333 = vld [vmem:[%s127 + $0x330] sm:$0xff]
          %334 = vst [vmem:[%s128 + $0x330] sm:$0xff] %v333
          %v335 = vld [vmem:[%s127 + $0x338] sm:$0xff]
          %336 = vst [vmem:[%s128 + $0x338] sm:$0xff] %v335
          %v337 = vld [vmem:[%s127 + $0x340] sm:$0xff]
          %338 = vst [vmem:[%s128 + $0x340] sm:$0xff] %v337
          %v339 = vld [vmem:[%s127 + $0x348] sm:$0xff]
          %340 = vst [vmem:[%s128 + $0x348] sm:$0xff] %v339
          %v341 = vld [vmem:[%s127 + $0x350] sm:$0xff]
          %342 = vst [vmem:[%s128 + $0x350] sm:$0xff] %v341
          %v343 = vld [vmem:[%s127 + $0x358] sm:$0xff]
          %344 = vst [vmem:[%s128 + $0x358] sm:$0xff] %v343
          %v345 = vld [vmem:[%s127 + $0x360] sm:$0xff]
          %346 = vst [vmem:[%s128 + $0x360] sm:$0xff] %v345
          %v347 = vld [vmem:[%s127 + $0x368] sm:$0xff]
          %348 = vst [vmem:[%s128 + $0x368] sm:$0xff] %v347
          %v349 = vld [vmem:[%s127 + $0x370] sm:$0xff]
          %350 = vst [vmem:[%s128 + $0x370] sm:$0xff] %v349
          %v351 = vld [vmem:[%s127 + $0x378] sm:$0xff]
          %352 = vst [vmem:[%s128 + $0x378] sm:$0xff] %v351
          %v353 = vld [vmem:[%s127 + $0x380] sm:$0xff]
          %354 = vst [vmem:[%s128 + $0x380] sm:$0xff] %v353
          %v355 = vld [vmem:[%s127 + $0x388] sm:$0xff]
          %356 = vst [vmem:[%s128 + $0x388] sm:$0xff] %v355
          %v357 = vld [vmem:[%s127 + $0x390] sm:$0xff]
          %358 = vst [vmem:[%s128 + $0x390] sm:$0xff] %v357
          %v359 = vld [vmem:[%s127 + $0x398] sm:$0xff]
          %360 = vst [vmem:[%s128 + $0x398] sm:$0xff] %v359
          %v361 = vld [vmem:[%s127 + $0x3a0] sm:$0xff]
          %362 = vst [vmem:[%s128 + $0x3a0] sm:$0xff] %v361
          %v363 = vld [vmem:[%s127 + $0x3a8] sm:$0xff]
          %364 = vst [vmem:[%s128 + $0x3a8] sm:$0xff] %v363
          %v365 = vld [vmem:[%s127 + $0x3b0] sm:$0xff]
          %366 = vst [vmem:[%s128 + $0x3b0] sm:$0xff] %v365
          %v367 = vld [vmem:[%s127 + $0x3b8] sm:$0xff]
          %368 = vst [vmem:[%s128 + $0x3b8] sm:$0xff] %v367
          %v369 = vld [vmem:[%s127 + $0x3c0] sm:$0xff]
          %370 = vst [vmem:[%s128 + $0x3c0] sm:$0xff] %v369
          %v371 = vld [vmem:[%s127 + $0x3c8] sm:$0xff]
          %372 = vst [vmem:[%s128 + $0x3c8] sm:$0xff] %v371
          %v373 = vld [vmem:[%s127 + $0x3d0] sm:$0xff]
          %374 = vst [vmem:[%s128 + $0x3d0] sm:$0xff] %v373
          %v375 = vld [vmem:[%s127 + $0x3d8] sm:$0xff]
          %376 = vst [vmem:[%s128 + $0x3d8] sm:$0xff] %v375
          %v377 = vld [vmem:[%s127 + $0x3e0] sm:$0xff]
          %378 = vst [vmem:[%s128 + $0x3e0] sm:$0xff] %v377
          %v379 = vld [vmem:[%s127 + $0x3e8] sm:$0xff]
          %380 = vst [vmem:[%s128 + $0x3e8] sm:$0xff] %v379
          %v381 = vld [vmem:[%s127 + $0x3f0] sm:$0xff]
          %382 = vst [vmem:[%s128 + $0x3f0] sm:$0xff] %v381
          %v383 = vld [vmem:[%s127 + $0x3f8] sm:$0xff]
          %384 = vst [vmem:[%s128 + $0x3f8] sm:$0xff] %v383
          %v385 = vld [vmem:[%s127 + $0x400] sm:$0xff]
          %386 = vst [vmem:[%s128 + $0x400] sm:$0xff] %v385
        $region65: #{_grasp_dist_field_impl.1} parent=59 // loop_footer
          %s126 = sadd.s32 1, %s122
        $region66: #{_grasp_dist_field_impl.1} parent=59 // loop_footer_branch
          %121 = sbr.rel target = $region62
        $region67: #{_grasp_dist_field_impl.1} parent=59 // loop_exit
          _
      $region60: #{_grasp_dist_field_impl.1} parent=44 // pred_fallthru
        _
      %p387 = pneg %p117
      // Predicated region
      $region68: #{_grasp_dist_field_impl.1} parent=44 // pred_check
        _
      $region69: #{_grasp_dist_field_impl.1} parent=44 // pred_check_branch
        %389 = sbr.rel (%p117) target = $region71
      $region70: #{_grasp_dist_field_impl.1} parent=44 // pred_region
        %s390 = sand.u32 1032, 7
      $region71: #{_grasp_dist_field_impl.1} parent=44 // pred_fallthru
        _
    $region45: #{_grasp_dist_field_impl.1} parent=1 // pred_fallthru
      _
    // Predicated region
    $region46: #{_grasp_dist_field_impl.1} parent=1 // pred_check
      %p102 = pneg %p98
    $region47: #{_grasp_dist_field_impl.1} parent=1 // pred_check_branch
      %104 = sbr.rel (%p102) target = $region49
    $region48: #{_grasp_dist_field_impl.1} parent=1 // pred_region
      %s105 = sshllo.u32 0, 1032
      loop: start=0, step=1, limit=1
      $region50: #{_grasp_dist_field_impl.1} parent=48 // loop_pre_header
        _
      $region51: #{_grasp_dist_field_impl.1} parent=48 // loop_header
        %s107 = sphi 0, %s111
        %p108 = scmp.ge.s32.totalorder %s107, 1
        %s112 = sphi %s9, %s9
        %s113 = sphi [#allocation3], [#allocation3]
      $region52: #{_grasp_dist_field_impl.1} parent=48 // loop_header_branch
        %110 = sbr.rel (%p108) target = $region56
      $region53: #{_grasp_dist_field_impl.1} parent=48 // loop_body
        %v114 = vld [vmem:[%s112] sm:%s105]
        %115 = vst [vmem:[%s113] sm:%s105] %v114
      $region54: #{_grasp_dist_field_impl.1} parent=48 // loop_footer
        %s111 = sadd.s32 1, %s107
      $region55: #{_grasp_dist_field_impl.1} parent=48 // loop_footer_branch
        %106 = sbr.rel target = $region51
      $region56: #{_grasp_dist_field_impl.1} parent=48 // loop_exit
        _
    $region49: #{_grasp_dist_field_impl.1} parent=1 // pred_fallthru
      _
    // Predicated region
    $region72: #{_grasp_dist_field_impl.1} parent=1 // pred_check
      _
    $region73: #{_grasp_dist_field_impl.1} parent=1 // pred_check_branch
      %393 = sbr.rel (0) target = $region75
    $region74: #{_grasp_dist_field_impl.1} parent=1 // pred_region
      %394 = vsyncadd %s96, 16512
    $region75: #{_grasp_dist_field_impl.1} parent=1 // pred_fallthru
      _
    %s395 = scalar_lea.sflag [#allocation5], 2
    %p397 = scmp.lt.u32.totalorder 4, 8
    %p398 = pneg %p397
    // Predicated region
    $region76: #{_grasp_dist_field_impl.1} parent=1 // pred_check
      _
    $region77: #{_grasp_dist_field_impl.1} parent=1 // pred_check_branch
      %400 = sbr.rel (%p397) target = $region79
    $region78: #{_grasp_dist_field_impl.1} parent=1 // pred_region
      %s1245 = sand.u32 4, 7
      %p1246 = scmp.eq.s32.totalorder %s1245, 0
      %p1247 = pneg %p1246
      // Predicated region
      $region91: #{_grasp_dist_field_impl.1} parent=78 // pred_check
        _
      $region92: #{_grasp_dist_field_impl.1} parent=78 // pred_check_branch
        %1249 = sbr.rel (%p1246) target = $region94
      $region93: #{_grasp_dist_field_impl.1} parent=78 // pred_region
        %s1250 = sand.u32 4, 7
        %s1251 = ssub.s32 4, %s1250
        %s1252 = scalar_lea.vmem %s10, %s1251
        %s1253 = ssub.s32 4, %s1250
        %s1254 = scalar_lea.vmem [#allocation4], %s1253
        loop: start=0, step=1, limit=1
        $region95: #{_grasp_dist_field_impl.1} parent=93 // loop_pre_header
          _
        $region96: #{_grasp_dist_field_impl.1} parent=93 // loop_header
          %s1256 = sphi 0, %s1260
          %p1257 = scmp.ge.s32.totalorder %s1256, 1
          %s1261 = sphi %s10, %s10
          %s1262 = sphi [#allocation4], [#allocation4]
        $region97: #{_grasp_dist_field_impl.1} parent=93 // loop_header_branch
          %1259 = sbr.rel (%p1257) target = $region101
        $region98: #{_grasp_dist_field_impl.1} parent=93 // loop_body
          _
        $region99: #{_grasp_dist_field_impl.1} parent=93 // loop_footer
          %s1260 = sadd.s32 1, %s1256
        $region100: #{_grasp_dist_field_impl.1} parent=93 // loop_footer_branch
          %1255 = sbr.rel target = $region96
        $region101: #{_grasp_dist_field_impl.1} parent=93 // loop_exit
          _
        %s1263 = sshllo.u32 0, %s1250
        loop: start=0, step=1, limit=1
        $region102: #{_grasp_dist_field_impl.1} parent=93 // loop_pre_header
          _
        $region103: #{_grasp_dist_field_impl.1} parent=93 // loop_header
          %s1265 = sphi 0, %s1269
          %p1266 = scmp.ge.s32.totalorder %s1265, 1
          %s1270 = sphi %s1252, %s1252
          %s1271 = sphi %s1254, %s1254
        $region104: #{_grasp_dist_field_impl.1} parent=93 // loop_header_branch
          %1268 = sbr.rel (%p1266) target = $region108
        $region105: #{_grasp_dist_field_impl.1} parent=93 // loop_body
          %v1272 = vld [vmem:[%s1270] sm:%s1263]
          %1273 = vst [vmem:[%s1271] sm:%s1263] %v1272
          %v1274 = vld [vmem:[%s1270 + $0x34] sm:%s1263]
          %1275 = vst [vmem:[%s1271 + $0x4] sm:%s1263] %v1274
          %v1276 = vld [vmem:[%s1270 + $0x4] sm:%s1263]
          %1277 = vst [vmem:[%s1271 + $0x8] sm:%s1263] %v1276
          %v1278 = vld [vmem:[%s1270 + $0x38] sm:%s1263]
          %1279 = vst [vmem:[%s1271 + $0xc] sm:%s1263] %v1278
          %v1280 = vld [vmem:[%s1270 + $0x8] sm:%s1263]
          %1281 = vst [vmem:[%s1271 + $0x10] sm:%s1263] %v1280
          %v1282 = vld [vmem:[%s1270 + $0x3c] sm:%s1263]
          %1283 = vst [vmem:[%s1271 + $0x14] sm:%s1263] %v1282
          %v1284 = vld [vmem:[%s1270 + $0xc] sm:%s1263]
          %1285 = vst [vmem:[%s1271 + $0x18] sm:%s1263] %v1284
          %v1286 = vld [vmem:[%s1270 + $0x40] sm:%s1263]
          %1287 = vst [vmem:[%s1271 + $0x1c] sm:%s1263] %v1286
          %v1288 = vld [vmem:[%s1270 + $0x10] sm:%s1263]
          %1289 = vst [vmem:[%s1271 + $0x20] sm:%s1263] %v1288
          %v1290 = vld [vmem:[%s1270 + $0x44] sm:%s1263]
          %1291 = vst [vmem:[%s1271 + $0x24] sm:%s1263] %v1290
          %v1292 = vld [vmem:[%s1270 + $0x14] sm:%s1263]
          %1293 = vst [vmem:[%s1271 + $0x28] sm:%s1263] %v1292
          %v1294 = vld [vmem:[%s1270 + $0x48] sm:%s1263]
          %1295 = vst [vmem:[%s1271 + $0x2c] sm:%s1263] %v1294
          %v1296 = vld [vmem:[%s1270 + $0x18] sm:%s1263]
          %1297 = vst [vmem:[%s1271 + $0x30] sm:%s1263] %v1296
          %v1298 = vld [vmem:[%s1270 + $0x4c] sm:%s1263]
          %1299 = vst [vmem:[%s1271 + $0x34] sm:%s1263] %v1298
          %v1300 = vld [vmem:[%s1270 + $0x1c] sm:%s1263]
          %1301 = vst [vmem:[%s1271 + $0x38] sm:%s1263] %v1300
          %v1302 = vld [vmem:[%s1270 + $0x50] sm:%s1263]
          %1303 = vst [vmem:[%s1271 + $0x3c] sm:%s1263] %v1302
          %v1304 = vld [vmem:[%s1270 + $0x20] sm:%s1263]
          %1305 = vst [vmem:[%s1271 + $0x40] sm:%s1263] %v1304
          %v1306 = vld [vmem:[%s1270 + $0x54] sm:%s1263]
          %1307 = vst [vmem:[%s1271 + $0x44] sm:%s1263] %v1306
          %v1308 = vld [vmem:[%s1270 + $0x24] sm:%s1263]
          %1309 = vst [vmem:[%s1271 + $0x48] sm:%s1263] %v1308
          %v1310 = vld [vmem:[%s1270 + $0x58] sm:%s1263]
          %1311 = vst [vmem:[%s1271 + $0x4c] sm:%s1263] %v1310
          %v1312 = vld [vmem:[%s1270 + $0x28] sm:%s1263]
          %1313 = vst [vmem:[%s1271 + $0x50] sm:%s1263] %v1312
          %v1314 = vld [vmem:[%s1270 + $0x5c] sm:%s1263]
          %1315 = vst [vmem:[%s1271 + $0x54] sm:%s1263] %v1314
          %v1316 = vld [vmem:[%s1270 + $0x2c] sm:%s1263]
          %1317 = vst [vmem:[%s1271 + $0x58] sm:%s1263] %v1316
          %v1318 = vld [vmem:[%s1270 + $0x60] sm:%s1263]
          %1319 = vst [vmem:[%s1271 + $0x5c] sm:%s1263] %v1318
          %v1320 = vld [vmem:[%s1270 + $0x30] sm:%s1263]
          %1321 = vst [vmem:[%s1271 + $0x60] sm:%s1263] %v1320
          %v1322 = vld [vmem:[%s1270 + $0x64] sm:%s1263]
          %1323 = vst [vmem:[%s1271 + $0x64] sm:%s1263] %v1322
          %v1324 = vld [vmem:[%s1270 + $0x68] sm:%s1263]
          %1325 = vst [vmem:[%s1271 + $0x68] sm:%s1263] %v1324
          %v1326 = vld [vmem:[%s1270 + $0x9c] sm:%s1263]
          %1327 = vst [vmem:[%s1271 + $0x6c] sm:%s1263] %v1326
          %v1328 = vld [vmem:[%s1270 + $0x6c] sm:%s1263]
          %1329 = vst [vmem:[%s1271 + $0x70] sm:%s1263] %v1328
          %v1330 = vld [vmem:[%s1270 + $0xa0] sm:%s1263]
          %1331 = vst [vmem:[%s1271 + $0x74] sm:%s1263] %v1330
          %v1332 = vld [vmem:[%s1270 + $0x70] sm:%s1263]
          %1333 = vst [vmem:[%s1271 + $0x78] sm:%s1263] %v1332
          %v1334 = vld [vmem:[%s1270 + $0xa4] sm:%s1263]
          %1335 = vst [vmem:[%s1271 + $0x7c] sm:%s1263] %v1334
          %v1336 = vld [vmem:[%s1270 + $0x74] sm:%s1263]
          %1337 = vst [vmem:[%s1271 + $0x80] sm:%s1263] %v1336
          %v1338 = vld [vmem:[%s1270 + $0xa8] sm:%s1263]
          %1339 = vst [vmem:[%s1271 + $0x84] sm:%s1263] %v1338
          %v1340 = vld [vmem:[%s1270 + $0x78] sm:%s1263]
          %1341 = vst [vmem:[%s1271 + $0x88] sm:%s1263] %v1340
          %v1342 = vld [vmem:[%s1270 + $0xac] sm:%s1263]
          %1343 = vst [vmem:[%s1271 + $0x8c] sm:%s1263] %v1342
          %v1344 = vld [vmem:[%s1270 + $0x7c] sm:%s1263]
          %1345 = vst [vmem:[%s1271 + $0x90] sm:%s1263] %v1344
          %v1346 = vld [vmem:[%s1270 + $0xb0] sm:%s1263]
          %1347 = vst [vmem:[%s1271 + $0x94] sm:%s1263] %v1346
          %v1348 = vld [vmem:[%s1270 + $0x80] sm:%s1263]
          %1349 = vst [vmem:[%s1271 + $0x98] sm:%s1263] %v1348
          %v1350 = vld [vmem:[%s1270 + $0xb4] sm:%s1263]
          %1351 = vst [vmem:[%s1271 + $0x9c] sm:%s1263] %v1350
          %v1352 = vld [vmem:[%s1270 + $0x84] sm:%s1263]
          %1353 = vst [vmem:[%s1271 + $0xa0] sm:%s1263] %v1352
          %v1354 = vld [vmem:[%s1270 + $0xb8] sm:%s1263]
          %1355 = vst [vmem:[%s1271 + $0xa4] sm:%s1263] %v1354
          %v1356 = vld [vmem:[%s1270 + $0x88] sm:%s1263]
          %1357 = vst [vmem:[%s1271 + $0xa8] sm:%s1263] %v1356
          %v1358 = vld [vmem:[%s1270 + $0xbc] sm:%s1263]
          %1359 = vst [vmem:[%s1271 + $0xac] sm:%s1263] %v1358
          %v1360 = vld [vmem:[%s1270 + $0x8c] sm:%s1263]
          %1361 = vst [vmem:[%s1271 + $0xb0] sm:%s1263] %v1360
          %v1362 = vld [vmem:[%s1270 + $0xc0] sm:%s1263]
          %1363 = vst [vmem:[%s1271 + $0xb4] sm:%s1263] %v1362
          %v1364 = vld [vmem:[%s1270 + $0x90] sm:%s1263]
          %1365 = vst [vmem:[%s1271 + $0xb8] sm:%s1263] %v1364
          %v1366 = vld [vmem:[%s1270 + $0xc4] sm:%s1263]
          %1367 = vst [vmem:[%s1271 + $0xbc] sm:%s1263] %v1366
          %v1368 = vld [vmem:[%s1270 + $0x94] sm:%s1263]
          %1369 = vst [vmem:[%s1271 + $0xc0] sm:%s1263] %v1368
          %v1370 = vld [vmem:[%s1270 + $0xc8] sm:%s1263]
          %1371 = vst [vmem:[%s1271 + $0xc4] sm:%s1263] %v1370
          %v1372 = vld [vmem:[%s1270 + $0x98] sm:%s1263]
          %1373 = vst [vmem:[%s1271 + $0xc8] sm:%s1263] %v1372
          %v1374 = vld [vmem:[%s1270 + $0xcc] sm:%s1263]
          %1375 = vst [vmem:[%s1271 + $0xcc] sm:%s1263] %v1374
          %v1376 = vld [vmem:[%s1270 + $0xd0] sm:%s1263]
          %1377 = vst [vmem:[%s1271 + $0xd0] sm:%s1263] %v1376
          %v1378 = vld [vmem:[%s1270 + $0x104] sm:%s1263]
          %1379 = vst [vmem:[%s1271 + $0xd4] sm:%s1263] %v1378
          %v1380 = vld [vmem:[%s1270 + $0xd4] sm:%s1263]
          %1381 = vst [vmem:[%s1271 + $0xd8] sm:%s1263] %v1380
          %v1382 = vld [vmem:[%s1270 + $0x108] sm:%s1263]
          %1383 = vst [vmem:[%s1271 + $0xdc] sm:%s1263] %v1382
          %v1384 = vld [vmem:[%s1270 + $0xd8] sm:%s1263]
          %1385 = vst [vmem:[%s1271 + $0xe0] sm:%s1263] %v1384
          %v1386 = vld [vmem:[%s1270 + $0x10c] sm:%s1263]
          %1387 = vst [vmem:[%s1271 + $0xe4] sm:%s1263] %v1386
          %v1388 = vld [vmem:[%s1270 + $0xdc] sm:%s1263]
          %1389 = vst [vmem:[%s1271 + $0xe8] sm:%s1263] %v1388
          %v1390 = vld [vmem:[%s1270 + $0x110] sm:%s1263]
          %1391 = vst [vmem:[%s1271 + $0xec] sm:%s1263] %v1390
          %v1392 = vld [vmem:[%s1270 + $0xe0] sm:%s1263]
          %1393 = vst [vmem:[%s1271 + $0xf0] sm:%s1263] %v1392
          %v1394 = vld [vmem:[%s1270 + $0x114] sm:%s1263]
          %1395 = vst [vmem:[%s1271 + $0xf4] sm:%s1263] %v1394
          %v1396 = vld [vmem:[%s1270 + $0xe4] sm:%s1263]
          %1397 = vst [vmem:[%s1271 + $0xf8] sm:%s1263] %v1396
          %v1398 = vld [vmem:[%s1270 + $0x118] sm:%s1263]
          %1399 = vst [vmem:[%s1271 + $0xfc] sm:%s1263] %v1398
          %v1400 = vld [vmem:[%s1270 + $0xe8] sm:%s1263]
          %1401 = vst [vmem:[%s1271 + $0x100] sm:%s1263] %v1400
          %v1402 = vld [vmem:[%s1270 + $0x11c] sm:%s1263]
          %1403 = vst [vmem:[%s1271 + $0x104] sm:%s1263] %v1402
          %v1404 = vld [vmem:[%s1270 + $0xec] sm:%s1263]
          %1405 = vst [vmem:[%s1271 + $0x108] sm:%s1263] %v1404
          %v1406 = vld [vmem:[%s1270 + $0x120] sm:%s1263]
          %1407 = vst [vmem:[%s1271 + $0x10c] sm:%s1263] %v1406
          %v1408 = vld [vmem:[%s1270 + $0xf0] sm:%s1263]
          %1409 = vst [vmem:[%s1271 + $0x110] sm:%s1263] %v1408
          %v1410 = vld [vmem:[%s1270 + $0x124] sm:%s1263]
          %1411 = vst [vmem:[%s1271 + $0x114] sm:%s1263] %v1410
          %v1412 = vld [vmem:[%s1270 + $0xf4] sm:%s1263]
          %1413 = vst [vmem:[%s1271 + $0x118] sm:%s1263] %v1412
          %v1414 = vld [vmem:[%s1270 + $0x128] sm:%s1263]
          %1415 = vst [vmem:[%s1271 + $0x11c] sm:%s1263] %v1414
          %v1416 = vld [vmem:[%s1270 + $0xf8] sm:%s1263]
          %1417 = vst [vmem:[%s1271 + $0x120] sm:%s1263] %v1416
          %v1418 = vld [vmem:[%s1270 + $0x12c] sm:%s1263]
          %1419 = vst [vmem:[%s1271 + $0x124] sm:%s1263] %v1418
          %v1420 = vld [vmem:[%s1270 + $0xfc] sm:%s1263]
          %1421 = vst [vmem:[%s1271 + $0x128] sm:%s1263] %v1420
          %v1422 = vld [vmem:[%s1270 + $0x130] sm:%s1263]
          %1423 = vst [vmem:[%s1271 + $0x12c] sm:%s1263] %v1422
          %v1424 = vld [vmem:[%s1270 + $0x100] sm:%s1263]
          %1425 = vst [vmem:[%s1271 + $0x130] sm:%s1263] %v1424
          %v1426 = vld [vmem:[%s1270 + $0x134] sm:%s1263]
          %1427 = vst [vmem:[%s1271 + $0x134] sm:%s1263] %v1426
          %v1428 = vld [vmem:[%s1270 + $0x138] sm:%s1263]
          %1429 = vst [vmem:[%s1271 + $0x138] sm:%s1263] %v1428
          %v1430 = vld [vmem:[%s1270 + $0x16c] sm:%s1263]
          %1431 = vst [vmem:[%s1271 + $0x13c] sm:%s1263] %v1430
          %v1432 = vld [vmem:[%s1270 + $0x13c] sm:%s1263]
          %1433 = vst [vmem:[%s1271 + $0x140] sm:%s1263] %v1432
          %v1434 = vld [vmem:[%s1270 + $0x170] sm:%s1263]
          %1435 = vst [vmem:[%s1271 + $0x144] sm:%s1263] %v1434
          %v1436 = vld [vmem:[%s1270 + $0x140] sm:%s1263]
          %1437 = vst [vmem:[%s1271 + $0x148] sm:%s1263] %v1436
          %v1438 = vld [vmem:[%s1270 + $0x174] sm:%s1263]
          %1439 = vst [vmem:[%s1271 + $0x14c] sm:%s1263] %v1438
          %v1440 = vld [vmem:[%s1270 + $0x144] sm:%s1263]
          %1441 = vst [vmem:[%s1271 + $0x150] sm:%s1263] %v1440
          %v1442 = vld [vmem:[%s1270 + $0x178] sm:%s1263]
          %1443 = vst [vmem:[%s1271 + $0x154] sm:%s1263] %v1442
          %v1444 = vld [vmem:[%s1270 + $0x148] sm:%s1263]
          %1445 = vst [vmem:[%s1271 + $0x158] sm:%s1263] %v1444
          %v1446 = vld [vmem:[%s1270 + $0x17c] sm:%s1263]
          %1447 = vst [vmem:[%s1271 + $0x15c] sm:%s1263] %v1446
          %v1448 = vld [vmem:[%s1270 + $0x14c] sm:%s1263]
          %1449 = vst [vmem:[%s1271 + $0x160] sm:%s1263] %v1448
          %v1450 = vld [vmem:[%s1270 + $0x180] sm:%s1263]
          %1451 = vst [vmem:[%s1271 + $0x164] sm:%s1263] %v1450
          %v1452 = vld [vmem:[%s1270 + $0x150] sm:%s1263]
          %1453 = vst [vmem:[%s1271 + $0x168] sm:%s1263] %v1452
          %v1454 = vld [vmem:[%s1270 + $0x184] sm:%s1263]
          %1455 = vst [vmem:[%s1271 + $0x16c] sm:%s1263] %v1454
          %v1456 = vld [vmem:[%s1270 + $0x154] sm:%s1263]
          %1457 = vst [vmem:[%s1271 + $0x170] sm:%s1263] %v1456
          %v1458 = vld [vmem:[%s1270 + $0x188] sm:%s1263]
          %1459 = vst [vmem:[%s1271 + $0x174] sm:%s1263] %v1458
          %v1460 = vld [vmem:[%s1270 + $0x158] sm:%s1263]
          %1461 = vst [vmem:[%s1271 + $0x178] sm:%s1263] %v1460
          %v1462 = vld [vmem:[%s1270 + $0x18c] sm:%s1263]
          %1463 = vst [vmem:[%s1271 + $0x17c] sm:%s1263] %v1462
          %v1464 = vld [vmem:[%s1270 + $0x15c] sm:%s1263]
          %1465 = vst [vmem:[%s1271 + $0x180] sm:%s1263] %v1464
          %v1466 = vld [vmem:[%s1270 + $0x190] sm:%s1263]
          %1467 = vst [vmem:[%s1271 + $0x184] sm:%s1263] %v1466
          %v1468 = vld [vmem:[%s1270 + $0x160] sm:%s1263]
          %1469 = vst [vmem:[%s1271 + $0x188] sm:%s1263] %v1468
          %v1470 = vld [vmem:[%s1270 + $0x194] sm:%s1263]
          %1471 = vst [vmem:[%s1271 + $0x18c] sm:%s1263] %v1470
          %v1472 = vld [vmem:[%s1270 + $0x164] sm:%s1263]
          %1473 = vst [vmem:[%s1271 + $0x190] sm:%s1263] %v1472
          %v1474 = vld [vmem:[%s1270 + $0x198] sm:%s1263]
          %1475 = vst [vmem:[%s1271 + $0x194] sm:%s1263] %v1474
          %v1476 = vld [vmem:[%s1270 + $0x168] sm:%s1263]
          %1477 = vst [vmem:[%s1271 + $0x198] sm:%s1263] %v1476
          %v1478 = vld [vmem:[%s1270 + $0x19c] sm:%s1263]
          %1479 = vst [vmem:[%s1271 + $0x19c] sm:%s1263] %v1478
          %v1480 = vld [vmem:[%s1270 + $0x1a0] sm:%s1263]
          %1481 = vst [vmem:[%s1271 + $0x1a0] sm:%s1263] %v1480
          %v1482 = vld [vmem:[%s1270 + $0x1d4] sm:%s1263]
          %1483 = vst [vmem:[%s1271 + $0x1a4] sm:%s1263] %v1482
          %v1484 = vld [vmem:[%s1270 + $0x1a4] sm:%s1263]
          %1485 = vst [vmem:[%s1271 + $0x1a8] sm:%s1263] %v1484
          %v1486 = vld [vmem:[%s1270 + $0x1d8] sm:%s1263]
          %1487 = vst [vmem:[%s1271 + $0x1ac] sm:%s1263] %v1486
          %v1488 = vld [vmem:[%s1270 + $0x1a8] sm:%s1263]
          %1489 = vst [vmem:[%s1271 + $0x1b0] sm:%s1263] %v1488
          %v1490 = vld [vmem:[%s1270 + $0x1dc] sm:%s1263]
          %1491 = vst [vmem:[%s1271 + $0x1b4] sm:%s1263] %v1490
          %v1492 = vld [vmem:[%s1270 + $0x1ac] sm:%s1263]
          %1493 = vst [vmem:[%s1271 + $0x1b8] sm:%s1263] %v1492
          %v1494 = vld [vmem:[%s1270 + $0x1e0] sm:%s1263]
          %1495 = vst [vmem:[%s1271 + $0x1bc] sm:%s1263] %v1494
          %v1496 = vld [vmem:[%s1270 + $0x1b0] sm:%s1263]
          %1497 = vst [vmem:[%s1271 + $0x1c0] sm:%s1263] %v1496
          %v1498 = vld [vmem:[%s1270 + $0x1e4] sm:%s1263]
          %1499 = vst [vmem:[%s1271 + $0x1c4] sm:%s1263] %v1498
          %v1500 = vld [vmem:[%s1270 + $0x1b4] sm:%s1263]
          %1501 = vst [vmem:[%s1271 + $0x1c8] sm:%s1263] %v1500
          %v1502 = vld [vmem:[%s1270 + $0x1e8] sm:%s1263]
          %1503 = vst [vmem:[%s1271 + $0x1cc] sm:%s1263] %v1502
          %v1504 = vld [vmem:[%s1270 + $0x1b8] sm:%s1263]
          %1505 = vst [vmem:[%s1271 + $0x1d0] sm:%s1263] %v1504
          %v1506 = vld [vmem:[%s1270 + $0x1ec] sm:%s1263]
          %1507 = vst [vmem:[%s1271 + $0x1d4] sm:%s1263] %v1506
          %v1508 = vld [vmem:[%s1270 + $0x1bc] sm:%s1263]
          %1509 = vst [vmem:[%s1271 + $0x1d8] sm:%s1263] %v1508
          %v1510 = vld [vmem:[%s1270 + $0x1f0] sm:%s1263]
          %1511 = vst [vmem:[%s1271 + $0x1dc] sm:%s1263] %v1510
          %v1512 = vld [vmem:[%s1270 + $0x1c0] sm:%s1263]
          %1513 = vst [vmem:[%s1271 + $0x1e0] sm:%s1263] %v1512
          %v1514 = vld [vmem:[%s1270 + $0x1f4] sm:%s1263]
          %1515 = vst [vmem:[%s1271 + $0x1e4] sm:%s1263] %v1514
          %v1516 = vld [vmem:[%s1270 + $0x1c4] sm:%s1263]
          %1517 = vst [vmem:[%s1271 + $0x1e8] sm:%s1263] %v1516
          %v1518 = vld [vmem:[%s1270 + $0x1f8] sm:%s1263]
          %1519 = vst [vmem:[%s1271 + $0x1ec] sm:%s1263] %v1518
          %v1520 = vld [vmem:[%s1270 + $0x1c8] sm:%s1263]
          %1521 = vst [vmem:[%s1271 + $0x1f0] sm:%s1263] %v1520
          %v1522 = vld [vmem:[%s1270 + $0x1fc] sm:%s1263]
          %1523 = vst [vmem:[%s1271 + $0x1f4] sm:%s1263] %v1522
          %v1524 = vld [vmem:[%s1270 + $0x1cc] sm:%s1263]
          %1525 = vst [vmem:[%s1271 + $0x1f8] sm:%s1263] %v1524
          %v1526 = vld [vmem:[%s1270 + $0x200] sm:%s1263]
          %1527 = vst [vmem:[%s1271 + $0x1fc] sm:%s1263] %v1526
          %v1528 = vld [vmem:[%s1270 + $0x1d0] sm:%s1263]
          %1529 = vst [vmem:[%s1271 + $0x200] sm:%s1263] %v1528
          %v1530 = vld [vmem:[%s1270 + $0x204] sm:%s1263]
          %1531 = vst [vmem:[%s1271 + $0x204] sm:%s1263] %v1530
          %v1532 = vld [vmem:[%s1270 + $0x208] sm:%s1263]
          %1533 = vst [vmem:[%s1271 + $0x208] sm:%s1263] %v1532
          %v1534 = vld [vmem:[%s1270 + $0x23c] sm:%s1263]
          %1535 = vst [vmem:[%s1271 + $0x20c] sm:%s1263] %v1534
          %v1536 = vld [vmem:[%s1270 + $0x20c] sm:%s1263]
          %1537 = vst [vmem:[%s1271 + $0x210] sm:%s1263] %v1536
          %v1538 = vld [vmem:[%s1270 + $0x240] sm:%s1263]
          %1539 = vst [vmem:[%s1271 + $0x214] sm:%s1263] %v1538
          %v1540 = vld [vmem:[%s1270 + $0x210] sm:%s1263]
          %1541 = vst [vmem:[%s1271 + $0x218] sm:%s1263] %v1540
          %v1542 = vld [vmem:[%s1270 + $0x244] sm:%s1263]
          %1543 = vst [vmem:[%s1271 + $0x21c] sm:%s1263] %v1542
          %v1544 = vld [vmem:[%s1270 + $0x214] sm:%s1263]
          %1545 = vst [vmem:[%s1271 + $0x220] sm:%s1263] %v1544
          %v1546 = vld [vmem:[%s1270 + $0x248] sm:%s1263]
          %1547 = vst [vmem:[%s1271 + $0x224] sm:%s1263] %v1546
          %v1548 = vld [vmem:[%s1270 + $0x218] sm:%s1263]
          %1549 = vst [vmem:[%s1271 + $0x228] sm:%s1263] %v1548
          %v1550 = vld [vmem:[%s1270 + $0x24c] sm:%s1263]
          %1551 = vst [vmem:[%s1271 + $0x22c] sm:%s1263] %v1550
          %v1552 = vld [vmem:[%s1270 + $0x21c] sm:%s1263]
          %1553 = vst [vmem:[%s1271 + $0x230] sm:%s1263] %v1552
          %v1554 = vld [vmem:[%s1270 + $0x250] sm:%s1263]
          %1555 = vst [vmem:[%s1271 + $0x234] sm:%s1263] %v1554
          %v1556 = vld [vmem:[%s1270 + $0x220] sm:%s1263]
          %1557 = vst [vmem:[%s1271 + $0x238] sm:%s1263] %v1556
          %v1558 = vld [vmem:[%s1270 + $0x254] sm:%s1263]
          %1559 = vst [vmem:[%s1271 + $0x23c] sm:%s1263] %v1558
          %v1560 = vld [vmem:[%s1270 + $0x224] sm:%s1263]
          %1561 = vst [vmem:[%s1271 + $0x240] sm:%s1263] %v1560
          %v1562 = vld [vmem:[%s1270 + $0x258] sm:%s1263]
          %1563 = vst [vmem:[%s1271 + $0x244] sm:%s1263] %v1562
          %v1564 = vld [vmem:[%s1270 + $0x228] sm:%s1263]
          %1565 = vst [vmem:[%s1271 + $0x248] sm:%s1263] %v1564
          %v1566 = vld [vmem:[%s1270 + $0x25c] sm:%s1263]
          %1567 = vst [vmem:[%s1271 + $0x24c] sm:%s1263] %v1566
          %v1568 = vld [vmem:[%s1270 + $0x22c] sm:%s1263]
          %1569 = vst [vmem:[%s1271 + $0x250] sm:%s1263] %v1568
          %v1570 = vld [vmem:[%s1270 + $0x260] sm:%s1263]
          %1571 = vst [vmem:[%s1271 + $0x254] sm:%s1263] %v1570
          %v1572 = vld [vmem:[%s1270 + $0x230] sm:%s1263]
          %1573 = vst [vmem:[%s1271 + $0x258] sm:%s1263] %v1572
          %v1574 = vld [vmem:[%s1270 + $0x264] sm:%s1263]
          %1575 = vst [vmem:[%s1271 + $0x25c] sm:%s1263] %v1574
          %v1576 = vld [vmem:[%s1270 + $0x234] sm:%s1263]
          %1577 = vst [vmem:[%s1271 + $0x260] sm:%s1263] %v1576
          %v1578 = vld [vmem:[%s1270 + $0x268] sm:%s1263]
          %1579 = vst [vmem:[%s1271 + $0x264] sm:%s1263] %v1578
          %v1580 = vld [vmem:[%s1270 + $0x238] sm:%s1263]
          %1581 = vst [vmem:[%s1271 + $0x268] sm:%s1263] %v1580
          %v1582 = vld [vmem:[%s1270 + $0x26c] sm:%s1263]
          %1583 = vst [vmem:[%s1271 + $0x26c] sm:%s1263] %v1582
          %v1584 = vld [vmem:[%s1270 + $0x270] sm:%s1263]
          %1585 = vst [vmem:[%s1271 + $0x270] sm:%s1263] %v1584
          %v1586 = vld [vmem:[%s1270 + $0x2a4] sm:%s1263]
          %1587 = vst [vmem:[%s1271 + $0x274] sm:%s1263] %v1586
          %v1588 = vld [vmem:[%s1270 + $0x274] sm:%s1263]
          %1589 = vst [vmem:[%s1271 + $0x278] sm:%s1263] %v1588
          %v1590 = vld [vmem:[%s1270 + $0x2a8] sm:%s1263]
          %1591 = vst [vmem:[%s1271 + $0x27c] sm:%s1263] %v1590
          %v1592 = vld [vmem:[%s1270 + $0x278] sm:%s1263]
          %1593 = vst [vmem:[%s1271 + $0x280] sm:%s1263] %v1592
          %v1594 = vld [vmem:[%s1270 + $0x2ac] sm:%s1263]
          %1595 = vst [vmem:[%s1271 + $0x284] sm:%s1263] %v1594
          %v1596 = vld [vmem:[%s1270 + $0x27c] sm:%s1263]
          %1597 = vst [vmem:[%s1271 + $0x288] sm:%s1263] %v1596
          %v1598 = vld [vmem:[%s1270 + $0x2b0] sm:%s1263]
          %1599 = vst [vmem:[%s1271 + $0x28c] sm:%s1263] %v1598
          %v1600 = vld [vmem:[%s1270 + $0x280] sm:%s1263]
          %1601 = vst [vmem:[%s1271 + $0x290] sm:%s1263] %v1600
          %v1602 = vld [vmem:[%s1270 + $0x2b4] sm:%s1263]
          %1603 = vst [vmem:[%s1271 + $0x294] sm:%s1263] %v1602
          %v1604 = vld [vmem:[%s1270 + $0x284] sm:%s1263]
          %1605 = vst [vmem:[%s1271 + $0x298] sm:%s1263] %v1604
          %v1606 = vld [vmem:[%s1270 + $0x2b8] sm:%s1263]
          %1607 = vst [vmem:[%s1271 + $0x29c] sm:%s1263] %v1606
          %v1608 = vld [vmem:[%s1270 + $0x288] sm:%s1263]
          %1609 = vst [vmem:[%s1271 + $0x2a0] sm:%s1263] %v1608
          %v1610 = vld [vmem:[%s1270 + $0x2bc] sm:%s1263]
          %1611 = vst [vmem:[%s1271 + $0x2a4] sm:%s1263] %v1610
          %v1612 = vld [vmem:[%s1270 + $0x28c] sm:%s1263]
          %1613 = vst [vmem:[%s1271 + $0x2a8] sm:%s1263] %v1612
          %v1614 = vld [vmem:[%s1270 + $0x2c0] sm:%s1263]
          %1615 = vst [vmem:[%s1271 + $0x2ac] sm:%s1263] %v1614
          %v1616 = vld [vmem:[%s1270 + $0x290] sm:%s1263]
          %1617 = vst [vmem:[%s1271 + $0x2b0] sm:%s1263] %v1616
          %v1618 = vld [vmem:[%s1270 + $0x2c4] sm:%s1263]
          %1619 = vst [vmem:[%s1271 + $0x2b4] sm:%s1263] %v1618
          %v1620 = vld [vmem:[%s1270 + $0x294] sm:%s1263]
          %1621 = vst [vmem:[%s1271 + $0x2b8] sm:%s1263] %v1620
          %v1622 = vld [vmem:[%s1270 + $0x2c8] sm:%s1263]
          %1623 = vst [vmem:[%s1271 + $0x2bc] sm:%s1263] %v1622
          %v1624 = vld [vmem:[%s1270 + $0x298] sm:%s1263]
          %1625 = vst [vmem:[%s1271 + $0x2c0] sm:%s1263] %v1624
          %v1626 = vld [vmem:[%s1270 + $0x2cc] sm:%s1263]
          %1627 = vst [vmem:[%s1271 + $0x2c4] sm:%s1263] %v1626
          %v1628 = vld [vmem:[%s1270 + $0x29c] sm:%s1263]
          %1629 = vst [vmem:[%s1271 + $0x2c8] sm:%s1263] %v1628
          %v1630 = vld [vmem:[%s1270 + $0x2d0] sm:%s1263]
          %1631 = vst [vmem:[%s1271 + $0x2cc] sm:%s1263] %v1630
          %v1632 = vld [vmem:[%s1270 + $0x2a0] sm:%s1263]
          %1633 = vst [vmem:[%s1271 + $0x2d0] sm:%s1263] %v1632
          %v1634 = vld [vmem:[%s1270 + $0x2d4] sm:%s1263]
          %1635 = vst [vmem:[%s1271 + $0x2d4] sm:%s1263] %v1634
          %v1636 = vld [vmem:[%s1270 + $0x2d8] sm:%s1263]
          %1637 = vst [vmem:[%s1271 + $0x2d8] sm:%s1263] %v1636
          %v1638 = vld [vmem:[%s1270 + $0x30c] sm:%s1263]
          %1639 = vst [vmem:[%s1271 + $0x2dc] sm:%s1263] %v1638
          %v1640 = vld [vmem:[%s1270 + $0x2dc] sm:%s1263]
          %1641 = vst [vmem:[%s1271 + $0x2e0] sm:%s1263] %v1640
          %v1642 = vld [vmem:[%s1270 + $0x310] sm:%s1263]
          %1643 = vst [vmem:[%s1271 + $0x2e4] sm:%s1263] %v1642
          %v1644 = vld [vmem:[%s1270 + $0x2e0] sm:%s1263]
          %1645 = vst [vmem:[%s1271 + $0x2e8] sm:%s1263] %v1644
          %v1646 = vld [vmem:[%s1270 + $0x314] sm:%s1263]
          %1647 = vst [vmem:[%s1271 + $0x2ec] sm:%s1263] %v1646
          %v1648 = vld [vmem:[%s1270 + $0x2e4] sm:%s1263]
          %1649 = vst [vmem:[%s1271 + $0x2f0] sm:%s1263] %v1648
          %v1650 = vld [vmem:[%s1270 + $0x318] sm:%s1263]
          %1651 = vst [vmem:[%s1271 + $0x2f4] sm:%s1263] %v1650
          %v1652 = vld [vmem:[%s1270 + $0x2e8] sm:%s1263]
          %1653 = vst [vmem:[%s1271 + $0x2f8] sm:%s1263] %v1652
          %v1654 = vld [vmem:[%s1270 + $0x31c] sm:%s1263]
          %1655 = vst [vmem:[%s1271 + $0x2fc] sm:%s1263] %v1654
          %v1656 = vld [vmem:[%s1270 + $0x2ec] sm:%s1263]
          %1657 = vst [vmem:[%s1271 + $0x300] sm:%s1263] %v1656
          %v1658 = vld [vmem:[%s1270 + $0x320] sm:%s1263]
          %1659 = vst [vmem:[%s1271 + $0x304] sm:%s1263] %v1658
          %v1660 = vld [vmem:[%s1270 + $0x2f0] sm:%s1263]
          %1661 = vst [vmem:[%s1271 + $0x308] sm:%s1263] %v1660
          %v1662 = vld [vmem:[%s1270 + $0x324] sm:%s1263]
          %1663 = vst [vmem:[%s1271 + $0x30c] sm:%s1263] %v1662
          %v1664 = vld [vmem:[%s1270 + $0x2f4] sm:%s1263]
          %1665 = vst [vmem:[%s1271 + $0x310] sm:%s1263] %v1664
          %v1666 = vld [vmem:[%s1270 + $0x328] sm:%s1263]
          %1667 = vst [vmem:[%s1271 + $0x314] sm:%s1263] %v1666
          %v1668 = vld [vmem:[%s1270 + $0x2f8] sm:%s1263]
          %1669 = vst [vmem:[%s1271 + $0x318] sm:%s1263] %v1668
          %v1670 = vld [vmem:[%s1270 + $0x32c] sm:%s1263]
          %1671 = vst [vmem:[%s1271 + $0x31c] sm:%s1263] %v1670
          %v1672 = vld [vmem:[%s1270 + $0x2fc] sm:%s1263]
          %1673 = vst [vmem:[%s1271 + $0x320] sm:%s1263] %v1672
          %v1674 = vld [vmem:[%s1270 + $0x330] sm:%s1263]
          %1675 = vst [vmem:[%s1271 + $0x324] sm:%s1263] %v1674
          %v1676 = vld [vmem:[%s1270 + $0x300] sm:%s1263]
          %1677 = vst [vmem:[%s1271 + $0x328] sm:%s1263] %v1676
          %v1678 = vld [vmem:[%s1270 + $0x334] sm:%s1263]
          %1679 = vst [vmem:[%s1271 + $0x32c] sm:%s1263] %v1678
          %v1680 = vld [vmem:[%s1270 + $0x304] sm:%s1263]
          %1681 = vst [vmem:[%s1271 + $0x330] sm:%s1263] %v1680
          %v1682 = vld [vmem:[%s1270 + $0x338] sm:%s1263]
          %1683 = vst [vmem:[%s1271 + $0x334] sm:%s1263] %v1682
          %v1684 = vld [vmem:[%s1270 + $0x308] sm:%s1263]
          %1685 = vst [vmem:[%s1271 + $0x338] sm:%s1263] %v1684
          %v1686 = vld [vmem:[%s1270 + $0x33c] sm:%s1263]
          %1687 = vst [vmem:[%s1271 + $0x33c] sm:%s1263] %v1686
          %v1688 = vld [vmem:[%s1270 + $0x340] sm:%s1263]
          %1689 = vst [vmem:[%s1271 + $0x340] sm:%s1263] %v1688
          %v1690 = vld [vmem:[%s1270 + $0x374] sm:%s1263]
          %1691 = vst [vmem:[%s1271 + $0x344] sm:%s1263] %v1690
          %v1692 = vld [vmem:[%s1270 + $0x344] sm:%s1263]
          %1693 = vst [vmem:[%s1271 + $0x348] sm:%s1263] %v1692
          %v1694 = vld [vmem:[%s1270 + $0x378] sm:%s1263]
          %1695 = vst [vmem:[%s1271 + $0x34c] sm:%s1263] %v1694
          %v1696 = vld [vmem:[%s1270 + $0x348] sm:%s1263]
          %1697 = vst [vmem:[%s1271 + $0x350] sm:%s1263] %v1696
          %v1698 = vld [vmem:[%s1270 + $0x37c] sm:%s1263]
          %1699 = vst [vmem:[%s1271 + $0x354] sm:%s1263] %v1698
          %v1700 = vld [vmem:[%s1270 + $0x34c] sm:%s1263]
          %1701 = vst [vmem:[%s1271 + $0x358] sm:%s1263] %v1700
          %v1702 = vld [vmem:[%s1270 + $0x380] sm:%s1263]
          %1703 = vst [vmem:[%s1271 + $0x35c] sm:%s1263] %v1702
          %v1704 = vld [vmem:[%s1270 + $0x350] sm:%s1263]
          %1705 = vst [vmem:[%s1271 + $0x360] sm:%s1263] %v1704
          %v1706 = vld [vmem:[%s1270 + $0x384] sm:%s1263]
          %1707 = vst [vmem:[%s1271 + $0x364] sm:%s1263] %v1706
          %v1708 = vld [vmem:[%s1270 + $0x354] sm:%s1263]
          %1709 = vst [vmem:[%s1271 + $0x368] sm:%s1263] %v1708
          %v1710 = vld [vmem:[%s1270 + $0x388] sm:%s1263]
          %1711 = vst [vmem:[%s1271 + $0x36c] sm:%s1263] %v1710
          %v1712 = vld [vmem:[%s1270 + $0x358] sm:%s1263]
          %1713 = vst [vmem:[%s1271 + $0x370] sm:%s1263] %v1712
          %v1714 = vld [vmem:[%s1270 + $0x38c] sm:%s1263]
          %1715 = vst [vmem:[%s1271 + $0x374] sm:%s1263] %v1714
          %v1716 = vld [vmem:[%s1270 + $0x35c] sm:%s1263]
          %1717 = vst [vmem:[%s1271 + $0x378] sm:%s1263] %v1716
          %v1718 = vld [vmem:[%s1270 + $0x390] sm:%s1263]
          %1719 = vst [vmem:[%s1271 + $0x37c] sm:%s1263] %v1718
          %v1720 = vld [vmem:[%s1270 + $0x360] sm:%s1263]
          %1721 = vst [vmem:[%s1271 + $0x380] sm:%s1263] %v1720
          %v1722 = vld [vmem:[%s1270 + $0x394] sm:%s1263]
          %1723 = vst [vmem:[%s1271 + $0x384] sm:%s1263] %v1722
          %v1724 = vld [vmem:[%s1270 + $0x364] sm:%s1263]
          %1725 = vst [vmem:[%s1271 + $0x388] sm:%s1263] %v1724
          %v1726 = vld [vmem:[%s1270 + $0x398] sm:%s1263]
          %1727 = vst [vmem:[%s1271 + $0x38c] sm:%s1263] %v1726
          %v1728 = vld [vmem:[%s1270 + $0x368] sm:%s1263]
          %1729 = vst [vmem:[%s1271 + $0x390] sm:%s1263] %v1728
          %v1730 = vld [vmem:[%s1270 + $0x39c] sm:%s1263]
          %1731 = vst [vmem:[%s1271 + $0x394] sm:%s1263] %v1730
          %v1732 = vld [vmem:[%s1270 + $0x36c] sm:%s1263]
          %1733 = vst [vmem:[%s1271 + $0x398] sm:%s1263] %v1732
          %v1734 = vld [vmem:[%s1270 + $0x3a0] sm:%s1263]
          %1735 = vst [vmem:[%s1271 + $0x39c] sm:%s1263] %v1734
          %v1736 = vld [vmem:[%s1270 + $0x370] sm:%s1263]
          %1737 = vst [vmem:[%s1271 + $0x3a0] sm:%s1263] %v1736
          %v1738 = vld [vmem:[%s1270 + $0x3a4] sm:%s1263]
          %1739 = vst [vmem:[%s1271 + $0x3a4] sm:%s1263] %v1738
          %v1740 = vld [vmem:[%s1270 + $0x3a8] sm:%s1263]
          %1741 = vst [vmem:[%s1271 + $0x3a8] sm:%s1263] %v1740
          %v1742 = vld [vmem:[%s1270 + $0x3dc] sm:%s1263]
          %1743 = vst [vmem:[%s1271 + $0x3ac] sm:%s1263] %v1742
          %v1744 = vld [vmem:[%s1270 + $0x3ac] sm:%s1263]
          %1745 = vst [vmem:[%s1271 + $0x3b0] sm:%s1263] %v1744
          %v1746 = vld [vmem:[%s1270 + $0x3e0] sm:%s1263]
          %1747 = vst [vmem:[%s1271 + $0x3b4] sm:%s1263] %v1746
          %v1748 = vld [vmem:[%s1270 + $0x3b0] sm:%s1263]
          %1749 = vst [vmem:[%s1271 + $0x3b8] sm:%s1263] %v1748
          %v1750 = vld [vmem:[%s1270 + $0x3e4] sm:%s1263]
          %1751 = vst [vmem:[%s1271 + $0x3bc] sm:%s1263] %v1750
          %v1752 = vld [vmem:[%s1270 + $0x3b4] sm:%s1263]
          %1753 = vst [vmem:[%s1271 + $0x3c0] sm:%s1263] %v1752
          %v1754 = vld [vmem:[%s1270 + $0x3e8] sm:%s1263]
          %1755 = vst [vmem:[%s1271 + $0x3c4] sm:%s1263] %v1754
          %v1756 = vld [vmem:[%s1270 + $0x3b8] sm:%s1263]
          %1757 = vst [vmem:[%s1271 + $0x3c8] sm:%s1263] %v1756
          %v1758 = vld [vmem:[%s1270 + $0x3ec] sm:%s1263]
          %1759 = vst [vmem:[%s1271 + $0x3cc] sm:%s1263] %v1758
          %v1760 = vld [vmem:[%s1270 + $0x3bc] sm:%s1263]
          %1761 = vst [vmem:[%s1271 + $0x3d0] sm:%s1263] %v1760
          %v1762 = vld [vmem:[%s1270 + $0x3f0] sm:%s1263]
          %1763 = vst [vmem:[%s1271 + $0x3d4] sm:%s1263] %v1762
          %v1764 = vld [vmem:[%s1270 + $0x3c0] sm:%s1263]
          %1765 = vst [vmem:[%s1271 + $0x3d8] sm:%s1263] %v1764
          %v1766 = vld [vmem:[%s1270 + $0x3f4] sm:%s1263]
          %1767 = vst [vmem:[%s1271 + $0x3dc] sm:%s1263] %v1766
          %v1768 = vld [vmem:[%s1270 + $0x3c4] sm:%s1263]
          %1769 = vst [vmem:[%s1271 + $0x3e0] sm:%s1263] %v1768
          %v1770 = vld [vmem:[%s1270 + $0x3f8] sm:%s1263]
          %1771 = vst [vmem:[%s1271 + $0x3e4] sm:%s1263] %v1770
          %v1772 = vld [vmem:[%s1270 + $0x3c8] sm:%s1263]
          %1773 = vst [vmem:[%s1271 + $0x3e8] sm:%s1263] %v1772
          %v1774 = vld [vmem:[%s1270 + $0x3fc] sm:%s1263]
          %1775 = vst [vmem:[%s1271 + $0x3ec] sm:%s1263] %v1774
          %v1776 = vld [vmem:[%s1270 + $0x3cc] sm:%s1263]
          %1777 = vst [vmem:[%s1271 + $0x3f0] sm:%s1263] %v1776
          %v1778 = vld [vmem:[%s1270 + $0x400] sm:%s1263]
          %1779 = vst [vmem:[%s1271 + $0x3f4] sm:%s1263] %v1778
          %v1780 = vld [vmem:[%s1270 + $0x3d0] sm:%s1263]
          %1781 = vst [vmem:[%s1271 + $0x3f8] sm:%s1263] %v1780
          %v1782 = vld [vmem:[%s1270 + $0x404] sm:%s1263]
          %1783 = vst [vmem:[%s1271 + $0x3fc] sm:%s1263] %v1782
          %v1784 = vld [vmem:[%s1270 + $0x3d4] sm:%s1263]
          %1785 = vst [vmem:[%s1271 + $0x400] sm:%s1263] %v1784
          %v1786 = vld [vmem:[%s1270 + $0x408] sm:%s1263]
          %1787 = vst [vmem:[%s1271 + $0x404] sm:%s1263] %v1786
          %v1788 = vld [vmem:[%s1270 + $0x3d8] sm:%s1263]
          %1789 = vst [vmem:[%s1271 + $0x408] sm:%s1263] %v1788
          %v1790 = vld [vmem:[%s1270 + $0x40c] sm:%s1263]
          %1791 = vst [vmem:[%s1271 + $0x40c] sm:%s1263] %v1790
          %v1792 = vld [vmem:[%s1270 + $0x410] sm:%s1263]
          %1793 = vst [vmem:[%s1271 + $0x410] sm:%s1263] %v1792
          %v1794 = vld [vmem:[%s1270 + $0x444] sm:%s1263]
          %1795 = vst [vmem:[%s1271 + $0x414] sm:%s1263] %v1794
          %v1796 = vld [vmem:[%s1270 + $0x414] sm:%s1263]
          %1797 = vst [vmem:[%s1271 + $0x418] sm:%s1263] %v1796
          %v1798 = vld [vmem:[%s1270 + $0x448] sm:%s1263]
          %1799 = vst [vmem:[%s1271 + $0x41c] sm:%s1263] %v1798
          %v1800 = vld [vmem:[%s1270 + $0x418] sm:%s1263]
          %1801 = vst [vmem:[%s1271 + $0x420] sm:%s1263] %v1800
          %v1802 = vld [vmem:[%s1270 + $0x44c] sm:%s1263]
          %1803 = vst [vmem:[%s1271 + $0x424] sm:%s1263] %v1802
          %v1804 = vld [vmem:[%s1270 + $0x41c] sm:%s1263]
          %1805 = vst [vmem:[%s1271 + $0x428] sm:%s1263] %v1804
          %v1806 = vld [vmem:[%s1270 + $0x450] sm:%s1263]
          %1807 = vst [vmem:[%s1271 + $0x42c] sm:%s1263] %v1806
          %v1808 = vld [vmem:[%s1270 + $0x420] sm:%s1263]
          %1809 = vst [vmem:[%s1271 + $0x430] sm:%s1263] %v1808
          %v1810 = vld [vmem:[%s1270 + $0x454] sm:%s1263]
          %1811 = vst [vmem:[%s1271 + $0x434] sm:%s1263] %v1810
          %v1812 = vld [vmem:[%s1270 + $0x424] sm:%s1263]
          %1813 = vst [vmem:[%s1271 + $0x438] sm:%s1263] %v1812
          %v1814 = vld [vmem:[%s1270 + $0x458] sm:%s1263]
          %1815 = vst [vmem:[%s1271 + $0x43c] sm:%s1263] %v1814
          %v1816 = vld [vmem:[%s1270 + $0x428] sm:%s1263]
          %1817 = vst [vmem:[%s1271 + $0x440] sm:%s1263] %v1816
          %v1818 = vld [vmem:[%s1270 + $0x45c] sm:%s1263]
          %1819 = vst [vmem:[%s1271 + $0x444] sm:%s1263] %v1818
          %v1820 = vld [vmem:[%s1270 + $0x42c] sm:%s1263]
          %1821 = vst [vmem:[%s1271 + $0x448] sm:%s1263] %v1820
          %v1822 = vld [vmem:[%s1270 + $0x460] sm:%s1263]
          %1823 = vst [vmem:[%s1271 + $0x44c] sm:%s1263] %v1822
          %v1824 = vld [vmem:[%s1270 + $0x430] sm:%s1263]
          %1825 = vst [vmem:[%s1271 + $0x450] sm:%s1263] %v1824
          %v1826 = vld [vmem:[%s1270 + $0x464] sm:%s1263]
          %1827 = vst [vmem:[%s1271 + $0x454] sm:%s1263] %v1826
          %v1828 = vld [vmem:[%s1270 + $0x434] sm:%s1263]
          %1829 = vst [vmem:[%s1271 + $0x458] sm:%s1263] %v1828
          %v1830 = vld [vmem:[%s1270 + $0x468] sm:%s1263]
          %1831 = vst [vmem:[%s1271 + $0x45c] sm:%s1263] %v1830
          %v1832 = vld [vmem:[%s1270 + $0x438] sm:%s1263]
          %1833 = vst [vmem:[%s1271 + $0x460] sm:%s1263] %v1832
          %v1834 = vld [vmem:[%s1270 + $0x46c] sm:%s1263]
          %1835 = vst [vmem:[%s1271 + $0x464] sm:%s1263] %v1834
          %v1836 = vld [vmem:[%s1270 + $0x43c] sm:%s1263]
          %1837 = vst [vmem:[%s1271 + $0x468] sm:%s1263] %v1836
          %v1838 = vld [vmem:[%s1270 + $0x470] sm:%s1263]
          %1839 = vst [vmem:[%s1271 + $0x46c] sm:%s1263] %v1838
          %v1840 = vld [vmem:[%s1270 + $0x440] sm:%s1263]
          %1841 = vst [vmem:[%s1271 + $0x470] sm:%s1263] %v1840
          %v1842 = vld [vmem:[%s1270 + $0x474] sm:%s1263]
          %1843 = vst [vmem:[%s1271 + $0x474] sm:%s1263] %v1842
          %v1844 = vld [vmem:[%s1270 + $0x478] sm:%s1263]
          %1845 = vst [vmem:[%s1271 + $0x478] sm:%s1263] %v1844
          %v1846 = vld [vmem:[%s1270 + $0x4ac] sm:%s1263]
          %1847 = vst [vmem:[%s1271 + $0x47c] sm:%s1263] %v1846
          %v1848 = vld [vmem:[%s1270 + $0x47c] sm:%s1263]
          %1849 = vst [vmem:[%s1271 + $0x480] sm:%s1263] %v1848
          %v1850 = vld [vmem:[%s1270 + $0x4b0] sm:%s1263]
          %1851 = vst [vmem:[%s1271 + $0x484] sm:%s1263] %v1850
          %v1852 = vld [vmem:[%s1270 + $0x480] sm:%s1263]
          %1853 = vst [vmem:[%s1271 + $0x488] sm:%s1263] %v1852
          %v1854 = vld [vmem:[%s1270 + $0x4b4] sm:%s1263]
          %1855 = vst [vmem:[%s1271 + $0x48c] sm:%s1263] %v1854
          %v1856 = vld [vmem:[%s1270 + $0x484] sm:%s1263]
          %1857 = vst [vmem:[%s1271 + $0x490] sm:%s1263] %v1856
          %v1858 = vld [vmem:[%s1270 + $0x4b8] sm:%s1263]
          %1859 = vst [vmem:[%s1271 + $0x494] sm:%s1263] %v1858
          %v1860 = vld [vmem:[%s1270 + $0x488] sm:%s1263]
          %1861 = vst [vmem:[%s1271 + $0x498] sm:%s1263] %v1860
          %v1862 = vld [vmem:[%s1270 + $0x4bc] sm:%s1263]
          %1863 = vst [vmem:[%s1271 + $0x49c] sm:%s1263] %v1862
          %v1864 = vld [vmem:[%s1270 + $0x48c] sm:%s1263]
          %1865 = vst [vmem:[%s1271 + $0x4a0] sm:%s1263] %v1864
          %v1866 = vld [vmem:[%s1270 + $0x4c0] sm:%s1263]
          %1867 = vst [vmem:[%s1271 + $0x4a4] sm:%s1263] %v1866
          %v1868 = vld [vmem:[%s1270 + $0x490] sm:%s1263]
          %1869 = vst [vmem:[%s1271 + $0x4a8] sm:%s1263] %v1868
          %v1870 = vld [vmem:[%s1270 + $0x4c4] sm:%s1263]
          %1871 = vst [vmem:[%s1271 + $0x4ac] sm:%s1263] %v1870
          %v1872 = vld [vmem:[%s1270 + $0x494] sm:%s1263]
          %1873 = vst [vmem:[%s1271 + $0x4b0] sm:%s1263] %v1872
          %v1874 = vld [vmem:[%s1270 + $0x4c8] sm:%s1263]
          %1875 = vst [vmem:[%s1271 + $0x4b4] sm:%s1263] %v1874
          %v1876 = vld [vmem:[%s1270 + $0x498] sm:%s1263]
          %1877 = vst [vmem:[%s1271 + $0x4b8] sm:%s1263] %v1876
          %v1878 = vld [vmem:[%s1270 + $0x4cc] sm:%s1263]
          %1879 = vst [vmem:[%s1271 + $0x4bc] sm:%s1263] %v1878
          %v1880 = vld [vmem:[%s1270 + $0x49c] sm:%s1263]
          %1881 = vst [vmem:[%s1271 + $0x4c0] sm:%s1263] %v1880
          %v1882 = vld [vmem:[%s1270 + $0x4d0] sm:%s1263]
          %1883 = vst [vmem:[%s1271 + $0x4c4] sm:%s1263] %v1882
          %v1884 = vld [vmem:[%s1270 + $0x4a0] sm:%s1263]
          %1885 = vst [vmem:[%s1271 + $0x4c8] sm:%s1263] %v1884
          %v1886 = vld [vmem:[%s1270 + $0x4d4] sm:%s1263]
          %1887 = vst [vmem:[%s1271 + $0x4cc] sm:%s1263] %v1886
          %v1888 = vld [vmem:[%s1270 + $0x4a4] sm:%s1263]
          %1889 = vst [vmem:[%s1271 + $0x4d0] sm:%s1263] %v1888
          %v1890 = vld [vmem:[%s1270 + $0x4d8] sm:%s1263]
          %1891 = vst [vmem:[%s1271 + $0x4d4] sm:%s1263] %v1890
          %v1892 = vld [vmem:[%s1270 + $0x4a8] sm:%s1263]
          %1893 = vst [vmem:[%s1271 + $0x4d8] sm:%s1263] %v1892
          %v1894 = vld [vmem:[%s1270 + $0x4dc] sm:%s1263]
          %1895 = vst [vmem:[%s1271 + $0x4dc] sm:%s1263] %v1894
          %v1896 = vld [vmem:[%s1270 + $0x4e0] sm:%s1263]
          %1897 = vst [vmem:[%s1271 + $0x4e0] sm:%s1263] %v1896
          %v1898 = vld [vmem:[%s1270 + $0x514] sm:%s1263]
          %1899 = vst [vmem:[%s1271 + $0x4e4] sm:%s1263] %v1898
          %v1900 = vld [vmem:[%s1270 + $0x4e4] sm:%s1263]
          %1901 = vst [vmem:[%s1271 + $0x4e8] sm:%s1263] %v1900
          %v1902 = vld [vmem:[%s1270 + $0x518] sm:%s1263]
          %1903 = vst [vmem:[%s1271 + $0x4ec] sm:%s1263] %v1902
          %v1904 = vld [vmem:[%s1270 + $0x4e8] sm:%s1263]
          %1905 = vst [vmem:[%s1271 + $0x4f0] sm:%s1263] %v1904
          %v1906 = vld [vmem:[%s1270 + $0x51c] sm:%s1263]
          %1907 = vst [vmem:[%s1271 + $0x4f4] sm:%s1263] %v1906
          %v1908 = vld [vmem:[%s1270 + $0x4ec] sm:%s1263]
          %1909 = vst [vmem:[%s1271 + $0x4f8] sm:%s1263] %v1908
          %v1910 = vld [vmem:[%s1270 + $0x520] sm:%s1263]
          %1911 = vst [vmem:[%s1271 + $0x4fc] sm:%s1263] %v1910
          %v1912 = vld [vmem:[%s1270 + $0x4f0] sm:%s1263]
          %1913 = vst [vmem:[%s1271 + $0x500] sm:%s1263] %v1912
          %v1914 = vld [vmem:[%s1270 + $0x524] sm:%s1263]
          %1915 = vst [vmem:[%s1271 + $0x504] sm:%s1263] %v1914
          %v1916 = vld [vmem:[%s1270 + $0x4f4] sm:%s1263]
          %1917 = vst [vmem:[%s1271 + $0x508] sm:%s1263] %v1916
          %v1918 = vld [vmem:[%s1270 + $0x528] sm:%s1263]
          %1919 = vst [vmem:[%s1271 + $0x50c] sm:%s1263] %v1918
          %v1920 = vld [vmem:[%s1270 + $0x4f8] sm:%s1263]
          %1921 = vst [vmem:[%s1271 + $0x510] sm:%s1263] %v1920
          %v1922 = vld [vmem:[%s1270 + $0x52c] sm:%s1263]
          %1923 = vst [vmem:[%s1271 + $0x514] sm:%s1263] %v1922
          %v1924 = vld [vmem:[%s1270 + $0x4fc] sm:%s1263]
          %1925 = vst [vmem:[%s1271 + $0x518] sm:%s1263] %v1924
          %v1926 = vld [vmem:[%s1270 + $0x530] sm:%s1263]
          %1927 = vst [vmem:[%s1271 + $0x51c] sm:%s1263] %v1926
          %v1928 = vld [vmem:[%s1270 + $0x500] sm:%s1263]
          %1929 = vst [vmem:[%s1271 + $0x520] sm:%s1263] %v1928
          %v1930 = vld [vmem:[%s1270 + $0x534] sm:%s1263]
          %1931 = vst [vmem:[%s1271 + $0x524] sm:%s1263] %v1930
          %v1932 = vld [vmem:[%s1270 + $0x504] sm:%s1263]
          %1933 = vst [vmem:[%s1271 + $0x528] sm:%s1263] %v1932
          %v1934 = vld [vmem:[%s1270 + $0x538] sm:%s1263]
          %1935 = vst [vmem:[%s1271 + $0x52c] sm:%s1263] %v1934
          %v1936 = vld [vmem:[%s1270 + $0x508] sm:%s1263]
          %1937 = vst [vmem:[%s1271 + $0x530] sm:%s1263] %v1936
          %v1938 = vld [vmem:[%s1270 + $0x53c] sm:%s1263]
          %1939 = vst [vmem:[%s1271 + $0x534] sm:%s1263] %v1938
          %v1940 = vld [vmem:[%s1270 + $0x50c] sm:%s1263]
          %1941 = vst [vmem:[%s1271 + $0x538] sm:%s1263] %v1940
          %v1942 = vld [vmem:[%s1270 + $0x540] sm:%s1263]
          %1943 = vst [vmem:[%s1271 + $0x53c] sm:%s1263] %v1942
          %v1944 = vld [vmem:[%s1270 + $0x510] sm:%s1263]
          %1945 = vst [vmem:[%s1271 + $0x540] sm:%s1263] %v1944
          %v1946 = vld [vmem:[%s1270 + $0x544] sm:%s1263]
          %1947 = vst [vmem:[%s1271 + $0x544] sm:%s1263] %v1946
          %v1948 = vld [vmem:[%s1270 + $0x548] sm:%s1263]
          %1949 = vst [vmem:[%s1271 + $0x548] sm:%s1263] %v1948
          %v1950 = vld [vmem:[%s1270 + $0x57c] sm:%s1263]
          %1951 = vst [vmem:[%s1271 + $0x54c] sm:%s1263] %v1950
          %v1952 = vld [vmem:[%s1270 + $0x54c] sm:%s1263]
          %1953 = vst [vmem:[%s1271 + $0x550] sm:%s1263] %v1952
          %v1954 = vld [vmem:[%s1270 + $0x580] sm:%s1263]
          %1955 = vst [vmem:[%s1271 + $0x554] sm:%s1263] %v1954
          %v1956 = vld [vmem:[%s1270 + $0x550] sm:%s1263]
          %1957 = vst [vmem:[%s1271 + $0x558] sm:%s1263] %v1956
          %v1958 = vld [vmem:[%s1270 + $0x584] sm:%s1263]
          %1959 = vst [vmem:[%s1271 + $0x55c] sm:%s1263] %v1958
          %v1960 = vld [vmem:[%s1270 + $0x554] sm:%s1263]
          %1961 = vst [vmem:[%s1271 + $0x560] sm:%s1263] %v1960
          %v1962 = vld [vmem:[%s1270 + $0x588] sm:%s1263]
          %1963 = vst [vmem:[%s1271 + $0x564] sm:%s1263] %v1962
          %v1964 = vld [vmem:[%s1270 + $0x558] sm:%s1263]
          %1965 = vst [vmem:[%s1271 + $0x568] sm:%s1263] %v1964
          %v1966 = vld [vmem:[%s1270 + $0x58c] sm:%s1263]
          %1967 = vst [vmem:[%s1271 + $0x56c] sm:%s1263] %v1966
          %v1968 = vld [vmem:[%s1270 + $0x55c] sm:%s1263]
          %1969 = vst [vmem:[%s1271 + $0x570] sm:%s1263] %v1968
          %v1970 = vld [vmem:[%s1270 + $0x590] sm:%s1263]
          %1971 = vst [vmem:[%s1271 + $0x574] sm:%s1263] %v1970
          %v1972 = vld [vmem:[%s1270 + $0x560] sm:%s1263]
          %1973 = vst [vmem:[%s1271 + $0x578] sm:%s1263] %v1972
          %v1974 = vld [vmem:[%s1270 + $0x594] sm:%s1263]
          %1975 = vst [vmem:[%s1271 + $0x57c] sm:%s1263] %v1974
          %v1976 = vld [vmem:[%s1270 + $0x564] sm:%s1263]
          %1977 = vst [vmem:[%s1271 + $0x580] sm:%s1263] %v1976
          %v1978 = vld [vmem:[%s1270 + $0x598] sm:%s1263]
          %1979 = vst [vmem:[%s1271 + $0x584] sm:%s1263] %v1978
          %v1980 = vld [vmem:[%s1270 + $0x568] sm:%s1263]
          %1981 = vst [vmem:[%s1271 + $0x588] sm:%s1263] %v1980
          %v1982 = vld [vmem:[%s1270 + $0x59c] sm:%s1263]
          %1983 = vst [vmem:[%s1271 + $0x58c] sm:%s1263] %v1982
          %v1984 = vld [vmem:[%s1270 + $0x56c] sm:%s1263]
          %1985 = vst [vmem:[%s1271 + $0x590] sm:%s1263] %v1984
          %v1986 = vld [vmem:[%s1270 + $0x5a0] sm:%s1263]
          %1987 = vst [vmem:[%s1271 + $0x594] sm:%s1263] %v1986
          %v1988 = vld [vmem:[%s1270 + $0x570] sm:%s1263]
          %1989 = vst [vmem:[%s1271 + $0x598] sm:%s1263] %v1988
          %v1990 = vld [vmem:[%s1270 + $0x5a4] sm:%s1263]
          %1991 = vst [vmem:[%s1271 + $0x59c] sm:%s1263] %v1990
          %v1992 = vld [vmem:[%s1270 + $0x574] sm:%s1263]
          %1993 = vst [vmem:[%s1271 + $0x5a0] sm:%s1263] %v1992
          %v1994 = vld [vmem:[%s1270 + $0x5a8] sm:%s1263]
          %1995 = vst [vmem:[%s1271 + $0x5a4] sm:%s1263] %v1994
          %v1996 = vld [vmem:[%s1270 + $0x578] sm:%s1263]
          %1997 = vst [vmem:[%s1271 + $0x5a8] sm:%s1263] %v1996
          %v1998 = vld [vmem:[%s1270 + $0x5ac] sm:%s1263]
          %1999 = vst [vmem:[%s1271 + $0x5ac] sm:%s1263] %v1998
          %v2000 = vld [vmem:[%s1270 + $0x5b0] sm:%s1263]
          %2001 = vst [vmem:[%s1271 + $0x5b0] sm:%s1263] %v2000
          %v2002 = vld [vmem:[%s1270 + $0x5e4] sm:%s1263]
          %2003 = vst [vmem:[%s1271 + $0x5b4] sm:%s1263] %v2002
          %v2004 = vld [vmem:[%s1270 + $0x5b4] sm:%s1263]
          %2005 = vst [vmem:[%s1271 + $0x5b8] sm:%s1263] %v2004
          %v2006 = vld [vmem:[%s1270 + $0x5e8] sm:%s1263]
          %2007 = vst [vmem:[%s1271 + $0x5bc] sm:%s1263] %v2006
          %v2008 = vld [vmem:[%s1270 + $0x5b8] sm:%s1263]
          %2009 = vst [vmem:[%s1271 + $0x5c0] sm:%s1263] %v2008
          %v2010 = vld [vmem:[%s1270 + $0x5ec] sm:%s1263]
          %2011 = vst [vmem:[%s1271 + $0x5c4] sm:%s1263] %v2010
          %v2012 = vld [vmem:[%s1270 + $0x5bc] sm:%s1263]
          %2013 = vst [vmem:[%s1271 + $0x5c8] sm:%s1263] %v2012
          %v2014 = vld [vmem:[%s1270 + $0x5f0] sm:%s1263]
          %2015 = vst [vmem:[%s1271 + $0x5cc] sm:%s1263] %v2014
          %v2016 = vld [vmem:[%s1270 + $0x5c0] sm:%s1263]
          %2017 = vst [vmem:[%s1271 + $0x5d0] sm:%s1263] %v2016
          %v2018 = vld [vmem:[%s1270 + $0x5f4] sm:%s1263]
          %2019 = vst [vmem:[%s1271 + $0x5d4] sm:%s1263] %v2018
          %v2020 = vld [vmem:[%s1270 + $0x5c4] sm:%s1263]
          %2021 = vst [vmem:[%s1271 + $0x5d8] sm:%s1263] %v2020
          %v2022 = vld [vmem:[%s1270 + $0x5f8] sm:%s1263]
          %2023 = vst [vmem:[%s1271 + $0x5dc] sm:%s1263] %v2022
          %v2024 = vld [vmem:[%s1270 + $0x5c8] sm:%s1263]
          %2025 = vst [vmem:[%s1271 + $0x5e0] sm:%s1263] %v2024
          %v2026 = vld [vmem:[%s1270 + $0x5fc] sm:%s1263]
          %2027 = vst [vmem:[%s1271 + $0x5e4] sm:%s1263] %v2026
          %v2028 = vld [vmem:[%s1270 + $0x5cc] sm:%s1263]
          %2029 = vst [vmem:[%s1271 + $0x5e8] sm:%s1263] %v2028
          %v2030 = vld [vmem:[%s1270 + $0x600] sm:%s1263]
          %2031 = vst [vmem:[%s1271 + $0x5ec] sm:%s1263] %v2030
          %v2032 = vld [vmem:[%s1270 + $0x5d0] sm:%s1263]
          %2033 = vst [vmem:[%s1271 + $0x5f0] sm:%s1263] %v2032
          %v2034 = vld [vmem:[%s1270 + $0x604] sm:%s1263]
          %2035 = vst [vmem:[%s1271 + $0x5f4] sm:%s1263] %v2034
          %v2036 = vld [vmem:[%s1270 + $0x5d4] sm:%s1263]
          %2037 = vst [vmem:[%s1271 + $0x5f8] sm:%s1263] %v2036
          %v2038 = vld [vmem:[%s1270 + $0x608] sm:%s1263]
          %2039 = vst [vmem:[%s1271 + $0x5fc] sm:%s1263] %v2038
          %v2040 = vld [vmem:[%s1270 + $0x5d8] sm:%s1263]
          %2041 = vst [vmem:[%s1271 + $0x600] sm:%s1263] %v2040
          %v2042 = vld [vmem:[%s1270 + $0x60c] sm:%s1263]
          %2043 = vst [vmem:[%s1271 + $0x604] sm:%s1263] %v2042
          %v2044 = vld [vmem:[%s1270 + $0x5dc] sm:%s1263]
          %2045 = vst [vmem:[%s1271 + $0x608] sm:%s1263] %v2044
          %v2046 = vld [vmem:[%s1270 + $0x610] sm:%s1263]
          %2047 = vst [vmem:[%s1271 + $0x60c] sm:%s1263] %v2046
          %v2048 = vld [vmem:[%s1270 + $0x5e0] sm:%s1263]
          %2049 = vst [vmem:[%s1271 + $0x610] sm:%s1263] %v2048
          %v2050 = vld [vmem:[%s1270 + $0x614] sm:%s1263]
          %2051 = vst [vmem:[%s1271 + $0x614] sm:%s1263] %v2050
          %v2052 = vld [vmem:[%s1270 + $0x618] sm:%s1263]
          %2053 = vst [vmem:[%s1271 + $0x618] sm:%s1263] %v2052
          %v2054 = vld [vmem:[%s1270 + $0x64c] sm:%s1263]
          %2055 = vst [vmem:[%s1271 + $0x61c] sm:%s1263] %v2054
          %v2056 = vld [vmem:[%s1270 + $0x61c] sm:%s1263]
          %2057 = vst [vmem:[%s1271 + $0x620] sm:%s1263] %v2056
          %v2058 = vld [vmem:[%s1270 + $0x650] sm:%s1263]
          %2059 = vst [vmem:[%s1271 + $0x624] sm:%s1263] %v2058
          %v2060 = vld [vmem:[%s1270 + $0x620] sm:%s1263]
          %2061 = vst [vmem:[%s1271 + $0x628] sm:%s1263] %v2060
          %v2062 = vld [vmem:[%s1270 + $0x654] sm:%s1263]
          %2063 = vst [vmem:[%s1271 + $0x62c] sm:%s1263] %v2062
          %v2064 = vld [vmem:[%s1270 + $0x624] sm:%s1263]
          %2065 = vst [vmem:[%s1271 + $0x630] sm:%s1263] %v2064
          %v2066 = vld [vmem:[%s1270 + $0x658] sm:%s1263]
          %2067 = vst [vmem:[%s1271 + $0x634] sm:%s1263] %v2066
          %v2068 = vld [vmem:[%s1270 + $0x628] sm:%s1263]
          %2069 = vst [vmem:[%s1271 + $0x638] sm:%s1263] %v2068
          %v2070 = vld [vmem:[%s1270 + $0x65c] sm:%s1263]
          %2071 = vst [vmem:[%s1271 + $0x63c] sm:%s1263] %v2070
          %v2072 = vld [vmem:[%s1270 + $0x62c] sm:%s1263]
          %2073 = vst [vmem:[%s1271 + $0x640] sm:%s1263] %v2072
          %v2074 = vld [vmem:[%s1270 + $0x660] sm:%s1263]
          %2075 = vst [vmem:[%s1271 + $0x644] sm:%s1263] %v2074
          %v2076 = vld [vmem:[%s1270 + $0x630] sm:%s1263]
          %2077 = vst [vmem:[%s1271 + $0x648] sm:%s1263] %v2076
          %v2078 = vld [vmem:[%s1270 + $0x664] sm:%s1263]
          %2079 = vst [vmem:[%s1271 + $0x64c] sm:%s1263] %v2078
          %v2080 = vld [vmem:[%s1270 + $0x634] sm:%s1263]
          %2081 = vst [vmem:[%s1271 + $0x650] sm:%s1263] %v2080
          %v2082 = vld [vmem:[%s1270 + $0x668] sm:%s1263]
          %2083 = vst [vmem:[%s1271 + $0x654] sm:%s1263] %v2082
          %v2084 = vld [vmem:[%s1270 + $0x638] sm:%s1263]
          %2085 = vst [vmem:[%s1271 + $0x658] sm:%s1263] %v2084
          %v2086 = vld [vmem:[%s1270 + $0x66c] sm:%s1263]
          %2087 = vst [vmem:[%s1271 + $0x65c] sm:%s1263] %v2086
          %v2088 = vld [vmem:[%s1270 + $0x63c] sm:%s1263]
          %2089 = vst [vmem:[%s1271 + $0x660] sm:%s1263] %v2088
          %v2090 = vld [vmem:[%s1270 + $0x670] sm:%s1263]
          %2091 = vst [vmem:[%s1271 + $0x664] sm:%s1263] %v2090
          %v2092 = vld [vmem:[%s1270 + $0x640] sm:%s1263]
          %2093 = vst [vmem:[%s1271 + $0x668] sm:%s1263] %v2092
          %v2094 = vld [vmem:[%s1270 + $0x674] sm:%s1263]
          %2095 = vst [vmem:[%s1271 + $0x66c] sm:%s1263] %v2094
          %v2096 = vld [vmem:[%s1270 + $0x644] sm:%s1263]
          %2097 = vst [vmem:[%s1271 + $0x670] sm:%s1263] %v2096
          %v2098 = vld [vmem:[%s1270 + $0x678] sm:%s1263]
          %2099 = vst [vmem:[%s1271 + $0x674] sm:%s1263] %v2098
          %v2100 = vld [vmem:[%s1270 + $0x648] sm:%s1263]
          %2101 = vst [vmem:[%s1271 + $0x678] sm:%s1263] %v2100
          %v2102 = vld [vmem:[%s1270 + $0x67c] sm:%s1263]
          %2103 = vst [vmem:[%s1271 + $0x67c] sm:%s1263] %v2102
        $region106: #{_grasp_dist_field_impl.1} parent=93 // loop_footer
          %s1269 = sadd.s32 1, %s1265
        $region107: #{_grasp_dist_field_impl.1} parent=93 // loop_footer_branch
          %1264 = sbr.rel target = $region103
        $region108: #{_grasp_dist_field_impl.1} parent=93 // loop_exit
          _
      $region94: #{_grasp_dist_field_impl.1} parent=78 // pred_fallthru
        _
    $region79: #{_grasp_dist_field_impl.1} parent=1 // pred_fallthru
      _
    // Predicated region
    $region80: #{_grasp_dist_field_impl.1} parent=1 // pred_check
      %p401 = pneg %p397
    $region81: #{_grasp_dist_field_impl.1} parent=1 // pred_check_branch
      %403 = sbr.rel (%p401) target = $region83
    $region82: #{_grasp_dist_field_impl.1} parent=1 // pred_region
      %s404 = sshllo.u32 0, 4
      loop: start=0, step=1, limit=1
      $region84: #{_grasp_dist_field_impl.1} parent=82 // loop_pre_header
        _
      $region85: #{_grasp_dist_field_impl.1} parent=82 // loop_header
        %s406 = sphi 0, %s410
        %p407 = scmp.ge.s32.totalorder %s406, 1
        %s411 = sphi %s10, %s10
        %s412 = sphi [#allocation4], [#allocation4]
      $region86: #{_grasp_dist_field_impl.1} parent=82 // loop_header_branch
        %409 = sbr.rel (%p407) target = $region90
      $region87: #{_grasp_dist_field_impl.1} parent=82 // loop_body
        %v413 = vld [vmem:[%s411] sm:%s404]
        %414 = vst [vmem:[%s412] sm:%s404] %v413
        %v415 = vld [vmem:[%s411 + $0x34] sm:%s404]
        %416 = vst [vmem:[%s412 + $0x4] sm:%s404] %v415
        %v417 = vld [vmem:[%s411 + $0x4] sm:%s404]
        %418 = vst [vmem:[%s412 + $0x8] sm:%s404] %v417
        %v419 = vld [vmem:[%s411 + $0x38] sm:%s404]
        %420 = vst [vmem:[%s412 + $0xc] sm:%s404] %v419
        %v421 = vld [vmem:[%s411 + $0x8] sm:%s404]
        %422 = vst [vmem:[%s412 + $0x10] sm:%s404] %v421
        %v423 = vld [vmem:[%s411 + $0x3c] sm:%s404]
        %424 = vst [vmem:[%s412 + $0x14] sm:%s404] %v423
        %v425 = vld [vmem:[%s411 + $0xc] sm:%s404]
        %426 = vst [vmem:[%s412 + $0x18] sm:%s404] %v425
        %v427 = vld [vmem:[%s411 + $0x40] sm:%s404]
        %428 = vst [vmem:[%s412 + $0x1c] sm:%s404] %v427
        %v429 = vld [vmem:[%s411 + $0x10] sm:%s404]
        %430 = vst [vmem:[%s412 + $0x20] sm:%s404] %v429
        %v431 = vld [vmem:[%s411 + $0x44] sm:%s404]
        %432 = vst [vmem:[%s412 + $0x24] sm:%s404] %v431
        %v433 = vld [vmem:[%s411 + $0x14] sm:%s404]
        %434 = vst [vmem:[%s412 + $0x28] sm:%s404] %v433
        %v435 = vld [vmem:[%s411 + $0x48] sm:%s404]
        %436 = vst [vmem:[%s412 + $0x2c] sm:%s404] %v435
        %v437 = vld [vmem:[%s411 + $0x18] sm:%s404]
        %438 = vst [vmem:[%s412 + $0x30] sm:%s404] %v437
        %v439 = vld [vmem:[%s411 + $0x4c] sm:%s404]
        %440 = vst [vmem:[%s412 + $0x34] sm:%s404] %v439
        %v441 = vld [vmem:[%s411 + $0x1c] sm:%s404]
        %442 = vst [vmem:[%s412 + $0x38] sm:%s404] %v441
        %v443 = vld [vmem:[%s411 + $0x50] sm:%s404]
        %444 = vst [vmem:[%s412 + $0x3c] sm:%s404] %v443
        %v445 = vld [vmem:[%s411 + $0x20] sm:%s404]
        %446 = vst [vmem:[%s412 + $0x40] sm:%s404] %v445
        %v447 = vld [vmem:[%s411 + $0x54] sm:%s404]
        %448 = vst [vmem:[%s412 + $0x44] sm:%s404] %v447
        %v449 = vld [vmem:[%s411 + $0x24] sm:%s404]
        %450 = vst [vmem:[%s412 + $0x48] sm:%s404] %v449
        %v451 = vld [vmem:[%s411 + $0x58] sm:%s404]
        %452 = vst [vmem:[%s412 + $0x4c] sm:%s404] %v451
        %v453 = vld [vmem:[%s411 + $0x28] sm:%s404]
        %454 = vst [vmem:[%s412 + $0x50] sm:%s404] %v453
        %v455 = vld [vmem:[%s411 + $0x5c] sm:%s404]
        %456 = vst [vmem:[%s412 + $0x54] sm:%s404] %v455
        %v457 = vld [vmem:[%s411 + $0x2c] sm:%s404]
        %458 = vst [vmem:[%s412 + $0x58] sm:%s404] %v457
        %v459 = vld [vmem:[%s411 + $0x60] sm:%s404]
        %460 = vst [vmem:[%s412 + $0x5c] sm:%s404] %v459
        %v461 = vld [vmem:[%s411 + $0x30] sm:%s404]
        %462 = vst [vmem:[%s412 + $0x60] sm:%s404] %v461
        %v463 = vld [vmem:[%s411 + $0x64] sm:%s404]
        %464 = vst [vmem:[%s412 + $0x64] sm:%s404] %v463
        %v465 = vld [vmem:[%s411 + $0x68] sm:%s404]
        %466 = vst [vmem:[%s412 + $0x68] sm:%s404] %v465
        %v467 = vld [vmem:[%s411 + $0x9c] sm:%s404]
        %468 = vst [vmem:[%s412 + $0x6c] sm:%s404] %v467
        %v469 = vld [vmem:[%s411 + $0x6c] sm:%s404]
        %470 = vst [vmem:[%s412 + $0x70] sm:%s404] %v469
        %v471 = vld [vmem:[%s411 + $0xa0] sm:%s404]
        %472 = vst [vmem:[%s412 + $0x74] sm:%s404] %v471
        %v473 = vld [vmem:[%s411 + $0x70] sm:%s404]
        %474 = vst [vmem:[%s412 + $0x78] sm:%s404] %v473
        %v475 = vld [vmem:[%s411 + $0xa4] sm:%s404]
        %476 = vst [vmem:[%s412 + $0x7c] sm:%s404] %v475
        %v477 = vld [vmem:[%s411 + $0x74] sm:%s404]
        %478 = vst [vmem:[%s412 + $0x80] sm:%s404] %v477
        %v479 = vld [vmem:[%s411 + $0xa8] sm:%s404]
        %480 = vst [vmem:[%s412 + $0x84] sm:%s404] %v479
        %v481 = vld [vmem:[%s411 + $0x78] sm:%s404]
        %482 = vst [vmem:[%s412 + $0x88] sm:%s404] %v481
        %v483 = vld [vmem:[%s411 + $0xac] sm:%s404]
        %484 = vst [vmem:[%s412 + $0x8c] sm:%s404] %v483
        %v485 = vld [vmem:[%s411 + $0x7c] sm:%s404]
        %486 = vst [vmem:[%s412 + $0x90] sm:%s404] %v485
        %v487 = vld [vmem:[%s411 + $0xb0] sm:%s404]
        %488 = vst [vmem:[%s412 + $0x94] sm:%s404] %v487
        %v489 = vld [vmem:[%s411 + $0x80] sm:%s404]
        %490 = vst [vmem:[%s412 + $0x98] sm:%s404] %v489
        %v491 = vld [vmem:[%s411 + $0xb4] sm:%s404]
        %492 = vst [vmem:[%s412 + $0x9c] sm:%s404] %v491
        %v493 = vld [vmem:[%s411 + $0x84] sm:%s404]
        %494 = vst [vmem:[%s412 + $0xa0] sm:%s404] %v493
        %v495 = vld [vmem:[%s411 + $0xb8] sm:%s404]
        %496 = vst [vmem:[%s412 + $0xa4] sm:%s404] %v495
        %v497 = vld [vmem:[%s411 + $0x88] sm:%s404]
        %498 = vst [vmem:[%s412 + $0xa8] sm:%s404] %v497
        %v499 = vld [vmem:[%s411 + $0xbc] sm:%s404]
        %500 = vst [vmem:[%s412 + $0xac] sm:%s404] %v499
        %v501 = vld [vmem:[%s411 + $0x8c] sm:%s404]
        %502 = vst [vmem:[%s412 + $0xb0] sm:%s404] %v501
        %v503 = vld [vmem:[%s411 + $0xc0] sm:%s404]
        %504 = vst [vmem:[%s412 + $0xb4] sm:%s404] %v503
        %v505 = vld [vmem:[%s411 + $0x90] sm:%s404]
        %506 = vst [vmem:[%s412 + $0xb8] sm:%s404] %v505
        %v507 = vld [vmem:[%s411 + $0xc4] sm:%s404]
        %508 = vst [vmem:[%s412 + $0xbc] sm:%s404] %v507
        %v509 = vld [vmem:[%s411 + $0x94] sm:%s404]
        %510 = vst [vmem:[%s412 + $0xc0] sm:%s404] %v509
        %v511 = vld [vmem:[%s411 + $0xc8] sm:%s404]
        %512 = vst [vmem:[%s412 + $0xc4] sm:%s404] %v511
        %v513 = vld [vmem:[%s411 + $0x98] sm:%s404]
        %514 = vst [vmem:[%s412 + $0xc8] sm:%s404] %v513
        %v515 = vld [vmem:[%s411 + $0xcc] sm:%s404]
        %516 = vst [vmem:[%s412 + $0xcc] sm:%s404] %v515
        %v517 = vld [vmem:[%s411 + $0xd0] sm:%s404]
        %518 = vst [vmem:[%s412 + $0xd0] sm:%s404] %v517
        %v519 = vld [vmem:[%s411 + $0x104] sm:%s404]
        %520 = vst [vmem:[%s412 + $0xd4] sm:%s404] %v519
        %v521 = vld [vmem:[%s411 + $0xd4] sm:%s404]
        %522 = vst [vmem:[%s412 + $0xd8] sm:%s404] %v521
        %v523 = vld [vmem:[%s411 + $0x108] sm:%s404]
        %524 = vst [vmem:[%s412 + $0xdc] sm:%s404] %v523
        %v525 = vld [vmem:[%s411 + $0xd8] sm:%s404]
        %526 = vst [vmem:[%s412 + $0xe0] sm:%s404] %v525
        %v527 = vld [vmem:[%s411 + $0x10c] sm:%s404]
        %528 = vst [vmem:[%s412 + $0xe4] sm:%s404] %v527
        %v529 = vld [vmem:[%s411 + $0xdc] sm:%s404]
        %530 = vst [vmem:[%s412 + $0xe8] sm:%s404] %v529
        %v531 = vld [vmem:[%s411 + $0x110] sm:%s404]
        %532 = vst [vmem:[%s412 + $0xec] sm:%s404] %v531
        %v533 = vld [vmem:[%s411 + $0xe0] sm:%s404]
        %534 = vst [vmem:[%s412 + $0xf0] sm:%s404] %v533
        %v535 = vld [vmem:[%s411 + $0x114] sm:%s404]
        %536 = vst [vmem:[%s412 + $0xf4] sm:%s404] %v535
        %v537 = vld [vmem:[%s411 + $0xe4] sm:%s404]
        %538 = vst [vmem:[%s412 + $0xf8] sm:%s404] %v537
        %v539 = vld [vmem:[%s411 + $0x118] sm:%s404]
        %540 = vst [vmem:[%s412 + $0xfc] sm:%s404] %v539
        %v541 = vld [vmem:[%s411 + $0xe8] sm:%s404]
        %542 = vst [vmem:[%s412 + $0x100] sm:%s404] %v541
        %v543 = vld [vmem:[%s411 + $0x11c] sm:%s404]
        %544 = vst [vmem:[%s412 + $0x104] sm:%s404] %v543
        %v545 = vld [vmem:[%s411 + $0xec] sm:%s404]
        %546 = vst [vmem:[%s412 + $0x108] sm:%s404] %v545
        %v547 = vld [vmem:[%s411 + $0x120] sm:%s404]
        %548 = vst [vmem:[%s412 + $0x10c] sm:%s404] %v547
        %v549 = vld [vmem:[%s411 + $0xf0] sm:%s404]
        %550 = vst [vmem:[%s412 + $0x110] sm:%s404] %v549
        %v551 = vld [vmem:[%s411 + $0x124] sm:%s404]
        %552 = vst [vmem:[%s412 + $0x114] sm:%s404] %v551
        %v553 = vld [vmem:[%s411 + $0xf4] sm:%s404]
        %554 = vst [vmem:[%s412 + $0x118] sm:%s404] %v553
        %v555 = vld [vmem:[%s411 + $0x128] sm:%s404]
        %556 = vst [vmem:[%s412 + $0x11c] sm:%s404] %v555
        %v557 = vld [vmem:[%s411 + $0xf8] sm:%s404]
        %558 = vst [vmem:[%s412 + $0x120] sm:%s404] %v557
        %v559 = vld [vmem:[%s411 + $0x12c] sm:%s404]
        %560 = vst [vmem:[%s412 + $0x124] sm:%s404] %v559
        %v561 = vld [vmem:[%s411 + $0xfc] sm:%s404]
        %562 = vst [vmem:[%s412 + $0x128] sm:%s404] %v561
        %v563 = vld [vmem:[%s411 + $0x130] sm:%s404]
        %564 = vst [vmem:[%s412 + $0x12c] sm:%s404] %v563
        %v565 = vld [vmem:[%s411 + $0x100] sm:%s404]
        %566 = vst [vmem:[%s412 + $0x130] sm:%s404] %v565
        %v567 = vld [vmem:[%s411 + $0x134] sm:%s404]
        %568 = vst [vmem:[%s412 + $0x134] sm:%s404] %v567
        %v569 = vld [vmem:[%s411 + $0x138] sm:%s404]
        %570 = vst [vmem:[%s412 + $0x138] sm:%s404] %v569
        %v571 = vld [vmem:[%s411 + $0x16c] sm:%s404]
        %572 = vst [vmem:[%s412 + $0x13c] sm:%s404] %v571
        %v573 = vld [vmem:[%s411 + $0x13c] sm:%s404]
        %574 = vst [vmem:[%s412 + $0x140] sm:%s404] %v573
        %v575 = vld [vmem:[%s411 + $0x170] sm:%s404]
        %576 = vst [vmem:[%s412 + $0x144] sm:%s404] %v575
        %v577 = vld [vmem:[%s411 + $0x140] sm:%s404]
        %578 = vst [vmem:[%s412 + $0x148] sm:%s404] %v577
        %v579 = vld [vmem:[%s411 + $0x174] sm:%s404]
        %580 = vst [vmem:[%s412 + $0x14c] sm:%s404] %v579
        %v581 = vld [vmem:[%s411 + $0x144] sm:%s404]
        %582 = vst [vmem:[%s412 + $0x150] sm:%s404] %v581
        %v583 = vld [vmem:[%s411 + $0x178] sm:%s404]
        %584 = vst [vmem:[%s412 + $0x154] sm:%s404] %v583
        %v585 = vld [vmem:[%s411 + $0x148] sm:%s404]
        %586 = vst [vmem:[%s412 + $0x158] sm:%s404] %v585
        %v587 = vld [vmem:[%s411 + $0x17c] sm:%s404]
        %588 = vst [vmem:[%s412 + $0x15c] sm:%s404] %v587
        %v589 = vld [vmem:[%s411 + $0x14c] sm:%s404]
        %590 = vst [vmem:[%s412 + $0x160] sm:%s404] %v589
        %v591 = vld [vmem:[%s411 + $0x180] sm:%s404]
        %592 = vst [vmem:[%s412 + $0x164] sm:%s404] %v591
        %v593 = vld [vmem:[%s411 + $0x150] sm:%s404]
        %594 = vst [vmem:[%s412 + $0x168] sm:%s404] %v593
        %v595 = vld [vmem:[%s411 + $0x184] sm:%s404]
        %596 = vst [vmem:[%s412 + $0x16c] sm:%s404] %v595
        %v597 = vld [vmem:[%s411 + $0x154] sm:%s404]
        %598 = vst [vmem:[%s412 + $0x170] sm:%s404] %v597
        %v599 = vld [vmem:[%s411 + $0x188] sm:%s404]
        %600 = vst [vmem:[%s412 + $0x174] sm:%s404] %v599
        %v601 = vld [vmem:[%s411 + $0x158] sm:%s404]
        %602 = vst [vmem:[%s412 + $0x178] sm:%s404] %v601
        %v603 = vld [vmem:[%s411 + $0x18c] sm:%s404]
        %604 = vst [vmem:[%s412 + $0x17c] sm:%s404] %v603
        %v605 = vld [vmem:[%s411 + $0x15c] sm:%s404]
        %606 = vst [vmem:[%s412 + $0x180] sm:%s404] %v605
        %v607 = vld [vmem:[%s411 + $0x190] sm:%s404]
        %608 = vst [vmem:[%s412 + $0x184] sm:%s404] %v607
        %v609 = vld [vmem:[%s411 + $0x160] sm:%s404]
        %610 = vst [vmem:[%s412 + $0x188] sm:%s404] %v609
        %v611 = vld [vmem:[%s411 + $0x194] sm:%s404]
        %612 = vst [vmem:[%s412 + $0x18c] sm:%s404] %v611
        %v613 = vld [vmem:[%s411 + $0x164] sm:%s404]
        %614 = vst [vmem:[%s412 + $0x190] sm:%s404] %v613
        %v615 = vld [vmem:[%s411 + $0x198] sm:%s404]
        %616 = vst [vmem:[%s412 + $0x194] sm:%s404] %v615
        %v617 = vld [vmem:[%s411 + $0x168] sm:%s404]
        %618 = vst [vmem:[%s412 + $0x198] sm:%s404] %v617
        %v619 = vld [vmem:[%s411 + $0x19c] sm:%s404]
        %620 = vst [vmem:[%s412 + $0x19c] sm:%s404] %v619
        %v621 = vld [vmem:[%s411 + $0x1a0] sm:%s404]
        %622 = vst [vmem:[%s412 + $0x1a0] sm:%s404] %v621
        %v623 = vld [vmem:[%s411 + $0x1d4] sm:%s404]
        %624 = vst [vmem:[%s412 + $0x1a4] sm:%s404] %v623
        %v625 = vld [vmem:[%s411 + $0x1a4] sm:%s404]
        %626 = vst [vmem:[%s412 + $0x1a8] sm:%s404] %v625
        %v627 = vld [vmem:[%s411 + $0x1d8] sm:%s404]
        %628 = vst [vmem:[%s412 + $0x1ac] sm:%s404] %v627
        %v629 = vld [vmem:[%s411 + $0x1a8] sm:%s404]
        %630 = vst [vmem:[%s412 + $0x1b0] sm:%s404] %v629
        %v631 = vld [vmem:[%s411 + $0x1dc] sm:%s404]
        %632 = vst [vmem:[%s412 + $0x1b4] sm:%s404] %v631
        %v633 = vld [vmem:[%s411 + $0x1ac] sm:%s404]
        %634 = vst [vmem:[%s412 + $0x1b8] sm:%s404] %v633
        %v635 = vld [vmem:[%s411 + $0x1e0] sm:%s404]
        %636 = vst [vmem:[%s412 + $0x1bc] sm:%s404] %v635
        %v637 = vld [vmem:[%s411 + $0x1b0] sm:%s404]
        %638 = vst [vmem:[%s412 + $0x1c0] sm:%s404] %v637
        %v639 = vld [vmem:[%s411 + $0x1e4] sm:%s404]
        %640 = vst [vmem:[%s412 + $0x1c4] sm:%s404] %v639
        %v641 = vld [vmem:[%s411 + $0x1b4] sm:%s404]
        %642 = vst [vmem:[%s412 + $0x1c8] sm:%s404] %v641
        %v643 = vld [vmem:[%s411 + $0x1e8] sm:%s404]
        %644 = vst [vmem:[%s412 + $0x1cc] sm:%s404] %v643
        %v645 = vld [vmem:[%s411 + $0x1b8] sm:%s404]
        %646 = vst [vmem:[%s412 + $0x1d0] sm:%s404] %v645
        %v647 = vld [vmem:[%s411 + $0x1ec] sm:%s404]
        %648 = vst [vmem:[%s412 + $0x1d4] sm:%s404] %v647
        %v649 = vld [vmem:[%s411 + $0x1bc] sm:%s404]
        %650 = vst [vmem:[%s412 + $0x1d8] sm:%s404] %v649
        %v651 = vld [vmem:[%s411 + $0x1f0] sm:%s404]
        %652 = vst [vmem:[%s412 + $0x1dc] sm:%s404] %v651
        %v653 = vld [vmem:[%s411 + $0x1c0] sm:%s404]
        %654 = vst [vmem:[%s412 + $0x1e0] sm:%s404] %v653
        %v655 = vld [vmem:[%s411 + $0x1f4] sm:%s404]
        %656 = vst [vmem:[%s412 + $0x1e4] sm:%s404] %v655
        %v657 = vld [vmem:[%s411 + $0x1c4] sm:%s404]
        %658 = vst [vmem:[%s412 + $0x1e8] sm:%s404] %v657
        %v659 = vld [vmem:[%s411 + $0x1f8] sm:%s404]
        %660 = vst [vmem:[%s412 + $0x1ec] sm:%s404] %v659
        %v661 = vld [vmem:[%s411 + $0x1c8] sm:%s404]
        %662 = vst [vmem:[%s412 + $0x1f0] sm:%s404] %v661
        %v663 = vld [vmem:[%s411 + $0x1fc] sm:%s404]
        %664 = vst [vmem:[%s412 + $0x1f4] sm:%s404] %v663
        %v665 = vld [vmem:[%s411 + $0x1cc] sm:%s404]
        %666 = vst [vmem:[%s412 + $0x1f8] sm:%s404] %v665
        %v667 = vld [vmem:[%s411 + $0x200] sm:%s404]
        %668 = vst [vmem:[%s412 + $0x1fc] sm:%s404] %v667
        %v669 = vld [vmem:[%s411 + $0x1d0] sm:%s404]
        %670 = vst [vmem:[%s412 + $0x200] sm:%s404] %v669
        %v671 = vld [vmem:[%s411 + $0x204] sm:%s404]
        %672 = vst [vmem:[%s412 + $0x204] sm:%s404] %v671
        %v673 = vld [vmem:[%s411 + $0x208] sm:%s404]
        %674 = vst [vmem:[%s412 + $0x208] sm:%s404] %v673
        %v675 = vld [vmem:[%s411 + $0x23c] sm:%s404]
        %676 = vst [vmem:[%s412 + $0x20c] sm:%s404] %v675
        %v677 = vld [vmem:[%s411 + $0x20c] sm:%s404]
        %678 = vst [vmem:[%s412 + $0x210] sm:%s404] %v677
        %v679 = vld [vmem:[%s411 + $0x240] sm:%s404]
        %680 = vst [vmem:[%s412 + $0x214] sm:%s404] %v679
        %v681 = vld [vmem:[%s411 + $0x210] sm:%s404]
        %682 = vst [vmem:[%s412 + $0x218] sm:%s404] %v681
        %v683 = vld [vmem:[%s411 + $0x244] sm:%s404]
        %684 = vst [vmem:[%s412 + $0x21c] sm:%s404] %v683
        %v685 = vld [vmem:[%s411 + $0x214] sm:%s404]
        %686 = vst [vmem:[%s412 + $0x220] sm:%s404] %v685
        %v687 = vld [vmem:[%s411 + $0x248] sm:%s404]
        %688 = vst [vmem:[%s412 + $0x224] sm:%s404] %v687
        %v689 = vld [vmem:[%s411 + $0x218] sm:%s404]
        %690 = vst [vmem:[%s412 + $0x228] sm:%s404] %v689
        %v691 = vld [vmem:[%s411 + $0x24c] sm:%s404]
        %692 = vst [vmem:[%s412 + $0x22c] sm:%s404] %v691
        %v693 = vld [vmem:[%s411 + $0x21c] sm:%s404]
        %694 = vst [vmem:[%s412 + $0x230] sm:%s404] %v693
        %v695 = vld [vmem:[%s411 + $0x250] sm:%s404]
        %696 = vst [vmem:[%s412 + $0x234] sm:%s404] %v695
        %v697 = vld [vmem:[%s411 + $0x220] sm:%s404]
        %698 = vst [vmem:[%s412 + $0x238] sm:%s404] %v697
        %v699 = vld [vmem:[%s411 + $0x254] sm:%s404]
        %700 = vst [vmem:[%s412 + $0x23c] sm:%s404] %v699
        %v701 = vld [vmem:[%s411 + $0x224] sm:%s404]
        %702 = vst [vmem:[%s412 + $0x240] sm:%s404] %v701
        %v703 = vld [vmem:[%s411 + $0x258] sm:%s404]
        %704 = vst [vmem:[%s412 + $0x244] sm:%s404] %v703
        %v705 = vld [vmem:[%s411 + $0x228] sm:%s404]
        %706 = vst [vmem:[%s412 + $0x248] sm:%s404] %v705
        %v707 = vld [vmem:[%s411 + $0x25c] sm:%s404]
        %708 = vst [vmem:[%s412 + $0x24c] sm:%s404] %v707
        %v709 = vld [vmem:[%s411 + $0x22c] sm:%s404]
        %710 = vst [vmem:[%s412 + $0x250] sm:%s404] %v709
        %v711 = vld [vmem:[%s411 + $0x260] sm:%s404]
        %712 = vst [vmem:[%s412 + $0x254] sm:%s404] %v711
        %v713 = vld [vmem:[%s411 + $0x230] sm:%s404]
        %714 = vst [vmem:[%s412 + $0x258] sm:%s404] %v713
        %v715 = vld [vmem:[%s411 + $0x264] sm:%s404]
        %716 = vst [vmem:[%s412 + $0x25c] sm:%s404] %v715
        %v717 = vld [vmem:[%s411 + $0x234] sm:%s404]
        %718 = vst [vmem:[%s412 + $0x260] sm:%s404] %v717
        %v719 = vld [vmem:[%s411 + $0x268] sm:%s404]
        %720 = vst [vmem:[%s412 + $0x264] sm:%s404] %v719
        %v721 = vld [vmem:[%s411 + $0x238] sm:%s404]
        %722 = vst [vmem:[%s412 + $0x268] sm:%s404] %v721
        %v723 = vld [vmem:[%s411 + $0x26c] sm:%s404]
        %724 = vst [vmem:[%s412 + $0x26c] sm:%s404] %v723
        %v725 = vld [vmem:[%s411 + $0x270] sm:%s404]
        %726 = vst [vmem:[%s412 + $0x270] sm:%s404] %v725
        %v727 = vld [vmem:[%s411 + $0x2a4] sm:%s404]
        %728 = vst [vmem:[%s412 + $0x274] sm:%s404] %v727
        %v729 = vld [vmem:[%s411 + $0x274] sm:%s404]
        %730 = vst [vmem:[%s412 + $0x278] sm:%s404] %v729
        %v731 = vld [vmem:[%s411 + $0x2a8] sm:%s404]
        %732 = vst [vmem:[%s412 + $0x27c] sm:%s404] %v731
        %v733 = vld [vmem:[%s411 + $0x278] sm:%s404]
        %734 = vst [vmem:[%s412 + $0x280] sm:%s404] %v733
        %v735 = vld [vmem:[%s411 + $0x2ac] sm:%s404]
        %736 = vst [vmem:[%s412 + $0x284] sm:%s404] %v735
        %v737 = vld [vmem:[%s411 + $0x27c] sm:%s404]
        %738 = vst [vmem:[%s412 + $0x288] sm:%s404] %v737
        %v739 = vld [vmem:[%s411 + $0x2b0] sm:%s404]
        %740 = vst [vmem:[%s412 + $0x28c] sm:%s404] %v739
        %v741 = vld [vmem:[%s411 + $0x280] sm:%s404]
        %742 = vst [vmem:[%s412 + $0x290] sm:%s404] %v741
        %v743 = vld [vmem:[%s411 + $0x2b4] sm:%s404]
        %744 = vst [vmem:[%s412 + $0x294] sm:%s404] %v743
        %v745 = vld [vmem:[%s411 + $0x284] sm:%s404]
        %746 = vst [vmem:[%s412 + $0x298] sm:%s404] %v745
        %v747 = vld [vmem:[%s411 + $0x2b8] sm:%s404]
        %748 = vst [vmem:[%s412 + $0x29c] sm:%s404] %v747
        %v749 = vld [vmem:[%s411 + $0x288] sm:%s404]
        %750 = vst [vmem:[%s412 + $0x2a0] sm:%s404] %v749
        %v751 = vld [vmem:[%s411 + $0x2bc] sm:%s404]
        %752 = vst [vmem:[%s412 + $0x2a4] sm:%s404] %v751
        %v753 = vld [vmem:[%s411 + $0x28c] sm:%s404]
        %754 = vst [vmem:[%s412 + $0x2a8] sm:%s404] %v753
        %v755 = vld [vmem:[%s411 + $0x2c0] sm:%s404]
        %756 = vst [vmem:[%s412 + $0x2ac] sm:%s404] %v755
        %v757 = vld [vmem:[%s411 + $0x290] sm:%s404]
        %758 = vst [vmem:[%s412 + $0x2b0] sm:%s404] %v757
        %v759 = vld [vmem:[%s411 + $0x2c4] sm:%s404]
        %760 = vst [vmem:[%s412 + $0x2b4] sm:%s404] %v759
        %v761 = vld [vmem:[%s411 + $0x294] sm:%s404]
        %762 = vst [vmem:[%s412 + $0x2b8] sm:%s404] %v761
        %v763 = vld [vmem:[%s411 + $0x2c8] sm:%s404]
        %764 = vst [vmem:[%s412 + $0x2bc] sm:%s404] %v763
        %v765 = vld [vmem:[%s411 + $0x298] sm:%s404]
        %766 = vst [vmem:[%s412 + $0x2c0] sm:%s404] %v765
        %v767 = vld [vmem:[%s411 + $0x2cc] sm:%s404]
        %768 = vst [vmem:[%s412 + $0x2c4] sm:%s404] %v767
        %v769 = vld [vmem:[%s411 + $0x29c] sm:%s404]
        %770 = vst [vmem:[%s412 + $0x2c8] sm:%s404] %v769
        %v771 = vld [vmem:[%s411 + $0x2d0] sm:%s404]
        %772 = vst [vmem:[%s412 + $0x2cc] sm:%s404] %v771
        %v773 = vld [vmem:[%s411 + $0x2a0] sm:%s404]
        %774 = vst [vmem:[%s412 + $0x2d0] sm:%s404] %v773
        %v775 = vld [vmem:[%s411 + $0x2d4] sm:%s404]
        %776 = vst [vmem:[%s412 + $0x2d4] sm:%s404] %v775
        %v777 = vld [vmem:[%s411 + $0x2d8] sm:%s404]
        %778 = vst [vmem:[%s412 + $0x2d8] sm:%s404] %v777
        %v779 = vld [vmem:[%s411 + $0x30c] sm:%s404]
        %780 = vst [vmem:[%s412 + $0x2dc] sm:%s404] %v779
        %v781 = vld [vmem:[%s411 + $0x2dc] sm:%s404]
        %782 = vst [vmem:[%s412 + $0x2e0] sm:%s404] %v781
        %v783 = vld [vmem:[%s411 + $0x310] sm:%s404]
        %784 = vst [vmem:[%s412 + $0x2e4] sm:%s404] %v783
        %v785 = vld [vmem:[%s411 + $0x2e0] sm:%s404]
        %786 = vst [vmem:[%s412 + $0x2e8] sm:%s404] %v785
        %v787 = vld [vmem:[%s411 + $0x314] sm:%s404]
        %788 = vst [vmem:[%s412 + $0x2ec] sm:%s404] %v787
        %v789 = vld [vmem:[%s411 + $0x2e4] sm:%s404]
        %790 = vst [vmem:[%s412 + $0x2f0] sm:%s404] %v789
        %v791 = vld [vmem:[%s411 + $0x318] sm:%s404]
        %792 = vst [vmem:[%s412 + $0x2f4] sm:%s404] %v791
        %v793 = vld [vmem:[%s411 + $0x2e8] sm:%s404]
        %794 = vst [vmem:[%s412 + $0x2f8] sm:%s404] %v793
        %v795 = vld [vmem:[%s411 + $0x31c] sm:%s404]
        %796 = vst [vmem:[%s412 + $0x2fc] sm:%s404] %v795
        %v797 = vld [vmem:[%s411 + $0x2ec] sm:%s404]
        %798 = vst [vmem:[%s412 + $0x300] sm:%s404] %v797
        %v799 = vld [vmem:[%s411 + $0x320] sm:%s404]
        %800 = vst [vmem:[%s412 + $0x304] sm:%s404] %v799
        %v801 = vld [vmem:[%s411 + $0x2f0] sm:%s404]
        %802 = vst [vmem:[%s412 + $0x308] sm:%s404] %v801
        %v803 = vld [vmem:[%s411 + $0x324] sm:%s404]
        %804 = vst [vmem:[%s412 + $0x30c] sm:%s404] %v803
        %v805 = vld [vmem:[%s411 + $0x2f4] sm:%s404]
        %806 = vst [vmem:[%s412 + $0x310] sm:%s404] %v805
        %v807 = vld [vmem:[%s411 + $0x328] sm:%s404]
        %808 = vst [vmem:[%s412 + $0x314] sm:%s404] %v807
        %v809 = vld [vmem:[%s411 + $0x2f8] sm:%s404]
        %810 = vst [vmem:[%s412 + $0x318] sm:%s404] %v809
        %v811 = vld [vmem:[%s411 + $0x32c] sm:%s404]
        %812 = vst [vmem:[%s412 + $0x31c] sm:%s404] %v811
        %v813 = vld [vmem:[%s411 + $0x2fc] sm:%s404]
        %814 = vst [vmem:[%s412 + $0x320] sm:%s404] %v813
        %v815 = vld [vmem:[%s411 + $0x330] sm:%s404]
        %816 = vst [vmem:[%s412 + $0x324] sm:%s404] %v815
        %v817 = vld [vmem:[%s411 + $0x300] sm:%s404]
        %818 = vst [vmem:[%s412 + $0x328] sm:%s404] %v817
        %v819 = vld [vmem:[%s411 + $0x334] sm:%s404]
        %820 = vst [vmem:[%s412 + $0x32c] sm:%s404] %v819
        %v821 = vld [vmem:[%s411 + $0x304] sm:%s404]
        %822 = vst [vmem:[%s412 + $0x330] sm:%s404] %v821
        %v823 = vld [vmem:[%s411 + $0x338] sm:%s404]
        %824 = vst [vmem:[%s412 + $0x334] sm:%s404] %v823
        %v825 = vld [vmem:[%s411 + $0x308] sm:%s404]
        %826 = vst [vmem:[%s412 + $0x338] sm:%s404] %v825
        %v827 = vld [vmem:[%s411 + $0x33c] sm:%s404]
        %828 = vst [vmem:[%s412 + $0x33c] sm:%s404] %v827
        %v829 = vld [vmem:[%s411 + $0x340] sm:%s404]
        %830 = vst [vmem:[%s412 + $0x340] sm:%s404] %v829
        %v831 = vld [vmem:[%s411 + $0x374] sm:%s404]
        %832 = vst [vmem:[%s412 + $0x344] sm:%s404] %v831
        %v833 = vld [vmem:[%s411 + $0x344] sm:%s404]
        %834 = vst [vmem:[%s412 + $0x348] sm:%s404] %v833
        %v835 = vld [vmem:[%s411 + $0x378] sm:%s404]
        %836 = vst [vmem:[%s412 + $0x34c] sm:%s404] %v835
        %v837 = vld [vmem:[%s411 + $0x348] sm:%s404]
        %838 = vst [vmem:[%s412 + $0x350] sm:%s404] %v837
        %v839 = vld [vmem:[%s411 + $0x37c] sm:%s404]
        %840 = vst [vmem:[%s412 + $0x354] sm:%s404] %v839
        %v841 = vld [vmem:[%s411 + $0x34c] sm:%s404]
        %842 = vst [vmem:[%s412 + $0x358] sm:%s404] %v841
        %v843 = vld [vmem:[%s411 + $0x380] sm:%s404]
        %844 = vst [vmem:[%s412 + $0x35c] sm:%s404] %v843
        %v845 = vld [vmem:[%s411 + $0x350] sm:%s404]
        %846 = vst [vmem:[%s412 + $0x360] sm:%s404] %v845
        %v847 = vld [vmem:[%s411 + $0x384] sm:%s404]
        %848 = vst [vmem:[%s412 + $0x364] sm:%s404] %v847
        %v849 = vld [vmem:[%s411 + $0x354] sm:%s404]
        %850 = vst [vmem:[%s412 + $0x368] sm:%s404] %v849
        %v851 = vld [vmem:[%s411 + $0x388] sm:%s404]
        %852 = vst [vmem:[%s412 + $0x36c] sm:%s404] %v851
        %v853 = vld [vmem:[%s411 + $0x358] sm:%s404]
        %854 = vst [vmem:[%s412 + $0x370] sm:%s404] %v853
        %v855 = vld [vmem:[%s411 + $0x38c] sm:%s404]
        %856 = vst [vmem:[%s412 + $0x374] sm:%s404] %v855
        %v857 = vld [vmem:[%s411 + $0x35c] sm:%s404]
        %858 = vst [vmem:[%s412 + $0x378] sm:%s404] %v857
        %v859 = vld [vmem:[%s411 + $0x390] sm:%s404]
        %860 = vst [vmem:[%s412 + $0x37c] sm:%s404] %v859
        %v861 = vld [vmem:[%s411 + $0x360] sm:%s404]
        %862 = vst [vmem:[%s412 + $0x380] sm:%s404] %v861
        %v863 = vld [vmem:[%s411 + $0x394] sm:%s404]
        %864 = vst [vmem:[%s412 + $0x384] sm:%s404] %v863
        %v865 = vld [vmem:[%s411 + $0x364] sm:%s404]
        %866 = vst [vmem:[%s412 + $0x388] sm:%s404] %v865
        %v867 = vld [vmem:[%s411 + $0x398] sm:%s404]
        %868 = vst [vmem:[%s412 + $0x38c] sm:%s404] %v867
        %v869 = vld [vmem:[%s411 + $0x368] sm:%s404]
        %870 = vst [vmem:[%s412 + $0x390] sm:%s404] %v869
        %v871 = vld [vmem:[%s411 + $0x39c] sm:%s404]
        %872 = vst [vmem:[%s412 + $0x394] sm:%s404] %v871
        %v873 = vld [vmem:[%s411 + $0x36c] sm:%s404]
        %874 = vst [vmem:[%s412 + $0x398] sm:%s404] %v873
        %v875 = vld [vmem:[%s411 + $0x3a0] sm:%s404]
        %876 = vst [vmem:[%s412 + $0x39c] sm:%s404] %v875
        %v877 = vld [vmem:[%s411 + $0x370] sm:%s404]
        %878 = vst [vmem:[%s412 + $0x3a0] sm:%s404] %v877
        %v879 = vld [vmem:[%s411 + $0x3a4] sm:%s404]
        %880 = vst [vmem:[%s412 + $0x3a4] sm:%s404] %v879
        %v881 = vld [vmem:[%s411 + $0x3a8] sm:%s404]
        %882 = vst [vmem:[%s412 + $0x3a8] sm:%s404] %v881
        %v883 = vld [vmem:[%s411 + $0x3dc] sm:%s404]
        %884 = vst [vmem:[%s412 + $0x3ac] sm:%s404] %v883
        %v885 = vld [vmem:[%s411 + $0x3ac] sm:%s404]
        %886 = vst [vmem:[%s412 + $0x3b0] sm:%s404] %v885
        %v887 = vld [vmem:[%s411 + $0x3e0] sm:%s404]
        %888 = vst [vmem:[%s412 + $0x3b4] sm:%s404] %v887
        %v889 = vld [vmem:[%s411 + $0x3b0] sm:%s404]
        %890 = vst [vmem:[%s412 + $0x3b8] sm:%s404] %v889
        %v891 = vld [vmem:[%s411 + $0x3e4] sm:%s404]
        %892 = vst [vmem:[%s412 + $0x3bc] sm:%s404] %v891
        %v893 = vld [vmem:[%s411 + $0x3b4] sm:%s404]
        %894 = vst [vmem:[%s412 + $0x3c0] sm:%s404] %v893
        %v895 = vld [vmem:[%s411 + $0x3e8] sm:%s404]
        %896 = vst [vmem:[%s412 + $0x3c4] sm:%s404] %v895
        %v897 = vld [vmem:[%s411 + $0x3b8] sm:%s404]
        %898 = vst [vmem:[%s412 + $0x3c8] sm:%s404] %v897
        %v899 = vld [vmem:[%s411 + $0x3ec] sm:%s404]
        %900 = vst [vmem:[%s412 + $0x3cc] sm:%s404] %v899
        %v901 = vld [vmem:[%s411 + $0x3bc] sm:%s404]
        %902 = vst [vmem:[%s412 + $0x3d0] sm:%s404] %v901
        %v903 = vld [vmem:[%s411 + $0x3f0] sm:%s404]
        %904 = vst [vmem:[%s412 + $0x3d4] sm:%s404] %v903
        %v905 = vld [vmem:[%s411 + $0x3c0] sm:%s404]
        %906 = vst [vmem:[%s412 + $0x3d8] sm:%s404] %v905
        %v907 = vld [vmem:[%s411 + $0x3f4] sm:%s404]
        %908 = vst [vmem:[%s412 + $0x3dc] sm:%s404] %v907
        %v909 = vld [vmem:[%s411 + $0x3c4] sm:%s404]
        %910 = vst [vmem:[%s412 + $0x3e0] sm:%s404] %v909
        %v911 = vld [vmem:[%s411 + $0x3f8] sm:%s404]
        %912 = vst [vmem:[%s412 + $0x3e4] sm:%s404] %v911
        %v913 = vld [vmem:[%s411 + $0x3c8] sm:%s404]
        %914 = vst [vmem:[%s412 + $0x3e8] sm:%s404] %v913
        %v915 = vld [vmem:[%s411 + $0x3fc] sm:%s404]
        %916 = vst [vmem:[%s412 + $0x3ec] sm:%s404] %v915
        %v917 = vld [vmem:[%s411 + $0x3cc] sm:%s404]
        %918 = vst [vmem:[%s412 + $0x3f0] sm:%s404] %v917
        %v919 = vld [vmem:[%s411 + $0x400] sm:%s404]
        %920 = vst [vmem:[%s412 + $0x3f4] sm:%s404] %v919
        %v921 = vld [vmem:[%s411 + $0x3d0] sm:%s404]
        %922 = vst [vmem:[%s412 + $0x3f8] sm:%s404] %v921
        %v923 = vld [vmem:[%s411 + $0x404] sm:%s404]
        %924 = vst [vmem:[%s412 + $0x3fc] sm:%s404] %v923
        %v925 = vld [vmem:[%s411 + $0x3d4] sm:%s404]
        %926 = vst [vmem:[%s412 + $0x400] sm:%s404] %v925
        %v927 = vld [vmem:[%s411 + $0x408] sm:%s404]
        %928 = vst [vmem:[%s412 + $0x404] sm:%s404] %v927
        %v929 = vld [vmem:[%s411 + $0x3d8] sm:%s404]
        %930 = vst [vmem:[%s412 + $0x408] sm:%s404] %v929
        %v931 = vld [vmem:[%s411 + $0x40c] sm:%s404]
        %932 = vst [vmem:[%s412 + $0x40c] sm:%s404] %v931
        %v933 = vld [vmem:[%s411 + $0x410] sm:%s404]
        %934 = vst [vmem:[%s412 + $0x410] sm:%s404] %v933
        %v935 = vld [vmem:[%s411 + $0x444] sm:%s404]
        %936 = vst [vmem:[%s412 + $0x414] sm:%s404] %v935
        %v937 = vld [vmem:[%s411 + $0x414] sm:%s404]
        %938 = vst [vmem:[%s412 + $0x418] sm:%s404] %v937
        %v939 = vld [vmem:[%s411 + $0x448] sm:%s404]
        %940 = vst [vmem:[%s412 + $0x41c] sm:%s404] %v939
        %v941 = vld [vmem:[%s411 + $0x418] sm:%s404]
        %942 = vst [vmem:[%s412 + $0x420] sm:%s404] %v941
        %v943 = vld [vmem:[%s411 + $0x44c] sm:%s404]
        %944 = vst [vmem:[%s412 + $0x424] sm:%s404] %v943
        %v945 = vld [vmem:[%s411 + $0x41c] sm:%s404]
        %946 = vst [vmem:[%s412 + $0x428] sm:%s404] %v945
        %v947 = vld [vmem:[%s411 + $0x450] sm:%s404]
        %948 = vst [vmem:[%s412 + $0x42c] sm:%s404] %v947
        %v949 = vld [vmem:[%s411 + $0x420] sm:%s404]
        %950 = vst [vmem:[%s412 + $0x430] sm:%s404] %v949
        %v951 = vld [vmem:[%s411 + $0x454] sm:%s404]
        %952 = vst [vmem:[%s412 + $0x434] sm:%s404] %v951
        %v953 = vld [vmem:[%s411 + $0x424] sm:%s404]
        %954 = vst [vmem:[%s412 + $0x438] sm:%s404] %v953
        %v955 = vld [vmem:[%s411 + $0x458] sm:%s404]
        %956 = vst [vmem:[%s412 + $0x43c] sm:%s404] %v955
        %v957 = vld [vmem:[%s411 + $0x428] sm:%s404]
        %958 = vst [vmem:[%s412 + $0x440] sm:%s404] %v957
        %v959 = vld [vmem:[%s411 + $0x45c] sm:%s404]
        %960 = vst [vmem:[%s412 + $0x444] sm:%s404] %v959
        %v961 = vld [vmem:[%s411 + $0x42c] sm:%s404]
        %962 = vst [vmem:[%s412 + $0x448] sm:%s404] %v961
        %v963 = vld [vmem:[%s411 + $0x460] sm:%s404]
        %964 = vst [vmem:[%s412 + $0x44c] sm:%s404] %v963
        %v965 = vld [vmem:[%s411 + $0x430] sm:%s404]
        %966 = vst [vmem:[%s412 + $0x450] sm:%s404] %v965
        %v967 = vld [vmem:[%s411 + $0x464] sm:%s404]
        %968 = vst [vmem:[%s412 + $0x454] sm:%s404] %v967
        %v969 = vld [vmem:[%s411 + $0x434] sm:%s404]
        %970 = vst [vmem:[%s412 + $0x458] sm:%s404] %v969
        %v971 = vld [vmem:[%s411 + $0x468] sm:%s404]
        %972 = vst [vmem:[%s412 + $0x45c] sm:%s404] %v971
        %v973 = vld [vmem:[%s411 + $0x438] sm:%s404]
        %974 = vst [vmem:[%s412 + $0x460] sm:%s404] %v973
        %v975 = vld [vmem:[%s411 + $0x46c] sm:%s404]
        %976 = vst [vmem:[%s412 + $0x464] sm:%s404] %v975
        %v977 = vld [vmem:[%s411 + $0x43c] sm:%s404]
        %978 = vst [vmem:[%s412 + $0x468] sm:%s404] %v977
        %v979 = vld [vmem:[%s411 + $0x470] sm:%s404]
        %980 = vst [vmem:[%s412 + $0x46c] sm:%s404] %v979
        %v981 = vld [vmem:[%s411 + $0x440] sm:%s404]
        %982 = vst [vmem:[%s412 + $0x470] sm:%s404] %v981
        %v983 = vld [vmem:[%s411 + $0x474] sm:%s404]
        %984 = vst [vmem:[%s412 + $0x474] sm:%s404] %v983
        %v985 = vld [vmem:[%s411 + $0x478] sm:%s404]
        %986 = vst [vmem:[%s412 + $0x478] sm:%s404] %v985
        %v987 = vld [vmem:[%s411 + $0x4ac] sm:%s404]
        %988 = vst [vmem:[%s412 + $0x47c] sm:%s404] %v987
        %v989 = vld [vmem:[%s411 + $0x47c] sm:%s404]
        %990 = vst [vmem:[%s412 + $0x480] sm:%s404] %v989
        %v991 = vld [vmem:[%s411 + $0x4b0] sm:%s404]
        %992 = vst [vmem:[%s412 + $0x484] sm:%s404] %v991
        %v993 = vld [vmem:[%s411 + $0x480] sm:%s404]
        %994 = vst [vmem:[%s412 + $0x488] sm:%s404] %v993
        %v995 = vld [vmem:[%s411 + $0x4b4] sm:%s404]
        %996 = vst [vmem:[%s412 + $0x48c] sm:%s404] %v995
        %v997 = vld [vmem:[%s411 + $0x484] sm:%s404]
        %998 = vst [vmem:[%s412 + $0x490] sm:%s404] %v997
        %v999 = vld [vmem:[%s411 + $0x4b8] sm:%s404]
        %1000 = vst [vmem:[%s412 + $0x494] sm:%s404] %v999
        %v1001 = vld [vmem:[%s411 + $0x488] sm:%s404]
        %1002 = vst [vmem:[%s412 + $0x498] sm:%s404] %v1001
        %v1003 = vld [vmem:[%s411 + $0x4bc] sm:%s404]
        %1004 = vst [vmem:[%s412 + $0x49c] sm:%s404] %v1003
        %v1005 = vld [vmem:[%s411 + $0x48c] sm:%s404]
        %1006 = vst [vmem:[%s412 + $0x4a0] sm:%s404] %v1005
        %v1007 = vld [vmem:[%s411 + $0x4c0] sm:%s404]
        %1008 = vst [vmem:[%s412 + $0x4a4] sm:%s404] %v1007
        %v1009 = vld [vmem:[%s411 + $0x490] sm:%s404]
        %1010 = vst [vmem:[%s412 + $0x4a8] sm:%s404] %v1009
        %v1011 = vld [vmem:[%s411 + $0x4c4] sm:%s404]
        %1012 = vst [vmem:[%s412 + $0x4ac] sm:%s404] %v1011
        %v1013 = vld [vmem:[%s411 + $0x494] sm:%s404]
        %1014 = vst [vmem:[%s412 + $0x4b0] sm:%s404] %v1013
        %v1015 = vld [vmem:[%s411 + $0x4c8] sm:%s404]
        %1016 = vst [vmem:[%s412 + $0x4b4] sm:%s404] %v1015
        %v1017 = vld [vmem:[%s411 + $0x498] sm:%s404]
        %1018 = vst [vmem:[%s412 + $0x4b8] sm:%s404] %v1017
        %v1019 = vld [vmem:[%s411 + $0x4cc] sm:%s404]
        %1020 = vst [vmem:[%s412 + $0x4bc] sm:%s404] %v1019
        %v1021 = vld [vmem:[%s411 + $0x49c] sm:%s404]
        %1022 = vst [vmem:[%s412 + $0x4c0] sm:%s404] %v1021
        %v1023 = vld [vmem:[%s411 + $0x4d0] sm:%s404]
        %1024 = vst [vmem:[%s412 + $0x4c4] sm:%s404] %v1023
        %v1025 = vld [vmem:[%s411 + $0x4a0] sm:%s404]
        %1026 = vst [vmem:[%s412 + $0x4c8] sm:%s404] %v1025
        %v1027 = vld [vmem:[%s411 + $0x4d4] sm:%s404]
        %1028 = vst [vmem:[%s412 + $0x4cc] sm:%s404] %v1027
        %v1029 = vld [vmem:[%s411 + $0x4a4] sm:%s404]
        %1030 = vst [vmem:[%s412 + $0x4d0] sm:%s404] %v1029
        %v1031 = vld [vmem:[%s411 + $0x4d8] sm:%s404]
        %1032 = vst [vmem:[%s412 + $0x4d4] sm:%s404] %v1031
        %v1033 = vld [vmem:[%s411 + $0x4a8] sm:%s404]
        %1034 = vst [vmem:[%s412 + $0x4d8] sm:%s404] %v1033
        %v1035 = vld [vmem:[%s411 + $0x4dc] sm:%s404]
        %1036 = vst [vmem:[%s412 + $0x4dc] sm:%s404] %v1035
        %v1037 = vld [vmem:[%s411 + $0x4e0] sm:%s404]
        %1038 = vst [vmem:[%s412 + $0x4e0] sm:%s404] %v1037
        %v1039 = vld [vmem:[%s411 + $0x514] sm:%s404]
        %1040 = vst [vmem:[%s412 + $0x4e4] sm:%s404] %v1039
        %v1041 = vld [vmem:[%s411 + $0x4e4] sm:%s404]
        %1042 = vst [vmem:[%s412 + $0x4e8] sm:%s404] %v1041
        %v1043 = vld [vmem:[%s411 + $0x518] sm:%s404]
        %1044 = vst [vmem:[%s412 + $0x4ec] sm:%s404] %v1043
        %v1045 = vld [vmem:[%s411 + $0x4e8] sm:%s404]
        %1046 = vst [vmem:[%s412 + $0x4f0] sm:%s404] %v1045
        %v1047 = vld [vmem:[%s411 + $0x51c] sm:%s404]
        %1048 = vst [vmem:[%s412 + $0x4f4] sm:%s404] %v1047
        %v1049 = vld [vmem:[%s411 + $0x4ec] sm:%s404]
        %1050 = vst [vmem:[%s412 + $0x4f8] sm:%s404] %v1049
        %v1051 = vld [vmem:[%s411 + $0x520] sm:%s404]
        %1052 = vst [vmem:[%s412 + $0x4fc] sm:%s404] %v1051
        %v1053 = vld [vmem:[%s411 + $0x4f0] sm:%s404]
        %1054 = vst [vmem:[%s412 + $0x500] sm:%s404] %v1053
        %v1055 = vld [vmem:[%s411 + $0x524] sm:%s404]
        %1056 = vst [vmem:[%s412 + $0x504] sm:%s404] %v1055
        %v1057 = vld [vmem:[%s411 + $0x4f4] sm:%s404]
        %1058 = vst [vmem:[%s412 + $0x508] sm:%s404] %v1057
        %v1059 = vld [vmem:[%s411 + $0x528] sm:%s404]
        %1060 = vst [vmem:[%s412 + $0x50c] sm:%s404] %v1059
        %v1061 = vld [vmem:[%s411 + $0x4f8] sm:%s404]
        %1062 = vst [vmem:[%s412 + $0x510] sm:%s404] %v1061
        %v1063 = vld [vmem:[%s411 + $0x52c] sm:%s404]
        %1064 = vst [vmem:[%s412 + $0x514] sm:%s404] %v1063
        %v1065 = vld [vmem:[%s411 + $0x4fc] sm:%s404]
        %1066 = vst [vmem:[%s412 + $0x518] sm:%s404] %v1065
        %v1067 = vld [vmem:[%s411 + $0x530] sm:%s404]
        %1068 = vst [vmem:[%s412 + $0x51c] sm:%s404] %v1067
        %v1069 = vld [vmem:[%s411 + $0x500] sm:%s404]
        %1070 = vst [vmem:[%s412 + $0x520] sm:%s404] %v1069
        %v1071 = vld [vmem:[%s411 + $0x534] sm:%s404]
        %1072 = vst [vmem:[%s412 + $0x524] sm:%s404] %v1071
        %v1073 = vld [vmem:[%s411 + $0x504] sm:%s404]
        %1074 = vst [vmem:[%s412 + $0x528] sm:%s404] %v1073
        %v1075 = vld [vmem:[%s411 + $0x538] sm:%s404]
        %1076 = vst [vmem:[%s412 + $0x52c] sm:%s404] %v1075
        %v1077 = vld [vmem:[%s411 + $0x508] sm:%s404]
        %1078 = vst [vmem:[%s412 + $0x530] sm:%s404] %v1077
        %v1079 = vld [vmem:[%s411 + $0x53c] sm:%s404]
        %1080 = vst [vmem:[%s412 + $0x534] sm:%s404] %v1079
        %v1081 = vld [vmem:[%s411 + $0x50c] sm:%s404]
        %1082 = vst [vmem:[%s412 + $0x538] sm:%s404] %v1081
        %v1083 = vld [vmem:[%s411 + $0x540] sm:%s404]
        %1084 = vst [vmem:[%s412 + $0x53c] sm:%s404] %v1083
        %v1085 = vld [vmem:[%s411 + $0x510] sm:%s404]
        %1086 = vst [vmem:[%s412 + $0x540] sm:%s404] %v1085
        %v1087 = vld [vmem:[%s411 + $0x544] sm:%s404]
        %1088 = vst [vmem:[%s412 + $0x544] sm:%s404] %v1087
        %v1089 = vld [vmem:[%s411 + $0x548] sm:%s404]
        %1090 = vst [vmem:[%s412 + $0x548] sm:%s404] %v1089
        %v1091 = vld [vmem:[%s411 + $0x57c] sm:%s404]
        %1092 = vst [vmem:[%s412 + $0x54c] sm:%s404] %v1091
        %v1093 = vld [vmem:[%s411 + $0x54c] sm:%s404]
        %1094 = vst [vmem:[%s412 + $0x550] sm:%s404] %v1093
        %v1095 = vld [vmem:[%s411 + $0x580] sm:%s404]
        %1096 = vst [vmem:[%s412 + $0x554] sm:%s404] %v1095
        %v1097 = vld [vmem:[%s411 + $0x550] sm:%s404]
        %1098 = vst [vmem:[%s412 + $0x558] sm:%s404] %v1097
        %v1099 = vld [vmem:[%s411 + $0x584] sm:%s404]
        %1100 = vst [vmem:[%s412 + $0x55c] sm:%s404] %v1099
        %v1101 = vld [vmem:[%s411 + $0x554] sm:%s404]
        %1102 = vst [vmem:[%s412 + $0x560] sm:%s404] %v1101
        %v1103 = vld [vmem:[%s411 + $0x588] sm:%s404]
        %1104 = vst [vmem:[%s412 + $0x564] sm:%s404] %v1103
        %v1105 = vld [vmem:[%s411 + $0x558] sm:%s404]
        %1106 = vst [vmem:[%s412 + $0x568] sm:%s404] %v1105
        %v1107 = vld [vmem:[%s411 + $0x58c] sm:%s404]
        %1108 = vst [vmem:[%s412 + $0x56c] sm:%s404] %v1107
        %v1109 = vld [vmem:[%s411 + $0x55c] sm:%s404]
        %1110 = vst [vmem:[%s412 + $0x570] sm:%s404] %v1109
        %v1111 = vld [vmem:[%s411 + $0x590] sm:%s404]
        %1112 = vst [vmem:[%s412 + $0x574] sm:%s404] %v1111
        %v1113 = vld [vmem:[%s411 + $0x560] sm:%s404]
        %1114 = vst [vmem:[%s412 + $0x578] sm:%s404] %v1113
        %v1115 = vld [vmem:[%s411 + $0x594] sm:%s404]
        %1116 = vst [vmem:[%s412 + $0x57c] sm:%s404] %v1115
        %v1117 = vld [vmem:[%s411 + $0x564] sm:%s404]
        %1118 = vst [vmem:[%s412 + $0x580] sm:%s404] %v1117
        %v1119 = vld [vmem:[%s411 + $0x598] sm:%s404]
        %1120 = vst [vmem:[%s412 + $0x584] sm:%s404] %v1119
        %v1121 = vld [vmem:[%s411 + $0x568] sm:%s404]
        %1122 = vst [vmem:[%s412 + $0x588] sm:%s404] %v1121
        %v1123 = vld [vmem:[%s411 + $0x59c] sm:%s404]
        %1124 = vst [vmem:[%s412 + $0x58c] sm:%s404] %v1123
        %v1125 = vld [vmem:[%s411 + $0x56c] sm:%s404]
        %1126 = vst [vmem:[%s412 + $0x590] sm:%s404] %v1125
        %v1127 = vld [vmem:[%s411 + $0x5a0] sm:%s404]
        %1128 = vst [vmem:[%s412 + $0x594] sm:%s404] %v1127
        %v1129 = vld [vmem:[%s411 + $0x570] sm:%s404]
        %1130 = vst [vmem:[%s412 + $0x598] sm:%s404] %v1129
        %v1131 = vld [vmem:[%s411 + $0x5a4] sm:%s404]
        %1132 = vst [vmem:[%s412 + $0x59c] sm:%s404] %v1131
        %v1133 = vld [vmem:[%s411 + $0x574] sm:%s404]
        %1134 = vst [vmem:[%s412 + $0x5a0] sm:%s404] %v1133
        %v1135 = vld [vmem:[%s411 + $0x5a8] sm:%s404]
        %1136 = vst [vmem:[%s412 + $0x5a4] sm:%s404] %v1135
        %v1137 = vld [vmem:[%s411 + $0x578] sm:%s404]
        %1138 = vst [vmem:[%s412 + $0x5a8] sm:%s404] %v1137
        %v1139 = vld [vmem:[%s411 + $0x5ac] sm:%s404]
        %1140 = vst [vmem:[%s412 + $0x5ac] sm:%s404] %v1139
        %v1141 = vld [vmem:[%s411 + $0x5b0] sm:%s404]
        %1142 = vst [vmem:[%s412 + $0x5b0] sm:%s404] %v1141
        %v1143 = vld [vmem:[%s411 + $0x5e4] sm:%s404]
        %1144 = vst [vmem:[%s412 + $0x5b4] sm:%s404] %v1143
        %v1145 = vld [vmem:[%s411 + $0x5b4] sm:%s404]
        %1146 = vst [vmem:[%s412 + $0x5b8] sm:%s404] %v1145
        %v1147 = vld [vmem:[%s411 + $0x5e8] sm:%s404]
        %1148 = vst [vmem:[%s412 + $0x5bc] sm:%s404] %v1147
        %v1149 = vld [vmem:[%s411 + $0x5b8] sm:%s404]
        %1150 = vst [vmem:[%s412 + $0x5c0] sm:%s404] %v1149
        %v1151 = vld [vmem:[%s411 + $0x5ec] sm:%s404]
        %1152 = vst [vmem:[%s412 + $0x5c4] sm:%s404] %v1151
        %v1153 = vld [vmem:[%s411 + $0x5bc] sm:%s404]
        %1154 = vst [vmem:[%s412 + $0x5c8] sm:%s404] %v1153
        %v1155 = vld [vmem:[%s411 + $0x5f0] sm:%s404]
        %1156 = vst [vmem:[%s412 + $0x5cc] sm:%s404] %v1155
        %v1157 = vld [vmem:[%s411 + $0x5c0] sm:%s404]
        %1158 = vst [vmem:[%s412 + $0x5d0] sm:%s404] %v1157
        %v1159 = vld [vmem:[%s411 + $0x5f4] sm:%s404]
        %1160 = vst [vmem:[%s412 + $0x5d4] sm:%s404] %v1159
        %v1161 = vld [vmem:[%s411 + $0x5c4] sm:%s404]
        %1162 = vst [vmem:[%s412 + $0x5d8] sm:%s404] %v1161
        %v1163 = vld [vmem:[%s411 + $0x5f8] sm:%s404]
        %1164 = vst [vmem:[%s412 + $0x5dc] sm:%s404] %v1163
        %v1165 = vld [vmem:[%s411 + $0x5c8] sm:%s404]
        %1166 = vst [vmem:[%s412 + $0x5e0] sm:%s404] %v1165
        %v1167 = vld [vmem:[%s411 + $0x5fc] sm:%s404]
        %1168 = vst [vmem:[%s412 + $0x5e4] sm:%s404] %v1167
        %v1169 = vld [vmem:[%s411 + $0x5cc] sm:%s404]
        %1170 = vst [vmem:[%s412 + $0x5e8] sm:%s404] %v1169
        %v1171 = vld [vmem:[%s411 + $0x600] sm:%s404]
        %1172 = vst [vmem:[%s412 + $0x5ec] sm:%s404] %v1171
        %v1173 = vld [vmem:[%s411 + $0x5d0] sm:%s404]
        %1174 = vst [vmem:[%s412 + $0x5f0] sm:%s404] %v1173
        %v1175 = vld [vmem:[%s411 + $0x604] sm:%s404]
        %1176 = vst [vmem:[%s412 + $0x5f4] sm:%s404] %v1175
        %v1177 = vld [vmem:[%s411 + $0x5d4] sm:%s404]
        %1178 = vst [vmem:[%s412 + $0x5f8] sm:%s404] %v1177
        %v1179 = vld [vmem:[%s411 + $0x608] sm:%s404]
        %1180 = vst [vmem:[%s412 + $0x5fc] sm:%s404] %v1179
        %v1181 = vld [vmem:[%s411 + $0x5d8] sm:%s404]
        %1182 = vst [vmem:[%s412 + $0x600] sm:%s404] %v1181
        %v1183 = vld [vmem:[%s411 + $0x60c] sm:%s404]
        %1184 = vst [vmem:[%s412 + $0x604] sm:%s404] %v1183
        %v1185 = vld [vmem:[%s411 + $0x5dc] sm:%s404]
        %1186 = vst [vmem:[%s412 + $0x608] sm:%s404] %v1185
        %v1187 = vld [vmem:[%s411 + $0x610] sm:%s404]
        %1188 = vst [vmem:[%s412 + $0x60c] sm:%s404] %v1187
        %v1189 = vld [vmem:[%s411 + $0x5e0] sm:%s404]
        %1190 = vst [vmem:[%s412 + $0x610] sm:%s404] %v1189
        %v1191 = vld [vmem:[%s411 + $0x614] sm:%s404]
        %1192 = vst [vmem:[%s412 + $0x614] sm:%s404] %v1191
        %v1193 = vld [vmem:[%s411 + $0x618] sm:%s404]
        %1194 = vst [vmem:[%s412 + $0x618] sm:%s404] %v1193
        %v1195 = vld [vmem:[%s411 + $0x64c] sm:%s404]
        %1196 = vst [vmem:[%s412 + $0x61c] sm:%s404] %v1195
        %v1197 = vld [vmem:[%s411 + $0x61c] sm:%s404]
        %1198 = vst [vmem:[%s412 + $0x620] sm:%s404] %v1197
        %v1199 = vld [vmem:[%s411 + $0x650] sm:%s404]
        %1200 = vst [vmem:[%s412 + $0x624] sm:%s404] %v1199
        %v1201 = vld [vmem:[%s411 + $0x620] sm:%s404]
        %1202 = vst [vmem:[%s412 + $0x628] sm:%s404] %v1201
        %v1203 = vld [vmem:[%s411 + $0x654] sm:%s404]
        %1204 = vst [vmem:[%s412 + $0x62c] sm:%s404] %v1203
        %v1205 = vld [vmem:[%s411 + $0x624] sm:%s404]
        %1206 = vst [vmem:[%s412 + $0x630] sm:%s404] %v1205
        %v1207 = vld [vmem:[%s411 + $0x658] sm:%s404]
        %1208 = vst [vmem:[%s412 + $0x634] sm:%s404] %v1207
        %v1209 = vld [vmem:[%s411 + $0x628] sm:%s404]
        %1210 = vst [vmem:[%s412 + $0x638] sm:%s404] %v1209
        %v1211 = vld [vmem:[%s411 + $0x65c] sm:%s404]
        %1212 = vst [vmem:[%s412 + $0x63c] sm:%s404] %v1211
        %v1213 = vld [vmem:[%s411 + $0x62c] sm:%s404]
        %1214 = vst [vmem:[%s412 + $0x640] sm:%s404] %v1213
        %v1215 = vld [vmem:[%s411 + $0x660] sm:%s404]
        %1216 = vst [vmem:[%s412 + $0x644] sm:%s404] %v1215
        %v1217 = vld [vmem:[%s411 + $0x630] sm:%s404]
        %1218 = vst [vmem:[%s412 + $0x648] sm:%s404] %v1217
        %v1219 = vld [vmem:[%s411 + $0x664] sm:%s404]
        %1220 = vst [vmem:[%s412 + $0x64c] sm:%s404] %v1219
        %v1221 = vld [vmem:[%s411 + $0x634] sm:%s404]
        %1222 = vst [vmem:[%s412 + $0x650] sm:%s404] %v1221
        %v1223 = vld [vmem:[%s411 + $0x668] sm:%s404]
        %1224 = vst [vmem:[%s412 + $0x654] sm:%s404] %v1223
        %v1225 = vld [vmem:[%s411 + $0x638] sm:%s404]
        %1226 = vst [vmem:[%s412 + $0x658] sm:%s404] %v1225
        %v1227 = vld [vmem:[%s411 + $0x66c] sm:%s404]
        %1228 = vst [vmem:[%s412 + $0x65c] sm:%s404] %v1227
        %v1229 = vld [vmem:[%s411 + $0x63c] sm:%s404]
        %1230 = vst [vmem:[%s412 + $0x660] sm:%s404] %v1229
        %v1231 = vld [vmem:[%s411 + $0x670] sm:%s404]
        %1232 = vst [vmem:[%s412 + $0x664] sm:%s404] %v1231
        %v1233 = vld [vmem:[%s411 + $0x640] sm:%s404]
        %1234 = vst [vmem:[%s412 + $0x668] sm:%s404] %v1233
        %v1235 = vld [vmem:[%s411 + $0x674] sm:%s404]
        %1236 = vst [vmem:[%s412 + $0x66c] sm:%s404] %v1235
        %v1237 = vld [vmem:[%s411 + $0x644] sm:%s404]
        %1238 = vst [vmem:[%s412 + $0x670] sm:%s404] %v1237
        %v1239 = vld [vmem:[%s411 + $0x678] sm:%s404]
        %1240 = vst [vmem:[%s412 + $0x674] sm:%s404] %v1239
        %v1241 = vld [vmem:[%s411 + $0x648] sm:%s404]
        %1242 = vst [vmem:[%s412 + $0x678] sm:%s404] %v1241
        %v1243 = vld [vmem:[%s411 + $0x67c] sm:%s404]
        %1244 = vst [vmem:[%s412 + $0x67c] sm:%s404] %v1243
      $region88: #{_grasp_dist_field_impl.1} parent=82 // loop_footer
        %s410 = sadd.s32 1, %s406
      $region89: #{_grasp_dist_field_impl.1} parent=82 // loop_footer_branch
        %405 = sbr.rel target = $region85
      $region90: #{_grasp_dist_field_impl.1} parent=82 // loop_exit
        _
    $region83: #{_grasp_dist_field_impl.1} parent=1 // pred_fallthru
      _
    // Predicated region
    $region109: #{_grasp_dist_field_impl.1} parent=1 // pred_check
      _
    $region110: #{_grasp_dist_field_impl.1} parent=1 // pred_check_branch
      %2106 = sbr.rel (0) target = $region112
    $region111: #{_grasp_dist_field_impl.1} parent=1 // pred_region
      %2107 = vsyncadd %s395, 26624
    $region112: #{_grasp_dist_field_impl.1} parent=1 // pred_fallthru
      _
    %v2108 = vld [vmem:[%s0] sm:$0xff]
    %v2109 = vld [vmem:[%s0 + $0x8] sm:$0xff]
    %v2110 = vld [vmem:[%s0 + $0x10] sm:$0xff]
    %v2111 = vld [vmem:[%s0 + $0x18] sm:$0xff]
    %v2112 = vld [vmem:[%s0 + $0x20] sm:$0xff]
    %v2113 = vld [vmem:[%s0 + $0x28] sm:$0xff]
    %v2114 = vld [vmem:[%s0 + $0x30] sm:$0xff]
    %v2115 = vld [vmem:[%s0 + $0x38] sm:$0xff]
    %v2116 = vld [vmem:[%s0 + $0x40] sm:$0xff]
    %v2117 = vld [vmem:[%s0 + $0x48] sm:$0xff]
    %v2118 = vld [vmem:[%s0 + $0x50] sm:$0xff]
    %v2119 = vld [vmem:[%s0 + $0x58] sm:$0xff]
    %v2120 = vld [vmem:[%s0 + $0x60] sm:$0xff]
    %v2121 = vld [vmem:[%s0 + $0x68] sm:$0xff]
    %v2122 = vld [vmem:[%s0 + $0x70] sm:$0xff]
    %v2123 = vld [vmem:[%s0 + $0x78] sm:$0xff]
    %v2124 = vld [vmem:[%s2] sm:$0x3]
    %v2125 = vunpack.c.l.bf16 %v2124
    %2127 = vset.pattern.permute.xlu0 0
    %2128 = vperm.xlu0 %2127, %v2108
    %v2129 = vpop.permute.xlu0 %2128
    %2132 = vset.pattern.permute.xlu0 0
    %2133 = vperm.xlu0 %2132, %v2109
    %v2134 = vpop.permute.xlu0 %2133
    %2137 = vset.pattern.permute.xlu0 0
    %2138 = vperm.xlu0 %2137, %v2110
    %v2139 = vpop.permute.xlu0 %2138
    %2142 = vset.pattern.permute.xlu0 0
    %2143 = vperm.xlu0 %2142, %v2111
    %v2144 = vpop.permute.xlu0 %2143
    %2147 = vset.pattern.permute.xlu0 0
    %2148 = vperm.xlu0 %2147, %v2112
    %v2149 = vpop.permute.xlu0 %2148
    %2152 = vset.pattern.permute.xlu0 0
    %2153 = vperm.xlu0 %2152, %v2113
    %v2154 = vpop.permute.xlu0 %2153
    %2157 = vset.pattern.permute.xlu0 0
    %2158 = vperm.xlu0 %2157, %v2114
    %v2159 = vpop.permute.xlu0 %2158
    %2162 = vset.pattern.permute.xlu0 0
    %2163 = vperm.xlu0 %2162, %v2115
    %v2164 = vpop.permute.xlu0 %2163
    %2167 = vset.pattern.permute.xlu0 0
    %2168 = vperm.xlu0 %2167, %v2116
    %v2169 = vpop.permute.xlu0 %2168
    %2172 = vset.pattern.permute.xlu0 0
    %2173 = vperm.xlu0 %2172, %v2117
    %v2174 = vpop.permute.xlu0 %2173
    %2177 = vset.pattern.permute.xlu0 0
    %2178 = vperm.xlu0 %2177, %v2118
    %v2179 = vpop.permute.xlu0 %2178
    %2182 = vset.pattern.permute.xlu0 0
    %2183 = vperm.xlu0 %2182, %v2119
    %v2184 = vpop.permute.xlu0 %2183
    %2187 = vset.pattern.permute.xlu0 0
    %2188 = vperm.xlu0 %2187, %v2120
    %v2189 = vpop.permute.xlu0 %2188
    %2192 = vset.pattern.permute.xlu0 0
    %2193 = vperm.xlu0 %2192, %v2121
    %v2194 = vpop.permute.xlu0 %2193
    %2197 = vset.pattern.permute.xlu0 0
    %2198 = vperm.xlu0 %2197, %v2122
    %v2199 = vpop.permute.xlu0 %2198
    %2202 = vset.pattern.permute.xlu0 0
    %2203 = vperm.xlu0 %2202, %v2123
    %v2204 = vpop.permute.xlu0 %2203
    %v2206 = vlaneseq
    %v2207 = vshrl.u32 %v2206, 7
    %v2208 = vsub.s32 0, %v2207
    %v2209 = vrot.slane %v2125, %v2208
    %v2210 = vmul.f32 %v2129, %v2209
    %v2211 = vmul.f32 %v2134, %v2209
    %v2212 = vmul.f32 %v2139, %v2209
    %v2213 = vmul.f32 %v2144, %v2209
    %v2214 = vmul.f32 %v2149, %v2209
    %v2215 = vmul.f32 %v2154, %v2209
    %v2216 = vmul.f32 %v2159, %v2209
    %v2217 = vmul.f32 %v2164, %v2209
    %v2218 = vmul.f32 %v2169, %v2209
    %v2219 = vmul.f32 %v2174, %v2209
    %v2220 = vmul.f32 %v2179, %v2209
    %v2221 = vmul.f32 %v2184, %v2209
    %v2222 = vmul.f32 %v2189, %v2209
    %v2223 = vmul.f32 %v2194, %v2209
    %v2224 = vmul.f32 %v2199, %v2209
    %v2225 = vmul.f32 %v2204, %v2209
    %2226 = vset.pattern.permute.xlu0 1
    %2227 = vperm.xlu0 %2226, %v2108
    %v2228 = vpop.permute.xlu0 %2227
    %2230 = vset.pattern.permute.xlu0 1
    %2231 = vperm.xlu0 %2230, %v2109
    %v2232 = vpop.permute.xlu0 %2231
    %2234 = vset.pattern.permute.xlu0 1
    %2235 = vperm.xlu0 %2234, %v2110
    %v2236 = vpop.permute.xlu0 %2235
    %2238 = vset.pattern.permute.xlu0 1
    %2239 = vperm.xlu0 %2238, %v2111
    %v2240 = vpop.permute.xlu0 %2239
    %2242 = vset.pattern.permute.xlu0 1
    %2243 = vperm.xlu0 %2242, %v2112
    %v2244 = vpop.permute.xlu0 %2243
    %2246 = vset.pattern.permute.xlu0 1
    %2247 = vperm.xlu0 %2246, %v2113
    %v2248 = vpop.permute.xlu0 %2247
    %2250 = vset.pattern.permute.xlu0 1
    %2251 = vperm.xlu0 %2250, %v2114
    %v2252 = vpop.permute.xlu0 %2251
    %2254 = vset.pattern.permute.xlu0 1
    %2255 = vperm.xlu0 %2254, %v2115
    %v2256 = vpop.permute.xlu0 %2255
    %2258 = vset.pattern.permute.xlu0 1
    %2259 = vperm.xlu0 %2258, %v2116
    %v2260 = vpop.permute.xlu0 %2259
    %2262 = vset.pattern.permute.xlu0 1
    %2263 = vperm.xlu0 %2262, %v2117
    %v2264 = vpop.permute.xlu0 %2263
    %2266 = vset.pattern.permute.xlu0 1
    %2267 = vperm.xlu0 %2266, %v2118
    %v2268 = vpop.permute.xlu0 %2267
    %2270 = vset.pattern.permute.xlu0 1
    %2271 = vperm.xlu0 %2270, %v2119
    %v2272 = vpop.permute.xlu0 %2271
    %2274 = vset.pattern.permute.xlu0 1
    %2275 = vperm.xlu0 %2274, %v2120
    %v2276 = vpop.permute.xlu0 %2275
    %2278 = vset.pattern.permute.xlu0 1
    %2279 = vperm.xlu0 %2278, %v2121
    %v2280 = vpop.permute.xlu0 %2279
    %2282 = vset.pattern.permute.xlu0 1
    %2283 = vperm.xlu0 %2282, %v2122
    %v2284 = vpop.permute.xlu0 %2283
    %2286 = vset.pattern.permute.xlu0 1
    %2287 = vperm.xlu0 %2286, %v2123
    %v2288 = vpop.permute.xlu0 %2287
    %v2290 = vlaneseq
    %v2291 = vshrl.u32 %v2290, 7
    %v2292 = vsub.s32 1, %v2291
    %v2293 = vrot.slane %v2125, %v2292
    %v2294 = vmul.f32 %v2228, %v2293
    %v2295 = vmul.f32 %v2232, %v2293
    %v2296 = vmul.f32 %v2236, %v2293
    %v2297 = vmul.f32 %v2240, %v2293
    %v2298 = vmul.f32 %v2244, %v2293
    %v2299 = vmul.f32 %v2248, %v2293
    %v2300 = vmul.f32 %v2252, %v2293
    %v2301 = vmul.f32 %v2256, %v2293
    %v2302 = vmul.f32 %v2260, %v2293
    %v2303 = vmul.f32 %v2264, %v2293
    %v2304 = vmul.f32 %v2268, %v2293
    %v2305 = vmul.f32 %v2272, %v2293
    %v2306 = vmul.f32 %v2276, %v2293
    %v2307 = vmul.f32 %v2280, %v2293
    %v2308 = vmul.f32 %v2284, %v2293
    %v2309 = vmul.f32 %v2288, %v2293
    %v2310 = vadd.f32 %v2210, %v2294
    %v2311 = vadd.f32 %v2211, %v2295
    %v2312 = vadd.f32 %v2212, %v2296
    %v2313 = vadd.f32 %v2213, %v2297
    %v2314 = vadd.f32 %v2214, %v2298
    %v2315 = vadd.f32 %v2215, %v2299
    %v2316 = vadd.f32 %v2216, %v2300
    %v2317 = vadd.f32 %v2217, %v2301
    %v2318 = vadd.f32 %v2218, %v2302
    %v2319 = vadd.f32 %v2219, %v2303
    %v2320 = vadd.f32 %v2220, %v2304
    %v2321 = vadd.f32 %v2221, %v2305
    %v2322 = vadd.f32 %v2222, %v2306
    %v2323 = vadd.f32 %v2223, %v2307
    %v2324 = vadd.f32 %v2224, %v2308
    %v2325 = vadd.f32 %v2225, %v2309
    %2326 = vset.pattern.permute.xlu0 2
    %2327 = vperm.xlu0 %2326, %v2108
    %v2328 = vpop.permute.xlu0 %2327
    %2330 = vset.pattern.permute.xlu0 2
    %2331 = vperm.xlu0 %2330, %v2109
    %v2332 = vpop.permute.xlu0 %2331
    %2334 = vset.pattern.permute.xlu0 2
    %2335 = vperm.xlu0 %2334, %v2110
    %v2336 = vpop.permute.xlu0 %2335
    %2338 = vset.pattern.permute.xlu0 2
    %2339 = vperm.xlu0 %2338, %v2111
    %v2340 = vpop.permute.xlu0 %2339
    %2342 = vset.pattern.permute.xlu0 2
    %2343 = vperm.xlu0 %2342, %v2112
    %v2344 = vpop.permute.xlu0 %2343
    %2346 = vset.pattern.permute.xlu0 2
    %2347 = vperm.xlu0 %2346, %v2113
    %v2348 = vpop.permute.xlu0 %2347
    %2350 = vset.pattern.permute.xlu0 2
    %2351 = vperm.xlu0 %2350, %v2114
    %v2352 = vpop.permute.xlu0 %2351
    %2354 = vset.pattern.permute.xlu0 2
    %2355 = vperm.xlu0 %2354, %v2115
    %v2356 = vpop.permute.xlu0 %2355
    %2358 = vset.pattern.permute.xlu0 2
    %2359 = vperm.xlu0 %2358, %v2116
    %v2360 = vpop.permute.xlu0 %2359
    %2362 = vset.pattern.permute.xlu0 2
    %2363 = vperm.xlu0 %2362, %v2117
    %v2364 = vpop.permute.xlu0 %2363
    %2366 = vset.pattern.permute.xlu0 2
    %2367 = vperm.xlu0 %2366, %v2118
    %v2368 = vpop.permute.xlu0 %2367
    %2370 = vset.pattern.permute.xlu0 2
    %2371 = vperm.xlu0 %2370, %v2119
    %v2372 = vpop.permute.xlu0 %2371
    %2374 = vset.pattern.permute.xlu0 2
    %2375 = vperm.xlu0 %2374, %v2120
    %v2376 = vpop.permute.xlu0 %2375
    %2378 = vset.pattern.permute.xlu0 2
    %2379 = vperm.xlu0 %2378, %v2121
    %v2380 = vpop.permute.xlu0 %2379
    %2382 = vset.pattern.permute.xlu0 2
    %2383 = vperm.xlu0 %2382, %v2122
    %v2384 = vpop.permute.xlu0 %2383
    %2386 = vset.pattern.permute.xlu0 2
    %2387 = vperm.xlu0 %2386, %v2123
    %v2388 = vpop.permute.xlu0 %2387
    %v2390 = vlaneseq
    %v2391 = vshrl.u32 %v2390, 7
    %v2392 = vsub.s32 2, %v2391
    %v2393 = vrot.slane %v2125, %v2392
    %v2394 = vmul.f32 %v2328, %v2393
    %v2395 = vmul.f32 %v2332, %v2393
    %v2396 = vmul.f32 %v2336, %v2393
    %v2397 = vmul.f32 %v2340, %v2393
    %v2398 = vmul.f32 %v2344, %v2393
    %v2399 = vmul.f32 %v2348, %v2393
    %v2400 = vmul.f32 %v2352, %v2393
    %v2401 = vmul.f32 %v2356, %v2393
    %v2402 = vmul.f32 %v2360, %v2393
    %v2403 = vmul.f32 %v2364, %v2393
    %v2404 = vmul.f32 %v2368, %v2393
    %v2405 = vmul.f32 %v2372, %v2393
    %v2406 = vmul.f32 %v2376, %v2393
    %v2407 = vmul.f32 %v2380, %v2393
    %v2408 = vmul.f32 %v2384, %v2393
    %v2409 = vmul.f32 %v2388, %v2393
    %v2410 = vadd.f32 %v2310, %v2394
    %v2411 = vadd.f32 %v2311, %v2395
    %v2412 = vadd.f32 %v2312, %v2396
    %v2413 = vadd.f32 %v2313, %v2397
    %v2414 = vadd.f32 %v2314, %v2398
    %v2415 = vadd.f32 %v2315, %v2399
    %v2416 = vadd.f32 %v2316, %v2400
    %v2417 = vadd.f32 %v2317, %v2401
    %v2418 = vadd.f32 %v2318, %v2402
    %v2419 = vadd.f32 %v2319, %v2403
    %v2420 = vadd.f32 %v2320, %v2404
    %v2421 = vadd.f32 %v2321, %v2405
    %v2422 = vadd.f32 %v2322, %v2406
    %v2423 = vadd.f32 %v2323, %v2407
    %v2424 = vadd.f32 %v2324, %v2408
    %v2425 = vadd.f32 %v2325, %v2409
    %v2426 = vld [vmem:[%s7] sm:$0x1]
    %v2428 = vlaneseq
    %v2429 = vshrl.u32 %v2428, 7
    %v2430 = vsub.s32 0, %v2429
    %v2431 = vrot.slane %v2426, %v2430
    %v2433 = vadd.f32 %v2410, %v2431
    %v2434 = vadd.f32 %v2411, %v2431
    %v2435 = vadd.f32 %v2412, %v2431
    %v2436 = vadd.f32 %v2413, %v2431
    %v2437 = vadd.f32 %v2414, %v2431
    %v2438 = vadd.f32 %v2415, %v2431
    %v2439 = vadd.f32 %v2416, %v2431
    %v2440 = vadd.f32 %v2417, %v2431
    %v2441 = vadd.f32 %v2418, %v2431
    %v2442 = vadd.f32 %v2419, %v2431
    %v2443 = vadd.f32 %v2420, %v2431
    %v2444 = vadd.f32 %v2421, %v2431
    %v2445 = vadd.f32 %v2422, %v2431
    %v2446 = vadd.f32 %v2423, %v2431
    %v2447 = vadd.f32 %v2424, %v2431
    %v2448 = vadd.f32 %v2425, %v2431
    %v2449 = vmax.f32 %v2433, 0.0
    %v2450 = vmax.f32 %v2434, 0.0
    %v2451 = vmax.f32 %v2435, 0.0
    %v2452 = vmax.f32 %v2436, 0.0
    %v2453 = vmax.f32 %v2437, 0.0
    %v2454 = vmax.f32 %v2438, 0.0
    %v2455 = vmax.f32 %v2439, 0.0
    %v2456 = vmax.f32 %v2440, 0.0
    %v2457 = vmax.f32 %v2441, 0.0
    %v2458 = vmax.f32 %v2442, 0.0
    %v2459 = vmax.f32 %v2443, 0.0
    %v2460 = vmax.f32 %v2444, 0.0
    %v2461 = vmax.f32 %v2445, 0.0
    %v2462 = vmax.f32 %v2446, 0.0
    %v2463 = vmax.f32 %v2447, 0.0
    %v2464 = vmax.f32 %v2448, 0.0
    %v2465 = vld [vmem:[%s3] sm:$0xff]
    %v2466 = vld [vmem:[%s3 + $0x8] sm:$0xff]
    %v2467 = vld [vmem:[%s3 + $0x10] sm:$0xff]
    %v2468 = vld [vmem:[%s3 + $0x18] sm:$0xff]
    %v2469 = vld [vmem:[%s3 + $0x20] sm:$0xff]
    %v2470 = vld [vmem:[%s3 + $0x28] sm:$0xff]
    %v2471 = vld [vmem:[%s3 + $0x30] sm:$0xff]
    %v2472 = vld [vmem:[%s3 + $0x38] sm:$0xff]
    %v2473 = vld [vmem:[%s3 + $0x40] sm:$0xff]
    %v2474 = vld [vmem:[%s3 + $0x48] sm:$0xff]
    %v2475 = vld [vmem:[%s3 + $0x50] sm:$0xff]
    %v2476 = vld [vmem:[%s3 + $0x58] sm:$0xff]
    %v2477 = vld [vmem:[%s3 + $0x60] sm:$0xff]
    %v2478 = vld [vmem:[%s3 + $0x68] sm:$0xff]
    %v2479 = vld [vmem:[%s3 + $0x70] sm:$0xff]
    %v2480 = vld [vmem:[%s3 + $0x78] sm:$0xff]
    %v2481 = vpack.c.bf16 %v2450, %v2449
    %v2482 = vpack.c.bf16 %v2452, %v2451
    %v2483 = vpack.c.bf16 %v2454, %v2453
    %v2484 = vpack.c.bf16 %v2456, %v2455
    %v2485 = vpack.c.bf16 %v2458, %v2457
    %v2486 = vpack.c.bf16 %v2460, %v2459
    %v2487 = vpack.c.bf16 %v2462, %v2461
    %v2488 = vpack.c.bf16 %v2464, %v2463
    %v2489 = vld [vmem:[%s7 + $0x1] sm:$0x3]
    %v2491 = vlaneseq
    %v2492 = vshrl.u32 %v2491, 7
    %v2493 = vsub.s32 0, %v2492
    %v2494 = vrot.slane %v2489, %v2493
    %v2495 = vlaneseq
    %v2496 = vshrl.u32 %v2495, 7
    %v2497 = vsub.s32 1, %v2496
    %v2498 = vrot.slane %v2489, %v2497
    %v2517 = vunpack.c.l.b16 %v2465
    %v2518 = vunpack.c.h.b16 %v2465
    %v2519 = vunpack.c.l.b16 %v2466
    %v2520 = vunpack.c.h.b16 %v2466
    %v2521 = vunpack.c.l.b16 %v2467
    %v2522 = vunpack.c.h.b16 %v2467
    %v2523 = vunpack.c.l.b16 %v2468
    %v2524 = vunpack.c.h.b16 %v2468
    %v2525 = vunpack.c.l.b16 %v2469
    %v2526 = vunpack.c.h.b16 %v2469
    %v2527 = vunpack.c.l.b16 %v2470
    %v2528 = vunpack.c.h.b16 %v2470
    %v2529 = vunpack.c.l.b16 %v2471
    %v2530 = vunpack.c.h.b16 %v2471
    %v2531 = vunpack.c.l.b16 %v2472
    %v2532 = vunpack.c.h.b16 %v2472
    %v2533 = vunpack.c.l.b16 %v2473
    %v2534 = vunpack.c.h.b16 %v2473
    %v2535 = vunpack.c.l.b16 %v2474
    %v2536 = vunpack.c.h.b16 %v2474
    %v2537 = vunpack.c.l.b16 %v2475
    %v2538 = vunpack.c.h.b16 %v2475
    %v2539 = vunpack.c.l.b16 %v2476
    %v2540 = vunpack.c.h.b16 %v2476
    %v2541 = vunpack.c.l.b16 %v2477
    %v2542 = vunpack.c.h.b16 %v2477
    %v2543 = vunpack.c.l.b16 %v2478
    %v2544 = vunpack.c.h.b16 %v2478
    %v2545 = vunpack.c.l.b16 %v2479
    %v2546 = vunpack.c.h.b16 %v2479
    %v2547 = vunpack.c.l.b16 %v2480
    %v2548 = vunpack.c.h.b16 %v2480
    %v2549 = vpack.c.b16 %v2519, %v2517
    %v2550 = vpack.c.b16 %v2520, %v2518
    %v2551 = vpack.c.b16 %v2523, %v2521
    %v2552 = vpack.c.b16 %v2524, %v2522
    %v2553 = vpack.c.b16 %v2527, %v2525
    %v2554 = vpack.c.b16 %v2528, %v2526
    %v2555 = vpack.c.b16 %v2531, %v2529
    %v2556 = vpack.c.b16 %v2532, %v2530
    %v2557 = vpack.c.b16 %v2535, %v2533
    %v2558 = vpack.c.b16 %v2536, %v2534
    %v2559 = vpack.c.b16 %v2539, %v2537
    %v2560 = vpack.c.b16 %v2540, %v2538
    %v2561 = vpack.c.b16 %v2543, %v2541
    %v2562 = vpack.c.b16 %v2544, %v2542
    %v2563 = vpack.c.b16 %v2547, %v2545
    %v2564 = vpack.c.b16 %v2548, %v2546
    %2581 = vmatprep.subr.bf16.mxu0 %v2550
    %2582 = vmatpush1.bf16.msra.mxu0 %v2549
    %2583 = vmatprep.subr.bf16.mxu0 %v2552
    %2584 = vmatpush1.bf16.msra.mxu0 %v2551
    %2585 = vmatprep.subr.bf16.mxu0 %v2554
    %2586 = vmatpush1.bf16.msra.mxu0 %v2553
    %2587 = vmatprep.subr.bf16.mxu0 %v2556
    %2588 = vmatpush1.bf16.msra.mxu0 %v2555
    %2589 = vmatprep.subr.bf16.mxu0 %v2558
    %2590 = vmatpush1.bf16.msra.mxu0 %v2557
    %2591 = vmatprep.subr.bf16.mxu0 %v2560
    %2592 = vmatpush1.bf16.msra.mxu0 %v2559
    %2593 = vmatprep.subr.bf16.mxu0 %v2562
    %2594 = vmatpush1.bf16.msra.mxu0 %v2561
    %2595 = vmatprep.subr.bf16.mxu0 %v2564
    %2596 = vmatpush1.bf16.msra.mxu0 %v2563
    %2597 = vmatprep.subr.bf16.mxu0 0
    %2598 = vmatpush1.bf16.msra.mxu0 0
    %2599 = vmatprep.subr.bf16.mxu0 0
    %2600 = vmatpush1.bf16.msra.mxu0 0
    %2601 = vmatprep.subr.bf16.mxu0 0
    %2602 = vmatpush1.bf16.msra.mxu0 0
    %2603 = vmatprep.subr.bf16.mxu0 0
    %2604 = vmatpush1.bf16.msra.mxu0 0
    %2605 = vmatprep.subr.bf16.mxu0 0
    %2606 = vmatpush1.bf16.msra.mxu0 0
    %2607 = vmatprep.subr.bf16.mxu0 0
    %2608 = vmatpush1.bf16.msra.mxu0 0
    %2609 = vmatprep.subr.bf16.mxu0 0
    %2610 = vmatpush1.bf16.msra.mxu0 0
    %2611 = vmatprep.subr.bf16.mxu0 0
    %2612 = vmatpush1.bf16.msra.mxu0 0
    %2613 = vmatprep.mubr.bf16.mxu0 0
    %2614 = vmatmul.mubr.bf16.gmra.mrb[0].mxu0 %v2481
    %v2615 = vpop.f32.mrb[0].mxu0
    %v2616 = vadd.f32 %v2494, %v2615
    %v2617 = vpop.f32.mrb[0].mxu0
    %v2618 = vadd.f32 %v2498, %v2617
    %v2619 = vpop.f32.mrb[0].mxu0
    %v2620 = vadd.f32 %v2494, %v2619
    %v2621 = vpop.f32.mrb[0].mxu0
    %v2622 = vadd.f32 %v2498, %v2621
    %2623 = vmatprep.mubr.bf16.mxu0 0
    %2624 = vmatmul.mubr.bf16.gmra.mrb[0].mxu0 %v2482
    %v2625 = vpop.f32.mrb[0].mxu0
    %v2626 = vadd.f32 %v2494, %v2625
    %v2627 = vpop.f32.mrb[0].mxu0
    %v2628 = vadd.f32 %v2498, %v2627
    %v2629 = vpop.f32.mrb[0].mxu0
    %v2630 = vadd.f32 %v2494, %v2629
    %v2631 = vpop.f32.mrb[0].mxu0
    %v2632 = vadd.f32 %v2498, %v2631
    %2633 = vmatprep.mubr.bf16.mxu0 0
    %2634 = vmatmul.mubr.bf16.gmra.mrb[0].mxu0 %v2483
    %v2635 = vpop.f32.mrb[0].mxu0
    %v2636 = vadd.f32 %v2494, %v2635
    %v2637 = vpop.f32.mrb[0].mxu0
    %v2638 = vadd.f32 %v2498, %v2637
    %v2639 = vpop.f32.mrb[0].mxu0
    %v2640 = vadd.f32 %v2494, %v2639
    %v2641 = vpop.f32.mrb[0].mxu0
    %v2642 = vadd.f32 %v2498, %v2641
    %2643 = vmatprep.mubr.bf16.mxu0 0
    %2644 = vmatmul.mubr.bf16.gmra.mrb[0].mxu0 %v2484
    %v2645 = vpop.f32.mrb[0].mxu0
    %v2646 = vadd.f32 %v2494, %v2645
    %v2647 = vpop.f32.mrb[0].mxu0
    %v2648 = vadd.f32 %v2498, %v2647
    %v2649 = vpop.f32.mrb[0].mxu0
    %v2650 = vadd.f32 %v2494, %v2649
    %v2651 = vpop.f32.mrb[0].mxu0
    %v2652 = vadd.f32 %v2498, %v2651
    %2653 = vmatprep.mubr.bf16.mxu0 0
    %2654 = vmatmul.mubr.bf16.gmra.mrb[0].mxu0 %v2485
    %v2655 = vpop.f32.mrb[0].mxu0
    %v2656 = vadd.f32 %v2494, %v2655
    %v2657 = vpop.f32.mrb[0].mxu0
    %v2658 = vadd.f32 %v2498, %v2657
    %v2659 = vpop.f32.mrb[0].mxu0
    %v2660 = vadd.f32 %v2494, %v2659
    %v2661 = vpop.f32.mrb[0].mxu0
    %v2662 = vadd.f32 %v2498, %v2661
    %2663 = vmatprep.mubr.bf16.mxu0 0
    %2664 = vmatmul.mubr.bf16.gmra.mrb[0].mxu0 %v2486
    %v2665 = vpop.f32.mrb[0].mxu0
    %v2666 = vadd.f32 %v2494, %v2665
    %v2667 = vpop.f32.mrb[0].mxu0
    %v2668 = vadd.f32 %v2498, %v2667
    %v2669 = vpop.f32.mrb[0].mxu0
    %v2670 = vadd.f32 %v2494, %v2669
    %v2671 = vpop.f32.mrb[0].mxu0
    %v2672 = vadd.f32 %v2498, %v2671
    %2673 = vmatprep.mubr.bf16.mxu0 0
    %2674 = vmatmul.mubr.bf16.gmra.mrb[0].mxu0 %v2487
    %v2675 = vpop.f32.mrb[0].mxu0
    %v2676 = vadd.f32 %v2494, %v2675
    %v2677 = vpop.f32.mrb[0].mxu0
    %v2678 = vadd.f32 %v2498, %v2677
    %v2679 = vpop.f32.mrb[0].mxu0
    %v2680 = vadd.f32 %v2494, %v2679
    %v2681 = vpop.f32.mrb[0].mxu0
    %v2682 = vadd.f32 %v2498, %v2681
    %2683 = vmatprep.mubr.bf16.mxu0 0
    %2684 = vmatmul.mubr.bf16.gmra.mrb[0].mxu0 %v2488
    %v2685 = vpop.f32.mrb[0].mxu0
    %v2686 = vadd.f32 %v2494, %v2685
    %v2687 = vpop.f32.mrb[0].mxu0
    %v2688 = vadd.f32 %v2498, %v2687
    %v2689 = vpop.f32.mrb[0].mxu0
    %v2690 = vadd.f32 %v2494, %v2689
    %v2691 = vpop.f32.mrb[0].mxu0
    %v2692 = vadd.f32 %v2498, %v2691
    %2693 = vdwg.mxu0
    %v2694 = vmax.f32 %v2616, %v2626
    %v2695 = vmax.f32 %v2620, %v2630
    %v2696 = vmax.f32 %v2694, %v2636
    %v2697 = vmax.f32 %v2695, %v2640
    %v2698 = vmax.f32 %v2696, %v2646
    %v2699 = vmax.f32 %v2697, %v2650
    %v2700 = vmax.f32 %v2698, %v2699
    %v2701 = vrot.slane %v2700, 4
    %v2702 = vmax.f32 %v2700, %v2701
    %v2703 = vrot.slane %v2702, 2
    %v2704 = vmax.f32 %v2702, %v2703
    %v2705 = vrot.slane %v2704, 1
    %v2706 = vmax.f32 %v2704, %v2705
    %v2707 = vmax.f32 %v2618, %v2628
    %v2708 = vmax.f32 %v2622, %v2632
    %v2709 = vmax.f32 %v2707, %v2638
    %v2710 = vmax.f32 %v2708, %v2642
    %v2711 = vmax.f32 %v2709, %v2648
    %v2712 = vmax.f32 %v2710, %v2652
    %v2713 = vmax.f32 %v2711, %v2712
    %v2714 = vrot.slane %v2713, 4
    %v2715 = vmax.f32 %v2713, %v2714
    %v2716 = vrot.slane %v2715, 2
    %v2717 = vmax.f32 %v2715, %v2716
    %v2718 = vrot.slane %v2717, 1
    %v2719 = vmax.f32 %v2717, %v2718
    %v2720 = vmax.f32 %v2656, %v2666
    %v2721 = vmax.f32 %v2660, %v2670
    %v2722 = vmax.f32 %v2720, %v2676
    %v2723 = vmax.f32 %v2721, %v2680
    %v2724 = vmax.f32 %v2722, %v2686
    %v2725 = vmax.f32 %v2723, %v2690
    %v2726 = vmax.f32 %v2724, %v2725
    %v2727 = vrot.slane %v2726, 4
    %v2728 = vmax.f32 %v2726, %v2727
    %v2729 = vrot.slane %v2728, 2
    %v2730 = vmax.f32 %v2728, %v2729
    %v2731 = vrot.slane %v2730, 1
    %v2732 = vmax.f32 %v2730, %v2731
    %v2733 = vmax.f32 %v2658, %v2668
    %v2734 = vmax.f32 %v2662, %v2672
    %v2735 = vmax.f32 %v2733, %v2678
    %v2736 = vmax.f32 %v2734, %v2682
    %v2737 = vmax.f32 %v2735, %v2688
    %v2738 = vmax.f32 %v2736, %v2692
    %v2739 = vmax.f32 %v2737, %v2738
    %v2740 = vrot.slane %v2739, 4
    %v2741 = vmax.f32 %v2739, %v2740
    %v2742 = vrot.slane %v2741, 2
    %v2743 = vmax.f32 %v2741, %v2742
    %v2744 = vrot.slane %v2743, 1
    %v2745 = vmax.f32 %v2743, %v2744
    %v2746 = vlaneseq
    %v2747 = vshrl.u32 %v2746, 7
    %vm2748 = vcmp.eq.s32.totalorder %v2747, 1
    %v2749 = vsel %vm2748, 1, 0
    %vm2750 = vcmp.eq.s32.totalorder %v2749, 1
    %v2751 = vsel %vm2750, %v2732, %v2706
    %v2752 = vsel %vm2750, %v2745, %v2719
    %v2753 = vld [vmem:[#allocation6] sm:$0xff]
    %v2754 = vld [vmem:[#allocation6 + $0x8] sm:$0xff]
    %v2755 = vld [vmem:[#allocation6 + $0x10] sm:$0xff]
    %v2756 = vld [vmem:[#allocation6 + $0x18] sm:$0xff]
    %v2757 = vld [vmem:[#allocation6 + $0x20] sm:$0xff]
    %v2758 = vld [vmem:[#allocation6 + $0x28] sm:$0xff]
    %v2759 = vld [vmem:[#allocation6 + $0x30] sm:$0xff]
    %v2760 = vld [vmem:[#allocation6 + $0x38] sm:$0xff]
    %v2761 = vld [vmem:[#allocation6 + $0x40] sm:$0xff]
    %v2762 = vld [vmem:[#allocation6 + $0x48] sm:$0xff]
    %v2763 = vld [vmem:[#allocation6 + $0x50] sm:$0xff]
    %v2764 = vld [vmem:[#allocation6 + $0x58] sm:$0xff]
    %v2765 = vld [vmem:[#allocation6 + $0x60] sm:$0xff]
    %v2766 = vld [vmem:[#allocation6 + $0x68] sm:$0xff]
    %v2767 = vld [vmem:[#allocation6 + $0x70] sm:$0xff]
    %v2768 = vld [vmem:[#allocation6 + $0x78] sm:$0xff]
    %v2769 = vld [vmem:[#allocation6 + $0x80] sm:$0xff]
    %v2770 = vld [vmem:[#allocation6 + $0x88] sm:$0xff]
    %v2771 = vld [vmem:[#allocation6 + $0x90] sm:$0xff]
    %v2772 = vld [vmem:[#allocation6 + $0x98] sm:$0xff]
    %v2773 = vld [vmem:[#allocation6 + $0xa0] sm:$0xff]
    %v2774 = vld [vmem:[#allocation6 + $0xa8] sm:$0xff]
    %v2775 = vld [vmem:[#allocation6 + $0xb0] sm:$0xff]
    %v2776 = vld [vmem:[#allocation6 + $0xb8] sm:$0xff]
    %v2777 = vld [vmem:[#allocation6 + $0xc0] sm:$0xff]
    %v2778 = vld [vmem:[#allocation6 + $0xc8] sm:$0xff]
    %v2779 = vld [vmem:[#allocation6 + $0xd0] sm:$0xff]
    %v2780 = vld [vmem:[#allocation6 + $0xd8] sm:$0xff]
    %v2781 = vld [vmem:[#allocation6 + $0xe0] sm:$0xff]
    %v2782 = vld [vmem:[#allocation6 + $0xe8] sm:$0xff]
    %v2783 = vld [vmem:[#allocation6 + $0xf0] sm:$0xff]
    %v2784 = vld [vmem:[#allocation6 + $0xf8] sm:$0xff]
    %v2785 = vld [vmem:[#allocation6 + $0x100] sm:$0xff]
    %v2786 = vld [vmem:[#allocation6 + $0x108] sm:$0xff]
    %v2787 = vld [vmem:[#allocation6 + $0x110] sm:$0xff]
    %v2788 = vld [vmem:[#allocation6 + $0x118] sm:$0xff]
    %v2789 = vld [vmem:[#allocation6 + $0x120] sm:$0xff]
    %v2790 = vld [vmem:[#allocation6 + $0x128] sm:$0xff]
    %v2791 = vld [vmem:[#allocation6 + $0x130] sm:$0xff]
    %v2792 = vld [vmem:[#allocation6 + $0x138] sm:$0xff]
    %v2793 = vld [vmem:[#allocation6 + $0x140] sm:$0xff]
    %v2794 = vld [vmem:[#allocation6 + $0x148] sm:$0xff]
    %v2795 = vld [vmem:[#allocation6 + $0x150] sm:$0xff]
    %v2796 = vld [vmem:[#allocation6 + $0x158] sm:$0xff]
    %v2797 = vld [vmem:[#allocation6 + $0x160] sm:$0xff]
    %v2798 = vld [vmem:[#allocation6 + $0x168] sm:$0xff]
    %v2799 = vld [vmem:[#allocation6 + $0x170] sm:$0xff]
    %v2800 = vld [vmem:[#allocation6 + $0x178] sm:$0xff]
    %v2801 = vld [vmem:[#allocation6 + $0x180] sm:$0xff]
    %v2802 = vld [vmem:[#allocation6 + $0x188] sm:$0xff]
    %v2803 = vld [vmem:[#allocation6 + $0x190] sm:$0xff]
    %v2804 = vld [vmem:[#allocation6 + $0x198] sm:$0xff]
    %v2805 = vld [vmem:[#allocation6 + $0x1a0] sm:$0xff]
    %v2806 = vld [vmem:[#allocation6 + $0x1a8] sm:$0xff]
    %v2807 = vld [vmem:[#allocation6 + $0x1b0] sm:$0xff]
    %v2808 = vld [vmem:[#allocation6 + $0x1b8] sm:$0xff]
    %v2809 = vld [vmem:[#allocation6 + $0x1c0] sm:$0xff]
    %v2810 = vld [vmem:[#allocation6 + $0x1c8] sm:$0xff]
    %v2811 = vld [vmem:[#allocation6 + $0x1d0] sm:$0xff]
    %v2812 = vld [vmem:[#allocation6 + $0x1d8] sm:$0xff]
    %v2813 = vld [vmem:[#allocation6 + $0x1e0] sm:$0xff]
    %v2814 = vld [vmem:[#allocation6 + $0x1e8] sm:$0xff]
    %v2815 = vld [vmem:[#allocation6 + $0x1f0] sm:$0xff]
    %v2816 = vld [vmem:[#allocation6 + $0x1f8] sm:$0xff]
    %v2817 = vpack.c.bf16 %v2751, %v2751
    %v2818 = vpack.c.bf16 %v2752, %v2752
    %v2883 = vunpack.c.l.b16 %v2753
    %v2884 = vunpack.c.h.b16 %v2753
    %v2885 = vunpack.c.l.b16 %v2754
    %v2886 = vunpack.c.h.b16 %v2754
    %v2887 = vunpack.c.l.b16 %v2755
    %v2888 = vunpack.c.h.b16 %v2755
    %v2889 = vunpack.c.l.b16 %v2756
    %v2890 = vunpack.c.h.b16 %v2756
    %v2891 = vunpack.c.l.b16 %v2757
    %v2892 = vunpack.c.h.b16 %v2757
    %v2893 = vunpack.c.l.b16 %v2758
    %v2894 = vunpack.c.h.b16 %v2758
    %v2895 = vunpack.c.l.b16 %v2759
    %v2896 = vunpack.c.h.b16 %v2759
    %v2897 = vunpack.c.l.b16 %v2760
    %v2898 = vunpack.c.h.b16 %v2760
    %v2899 = vunpack.c.l.b16 %v2761
    %v2900 = vunpack.c.h.b16 %v2761
    %v2901 = vunpack.c.l.b16 %v2762
    %v2902 = vunpack.c.h.b16 %v2762
    %v2903 = vunpack.c.l.b16 %v2763
    %v2904 = vunpack.c.h.b16 %v2763
    %v2905 = vunpack.c.l.b16 %v2764
    %v2906 = vunpack.c.h.b16 %v2764
    %v2907 = vunpack.c.l.b16 %v2765
    %v2908 = vunpack.c.h.b16 %v2765
    %v2909 = vunpack.c.l.b16 %v2766
    %v2910 = vunpack.c.h.b16 %v2766
    %v2911 = vunpack.c.l.b16 %v2767
    %v2912 = vunpack.c.h.b16 %v2767
    %v2913 = vunpack.c.l.b16 %v2768
    %v2914 = vunpack.c.h.b16 %v2768
    %v2915 = vunpack.c.l.b16 %v2769
    %v2916 = vunpack.c.h.b16 %v2769
    %v2917 = vunpack.c.l.b16 %v2770
    %v2918 = vunpack.c.h.b16 %v2770
    %v2919 = vunpack.c.l.b16 %v2771
    %v2920 = vunpack.c.h.b16 %v2771
    %v2921 = vunpack.c.l.b16 %v2772
    %v2922 = vunpack.c.h.b16 %v2772
    %v2923 = vunpack.c.l.b16 %v2773
    %v2924 = vunpack.c.h.b16 %v2773
    %v2925 = vunpack.c.l.b16 %v2774
    %v2926 = vunpack.c.h.b16 %v2774
    %v2927 = vunpack.c.l.b16 %v2775
    %v2928 = vunpack.c.h.b16 %v2775
    %v2929 = vunpack.c.l.b16 %v2776
    %v2930 = vunpack.c.h.b16 %v2776
    %v2931 = vunpack.c.l.b16 %v2777
    %v2932 = vunpack.c.h.b16 %v2777
    %v2933 = vunpack.c.l.b16 %v2778
    %v2934 = vunpack.c.h.b16 %v2778
    %v2935 = vunpack.c.l.b16 %v2779
    %v2936 = vunpack.c.h.b16 %v2779
    %v2937 = vunpack.c.l.b16 %v2780
    %v2938 = vunpack.c.h.b16 %v2780
    %v2939 = vunpack.c.l.b16 %v2781
    %v2940 = vunpack.c.h.b16 %v2781
    %v2941 = vunpack.c.l.b16 %v2782
    %v2942 = vunpack.c.h.b16 %v2782
    %v2943 = vunpack.c.l.b16 %v2783
    %v2944 = vunpack.c.h.b16 %v2783
    %v2945 = vunpack.c.l.b16 %v2784
    %v2946 = vunpack.c.h.b16 %v2784
    %v2947 = vunpack.c.l.b16 %v2785
    %v2948 = vunpack.c.h.b16 %v2785
    %v2949 = vunpack.c.l.b16 %v2786
    %v2950 = vunpack.c.h.b16 %v2786
    %v2951 = vunpack.c.l.b16 %v2787
    %v2952 = vunpack.c.h.b16 %v2787
    %v2953 = vunpack.c.l.b16 %v2788
    %v2954 = vunpack.c.h.b16 %v2788
    %v2955 = vunpack.c.l.b16 %v2789
    %v2956 = vunpack.c.h.b16 %v2789
    %v2957 = vunpack.c.l.b16 %v2790
    %v2958 = vunpack.c.h.b16 %v2790
    %v2959 = vunpack.c.l.b16 %v2791
    %v2960 = vunpack.c.h.b16 %v2791
    %v2961 = vunpack.c.l.b16 %v2792
    %v2962 = vunpack.c.h.b16 %v2792
    %v2963 = vunpack.c.l.b16 %v2793
    %v2964 = vunpack.c.h.b16 %v2793
    %v2965 = vunpack.c.l.b16 %v2794
    %v2966 = vunpack.c.h.b16 %v2794
    %v2967 = vunpack.c.l.b16 %v2795
    %v2968 = vunpack.c.h.b16 %v2795
    %v2969 = vunpack.c.l.b16 %v2796
    %v2970 = vunpack.c.h.b16 %v2796
    %v2971 = vunpack.c.l.b16 %v2797
    %v2972 = vunpack.c.h.b16 %v2797
    %v2973 = vunpack.c.l.b16 %v2798
    %v2974 = vunpack.c.h.b16 %v2798
    %v2975 = vunpack.c.l.b16 %v2799
    %v2976 = vunpack.c.h.b16 %v2799
    %v2977 = vunpack.c.l.b16 %v2800
    %v2978 = vunpack.c.h.b16 %v2800
    %v2979 = vunpack.c.l.b16 %v2801
    %v2980 = vunpack.c.h.b16 %v2801
    %v2981 = vunpack.c.l.b16 %v2802
    %v2982 = vunpack.c.h.b16 %v2802
    %v2983 = vunpack.c.l.b16 %v2803
    %v2984 = vunpack.c.h.b16 %v2803
    %v2985 = vunpack.c.l.b16 %v2804
    %v2986 = vunpack.c.h.b16 %v2804
    %v2987 = vunpack.c.l.b16 %v2805
    %v2988 = vunpack.c.h.b16 %v2805
    %v2989 = vunpack.c.l.b16 %v2806
    %v2990 = vunpack.c.h.b16 %v2806
    %v2991 = vunpack.c.l.b16 %v2807
    %v2992 = vunpack.c.h.b16 %v2807
    %v2993 = vunpack.c.l.b16 %v2808
    %v2994 = vunpack.c.h.b16 %v2808
    %v2995 = vunpack.c.l.b16 %v2809
    %v2996 = vunpack.c.h.b16 %v2809
    %v2997 = vunpack.c.l.b16 %v2810
    %v2998 = vunpack.c.h.b16 %v2810
    %v2999 = vunpack.c.l.b16 %v2811
    %v3000 = vunpack.c.h.b16 %v2811
    %v3001 = vunpack.c.l.b16 %v2812
    %v3002 = vunpack.c.h.b16 %v2812
    %v3003 = vunpack.c.l.b16 %v2813
    %v3004 = vunpack.c.h.b16 %v2813
    %v3005 = vunpack.c.l.b16 %v2814
    %v3006 = vunpack.c.h.b16 %v2814
    %v3007 = vunpack.c.l.b16 %v2815
    %v3008 = vunpack.c.h.b16 %v2815
    %v3009 = vunpack.c.l.b16 %v2816
    %v3010 = vunpack.c.h.b16 %v2816
    %v3011 = vpack.c.b16 %v2887, %v2883
    %v3012 = vpack.c.b16 %v2888, %v2884
    %v3013 = vpack.c.b16 %v2889, %v2885
    %v3014 = vpack.c.b16 %v2890, %v2886
    %v3015 = vpack.c.b16 %v2895, %v2891
    %v3016 = vpack.c.b16 %v2896, %v2892
    %v3017 = vpack.c.b16 %v2897, %v2893
    %v3018 = vpack.c.b16 %v2898, %v2894
    %v3019 = vpack.c.b16 %v2903, %v2899
    %v3020 = vpack.c.b16 %v2904, %v2900
    %v3021 = vpack.c.b16 %v2905, %v2901
    %v3022 = vpack.c.b16 %v2906, %v2902
    %v3023 = vpack.c.b16 %v2911, %v2907
    %v3024 = vpack.c.b16 %v2912, %v2908
    %v3025 = vpack.c.b16 %v2913, %v2909
    %v3026 = vpack.c.b16 %v2914, %v2910
    %v3027 = vpack.c.b16 %v2919, %v2915
    %v3028 = vpack.c.b16 %v2920, %v2916
    %v3029 = vpack.c.b16 %v2921, %v2917
    %v3030 = vpack.c.b16 %v2922, %v2918
    %v3031 = vpack.c.b16 %v2927, %v2923
    %v3032 = vpack.c.b16 %v2928, %v2924
    %v3033 = vpack.c.b16 %v2929, %v2925
    %v3034 = vpack.c.b16 %v2930, %v2926
    %v3035 = vpack.c.b16 %v2935, %v2931
    %v3036 = vpack.c.b16 %v2936, %v2932
    %v3037 = vpack.c.b16 %v2937, %v2933
    %v3038 = vpack.c.b16 %v2938, %v2934
    %v3039 = vpack.c.b16 %v2943, %v2939
    %v3040 = vpack.c.b16 %v2944, %v2940
    %v3041 = vpack.c.b16 %v2945, %v2941
    %v3042 = vpack.c.b16 %v2946, %v2942
    %v3043 = vpack.c.b16 %v2951, %v2947
    %v3044 = vpack.c.b16 %v2952, %v2948
    %v3045 = vpack.c.b16 %v2953, %v2949
    %v3046 = vpack.c.b16 %v2954, %v2950
    %v3047 = vpack.c.b16 %v2959, %v2955
    %v3048 = vpack.c.b16 %v2960, %v2956
    %v3049 = vpack.c.b16 %v2961, %v2957
    %v3050 = vpack.c.b16 %v2962, %v2958
    %v3051 = vpack.c.b16 %v2967, %v2963
    %v3052 = vpack.c.b16 %v2968, %v2964
    %v3053 = vpack.c.b16 %v2969, %v2965
    %v3054 = vpack.c.b16 %v2970, %v2966
    %v3055 = vpack.c.b16 %v2975, %v2971
    %v3056 = vpack.c.b16 %v2976, %v2972
    %v3057 = vpack.c.b16 %v2977, %v2973
    %v3058 = vpack.c.b16 %v2978, %v2974
    %v3059 = vpack.c.b16 %v2983, %v2979
    %v3060 = vpack.c.b16 %v2984, %v2980
    %v3061 = vpack.c.b16 %v2985, %v2981
    %v3062 = vpack.c.b16 %v2986, %v2982
    %v3063 = vpack.c.b16 %v2991, %v2987
    %v3064 = vpack.c.b16 %v2992, %v2988
    %v3065 = vpack.c.b16 %v2993, %v2989
    %v3066 = vpack.c.b16 %v2994, %v2990
    %v3067 = vpack.c.b16 %v2999, %v2995
    %v3068 = vpack.c.b16 %v3000, %v2996
    %v3069 = vpack.c.b16 %v3001, %v2997
    %v3070 = vpack.c.b16 %v3002, %v2998
    %v3071 = vpack.c.b16 %v3007, %v3003
    %v3072 = vpack.c.b16 %v3008, %v3004
    %v3073 = vpack.c.b16 %v3009, %v3005
    %v3074 = vpack.c.b16 %v3010, %v3006
    %3139 = vmatprep.subr.bf16.mxu0 %v3012
    %3140 = vmatpush1.bf16.msra.mxu0 %v3011
    %3141 = vmatprep.subr.bf16.mxu0 %v3016
    %3142 = vmatpush1.bf16.msra.mxu0 %v3015
    %3143 = vmatprep.subr.bf16.mxu0 %v3020
    %3144 = vmatpush1.bf16.msra.mxu0 %v3019
    %3145 = vmatprep.subr.bf16.mxu0 %v3024
    %3146 = vmatpush1.bf16.msra.mxu0 %v3023
    %3147 = vmatprep.subr.bf16.mxu0 %v3028
    %3148 = vmatpush1.bf16.msra.mxu0 %v3027
    %3149 = vmatprep.subr.bf16.mxu0 %v3032
    %3150 = vmatpush1.bf16.msra.mxu0 %v3031
    %3151 = vmatprep.subr.bf16.mxu0 %v3036
    %3152 = vmatpush1.bf16.msra.mxu0 %v3035
    %3153 = vmatprep.subr.bf16.mxu0 %v3040
    %3154 = vmatpush1.bf16.msra.mxu0 %v3039
    %3155 = vmatprep.subr.bf16.mxu0 %v3044
    %3156 = vmatpush1.bf16.msra.mxu0 %v3043
    %3157 = vmatprep.subr.bf16.mxu0 %v3048
    %3158 = vmatpush1.bf16.msra.mxu0 %v3047
    %3159 = vmatprep.subr.bf16.mxu0 %v3052
    %3160 = vmatpush1.bf16.msra.mxu0 %v3051
    %3161 = vmatprep.subr.bf16.mxu0 %v3056
    %3162 = vmatpush1.bf16.msra.mxu0 %v3055
    %3163 = vmatprep.subr.bf16.mxu0 %v3060
    %3164 = vmatpush1.bf16.msra.mxu0 %v3059
    %3165 = vmatprep.subr.bf16.mxu0 %v3064
    %3166 = vmatpush1.bf16.msra.mxu0 %v3063
    %3167 = vmatprep.subr.bf16.mxu0 %v3068
    %3168 = vmatpush1.bf16.msra.mxu0 %v3067
    %3169 = vmatprep.subr.bf16.mxu0 %v3072
    %3170 = vmatpush1.bf16.msra.mxu0 %v3071
    %3171 = vmatprep.mubr.bf16.mxu0 %v2818
    %3172 = vmatmul.mubr.bf16.gmra.mrb[0].mxu0 %v2817
    %v3173 = vpop.f32.mrb[0].mxu0
    %v3174 = vadd.f32 0.0, %v3173
    %v3175 = vpop.f32.mrb[0].mxu0
    %v3176 = vadd.f32 0.0, %v3175
    %v3177 = vpop.f32.mrb[0].mxu0
    %v3178 = vpop.f32.mrb[0].mxu0
    %3179 = vdwg.mxu0
    %3180 = vmatprep.subr.bf16.mxu0 %v3014
    %3181 = vmatpush1.bf16.msra.mxu0 %v3013
    %3182 = vmatprep.subr.bf16.mxu0 %v3018
    %3183 = vmatpush1.bf16.msra.mxu0 %v3017
    %3184 = vmatprep.subr.bf16.mxu0 %v3022
    %3185 = vmatpush1.bf16.msra.mxu0 %v3021
    %3186 = vmatprep.subr.bf16.mxu0 %v3026
    %3187 = vmatpush1.bf16.msra.mxu0 %v3025
    %3188 = vmatprep.subr.bf16.mxu0 %v3030
    %3189 = vmatpush1.bf16.msra.mxu0 %v3029
    %3190 = vmatprep.subr.bf16.mxu0 %v3034
    %3191 = vmatpush1.bf16.msra.mxu0 %v3033
    %3192 = vmatprep.subr.bf16.mxu0 %v3038
    %3193 = vmatpush1.bf16.msra.mxu0 %v3037
    %3194 = vmatprep.subr.bf16.mxu0 %v3042
    %3195 = vmatpush1.bf16.msra.mxu0 %v3041
    %3196 = vmatprep.subr.bf16.mxu0 %v3046
    %3197 = vmatpush1.bf16.msra.mxu0 %v3045
    %3198 = vmatprep.subr.bf16.mxu0 %v3050
    %3199 = vmatpush1.bf16.msra.mxu0 %v3049
    %3200 = vmatprep.subr.bf16.mxu0 %v3054
    %3201 = vmatpush1.bf16.msra.mxu0 %v3053
    %3202 = vmatprep.subr.bf16.mxu0 %v3058
    %3203 = vmatpush1.bf16.msra.mxu0 %v3057
    %3204 = vmatprep.subr.bf16.mxu0 %v3062
    %3205 = vmatpush1.bf16.msra.mxu0 %v3061
    %3206 = vmatprep.subr.bf16.mxu0 %v3066
    %3207 = vmatpush1.bf16.msra.mxu0 %v3065
    %3208 = vmatprep.subr.bf16.mxu0 %v3070
    %3209 = vmatpush1.bf16.msra.mxu0 %v3069
    %3210 = vmatprep.subr.bf16.mxu0 %v3074
    %3211 = vmatpush1.bf16.msra.mxu0 %v3073
    %3212 = vmatprep.mubr.bf16.mxu0 %v2818
    %3213 = vmatmul.mubr.bf16.gmra.mrb[0].mxu0 %v2817
    %v3214 = vpop.f32.mrb[0].mxu0
    %v3215 = vadd.f32 0.0, %v3214
    %v3216 = vpop.f32.mrb[0].mxu0
    %v3217 = vadd.f32 0.0, %v3216
    %v3218 = vpop.f32.mrb[0].mxu0
    %v3219 = vpop.f32.mrb[0].mxu0
    %3220 = vdwg.mxu0
    %v3221 = vld [vmem:[#allocation8] sm:$0xff]
    %v3222 = vld [vmem:[#allocation8 + $0x8] sm:$0xff]
    %v3223 = vld [vmem:[#allocation8 + $0x10] sm:$0xff]
    %v3224 = vld [vmem:[#allocation8 + $0x18] sm:$0xff]
    %v3225 = vld [vmem:[#allocation8 + $0x20] sm:$0xff]
    %v3226 = vld [vmem:[#allocation8 + $0x28] sm:$0xff]
    %v3227 = vld [vmem:[#allocation8 + $0x30] sm:$0xff]
    %v3228 = vld [vmem:[#allocation8 + $0x38] sm:$0xff]
    %v3229 = vld [vmem:[#allocation8 + $0x40] sm:$0xff]
    %v3230 = vld [vmem:[#allocation8 + $0x48] sm:$0xff]
    %v3231 = vld [vmem:[#allocation8 + $0x50] sm:$0xff]
    %v3232 = vld [vmem:[#allocation8 + $0x58] sm:$0xff]
    %v3233 = vld [vmem:[#allocation8 + $0x60] sm:$0xff]
    %v3234 = vld [vmem:[#allocation8 + $0x68] sm:$0xff]
    %v3235 = vld [vmem:[#allocation8 + $0x70] sm:$0xff]
    %v3236 = vld [vmem:[#allocation8 + $0x78] sm:$0xff]
    %v3237 = vld [vmem:[#allocation8 + $0x80] sm:$0xff]
    %v3238 = vld [vmem:[#allocation8 + $0x88] sm:$0xff]
    %v3239 = vld [vmem:[#allocation8 + $0x90] sm:$0xff]
    %v3240 = vld [vmem:[#allocation8 + $0x98] sm:$0xff]
    %v3241 = vld [vmem:[#allocation8 + $0xa0] sm:$0xff]
    %v3242 = vld [vmem:[#allocation8 + $0xa8] sm:$0xff]
    %v3243 = vld [vmem:[#allocation8 + $0xb0] sm:$0xff]
    %v3244 = vld [vmem:[#allocation8 + $0xb8] sm:$0xff]
    %v3245 = vld [vmem:[#allocation8 + $0xc0] sm:$0xff]
    %v3246 = vld [vmem:[#allocation8 + $0xc8] sm:$0xff]
    %v3247 = vld [vmem:[#allocation8 + $0xd0] sm:$0xff]
    %v3248 = vld [vmem:[#allocation8 + $0xd8] sm:$0xff]
    %v3249 = vld [vmem:[#allocation8 + $0xe0] sm:$0xff]
    %v3250 = vld [vmem:[#allocation8 + $0xe8] sm:$0xff]
    %v3251 = vld [vmem:[#allocation8 + $0xf0] sm:$0xff]
    %v3252 = vld [vmem:[#allocation8 + $0xf8] sm:$0xff]
    %v3253 = vld [vmem:[#allocation8 + $0x100] sm:$0xff]
    %v3254 = vld [vmem:[#allocation8 + $0x108] sm:$0xff]
    %v3255 = vld [vmem:[#allocation8 + $0x110] sm:$0xff]
    %v3256 = vld [vmem:[#allocation8 + $0x118] sm:$0xff]
    %v3257 = vld [vmem:[#allocation8 + $0x120] sm:$0xff]
    %v3258 = vld [vmem:[#allocation8 + $0x128] sm:$0xff]
    %v3259 = vld [vmem:[#allocation8 + $0x130] sm:$0xff]
    %v3260 = vld [vmem:[#allocation8 + $0x138] sm:$0xff]
    %v3261 = vld [vmem:[#allocation8 + $0x140] sm:$0xff]
    %v3262 = vld [vmem:[#allocation8 + $0x148] sm:$0xff]
    %v3263 = vld [vmem:[#allocation8 + $0x150] sm:$0xff]
    %v3264 = vld [vmem:[#allocation8 + $0x158] sm:$0xff]
    %v3265 = vld [vmem:[#allocation8 + $0x160] sm:$0xff]
    %v3266 = vld [vmem:[#allocation8 + $0x168] sm:$0xff]
    %v3267 = vld [vmem:[#allocation8 + $0x170] sm:$0xff]
    %v3268 = vld [vmem:[#allocation8 + $0x178] sm:$0xff]
    %v3269 = vld [vmem:[#allocation8 + $0x180] sm:$0xff]
    %v3270 = vld [vmem:[#allocation8 + $0x188] sm:$0xff]
    %v3271 = vld [vmem:[#allocation8 + $0x190] sm:$0xff]
    %v3272 = vld [vmem:[#allocation8 + $0x198] sm:$0xff]
    %v3273 = vld [vmem:[#allocation8 + $0x1a0] sm:$0xff]
    %v3274 = vld [vmem:[#allocation8 + $0x1a8] sm:$0xff]
    %v3275 = vld [vmem:[#allocation8 + $0x1b0] sm:$0xff]
    %v3276 = vld [vmem:[#allocation8 + $0x1b8] sm:$0xff]
    %v3277 = vld [vmem:[#allocation8 + $0x1c0] sm:$0xff]
    %v3278 = vld [vmem:[#allocation8 + $0x1c8] sm:$0xff]
    %v3279 = vld [vmem:[#allocation8 + $0x1d0] sm:$0xff]
    %v3280 = vld [vmem:[#allocation8 + $0x1d8] sm:$0xff]
    %v3281 = vld [vmem:[#allocation8 + $0x1e0] sm:$0xff]
    %v3282 = vld [vmem:[#allocation8 + $0x1e8] sm:$0xff]
    %v3283 = vld [vmem:[#allocation8 + $0x1f0] sm:$0xff]
    %v3284 = vld [vmem:[#allocation8 + $0x1f8] sm:$0xff]
    %v3285 = vpack.c.bf16 %v2620, %v2616
    %v3286 = vpack.c.bf16 %v2622, %v2618
    %v3287 = vpack.c.bf16 %v2630, %v2626
    %v3288 = vpack.c.bf16 %v2632, %v2628
    %v3289 = vpack.c.bf16 %v2640, %v2636
    %v3290 = vpack.c.bf16 %v2642, %v2638
    %v3291 = vpack.c.bf16 %v2650, %v2646
    %v3292 = vpack.c.bf16 %v2652, %v2648
    %v3293 = vpack.c.bf16 %v2660, %v2656
    %v3294 = vpack.c.bf16 %v2662, %v2658
    %v3295 = vpack.c.bf16 %v2670, %v2666
    %v3296 = vpack.c.bf16 %v2672, %v2668
    %v3297 = vpack.c.bf16 %v2680, %v2676
    %v3298 = vpack.c.bf16 %v2682, %v2678
    %v3299 = vpack.c.bf16 %v2690, %v2686
    %v3300 = vpack.c.bf16 %v2692, %v2688
    %v3301 = vld [vmem:[%s7 + $0x3] sm:$0xf]
    %v3303 = vlaneseq
    %v3304 = vshrl.u32 %v3303, 7
    %v3305 = vsub.s32 0, %v3304
    %v3306 = vrot.slane %v3301, %v3305
    %v3307 = vlaneseq
    %v3308 = vshrl.u32 %v3307, 7
    %v3309 = vsub.s32 1, %v3308
    %v3310 = vrot.slane %v3301, %v3309
    %v3311 = vlaneseq
    %v3312 = vshrl.u32 %v3311, 7
    %v3313 = vsub.s32 2, %v3312
    %v3314 = vrot.slane %v3301, %v3313
    %v3315 = vlaneseq
    %v3316 = vshrl.u32 %v3315, 7
    %v3317 = vsub.s32 3, %v3316
    %v3318 = vrot.slane %v3301, %v3317
    %v3387 = vunpack.c.l.b16 %v3221
    %v3388 = vunpack.c.h.b16 %v3221
    %v3389 = vunpack.c.l.b16 %v3222
    %v3390 = vunpack.c.h.b16 %v3222
    %v3391 = vunpack.c.l.b16 %v3223
    %v3392 = vunpack.c.h.b16 %v3223
    %v3393 = vunpack.c.l.b16 %v3224
    %v3394 = vunpack.c.h.b16 %v3224
    %v3395 = vunpack.c.l.b16 %v3225
    %v3396 = vunpack.c.h.b16 %v3225
    %v3397 = vunpack.c.l.b16 %v3226
    %v3398 = vunpack.c.h.b16 %v3226
    %v3399 = vunpack.c.l.b16 %v3227
    %v3400 = vunpack.c.h.b16 %v3227
    %v3401 = vunpack.c.l.b16 %v3228
    %v3402 = vunpack.c.h.b16 %v3228
    %v3403 = vunpack.c.l.b16 %v3229
    %v3404 = vunpack.c.h.b16 %v3229
    %v3405 = vunpack.c.l.b16 %v3230
    %v3406 = vunpack.c.h.b16 %v3230
    %v3407 = vunpack.c.l.b16 %v3231
    %v3408 = vunpack.c.h.b16 %v3231
    %v3409 = vunpack.c.l.b16 %v3232
    %v3410 = vunpack.c.h.b16 %v3232
    %v3411 = vunpack.c.l.b16 %v3233
    %v3412 = vunpack.c.h.b16 %v3233
    %v3413 = vunpack.c.l.b16 %v3234
    %v3414 = vunpack.c.h.b16 %v3234
    %v3415 = vunpack.c.l.b16 %v3235
    %v3416 = vunpack.c.h.b16 %v3235
    %v3417 = vunpack.c.l.b16 %v3236
    %v3418 = vunpack.c.h.b16 %v3236
    %v3419 = vunpack.c.l.b16 %v3237
    %v3420 = vunpack.c.h.b16 %v3237
    %v3421 = vunpack.c.l.b16 %v3238
    %v3422 = vunpack.c.h.b16 %v3238
    %v3423 = vunpack.c.l.b16 %v3239
    %v3424 = vunpack.c.h.b16 %v3239
    %v3425 = vunpack.c.l.b16 %v3240
    %v3426 = vunpack.c.h.b16 %v3240
    %v3427 = vunpack.c.l.b16 %v3241
    %v3428 = vunpack.c.h.b16 %v3241
    %v3429 = vunpack.c.l.b16 %v3242
    %v3430 = vunpack.c.h.b16 %v3242
    %v3431 = vunpack.c.l.b16 %v3243
    %v3432 = vunpack.c.h.b16 %v3243
    %v3433 = vunpack.c.l.b16 %v3244
    %v3434 = vunpack.c.h.b16 %v3244
    %v3435 = vunpack.c.l.b16 %v3245
    %v3436 = vunpack.c.h.b16 %v3245
    %v3437 = vunpack.c.l.b16 %v3246
    %v3438 = vunpack.c.h.b16 %v3246
    %v3439 = vunpack.c.l.b16 %v3247
    %v3440 = vunpack.c.h.b16 %v3247
    %v3441 = vunpack.c.l.b16 %v3248
    %v3442 = vunpack.c.h.b16 %v3248
    %v3443 = vunpack.c.l.b16 %v3249
    %v3444 = vunpack.c.h.b16 %v3249
    %v3445 = vunpack.c.l.b16 %v3250
    %v3446 = vunpack.c.h.b16 %v3250
    %v3447 = vunpack.c.l.b16 %v3251
    %v3448 = vunpack.c.h.b16 %v3251
    %v3449 = vunpack.c.l.b16 %v3252
    %v3450 = vunpack.c.h.b16 %v3252
    %v3451 = vunpack.c.l.b16 %v3253
    %v3452 = vunpack.c.h.b16 %v3253
    %v3453 = vunpack.c.l.b16 %v3254
    %v3454 = vunpack.c.h.b16 %v3254
    %v3455 = vunpack.c.l.b16 %v3255
    %v3456 = vunpack.c.h.b16 %v3255
    %v3457 = vunpack.c.l.b16 %v3256
    %v3458 = vunpack.c.h.b16 %v3256
    %v3459 = vunpack.c.l.b16 %v3257
    %v3460 = vunpack.c.h.b16 %v3257
    %v3461 = vunpack.c.l.b16 %v3258
    %v3462 = vunpack.c.h.b16 %v3258
    %v3463 = vunpack.c.l.b16 %v3259
    %v3464 = vunpack.c.h.b16 %v3259
    %v3465 = vunpack.c.l.b16 %v3260
    %v3466 = vunpack.c.h.b16 %v3260
    %v3467 = vunpack.c.l.b16 %v3261
    %v3468 = vunpack.c.h.b16 %v3261
    %v3469 = vunpack.c.l.b16 %v3262
    %v3470 = vunpack.c.h.b16 %v3262
    %v3471 = vunpack.c.l.b16 %v3263
    %v3472 = vunpack.c.h.b16 %v3263
    %v3473 = vunpack.c.l.b16 %v3264
    %v3474 = vunpack.c.h.b16 %v3264
    %v3475 = vunpack.c.l.b16 %v3265
    %v3476 = vunpack.c.h.b16 %v3265
    %v3477 = vunpack.c.l.b16 %v3266
    %v3478 = vunpack.c.h.b16 %v3266
    %v3479 = vunpack.c.l.b16 %v3267
    %v3480 = vunpack.c.h.b16 %v3267
    %v3481 = vunpack.c.l.b16 %v3268
    %v3482 = vunpack.c.h.b16 %v3268
    %v3483 = vunpack.c.l.b16 %v3269
    %v3484 = vunpack.c.h.b16 %v3269
    %v3485 = vunpack.c.l.b16 %v3270
    %v3486 = vunpack.c.h.b16 %v3270
    %v3487 = vunpack.c.l.b16 %v3271
    %v3488 = vunpack.c.h.b16 %v3271
    %v3489 = vunpack.c.l.b16 %v3272
    %v3490 = vunpack.c.h.b16 %v3272
    %v3491 = vunpack.c.l.b16 %v3273
    %v3492 = vunpack.c.h.b16 %v3273
    %v3493 = vunpack.c.l.b16 %v3274
    %v3494 = vunpack.c.h.b16 %v3274
    %v3495 = vunpack.c.l.b16 %v3275
    %v3496 = vunpack.c.h.b16 %v3275
    %v3497 = vunpack.c.l.b16 %v3276
    %v3498 = vunpack.c.h.b16 %v3276
    %v3499 = vunpack.c.l.b16 %v3277
    %v3500 = vunpack.c.h.b16 %v3277
    %v3501 = vunpack.c.l.b16 %v3278
    %v3502 = vunpack.c.h.b16 %v3278
    %v3503 = vunpack.c.l.b16 %v3279
    %v3504 = vunpack.c.h.b16 %v3279
    %v3505 = vunpack.c.l.b16 %v3280
    %v3506 = vunpack.c.h.b16 %v3280
    %v3507 = vunpack.c.l.b16 %v3281
    %v3508 = vunpack.c.h.b16 %v3281
    %v3509 = vunpack.c.l.b16 %v3282
    %v3510 = vunpack.c.h.b16 %v3282
    %v3511 = vunpack.c.l.b16 %v3283
    %v3512 = vunpack.c.h.b16 %v3283
    %v3513 = vunpack.c.l.b16 %v3284
    %v3514 = vunpack.c.h.b16 %v3284
    %v3515 = vpack.c.b16 %v3391, %v3387
    %v3516 = vpack.c.b16 %v3392, %v3388
    %v3517 = vpack.c.b16 %v3393, %v3389
    %v3518 = vpack.c.b16 %v3394, %v3390
    %v3519 = vpack.c.b16 %v3399, %v3395
    %v3520 = vpack.c.b16 %v3400, %v3396
    %v3521 = vpack.c.b16 %v3401, %v3397
    %v3522 = vpack.c.b16 %v3402, %v3398
    %v3523 = vpack.c.b16 %v3407, %v3403
    %v3524 = vpack.c.b16 %v3408, %v3404
    %v3525 = vpack.c.b16 %v3409, %v3405
    %v3526 = vpack.c.b16 %v3410, %v3406
    %v3527 = vpack.c.b16 %v3415, %v3411
    %v3528 = vpack.c.b16 %v3416, %v3412
    %v3529 = vpack.c.b16 %v3417, %v3413
    %v3530 = vpack.c.b16 %v3418, %v3414
    %v3531 = vpack.c.b16 %v3423, %v3419
    %v3532 = vpack.c.b16 %v3424, %v3420
    %v3533 = vpack.c.b16 %v3425, %v3421
    %v3534 = vpack.c.b16 %v3426, %v3422
    %v3535 = vpack.c.b16 %v3431, %v3427
    %v3536 = vpack.c.b16 %v3432, %v3428
    %v3537 = vpack.c.b16 %v3433, %v3429
    %v3538 = vpack.c.b16 %v3434, %v3430
    %v3539 = vpack.c.b16 %v3439, %v3435
    %v3540 = vpack.c.b16 %v3440, %v3436
    %v3541 = vpack.c.b16 %v3441, %v3437
    %v3542 = vpack.c.b16 %v3442, %v3438
    %v3543 = vpack.c.b16 %v3447, %v3443
    %v3544 = vpack.c.b16 %v3448, %v3444
    %v3545 = vpack.c.b16 %v3449, %v3445
    %v3546 = vpack.c.b16 %v3450, %v3446
    %v3547 = vpack.c.b16 %v3455, %v3451
    %v3548 = vpack.c.b16 %v3456, %v3452
    %v3549 = vpack.c.b16 %v3457, %v3453
    %v3550 = vpack.c.b16 %v3458, %v3454
    %v3551 = vpack.c.b16 %v3463, %v3459
    %v3552 = vpack.c.b16 %v3464, %v3460
    %v3553 = vpack.c.b16 %v3465, %v3461
    %v3554 = vpack.c.b16 %v3466, %v3462
    %v3555 = vpack.c.b16 %v3471, %v3467
    %v3556 = vpack.c.b16 %v3472, %v3468
    %v3557 = vpack.c.b16 %v3473, %v3469
    %v3558 = vpack.c.b16 %v3474, %v3470
    %v3559 = vpack.c.b16 %v3479, %v3475
    %v3560 = vpack.c.b16 %v3480, %v3476
    %v3561 = vpack.c.b16 %v3481, %v3477
    %v3562 = vpack.c.b16 %v3482, %v3478
    %v3563 = vpack.c.b16 %v3487, %v3483
    %v3564 = vpack.c.b16 %v3488, %v3484
    %v3565 = vpack.c.b16 %v3489, %v3485
    %v3566 = vpack.c.b16 %v3490, %v3486
    %v3567 = vpack.c.b16 %v3495, %v3491
    %v3568 = vpack.c.b16 %v3496, %v3492
    %v3569 = vpack.c.b16 %v3497, %v3493
    %v3570 = vpack.c.b16 %v3498, %v3494
    %v3571 = vpack.c.b16 %v3503, %v3499
    %v3572 = vpack.c.b16 %v3504, %v3500
    %v3573 = vpack.c.b16 %v3505, %v3501
    %v3574 = vpack.c.b16 %v3506, %v3502
    %v3575 = vpack.c.b16 %v3511, %v3507
    %v3576 = vpack.c.b16 %v3512, %v3508
    %v3577 = vpack.c.b16 %v3513, %v3509
    %v3578 = vpack.c.b16 %v3514, %v3510
    %3643 = vmatprep.subr.bf16.mxu0 %v3516
    %3644 = vmatpush1.bf16.msra.mxu0 %v3515
    %3645 = vmatprep.subr.bf16.mxu0 %v3520
    %3646 = vmatpush1.bf16.msra.mxu0 %v3519
    %3647 = vmatprep.subr.bf16.mxu0 %v3524
    %3648 = vmatpush1.bf16.msra.mxu0 %v3523
    %3649 = vmatprep.subr.bf16.mxu0 %v3528
    %3650 = vmatpush1.bf16.msra.mxu0 %v3527
    %3651 = vmatprep.subr.bf16.mxu0 %v3532
    %3652 = vmatpush1.bf16.msra.mxu0 %v3531
    %3653 = vmatprep.subr.bf16.mxu0 %v3536
    %3654 = vmatpush1.bf16.msra.mxu0 %v3535
    %3655 = vmatprep.subr.bf16.mxu0 %v3540
    %3656 = vmatpush1.bf16.msra.mxu0 %v3539
    %3657 = vmatprep.subr.bf16.mxu0 %v3544
    %3658 = vmatpush1.bf16.msra.mxu0 %v3543
    %3659 = vmatprep.subr.bf16.mxu0 %v3548
    %3660 = vmatpush1.bf16.msra.mxu0 %v3547
    %3661 = vmatprep.subr.bf16.mxu0 %v3552
    %3662 = vmatpush1.bf16.msra.mxu0 %v3551
    %3663 = vmatprep.subr.bf16.mxu0 %v3556
    %3664 = vmatpush1.bf16.msra.mxu0 %v3555
    %3665 = vmatprep.subr.bf16.mxu0 %v3560
    %3666 = vmatpush1.bf16.msra.mxu0 %v3559
    %3667 = vmatprep.subr.bf16.mxu0 %v3564
    %3668 = vmatpush1.bf16.msra.mxu0 %v3563
    %3669 = vmatprep.subr.bf16.mxu0 %v3568
    %3670 = vmatpush1.bf16.msra.mxu0 %v3567
    %3671 = vmatprep.subr.bf16.mxu0 %v3572
    %3672 = vmatpush1.bf16.msra.mxu0 %v3571
    %3673 = vmatprep.subr.bf16.mxu0 %v3576
    %3674 = vmatpush1.bf16.msra.mxu0 %v3575
    %3675 = vmatprep.mubr.bf16.mxu0 %v3286
    %3676 = vmatmul.mubr.bf16.gmra.mrb[0].mxu0 %v3285
    %v3677 = vpop.f32.mrb[0].mxu0
    %v3678 = vadd.f32 %v3306, %v3677
    %v3679 = vpop.f32.mrb[0].mxu0
    %v3680 = vadd.f32 %v3310, %v3679
    %v3681 = vpop.f32.mrb[0].mxu0
    %v3682 = vadd.f32 %v3306, %v3681
    %v3683 = vpop.f32.mrb[0].mxu0
    %v3684 = vadd.f32 %v3310, %v3683
    %3685 = vmatprep.mubr.bf16.mxu0 %v3288
    %3686 = vmatmul.mubr.bf16.gmra.mrb[0].mxu0 %v3287
    %v3687 = vpop.f32.mrb[0].mxu0
    %v3688 = vadd.f32 %v3306, %v3687
    %v3689 = vpop.f32.mrb[0].mxu0
    %v3690 = vadd.f32 %v3310, %v3689
    %v3691 = vpop.f32.mrb[0].mxu0
    %v3692 = vadd.f32 %v3306, %v3691
    %v3693 = vpop.f32.mrb[0].mxu0
    %v3694 = vadd.f32 %v3310, %v3693
    %3695 = vmatprep.mubr.bf16.mxu0 %v3290
    %3696 = vmatmul.mubr.bf16.gmra.mrb[0].mxu0 %v3289
    %v3697 = vpop.f32.mrb[0].mxu0
    %v3698 = vadd.f32 %v3306, %v3697
    %v3699 = vpop.f32.mrb[0].mxu0
    %v3700 = vadd.f32 %v3310, %v3699
    %v3701 = vpop.f32.mrb[0].mxu0
    %v3702 = vadd.f32 %v3306, %v3701
    %v3703 = vpop.f32.mrb[0].mxu0
    %v3704 = vadd.f32 %v3310, %v3703
    %3705 = vmatprep.mubr.bf16.mxu0 %v3292
    %3706 = vmatmul.mubr.bf16.gmra.mrb[0].mxu0 %v3291
    %v3707 = vpop.f32.mrb[0].mxu0
    %v3708 = vadd.f32 %v3306, %v3707
    %v3709 = vpop.f32.mrb[0].mxu0
    %v3710 = vadd.f32 %v3310, %v3709
    %v3711 = vpop.f32.mrb[0].mxu0
    %v3712 = vadd.f32 %v3306, %v3711
    %v3713 = vpop.f32.mrb[0].mxu0
    %v3714 = vadd.f32 %v3310, %v3713
    %3715 = vmatprep.mubr.bf16.mxu0 %v3294
    %3716 = vmatmul.mubr.bf16.gmra.mrb[0].mxu0 %v3293
    %v3717 = vpop.f32.mrb[0].mxu0
    %v3718 = vadd.f32 %v3306, %v3717
    %v3719 = vpop.f32.mrb[0].mxu0
    %v3720 = vadd.f32 %v3310, %v3719
    %v3721 = vpop.f32.mrb[0].mxu0
    %v3722 = vadd.f32 %v3306, %v3721
    %v3723 = vpop.f32.mrb[0].mxu0
    %v3724 = vadd.f32 %v3310, %v3723
    %3725 = vmatprep.mubr.bf16.mxu0 %v3296
    %3726 = vmatmul.mubr.bf16.gmra.mrb[0].mxu0 %v3295
    %v3727 = vpop.f32.mrb[0].mxu0
    %v3728 = vadd.f32 %v3306, %v3727
    %v3729 = vpop.f32.mrb[0].mxu0
    %v3730 = vadd.f32 %v3310, %v3729
    %v3731 = vpop.f32.mrb[0].mxu0
    %v3732 = vadd.f32 %v3306, %v3731
    %v3733 = vpop.f32.mrb[0].mxu0
    %v3734 = vadd.f32 %v3310, %v3733
    %3735 = vmatprep.mubr.bf16.mxu0 %v3298
    %3736 = vmatmul.mubr.bf16.gmra.mrb[0].mxu0 %v3297
    %v3737 = vpop.f32.mrb[0].mxu0
    %v3738 = vadd.f32 %v3306, %v3737
    %v3739 = vpop.f32.mrb[0].mxu0
    %v3740 = vadd.f32 %v3310, %v3739
    %v3741 = vpop.f32.mrb[0].mxu0
    %v3742 = vadd.f32 %v3306, %v3741
    %v3743 = vpop.f32.mrb[0].mxu0
    %v3744 = vadd.f32 %v3310, %v3743
    %3745 = vmatprep.mubr.bf16.mxu0 %v3300
    %3746 = vmatmul.mubr.bf16.gmra.mrb[0].mxu0 %v3299
    %v3747 = vpop.f32.mrb[0].mxu0
    %v3748 = vadd.f32 %v3306, %v3747
    %v3749 = vpop.f32.mrb[0].mxu0
    %v3750 = vadd.f32 %v3310, %v3749
    %v3751 = vpop.f32.mrb[0].mxu0
    %v3752 = vadd.f32 %v3306, %v3751
    %v3753 = vpop.f32.mrb[0].mxu0
    %v3754 = vadd.f32 %v3310, %v3753
    %3755 = vdwg.mxu0
    %3756 = vmatprep.subr.bf16.mxu0 %v3518
    %3757 = vmatpush1.bf16.msra.mxu0 %v3517
    %3758 = vmatprep.subr.bf16.mxu0 %v3522
    %3759 = vmatpush1.bf16.msra.mxu0 %v3521
    %3760 = vmatprep.subr.bf16.mxu0 %v3526
    %3761 = vmatpush1.bf16.msra.mxu0 %v3525
    %3762 = vmatprep.subr.bf16.mxu0 %v3530
    %3763 = vmatpush1.bf16.msra.mxu0 %v3529
    %3764 = vmatprep.subr.bf16.mxu0 %v3534
    %3765 = vmatpush1.bf16.msra.mxu0 %v3533
    %3766 = vmatprep.subr.bf16.mxu0 %v3538
    %3767 = vmatpush1.bf16.msra.mxu0 %v3537
    %3768 = vmatprep.subr.bf16.mxu0 %v3542
    %3769 = vmatpush1.bf16.msra.mxu0 %v3541
    %3770 = vmatprep.subr.bf16.mxu0 %v3546
    %3771 = vmatpush1.bf16.msra.mxu0 %v3545
    %3772 = vmatprep.subr.bf16.mxu0 %v3550
    %3773 = vmatpush1.bf16.msra.mxu0 %v3549
    %3774 = vmatprep.subr.bf16.mxu0 %v3554
    %3775 = vmatpush1.bf16.msra.mxu0 %v3553
    %3776 = vmatprep.subr.bf16.mxu0 %v3558
    %3777 = vmatpush1.bf16.msra.mxu0 %v3557
    %3778 = vmatprep.subr.bf16.mxu0 %v3562
    %3779 = vmatpush1.bf16.msra.mxu0 %v3561
    %3780 = vmatprep.subr.bf16.mxu0 %v3566
    %3781 = vmatpush1.bf16.msra.mxu0 %v3565
    %3782 = vmatprep.subr.bf16.mxu0 %v3570
    %3783 = vmatpush1.bf16.msra.mxu0 %v3569
    %3784 = vmatprep.subr.bf16.mxu0 %v3574
    %3785 = vmatpush1.bf16.msra.mxu0 %v3573
    %3786 = vmatprep.subr.bf16.mxu0 %v3578
    %3787 = vmatpush1.bf16.msra.mxu0 %v3577
    %3788 = vmatprep.mubr.bf16.mxu0 %v3286
    %3789 = vmatmul.mubr.bf16.gmra.mrb[0].mxu0 %v3285
    %v3790 = vpop.f32.mrb[0].mxu0
    %v3791 = vadd.f32 %v3314, %v3790
    %v3792 = vpop.f32.mrb[0].mxu0
    %v3793 = vadd.f32 %v3318, %v3792
    %v3794 = vpop.f32.mrb[0].mxu0
    %v3795 = vadd.f32 %v3314, %v3794
    %v3796 = vpop.f32.mrb[0].mxu0
    %v3797 = vadd.f32 %v3318, %v3796
    %3798 = vmatprep.mubr.bf16.mxu0 %v3288
    %3799 = vmatmul.mubr.bf16.gmra.mrb[0].mxu0 %v3287
    %v3800 = vpop.f32.mrb[0].mxu0
    %v3801 = vadd.f32 %v3314, %v3800
    %v3802 = vpop.f32.mrb[0].mxu0
    %v3803 = vadd.f32 %v3318, %v3802
    %v3804 = vpop.f32.mrb[0].mxu0
    %v3805 = vadd.f32 %v3314, %v3804
    %v3806 = vpop.f32.mrb[0].mxu0
    %v3807 = vadd.f32 %v3318, %v3806
    %3808 = vmatprep.mubr.bf16.mxu0 %v3290
    %3809 = vmatmul.mubr.bf16.gmra.mrb[0].mxu0 %v3289
    %v3810 = vpop.f32.mrb[0].mxu0
    %v3811 = vadd.f32 %v3314, %v3810
    %v3812 = vpop.f32.mrb[0].mxu0
    %v3813 = vadd.f32 %v3318, %v3812
    %v3814 = vpop.f32.mrb[0].mxu0
    %v3815 = vadd.f32 %v3314, %v3814
    %v3816 = vpop.f32.mrb[0].mxu0
    %v3817 = vadd.f32 %v3318, %v3816
    %3818 = vmatprep.mubr.bf16.mxu0 %v3292
    %3819 = vmatmul.mubr.bf16.gmra.mrb[0].mxu0 %v3291
    %v3820 = vpop.f32.mrb[0].mxu0
    %v3821 = vadd.f32 %v3314, %v3820
    %v3822 = vpop.f32.mrb[0].mxu0
    %v3823 = vadd.f32 %v3318, %v3822
    %v3824 = vpop.f32.mrb[0].mxu0
    %v3825 = vadd.f32 %v3314, %v3824
    %v3826 = vpop.f32.mrb[0].mxu0
    %v3827 = vadd.f32 %v3318, %v3826
    %3828 = vmatprep.mubr.bf16.mxu0 %v3294
    %3829 = vmatmul.mubr.bf16.gmra.mrb[0].mxu0 %v3293
    %v3830 = vpop.f32.mrb[0].mxu0
    %v3831 = vadd.f32 %v3314, %v3830
    %v3832 = vpop.f32.mrb[0].mxu0
    %v3833 = vadd.f32 %v3318, %v3832
    %v3834 = vpop.f32.mrb[0].mxu0
    %v3835 = vadd.f32 %v3314, %v3834
    %v3836 = vpop.f32.mrb[0].mxu0
    %v3837 = vadd.f32 %v3318, %v3836
    %3838 = vmatprep.mubr.bf16.mxu0 %v3296
    %3839 = vmatmul.mubr.bf16.gmra.mrb[0].mxu0 %v3295
    %v3840 = vpop.f32.mrb[0].mxu0
    %v3841 = vadd.f32 %v3314, %v3840
    %v3842 = vpop.f32.mrb[0].mxu0
    %v3843 = vadd.f32 %v3318, %v3842
    %v3844 = vpop.f32.mrb[0].mxu0
    %v3845 = vadd.f32 %v3314, %v3844
    %v3846 = vpop.f32.mrb[0].mxu0
    %v3847 = vadd.f32 %v3318, %v3846
    %3848 = vmatprep.mubr.bf16.mxu0 %v3298
    %3849 = vmatmul.mubr.bf16.gmra.mrb[0].mxu0 %v3297
    %v3850 = vpop.f32.mrb[0].mxu0
    %v3851 = vadd.f32 %v3314, %v3850
    %v3852 = vpop.f32.mrb[0].mxu0
    %v3853 = vadd.f32 %v3318, %v3852
    %v3854 = vpop.f32.mrb[0].mxu0
    %v3855 = vadd.f32 %v3314, %v3854
    %v3856 = vpop.f32.mrb[0].mxu0
    %v3857 = vadd.f32 %v3318, %v3856
    %3858 = vmatprep.mubr.bf16.mxu0 %v3300
    %3859 = vmatmul.mubr.bf16.gmra.mrb[0].mxu0 %v3299
    %v3860 = vpop.f32.mrb[0].mxu0
    %v3861 = vadd.f32 %v3314, %v3860
    %v3862 = vpop.f32.mrb[0].mxu0
    %v3863 = vadd.f32 %v3318, %v3862
    %v3864 = vpop.f32.mrb[0].mxu0
    %v3865 = vadd.f32 %v3314, %v3864
    %v3866 = vpop.f32.mrb[0].mxu0
    %v3867 = vadd.f32 %v3318, %v3866
    %3868 = vdwg.mxu0
    %v3869 = vlaneseq
    %v3870 = vshrl.u32 %v3869, 7
    %v3871 = vsub.s32 0, %v3870
    %v3872 = vrot.slane %v3174, %v3871
    %v3873 = vlaneseq
    %v3874 = vshrl.u32 %v3873, 7
    %v3875 = vsub.s32 0, %v3874
    %v3876 = vrot.slane %v3176, %v3875
    %v3877 = vlaneseq
    %v3878 = vshrl.u32 %v3877, 7
    %v3879 = vsub.s32 0, %v3878
    %v3880 = vrot.slane %v3215, %v3879
    %v3881 = vlaneseq
    %v3882 = vshrl.u32 %v3881, 7
    %v3883 = vsub.s32 0, %v3882
    %v3884 = vrot.slane %v3217, %v3883
    %v3885 = vadd.s32 %v2747, 8
    %v3886 = vadd.s32 %v2747, 16
    %v3887 = vadd.s32 %v2747, 24
    %v3888 = vadd.s32 %v2747, 32
    %v3889 = vadd.s32 %v2747, 40
    %v3890 = vadd.s32 %v2747, 48
    %v3891 = vadd.s32 %v2747, 56
    %v3892 = vadd.s32 %v2747, 64
    %v3893 = vadd.s32 %v2747, 72
    %v3894 = vadd.s32 %v2747, 80
    %v3895 = vadd.s32 %v2747, 88
    %v3896 = vadd.s32 %v2747, 96
    %v3897 = vadd.s32 %v2747, 104
    %v3898 = vadd.s32 %v2747, 112
    %v3899 = vadd.s32 %v2747, 120
    %vm3900 = vcmp.ge.s32.totalorder %v2747, 64
    %vm3901 = vcmp.ge.s32.totalorder %v3885, 64
    %vm3902 = vcmp.ge.s32.totalorder %v3886, 64
    %vm3903 = vcmp.ge.s32.totalorder %v3887, 64
    %vm3904 = vcmp.ge.s32.totalorder %v3888, 64
    %vm3905 = vcmp.ge.s32.totalorder %v3889, 64
    %vm3906 = vcmp.ge.s32.totalorder %v3890, 64
    %vm3907 = vcmp.ge.s32.totalorder %v3891, 64
    %vm3908 = vcmp.ge.s32.totalorder %v3892, 64
    %vm3909 = vcmp.ge.s32.totalorder %v3893, 64
    %vm3910 = vcmp.ge.s32.totalorder %v3894, 64
    %vm3911 = vcmp.ge.s32.totalorder %v3895, 64
    %vm3912 = vcmp.ge.s32.totalorder %v3896, 64
    %vm3913 = vcmp.ge.s32.totalorder %v3897, 64
    %vm3914 = vcmp.ge.s32.totalorder %v3898, 64
    %vm3915 = vcmp.ge.s32.totalorder %v3899, 64
    %v3916 = vsel %vm3900, 1, 0
    %v3917 = vsel %vm3901, 1, 0
    %v3918 = vsel %vm3902, 1, 0
    %v3919 = vsel %vm3903, 1, 0
    %v3920 = vsel %vm3904, 1, 0
    %v3921 = vsel %vm3905, 1, 0
    %v3922 = vsel %vm3906, 1, 0
    %v3923 = vsel %vm3907, 1, 0
    %v3924 = vsel %vm3908, 1, 0
    %v3925 = vsel %vm3909, 1, 0
    %v3926 = vsel %vm3910, 1, 0
    %v3927 = vsel %vm3911, 1, 0
    %v3928 = vsel %vm3912, 1, 0
    %v3929 = vsel %vm3913, 1, 0
    %v3930 = vsel %vm3914, 1, 0
    %v3931 = vsel %vm3915, 1, 0
    %vm3932 = vcmp.eq.s32.totalorder %v3916, 1
    %vm3933 = vcmp.eq.s32.totalorder %v3917, 1
    %vm3934 = vcmp.eq.s32.totalorder %v3918, 1
    %vm3935 = vcmp.eq.s32.totalorder %v3919, 1
    %vm3936 = vcmp.eq.s32.totalorder %v3920, 1
    %vm3937 = vcmp.eq.s32.totalorder %v3921, 1
    %vm3938 = vcmp.eq.s32.totalorder %v3922, 1
    %vm3939 = vcmp.eq.s32.totalorder %v3923, 1
    %vm3940 = vcmp.eq.s32.totalorder %v3924, 1
    %vm3941 = vcmp.eq.s32.totalorder %v3925, 1
    %vm3942 = vcmp.eq.s32.totalorder %v3926, 1
    %vm3943 = vcmp.eq.s32.totalorder %v3927, 1
    %vm3944 = vcmp.eq.s32.totalorder %v3928, 1
    %vm3945 = vcmp.eq.s32.totalorder %v3929, 1
    %vm3946 = vcmp.eq.s32.totalorder %v3930, 1
    %vm3947 = vcmp.eq.s32.totalorder %v3931, 1
    %v3948 = vlaneseq
    %v3949 = vshrl.u32 %v3948, 7
    %v3950 = vsub.s32 1, %v3949
    %v3951 = vrot.slane %v3174, %v3950
    %v3952 = vlaneseq
    %v3953 = vshrl.u32 %v3952, 7
    %v3954 = vsub.s32 1, %v3953
    %v3955 = vrot.slane %v3176, %v3954
    %v3956 = vlaneseq
    %v3957 = vshrl.u32 %v3956, 7
    %v3958 = vsub.s32 1, %v3957
    %v3959 = vrot.slane %v3215, %v3958
    %v3960 = vlaneseq
    %v3961 = vshrl.u32 %v3960, 7
    %v3962 = vsub.s32 1, %v3961
    %v3963 = vrot.slane %v3217, %v3962
    %v3964 = vsel %vm3932, %v3951, %v3872
    %v3965 = vsel %vm3932, %v3955, %v3876
    %v3966 = vsel %vm3932, %v3959, %v3880
    %v3967 = vsel %vm3932, %v3963, %v3884
    %v3968 = vsel %vm3933, %v3951, %v3872
    %v3969 = vsel %vm3933, %v3955, %v3876
    %v3970 = vsel %vm3933, %v3959, %v3880
    %v3971 = vsel %vm3933, %v3963, %v3884
    %v3972 = vsel %vm3934, %v3951, %v3872
    %v3973 = vsel %vm3934, %v3955, %v3876
    %v3974 = vsel %vm3934, %v3959, %v3880
    %v3975 = vsel %vm3934, %v3963, %v3884
    %v3976 = vsel %vm3935, %v3951, %v3872
    %v3977 = vsel %vm3935, %v3955, %v3876
    %v3978 = vsel %vm3935, %v3959, %v3880
    %v3979 = vsel %vm3935, %v3963, %v3884
    %v3980 = vsel %vm3936, %v3951, %v3872
    %v3981 = vsel %vm3936, %v3955, %v3876
    %v3982 = vsel %vm3936, %v3959, %v3880
    %v3983 = vsel %vm3936, %v3963, %v3884
    %v3984 = vsel %vm3937, %v3951, %v3872
    %v3985 = vsel %vm3937, %v3955, %v3876
    %v3986 = vsel %vm3937, %v3959, %v3880
    %v3987 = vsel %vm3937, %v3963, %v3884
    %v3988 = vsel %vm3938, %v3951, %v3872
    %v3989 = vsel %vm3938, %v3955, %v3876
    %v3990 = vsel %vm3938, %v3959, %v3880
    %v3991 = vsel %vm3938, %v3963, %v3884
    %v3992 = vsel %vm3939, %v3951, %v3872
    %v3993 = vsel %vm3939, %v3955, %v3876
    %v3994 = vsel %vm3939, %v3959, %v3880
    %v3995 = vsel %vm3939, %v3963, %v3884
    %v3996 = vsel %vm3940, %v3951, %v3872
    %v3997 = vsel %vm3940, %v3955, %v3876
    %v3998 = vsel %vm3940, %v3959, %v3880
    %v3999 = vsel %vm3940, %v3963, %v3884
    %v4000 = vsel %vm3941, %v3951, %v3872
    %v4001 = vsel %vm3941, %v3955, %v3876
    %v4002 = vsel %vm3941, %v3959, %v3880
    %v4003 = vsel %vm3941, %v3963, %v3884
    %v4004 = vsel %vm3942, %v3951, %v3872
    %v4005 = vsel %vm3942, %v3955, %v3876
    %v4006 = vsel %vm3942, %v3959, %v3880
    %v4007 = vsel %vm3942, %v3963, %v3884
    %v4008 = vsel %vm3943, %v3951, %v3872
    %v4009 = vsel %vm3943, %v3955, %v3876
    %v4010 = vsel %vm3943, %v3959, %v3880
    %v4011 = vsel %vm3943, %v3963, %v3884
    %v4012 = vsel %vm3944, %v3951, %v3872
    %v4013 = vsel %vm3944, %v3955, %v3876
    %v4014 = vsel %vm3944, %v3959, %v3880
    %v4015 = vsel %vm3944, %v3963, %v3884
    %v4016 = vsel %vm3945, %v3951, %v3872
    %v4017 = vsel %vm3945, %v3955, %v3876
    %v4018 = vsel %vm3945, %v3959, %v3880
    %v4019 = vsel %vm3945, %v3963, %v3884
    %v4020 = vsel %vm3946, %v3951, %v3872
    %v4021 = vsel %vm3946, %v3955, %v3876
    %v4022 = vsel %vm3946, %v3959, %v3880
    %v4023 = vsel %vm3946, %v3963, %v3884
    %v4024 = vsel %vm3947, %v3951, %v3872
    %v4025 = vsel %vm3947, %v3955, %v3876
    %v4026 = vsel %vm3947, %v3959, %v3880
    %v4027 = vsel %vm3947, %v3963, %v3884
    %v4028 = vadd.f32 %v3678, %v3964
    %v4029 = vadd.f32 %v3680, %v3965
    %v4030 = vadd.f32 %v3791, %v3966
    %v4031 = vadd.f32 %v3793, %v3967
    %v4032 = vadd.f32 %v3682, %v3968
    %v4033 = vadd.f32 %v3684, %v3969
    %v4034 = vadd.f32 %v3795, %v3970
    %v4035 = vadd.f32 %v3797, %v3971
    %v4036 = vadd.f32 %v3688, %v3972
    %v4037 = vadd.f32 %v3690, %v3973
    %v4038 = vadd.f32 %v3801, %v3974
    %v4039 = vadd.f32 %v3803, %v3975
    %v4040 = vadd.f32 %v3692, %v3976
    %v4041 = vadd.f32 %v3694, %v3977
    %v4042 = vadd.f32 %v3805, %v3978
    %v4043 = vadd.f32 %v3807, %v3979
    %v4044 = vadd.f32 %v3698, %v3980
    %v4045 = vadd.f32 %v3700, %v3981
    %v4046 = vadd.f32 %v3811, %v3982
    %v4047 = vadd.f32 %v3813, %v3983
    %v4048 = vadd.f32 %v3702, %v3984
    %v4049 = vadd.f32 %v3704, %v3985
    %v4050 = vadd.f32 %v3815, %v3986
    %v4051 = vadd.f32 %v3817, %v3987
    %v4052 = vadd.f32 %v3708, %v3988
    %v4053 = vadd.f32 %v3710, %v3989
    %v4054 = vadd.f32 %v3821, %v3990
    %v4055 = vadd.f32 %v3823, %v3991
    %v4056 = vadd.f32 %v3712, %v3992
    %v4057 = vadd.f32 %v3714, %v3993
    %v4058 = vadd.f32 %v3825, %v3994
    %v4059 = vadd.f32 %v3827, %v3995
    %v4060 = vadd.f32 %v3718, %v3996
    %v4061 = vadd.f32 %v3720, %v3997
    %v4062 = vadd.f32 %v3831, %v3998
    %v4063 = vadd.f32 %v3833, %v3999
    %v4064 = vadd.f32 %v3722, %v4000
    %v4065 = vadd.f32 %v3724, %v4001
    %v4066 = vadd.f32 %v3835, %v4002
    %v4067 = vadd.f32 %v3837, %v4003
    %v4068 = vadd.f32 %v3728, %v4004
    %v4069 = vadd.f32 %v3730, %v4005
    %v4070 = vadd.f32 %v3841, %v4006
    %v4071 = vadd.f32 %v3843, %v4007
    %v4072 = vadd.f32 %v3732, %v4008
    %v4073 = vadd.f32 %v3734, %v4009
    %v4074 = vadd.f32 %v3845, %v4010
    %v4075 = vadd.f32 %v3847, %v4011
    %v4076 = vadd.f32 %v3738, %v4012
    %v4077 = vadd.f32 %v3740, %v4013
    %v4078 = vadd.f32 %v3851, %v4014
    %v4079 = vadd.f32 %v3853, %v4015
    %v4080 = vadd.f32 %v3742, %v4016
    %v4081 = vadd.f32 %v3744, %v4017
    %v4082 = vadd.f32 %v3855, %v4018
    %v4083 = vadd.f32 %v3857, %v4019
    %v4084 = vadd.f32 %v3748, %v4020
    %v4085 = vadd.f32 %v3750, %v4021
    %v4086 = vadd.f32 %v3861, %v4022
    %v4087 = vadd.f32 %v3863, %v4023
    %v4088 = vadd.f32 %v3752, %v4024
    %v4089 = vadd.f32 %v3754, %v4025
    %v4090 = vadd.f32 %v3865, %v4026
    %v4091 = vadd.f32 %v3867, %v4027
    %v4092 = vmax.f32 %v4028, 0.0
    %v4093 = vmax.f32 %v4029, 0.0
    %v4094 = vmax.f32 %v4030, 0.0
    %v4095 = vmax.f32 %v4031, 0.0
    %v4096 = vmax.f32 %v4032, 0.0
    %v4097 = vmax.f32 %v4033, 0.0
    %v4098 = vmax.f32 %v4034, 0.0
    %v4099 = vmax.f32 %v4035, 0.0
    %v4100 = vmax.f32 %v4036, 0.0
    %v4101 = vmax.f32 %v4037, 0.0
    %v4102 = vmax.f32 %v4038, 0.0
    %v4103 = vmax.f32 %v4039, 0.0
    %v4104 = vmax.f32 %v4040, 0.0
    %v4105 = vmax.f32 %v4041, 0.0
    %v4106 = vmax.f32 %v4042, 0.0
    %v4107 = vmax.f32 %v4043, 0.0
    %v4108 = vmax.f32 %v4044, 0.0
    %v4109 = vmax.f32 %v4045, 0.0
    %v4110 = vmax.f32 %v4046, 0.0
    %v4111 = vmax.f32 %v4047, 0.0
    %v4112 = vmax.f32 %v4048, 0.0
    %v4113 = vmax.f32 %v4049, 0.0
    %v4114 = vmax.f32 %v4050, 0.0
    %v4115 = vmax.f32 %v4051, 0.0
    %v4116 = vmax.f32 %v4052, 0.0
    %v4117 = vmax.f32 %v4053, 0.0
    %v4118 = vmax.f32 %v4054, 0.0
    %v4119 = vmax.f32 %v4055, 0.0
    %v4120 = vmax.f32 %v4056, 0.0
    %v4121 = vmax.f32 %v4057, 0.0
    %v4122 = vmax.f32 %v4058, 0.0
    %v4123 = vmax.f32 %v4059, 0.0
    %v4124 = vmax.f32 %v4060, 0.0
    %v4125 = vmax.f32 %v4061, 0.0
    %v4126 = vmax.f32 %v4062, 0.0
    %v4127 = vmax.f32 %v4063, 0.0
    %v4128 = vmax.f32 %v4064, 0.0
    %v4129 = vmax.f32 %v4065, 0.0
    %v4130 = vmax.f32 %v4066, 0.0
    %v4131 = vmax.f32 %v4067, 0.0
    %v4132 = vmax.f32 %v4068, 0.0
    %v4133 = vmax.f32 %v4069, 0.0
    %v4134 = vmax.f32 %v4070, 0.0
    %v4135 = vmax.f32 %v4071, 0.0
    %v4136 = vmax.f32 %v4072, 0.0
    %v4137 = vmax.f32 %v4073, 0.0
    %v4138 = vmax.f32 %v4074, 0.0
    %v4139 = vmax.f32 %v4075, 0.0
    %v4140 = vmax.f32 %v4076, 0.0
    %v4141 = vmax.f32 %v4077, 0.0
    %v4142 = vmax.f32 %v4078, 0.0
    %v4143 = vmax.f32 %v4079, 0.0
    %v4144 = vmax.f32 %v4080, 0.0
    %v4145 = vmax.f32 %v4081, 0.0
    %v4146 = vmax.f32 %v4082, 0.0
    %v4147 = vmax.f32 %v4083, 0.0
    %v4148 = vmax.f32 %v4084, 0.0
    %v4149 = vmax.f32 %v4085, 0.0
    %v4150 = vmax.f32 %v4086, 0.0
    %v4151 = vmax.f32 %v4087, 0.0
    %v4152 = vmax.f32 %v4088, 0.0
    %v4153 = vmax.f32 %v4089, 0.0
    %v4154 = vmax.f32 %v4090, 0.0
    %v4155 = vmax.f32 %v4091, 0.0
    %v4156 = vld [vmem:[%s6] sm:$0xff]
    %v4157 = vld [vmem:[%s6 + $0x8] sm:$0xff]
    %v4158 = vld [vmem:[%s6 + $0x10] sm:$0xff]
    %v4159 = vld [vmem:[%s6 + $0x18] sm:$0xff]
    %v4160 = vld [vmem:[%s6 + $0x20] sm:$0xff]
    %v4161 = vld [vmem:[%s6 + $0x28] sm:$0xff]
    %v4162 = vld [vmem:[%s6 + $0x30] sm:$0xff]
    %v4163 = vld [vmem:[%s6 + $0x38] sm:$0xff]
    %v4164 = vld [vmem:[%s6 + $0x40] sm:$0xff]
    %v4165 = vld [vmem:[%s6 + $0x48] sm:$0xff]
    %v4166 = vld [vmem:[%s6 + $0x50] sm:$0xff]
    %v4167 = vld [vmem:[%s6 + $0x58] sm:$0xff]
    %v4168 = vld [vmem:[%s6 + $0x60] sm:$0xff]
    %v4169 = vld [vmem:[%s6 + $0x68] sm:$0xff]
    %v4170 = vld [vmem:[%s6 + $0x70] sm:$0xff]
    %v4171 = vld [vmem:[%s6 + $0x78] sm:$0xff]
    %v4172 = vld [vmem:[%s6 + $0x80] sm:$0xff]
    %v4173 = vld [vmem:[%s6 + $0x88] sm:$0xff]
    %v4174 = vld [vmem:[%s6 + $0x90] sm:$0xff]
    %v4175 = vld [vmem:[%s6 + $0x98] sm:$0xff]
    %v4176 = vld [vmem:[%s6 + $0xa0] sm:$0xff]
    %v4177 = vld [vmem:[%s6 + $0xa8] sm:$0xff]
    %v4178 = vld [vmem:[%s6 + $0xb0] sm:$0xff]
    %v4179 = vld [vmem:[%s6 + $0xb8] sm:$0xff]
    %v4180 = vld [vmem:[%s6 + $0xc0] sm:$0xff]
    %v4181 = vld [vmem:[%s6 + $0xc8] sm:$0xff]
    %v4182 = vld [vmem:[%s6 + $0xd0] sm:$0xff]
    %v4183 = vld [vmem:[%s6 + $0xd8] sm:$0xff]
    %v4184 = vld [vmem:[%s6 + $0xe0] sm:$0xff]
    %v4185 = vld [vmem:[%s6 + $0xe8] sm:$0xff]
    %v4186 = vld [vmem:[%s6 + $0xf0] sm:$0xff]
    %v4187 = vld [vmem:[%s6 + $0xf8] sm:$0xff]
    %v4188 = vld [vmem:[%s6 + $0x100] sm:$0xff]
    %v4189 = vld [vmem:[%s6 + $0x108] sm:$0xff]
    %v4190 = vld [vmem:[%s6 + $0x110] sm:$0xff]
    %v4191 = vld [vmem:[%s6 + $0x118] sm:$0xff]
    %v4192 = vld [vmem:[%s6 + $0x120] sm:$0xff]
    %v4193 = vld [vmem:[%s6 + $0x128] sm:$0xff]
    %v4194 = vld [vmem:[%s6 + $0x130] sm:$0xff]
    %v4195 = vld [vmem:[%s6 + $0x138] sm:$0xff]
    %v4196 = vld [vmem:[%s6 + $0x140] sm:$0xff]
    %v4197 = vld [vmem:[%s6 + $0x148] sm:$0xff]
    %v4198 = vld [vmem:[%s6 + $0x150] sm:$0xff]
    %v4199 = vld [vmem:[%s6 + $0x158] sm:$0xff]
    %v4200 = vld [vmem:[%s6 + $0x160] sm:$0xff]
    %v4201 = vld [vmem:[%s6 + $0x168] sm:$0xff]
    %v4202 = vld [vmem:[%s6 + $0x170] sm:$0xff]
    %v4203 = vld [vmem:[%s6 + $0x178] sm:$0xff]
    %v4204 = vld [vmem:[%s6 + $0x180] sm:$0xff]
    %v4205 = vld [vmem:[%s6 + $0x188] sm:$0xff]
    %v4206 = vld [vmem:[%s6 + $0x190] sm:$0xff]
    %v4207 = vld [vmem:[%s6 + $0x198] sm:$0xff]
    %v4208 = vld [vmem:[%s6 + $0x1a0] sm:$0xff]
    %v4209 = vld [vmem:[%s6 + $0x1a8] sm:$0xff]
    %v4210 = vld [vmem:[%s6 + $0x1b0] sm:$0xff]
    %v4211 = vld [vmem:[%s6 + $0x1b8] sm:$0xff]
    %v4212 = vld [vmem:[%s6 + $0x1c0] sm:$0xff]
    %v4213 = vld [vmem:[%s6 + $0x1c8] sm:$0xff]
    %v4214 = vld [vmem:[%s6 + $0x1d0] sm:$0xff]
    %v4215 = vld [vmem:[%s6 + $0x1d8] sm:$0xff]
    %v4216 = vld [vmem:[%s6 + $0x1e0] sm:$0xff]
    %v4217 = vld [vmem:[%s6 + $0x1e8] sm:$0xff]
    %v4218 = vld [vmem:[%s6 + $0x1f0] sm:$0xff]
    %v4219 = vld [vmem:[%s6 + $0x1f8] sm:$0xff]
    %v4220 = vld [vmem:[%s6 + $0x200] sm:$0xff]
    %v4221 = vld [vmem:[%s6 + $0x208] sm:$0xff]
    %v4222 = vld [vmem:[%s6 + $0x210] sm:$0xff]
    %v4223 = vld [vmem:[%s6 + $0x218] sm:$0xff]
    %v4224 = vld [vmem:[%s6 + $0x220] sm:$0xff]
    %v4225 = vld [vmem:[%s6 + $0x228] sm:$0xff]
    %v4226 = vld [vmem:[%s6 + $0x230] sm:$0xff]
    %v4227 = vld [vmem:[%s6 + $0x238] sm:$0xff]
    %v4228 = vld [vmem:[%s6 + $0x240] sm:$0xff]
    %v4229 = vld [vmem:[%s6 + $0x248] sm:$0xff]
    %v4230 = vld [vmem:[%s6 + $0x250] sm:$0xff]
    %v4231 = vld [vmem:[%s6 + $0x258] sm:$0xff]
    %v4232 = vld [vmem:[%s6 + $0x260] sm:$0xff]
    %v4233 = vld [vmem:[%s6 + $0x268] sm:$0xff]
    %v4234 = vld [vmem:[%s6 + $0x270] sm:$0xff]
    %v4235 = vld [vmem:[%s6 + $0x278] sm:$0xff]
    %v4236 = vld [vmem:[%s6 + $0x280] sm:$0xff]
    %v4237 = vld [vmem:[%s6 + $0x288] sm:$0xff]
    %v4238 = vld [vmem:[%s6 + $0x290] sm:$0xff]
    %v4239 = vld [vmem:[%s6 + $0x298] sm:$0xff]
    %v4240 = vld [vmem:[%s6 + $0x2a0] sm:$0xff]
    %v4241 = vld [vmem:[%s6 + $0x2a8] sm:$0xff]
    %v4242 = vld [vmem:[%s6 + $0x2b0] sm:$0xff]
    %v4243 = vld [vmem:[%s6 + $0x2b8] sm:$0xff]
    %v4244 = vld [vmem:[%s6 + $0x2c0] sm:$0xff]
    %v4245 = vld [vmem:[%s6 + $0x2c8] sm:$0xff]
    %v4246 = vld [vmem:[%s6 + $0x2d0] sm:$0xff]
    %v4247 = vld [vmem:[%s6 + $0x2d8] sm:$0xff]
    %v4248 = vld [vmem:[%s6 + $0x2e0] sm:$0xff]
    %v4249 = vld [vmem:[%s6 + $0x2e8] sm:$0xff]
    %v4250 = vld [vmem:[%s6 + $0x2f0] sm:$0xff]
    %v4251 = vld [vmem:[%s6 + $0x2f8] sm:$0xff]
    %v4252 = vld [vmem:[%s6 + $0x300] sm:$0xff]
    %v4253 = vld [vmem:[%s6 + $0x308] sm:$0xff]
    %v4254 = vld [vmem:[%s6 + $0x310] sm:$0xff]
    %v4255 = vld [vmem:[%s6 + $0x318] sm:$0xff]
    %v4256 = vld [vmem:[%s6 + $0x320] sm:$0xff]
    %v4257 = vld [vmem:[%s6 + $0x328] sm:$0xff]
    %v4258 = vld [vmem:[%s6 + $0x330] sm:$0xff]
    %v4259 = vld [vmem:[%s6 + $0x338] sm:$0xff]
    %v4260 = vld [vmem:[%s6 + $0x340] sm:$0xff]
    %v4261 = vld [vmem:[%s6 + $0x348] sm:$0xff]
    %v4262 = vld [vmem:[%s6 + $0x350] sm:$0xff]
    %v4263 = vld [vmem:[%s6 + $0x358] sm:$0xff]
    %v4264 = vld [vmem:[%s6 + $0x360] sm:$0xff]
    %v4265 = vld [vmem:[%s6 + $0x368] sm:$0xff]
    %v4266 = vld [vmem:[%s6 + $0x370] sm:$0xff]
    %v4267 = vld [vmem:[%s6 + $0x378] sm:$0xff]
    %v4268 = vld [vmem:[%s6 + $0x380] sm:$0xff]
    %v4269 = vld [vmem:[%s6 + $0x388] sm:$0xff]
    %v4270 = vld [vmem:[%s6 + $0x390] sm:$0xff]
    %v4271 = vld [vmem:[%s6 + $0x398] sm:$0xff]
    %v4272 = vld [vmem:[%s6 + $0x3a0] sm:$0xff]
    %v4273 = vld [vmem:[%s6 + $0x3a8] sm:$0xff]
    %v4274 = vld [vmem:[%s6 + $0x3b0] sm:$0xff]
    %v4275 = vld [vmem:[%s6 + $0x3b8] sm:$0xff]
    %v4276 = vld [vmem:[%s6 + $0x3c0] sm:$0xff]
    %v4277 = vld [vmem:[%s6 + $0x3c8] sm:$0xff]
    %v4278 = vld [vmem:[%s6 + $0x3d0] sm:$0xff]
    %v4279 = vld [vmem:[%s6 + $0x3d8] sm:$0xff]
    %v4280 = vld [vmem:[%s6 + $0x3e0] sm:$0xff]
    %v4281 = vld [vmem:[%s6 + $0x3e8] sm:$0xff]
    %v4282 = vld [vmem:[%s6 + $0x3f0] sm:$0xff]
    %v4283 = vld [vmem:[%s6 + $0x3f8] sm:$0xff]
    %v4284 = vld [vmem:[%s6 + $0x400] sm:$0xff]
    %v4285 = vld [vmem:[%s6 + $0x408] sm:$0xff]
    %v4286 = vld [vmem:[%s6 + $0x410] sm:$0xff]
    %v4287 = vld [vmem:[%s6 + $0x418] sm:$0xff]
    %v4288 = vld [vmem:[%s6 + $0x420] sm:$0xff]
    %v4289 = vld [vmem:[%s6 + $0x428] sm:$0xff]
    %v4290 = vld [vmem:[%s6 + $0x430] sm:$0xff]
    %v4291 = vld [vmem:[%s6 + $0x438] sm:$0xff]
    %v4292 = vld [vmem:[%s6 + $0x440] sm:$0xff]
    %v4293 = vld [vmem:[%s6 + $0x448] sm:$0xff]
    %v4294 = vld [vmem:[%s6 + $0x450] sm:$0xff]
    %v4295 = vld [vmem:[%s6 + $0x458] sm:$0xff]
    %v4296 = vld [vmem:[%s6 + $0x460] sm:$0xff]
    %v4297 = vld [vmem:[%s6 + $0x468] sm:$0xff]
    %v4298 = vld [vmem:[%s6 + $0x470] sm:$0xff]
    %v4299 = vld [vmem:[%s6 + $0x478] sm:$0xff]
    %v4300 = vld [vmem:[%s6 + $0x480] sm:$0xff]
    %v4301 = vld [vmem:[%s6 + $0x488] sm:$0xff]
    %v4302 = vld [vmem:[%s6 + $0x490] sm:$0xff]
    %v4303 = vld [vmem:[%s6 + $0x498] sm:$0xff]
    %v4304 = vld [vmem:[%s6 + $0x4a0] sm:$0xff]
    %v4305 = vld [vmem:[%s6 + $0x4a8] sm:$0xff]
    %v4306 = vld [vmem:[%s6 + $0x4b0] sm:$0xff]
    %v4307 = vld [vmem:[%s6 + $0x4b8] sm:$0xff]
    %v4308 = vld [vmem:[%s6 + $0x4c0] sm:$0xff]
    %v4309 = vld [vmem:[%s6 + $0x4c8] sm:$0xff]
    %v4310 = vld [vmem:[%s6 + $0x4d0] sm:$0xff]
    %v4311 = vld [vmem:[%s6 + $0x4d8] sm:$0xff]
    %v4312 = vld [vmem:[%s6 + $0x4e0] sm:$0xff]
    %v4313 = vld [vmem:[%s6 + $0x4e8] sm:$0xff]
    %v4314 = vld [vmem:[%s6 + $0x4f0] sm:$0xff]
    %v4315 = vld [vmem:[%s6 + $0x4f8] sm:$0xff]
    %v4316 = vld [vmem:[%s6 + $0x500] sm:$0xff]
    %v4317 = vld [vmem:[%s6 + $0x508] sm:$0xff]
    %v4318 = vld [vmem:[%s6 + $0x510] sm:$0xff]
    %v4319 = vld [vmem:[%s6 + $0x518] sm:$0xff]
    %v4320 = vld [vmem:[%s6 + $0x520] sm:$0xff]
    %v4321 = vld [vmem:[%s6 + $0x528] sm:$0xff]
    %v4322 = vld [vmem:[%s6 + $0x530] sm:$0xff]
    %v4323 = vld [vmem:[%s6 + $0x538] sm:$0xff]
    %v4324 = vld [vmem:[%s6 + $0x540] sm:$0xff]
    %v4325 = vld [vmem:[%s6 + $0x548] sm:$0xff]
    %v4326 = vld [vmem:[%s6 + $0x550] sm:$0xff]
    %v4327 = vld [vmem:[%s6 + $0x558] sm:$0xff]
    %v4328 = vld [vmem:[%s6 + $0x560] sm:$0xff]
    %v4329 = vld [vmem:[%s6 + $0x568] sm:$0xff]
    %v4330 = vld [vmem:[%s6 + $0x570] sm:$0xff]
    %v4331 = vld [vmem:[%s6 + $0x578] sm:$0xff]
    %v4332 = vld [vmem:[%s6 + $0x580] sm:$0xff]
    %v4333 = vld [vmem:[%s6 + $0x588] sm:$0xff]
    %v4334 = vld [vmem:[%s6 + $0x590] sm:$0xff]
    %v4335 = vld [vmem:[%s6 + $0x598] sm:$0xff]
    %v4336 = vld [vmem:[%s6 + $0x5a0] sm:$0xff]
    %v4337 = vld [vmem:[%s6 + $0x5a8] sm:$0xff]
    %v4338 = vld [vmem:[%s6 + $0x5b0] sm:$0xff]
    %v4339 = vld [vmem:[%s6 + $0x5b8] sm:$0xff]
    %v4340 = vld [vmem:[%s6 + $0x5c0] sm:$0xff]
    %v4341 = vld [vmem:[%s6 + $0x5c8] sm:$0xff]
    %v4342 = vld [vmem:[%s6 + $0x5d0] sm:$0xff]
    %v4343 = vld [vmem:[%s6 + $0x5d8] sm:$0xff]
    %v4344 = vld [vmem:[%s6 + $0x5e0] sm:$0xff]
    %v4345 = vld [vmem:[%s6 + $0x5e8] sm:$0xff]
    %v4346 = vld [vmem:[%s6 + $0x5f0] sm:$0xff]
    %v4347 = vld [vmem:[%s6 + $0x5f8] sm:$0xff]
    %v4348 = vld [vmem:[%s6 + $0x600] sm:$0xff]
    %v4349 = vld [vmem:[%s6 + $0x608] sm:$0xff]
    %v4350 = vld [vmem:[%s6 + $0x610] sm:$0xff]
    %v4351 = vld [vmem:[%s6 + $0x618] sm:$0xff]
    %v4352 = vld [vmem:[%s6 + $0x620] sm:$0xff]
    %v4353 = vld [vmem:[%s6 + $0x628] sm:$0xff]
    %v4354 = vld [vmem:[%s6 + $0x630] sm:$0xff]
    %v4355 = vld [vmem:[%s6 + $0x638] sm:$0xff]
    %v4356 = vld [vmem:[%s6 + $0x640] sm:$0xff]
    %v4357 = vld [vmem:[%s6 + $0x648] sm:$0xff]
    %v4358 = vld [vmem:[%s6 + $0x650] sm:$0xff]
    %v4359 = vld [vmem:[%s6 + $0x658] sm:$0xff]
    %v4360 = vld [vmem:[%s6 + $0x660] sm:$0xff]
    %v4361 = vld [vmem:[%s6 + $0x668] sm:$0xff]
    %v4362 = vld [vmem:[%s6 + $0x670] sm:$0xff]
    %v4363 = vld [vmem:[%s6 + $0x678] sm:$0xff]
    %v4364 = vld [vmem:[%s6 + $0x680] sm:$0xff]
    %v4365 = vld [vmem:[%s6 + $0x688] sm:$0xff]
    %v4366 = vld [vmem:[%s6 + $0x690] sm:$0xff]
    %v4367 = vld [vmem:[%s6 + $0x698] sm:$0xff]
    %v4368 = vld [vmem:[%s6 + $0x6a0] sm:$0xff]
    %v4369 = vld [vmem:[%s6 + $0x6a8] sm:$0xff]
    %v4370 = vld [vmem:[%s6 + $0x6b0] sm:$0xff]
    %v4371 = vld [vmem:[%s6 + $0x6b8] sm:$0xff]
    %v4372 = vld [vmem:[%s6 + $0x6c0] sm:$0xff]
    %v4373 = vld [vmem:[%s6 + $0x6c8] sm:$0xff]
    %v4374 = vld [vmem:[%s6 + $0x6d0] sm:$0xff]
    %v4375 = vld [vmem:[%s6 + $0x6d8] sm:$0xff]
    %v4376 = vld [vmem:[%s6 + $0x6e0] sm:$0xff]
    %v4377 = vld [vmem:[%s6 + $0x6e8] sm:$0xff]
    %v4378 = vld [vmem:[%s6 + $0x6f0] sm:$0xff]
    %v4379 = vld [vmem:[%s6 + $0x6f8] sm:$0xff]
    %v4380 = vld [vmem:[%s6 + $0x700] sm:$0xff]
    %v4381 = vld [vmem:[%s6 + $0x708] sm:$0xff]
    %v4382 = vld [vmem:[%s6 + $0x710] sm:$0xff]
    %v4383 = vld [vmem:[%s6 + $0x718] sm:$0xff]
    %v4384 = vld [vmem:[%s6 + $0x720] sm:$0xff]
    %v4385 = vld [vmem:[%s6 + $0x728] sm:$0xff]
    %v4386 = vld [vmem:[%s6 + $0x730] sm:$0xff]
    %v4387 = vld [vmem:[%s6 + $0x738] sm:$0xff]
    %v4388 = vld [vmem:[%s6 + $0x740] sm:$0xff]
    %v4389 = vld [vmem:[%s6 + $0x748] sm:$0xff]
    %v4390 = vld [vmem:[%s6 + $0x750] sm:$0xff]
    %v4391 = vld [vmem:[%s6 + $0x758] sm:$0xff]
    %v4392 = vld [vmem:[%s6 + $0x760] sm:$0xff]
    %v4393 = vld [vmem:[%s6 + $0x768] sm:$0xff]
    %v4394 = vld [vmem:[%s6 + $0x770] sm:$0xff]
    %v4395 = vld [vmem:[%s6 + $0x778] sm:$0xff]
    %v4396 = vld [vmem:[%s6 + $0x780] sm:$0xff]
    %v4397 = vld [vmem:[%s6 + $0x788] sm:$0xff]
    %v4398 = vld [vmem:[%s6 + $0x790] sm:$0xff]
    %v4399 = vld [vmem:[%s6 + $0x798] sm:$0xff]
    %v4400 = vld [vmem:[%s6 + $0x7a0] sm:$0xff]
    %v4401 = vld [vmem:[%s6 + $0x7a8] sm:$0xff]
    %v4402 = vld [vmem:[%s6 + $0x7b0] sm:$0xff]
    %v4403 = vld [vmem:[%s6 + $0x7b8] sm:$0xff]
    %v4404 = vld [vmem:[%s6 + $0x7c0] sm:$0xff]
    %v4405 = vld [vmem:[%s6 + $0x7c8] sm:$0xff]
    %v4406 = vld [vmem:[%s6 + $0x7d0] sm:$0xff]
    %v4407 = vld [vmem:[%s6 + $0x7d8] sm:$0xff]
    %v4408 = vld [vmem:[%s6 + $0x7e0] sm:$0xff]
    %v4409 = vld [vmem:[%s6 + $0x7e8] sm:$0xff]
    %v4410 = vld [vmem:[%s6 + $0x7f0] sm:$0xff]
    %v4411 = vld [vmem:[%s6 + $0x7f8] sm:$0xff]
    %v4412 = vpack.c.bf16 %v4096, %v4092
    %v4413 = vpack.c.bf16 %v4097, %v4093
    %v4414 = vpack.c.bf16 %v4098, %v4094
    %v4415 = vpack.c.bf16 %v4099, %v4095
    %v4416 = vpack.c.bf16 %v4104, %v4100
    %v4417 = vpack.c.bf16 %v4105, %v4101
    %v4418 = vpack.c.bf16 %v4106, %v4102
    %v4419 = vpack.c.bf16 %v4107, %v4103
    %v4420 = vpack.c.bf16 %v4112, %v4108
    %v4421 = vpack.c.bf16 %v4113, %v4109
    %v4422 = vpack.c.bf16 %v4114, %v4110
    %v4423 = vpack.c.bf16 %v4115, %v4111
    %v4424 = vpack.c.bf16 %v4120, %v4116
    %v4425 = vpack.c.bf16 %v4121, %v4117
    %v4426 = vpack.c.bf16 %v4122, %v4118
    %v4427 = vpack.c.bf16 %v4123, %v4119
    %v4428 = vpack.c.bf16 %v4128, %v4124
    %v4429 = vpack.c.bf16 %v4129, %v4125
    %v4430 = vpack.c.bf16 %v4130, %v4126
    %v4431 = vpack.c.bf16 %v4131, %v4127
    %v4432 = vpack.c.bf16 %v4136, %v4132
    %v4433 = vpack.c.bf16 %v4137, %v4133
    %v4434 = vpack.c.bf16 %v4138, %v4134
    %v4435 = vpack.c.bf16 %v4139, %v4135
    %v4436 = vpack.c.bf16 %v4144, %v4140
    %v4437 = vpack.c.bf16 %v4145, %v4141
    %v4438 = vpack.c.bf16 %v4146, %v4142
    %v4439 = vpack.c.bf16 %v4147, %v4143
    %v4440 = vpack.c.bf16 %v4152, %v4148
    %v4441 = vpack.c.bf16 %v4153, %v4149
    %v4442 = vpack.c.bf16 %v4154, %v4150
    %v4443 = vpack.c.bf16 %v4155, %v4151
    %v4444 = vld [vmem:[%s7 + $0x7] sm:$0xff]
    %v4446 = vlaneseq
    %v4447 = vshrl.u32 %v4446, 7
    %v4448 = vsub.s32 0, %v4447
    %v4449 = vrot.slane %v4444, %v4448
    %v4450 = vlaneseq
    %v4451 = vshrl.u32 %v4450, 7
    %v4452 = vsub.s32 1, %v4451
    %v4453 = vrot.slane %v4444, %v4452
    %v4454 = vlaneseq
    %v4455 = vshrl.u32 %v4454, 7
    %v4456 = vsub.s32 2, %v4455
    %v4457 = vrot.slane %v4444, %v4456
    %v4458 = vlaneseq
    %v4459 = vshrl.u32 %v4458, 7
    %v4460 = vsub.s32 3, %v4459
    %v4461 = vrot.slane %v4444, %v4460
    %v4462 = vlaneseq
    %v4463 = vshrl.u32 %v4462, 7
    %v4464 = vsub.s32 4, %v4463
    %v4465 = vrot.slane %v4444, %v4464
    %v4466 = vlaneseq
    %v4467 = vshrl.u32 %v4466, 7
    %v4468 = vsub.s32 5, %v4467
    %v4469 = vrot.slane %v4444, %v4468
    %v4470 = vlaneseq
    %v4471 = vshrl.u32 %v4470, 7
    %v4472 = vsub.s32 6, %v4471
    %v4473 = vrot.slane %v4444, %v4472
    %v4474 = vlaneseq
    %v4475 = vshrl.u32 %v4474, 7
    %v4476 = vsub.s32 7, %v4475
    %v4477 = vrot.slane %v4444, %v4476
    %v4742 = vunpack.c.l.b16 %v4156
    %v4743 = vunpack.c.h.b16 %v4156
    %v4744 = vunpack.c.l.b16 %v4157
    %v4745 = vunpack.c.h.b16 %v4157
    %v4746 = vunpack.c.l.b16 %v4158
    %v4747 = vunpack.c.h.b16 %v4158
    %v4748 = vunpack.c.l.b16 %v4159
    %v4749 = vunpack.c.h.b16 %v4159
    %v4750 = vunpack.c.l.b16 %v4160
    %v4751 = vunpack.c.h.b16 %v4160
    %v4752 = vunpack.c.l.b16 %v4161
    %v4753 = vunpack.c.h.b16 %v4161
    %v4754 = vunpack.c.l.b16 %v4162
    %v4755 = vunpack.c.h.b16 %v4162
    %v4756 = vunpack.c.l.b16 %v4163
    %v4757 = vunpack.c.h.b16 %v4163
    %v4758 = vunpack.c.l.b16 %v4164
    %v4759 = vunpack.c.h.b16 %v4164
    %v4760 = vunpack.c.l.b16 %v4165
    %v4761 = vunpack.c.h.b16 %v4165
    %v4762 = vunpack.c.l.b16 %v4166
    %v4763 = vunpack.c.h.b16 %v4166
    %v4764 = vunpack.c.l.b16 %v4167
    %v4765 = vunpack.c.h.b16 %v4167
    %v4766 = vunpack.c.l.b16 %v4168
    %v4767 = vunpack.c.h.b16 %v4168
    %v4768 = vunpack.c.l.b16 %v4169
    %v4769 = vunpack.c.h.b16 %v4169
    %v4770 = vunpack.c.l.b16 %v4170
    %v4771 = vunpack.c.h.b16 %v4170
    %v4772 = vunpack.c.l.b16 %v4171
    %v4773 = vunpack.c.h.b16 %v4171
    %v4774 = vunpack.c.l.b16 %v4172
    %v4775 = vunpack.c.h.b16 %v4172
    %v4776 = vunpack.c.l.b16 %v4173
    %v4777 = vunpack.c.h.b16 %v4173
    %v4778 = vunpack.c.l.b16 %v4174
    %v4779 = vunpack.c.h.b16 %v4174
    %v4780 = vunpack.c.l.b16 %v4175
    %v4781 = vunpack.c.h.b16 %v4175
    %v4782 = vunpack.c.l.b16 %v4176
    %v4783 = vunpack.c.h.b16 %v4176
    %v4784 = vunpack.c.l.b16 %v4177
    %v4785 = vunpack.c.h.b16 %v4177
    %v4786 = vunpack.c.l.b16 %v4178
    %v4787 = vunpack.c.h.b16 %v4178
    %v4788 = vunpack.c.l.b16 %v4179
    %v4789 = vunpack.c.h.b16 %v4179
    %v4790 = vunpack.c.l.b16 %v4180
    %v4791 = vunpack.c.h.b16 %v4180
    %v4792 = vunpack.c.l.b16 %v4181
    %v4793 = vunpack.c.h.b16 %v4181
    %v4794 = vunpack.c.l.b16 %v4182
    %v4795 = vunpack.c.h.b16 %v4182
    %v4796 = vunpack.c.l.b16 %v4183
    %v4797 = vunpack.c.h.b16 %v4183
    %v4798 = vunpack.c.l.b16 %v4184
    %v4799 = vunpack.c.h.b16 %v4184
    %v4800 = vunpack.c.l.b16 %v4185
    %v4801 = vunpack.c.h.b16 %v4185
    %v4802 = vunpack.c.l.b16 %v4186
    %v4803 = vunpack.c.h.b16 %v4186
    %v4804 = vunpack.c.l.b16 %v4187
    %v4805 = vunpack.c.h.b16 %v4187
    %v4806 = vunpack.c.l.b16 %v4188
    %v4807 = vunpack.c.h.b16 %v4188
    %v4808 = vunpack.c.l.b16 %v4189
    %v4809 = vunpack.c.h.b16 %v4189
    %v4810 = vunpack.c.l.b16 %v4190
    %v4811 = vunpack.c.h.b16 %v4190
    %v4812 = vunpack.c.l.b16 %v4191
    %v4813 = vunpack.c.h.b16 %v4191
    %v4814 = vunpack.c.l.b16 %v4192
    %v4815 = vunpack.c.h.b16 %v4192
    %v4816 = vunpack.c.l.b16 %v4193
    %v4817 = vunpack.c.h.b16 %v4193
    %v4818 = vunpack.c.l.b16 %v4194
    %v4819 = vunpack.c.h.b16 %v4194
    %v4820 = vunpack.c.l.b16 %v4195
    %v4821 = vunpack.c.h.b16 %v4195
    %v4822 = vunpack.c.l.b16 %v4196
    %v4823 = vunpack.c.h.b16 %v4196
    %v4824 = vunpack.c.l.b16 %v4197
    %v4825 = vunpack.c.h.b16 %v4197
    %v4826 = vunpack.c.l.b16 %v4198
    %v4827 = vunpack.c.h.b16 %v4198
    %v4828 = vunpack.c.l.b16 %v4199
    %v4829 = vunpack.c.h.b16 %v4199
    %v4830 = vunpack.c.l.b16 %v4200
    %v4831 = vunpack.c.h.b16 %v4200
    %v4832 = vunpack.c.l.b16 %v4201
    %v4833 = vunpack.c.h.b16 %v4201
    %v4834 = vunpack.c.l.b16 %v4202
    %v4835 = vunpack.c.h.b16 %v4202
    %v4836 = vunpack.c.l.b16 %v4203
    %v4837 = vunpack.c.h.b16 %v4203
    %v4838 = vunpack.c.l.b16 %v4204
    %v4839 = vunpack.c.h.b16 %v4204
    %v4840 = vunpack.c.l.b16 %v4205
    %v4841 = vunpack.c.h.b16 %v4205
    %v4842 = vunpack.c.l.b16 %v4206
    %v4843 = vunpack.c.h.b16 %v4206
    %v4844 = vunpack.c.l.b16 %v4207
    %v4845 = vunpack.c.h.b16 %v4207
    %v4846 = vunpack.c.l.b16 %v4208
    %v4847 = vunpack.c.h.b16 %v4208
    %v4848 = vunpack.c.l.b16 %v4209
    %v4849 = vunpack.c.h.b16 %v4209
    %v4850 = vunpack.c.l.b16 %v4210
    %v4851 = vunpack.c.h.b16 %v4210
    %v4852 = vunpack.c.l.b16 %v4211
    %v4853 = vunpack.c.h.b16 %v4211
    %v4854 = vunpack.c.l.b16 %v4212
    %v4855 = vunpack.c.h.b16 %v4212
    %v4856 = vunpack.c.l.b16 %v4213
    %v4857 = vunpack.c.h.b16 %v4213
    %v4858 = vunpack.c.l.b16 %v4214
    %v4859 = vunpack.c.h.b16 %v4214
    %v4860 = vunpack.c.l.b16 %v4215
    %v4861 = vunpack.c.h.b16 %v4215
    %v4862 = vunpack.c.l.b16 %v4216
    %v4863 = vunpack.c.h.b16 %v4216
    %v4864 = vunpack.c.l.b16 %v4217
    %v4865 = vunpack.c.h.b16 %v4217
    %v4866 = vunpack.c.l.b16 %v4218
    %v4867 = vunpack.c.h.b16 %v4218
    %v4868 = vunpack.c.l.b16 %v4219
    %v4869 = vunpack.c.h.b16 %v4219
    %v4870 = vunpack.c.l.b16 %v4220
    %v4871 = vunpack.c.h.b16 %v4220
    %v4872 = vunpack.c.l.b16 %v4221
    %v4873 = vunpack.c.h.b16 %v4221
    %v4874 = vunpack.c.l.b16 %v4222
    %v4875 = vunpack.c.h.b16 %v4222
    %v4876 = vunpack.c.l.b16 %v4223
    %v4877 = vunpack.c.h.b16 %v4223
    %v4878 = vunpack.c.l.b16 %v4224
    %v4879 = vunpack.c.h.b16 %v4224
    %v4880 = vunpack.c.l.b16 %v4225
    %v4881 = vunpack.c.h.b16 %v4225
    %v4882 = vunpack.c.l.b16 %v4226
    %v4883 = vunpack.c.h.b16 %v4226
    %v4884 = vunpack.c.l.b16 %v4227
    %v4885 = vunpack.c.h.b16 %v4227
    %v4886 = vunpack.c.l.b16 %v4228
    %v4887 = vunpack.c.h.b16 %v4228
    %v4888 = vunpack.c.l.b16 %v4229
    %v4889 = vunpack.c.h.b16 %v4229
    %v4890 = vunpack.c.l.b16 %v4230
    %v4891 = vunpack.c.h.b16 %v4230
    %v4892 = vunpack.c.l.b16 %v4231
    %v4893 = vunpack.c.h.b16 %v4231
    %v4894 = vunpack.c.l.b16 %v4232
    %v4895 = vunpack.c.h.b16 %v4232
    %v4896 = vunpack.c.l.b16 %v4233
    %v4897 = vunpack.c.h.b16 %v4233
    %v4898 = vunpack.c.l.b16 %v4234
    %v4899 = vunpack.c.h.b16 %v4234
    %v4900 = vunpack.c.l.b16 %v4235
    %v4901 = vunpack.c.h.b16 %v4235
    %v4902 = vunpack.c.l.b16 %v4236
    %v4903 = vunpack.c.h.b16 %v4236
    %v4904 = vunpack.c.l.b16 %v4237
    %v4905 = vunpack.c.h.b16 %v4237
    %v4906 = vunpack.c.l.b16 %v4238
    %v4907 = vunpack.c.h.b16 %v4238
    %v4908 = vunpack.c.l.b16 %v4239
    %v4909 = vunpack.c.h.b16 %v4239
    %v4910 = vunpack.c.l.b16 %v4240
    %v4911 = vunpack.c.h.b16 %v4240
    %v4912 = vunpack.c.l.b16 %v4241
    %v4913 = vunpack.c.h.b16 %v4241
    %v4914 = vunpack.c.l.b16 %v4242
    %v4915 = vunpack.c.h.b16 %v4242
    %v4916 = vunpack.c.l.b16 %v4243
    %v4917 = vunpack.c.h.b16 %v4243
    %v4918 = vunpack.c.l.b16 %v4244
    %v4919 = vunpack.c.h.b16 %v4244
    %v4920 = vunpack.c.l.b16 %v4245
    %v4921 = vunpack.c.h.b16 %v4245
    %v4922 = vunpack.c.l.b16 %v4246
    %v4923 = vunpack.c.h.b16 %v4246
    %v4924 = vunpack.c.l.b16 %v4247
    %v4925 = vunpack.c.h.b16 %v4247
    %v4926 = vunpack.c.l.b16 %v4248
    %v4927 = vunpack.c.h.b16 %v4248
    %v4928 = vunpack.c.l.b16 %v4249
    %v4929 = vunpack.c.h.b16 %v4249
    %v4930 = vunpack.c.l.b16 %v4250
    %v4931 = vunpack.c.h.b16 %v4250
    %v4932 = vunpack.c.l.b16 %v4251
    %v4933 = vunpack.c.h.b16 %v4251
    %v4934 = vunpack.c.l.b16 %v4252
    %v4935 = vunpack.c.h.b16 %v4252
    %v4936 = vunpack.c.l.b16 %v4253
    %v4937 = vunpack.c.h.b16 %v4253
    %v4938 = vunpack.c.l.b16 %v4254
    %v4939 = vunpack.c.h.b16 %v4254
    %v4940 = vunpack.c.l.b16 %v4255
    %v4941 = vunpack.c.h.b16 %v4255
    %v4942 = vunpack.c.l.b16 %v4256
    %v4943 = vunpack.c.h.b16 %v4256
    %v4944 = vunpack.c.l.b16 %v4257
    %v4945 = vunpack.c.h.b16 %v4257
    %v4946 = vunpack.c.l.b16 %v4258
    %v4947 = vunpack.c.h.b16 %v4258
    %v4948 = vunpack.c.l.b16 %v4259
    %v4949 = vunpack.c.h.b16 %v4259
    %v4950 = vunpack.c.l.b16 %v4260
    %v4951 = vunpack.c.h.b16 %v4260
    %v4952 = vunpack.c.l.b16 %v4261
    %v4953 = vunpack.c.h.b16 %v4261
    %v4954 = vunpack.c.l.b16 %v4262
    %v4955 = vunpack.c.h.b16 %v4262
    %v4956 = vunpack.c.l.b16 %v4263
    %v4957 = vunpack.c.h.b16 %v4263
    %v4958 = vunpack.c.l.b16 %v4264
    %v4959 = vunpack.c.h.b16 %v4264
    %v4960 = vunpack.c.l.b16 %v4265
    %v4961 = vunpack.c.h.b16 %v4265
    %v4962 = vunpack.c.l.b16 %v4266
    %v4963 = vunpack.c.h.b16 %v4266
    %v4964 = vunpack.c.l.b16 %v4267
    %v4965 = vunpack.c.h.b16 %v4267
    %v4966 = vunpack.c.l.b16 %v4268
    %v4967 = vunpack.c.h.b16 %v4268
    %v4968 = vunpack.c.l.b16 %v4269
    %v4969 = vunpack.c.h.b16 %v4269
    %v4970 = vunpack.c.l.b16 %v4270
    %v4971 = vunpack.c.h.b16 %v4270
    %v4972 = vunpack.c.l.b16 %v4271
    %v4973 = vunpack.c.h.b16 %v4271
    %v4974 = vunpack.c.l.b16 %v4272
    %v4975 = vunpack.c.h.b16 %v4272
    %v4976 = vunpack.c.l.b16 %v4273
    %v4977 = vunpack.c.h.b16 %v4273
    %v4978 = vunpack.c.l.b16 %v4274
    %v4979 = vunpack.c.h.b16 %v4274
    %v4980 = vunpack.c.l.b16 %v4275
    %v4981 = vunpack.c.h.b16 %v4275
    %v4982 = vunpack.c.l.b16 %v4276
    %v4983 = vunpack.c.h.b16 %v4276
    %v4984 = vunpack.c.l.b16 %v4277
    %v4985 = vunpack.c.h.b16 %v4277
    %v4986 = vunpack.c.l.b16 %v4278
    %v4987 = vunpack.c.h.b16 %v4278
    %v4988 = vunpack.c.l.b16 %v4279
    %v4989 = vunpack.c.h.b16 %v4279
    %v4990 = vunpack.c.l.b16 %v4280
    %v4991 = vunpack.c.h.b16 %v4280
    %v4992 = vunpack.c.l.b16 %v4281
    %v4993 = vunpack.c.h.b16 %v4281
    %v4994 = vunpack.c.l.b16 %v4282
    %v4995 = vunpack.c.h.b16 %v4282
    %v4996 = vunpack.c.l.b16 %v4283
    %v4997 = vunpack.c.h.b16 %v4283
    %v4998 = vunpack.c.l.b16 %v4284
    %v4999 = vunpack.c.h.b16 %v4284
    %v5000 = vunpack.c.l.b16 %v4285
    %v5001 = vunpack.c.h.b16 %v4285
    %v5002 = vunpack.c.l.b16 %v4286
    %v5003 = vunpack.c.h.b16 %v4286
    %v5004 = vunpack.c.l.b16 %v4287
    %v5005 = vunpack.c.h.b16 %v4287
    %v5006 = vunpack.c.l.b16 %v4288
    %v5007 = vunpack.c.h.b16 %v4288
    %v5008 = vunpack.c.l.b16 %v4289
    %v5009 = vunpack.c.h.b16 %v4289
    %v5010 = vunpack.c.l.b16 %v4290
    %v5011 = vunpack.c.h.b16 %v4290
    %v5012 = vunpack.c.l.b16 %v4291
    %v5013 = vunpack.c.h.b16 %v4291
    %v5014 = vunpack.c.l.b16 %v4292
    %v5015 = vunpack.c.h.b16 %v4292
    %v5016 = vunpack.c.l.b16 %v4293
    %v5017 = vunpack.c.h.b16 %v4293
    %v5018 = vunpack.c.l.b16 %v4294
    %v5019 = vunpack.c.h.b16 %v4294
    %v5020 = vunpack.c.l.b16 %v4295
    %v5021 = vunpack.c.h.b16 %v4295
    %v5022 = vunpack.c.l.b16 %v4296
    %v5023 = vunpack.c.h.b16 %v4296
    %v5024 = vunpack.c.l.b16 %v4297
    %v5025 = vunpack.c.h.b16 %v4297
    %v5026 = vunpack.c.l.b16 %v4298
    %v5027 = vunpack.c.h.b16 %v4298
    %v5028 = vunpack.c.l.b16 %v4299
    %v5029 = vunpack.c.h.b16 %v4299
    %v5030 = vunpack.c.l.b16 %v4300
    %v5031 = vunpack.c.h.b16 %v4300
    %v5032 = vunpack.c.l.b16 %v4301
    %v5033 = vunpack.c.h.b16 %v4301
    %v5034 = vunpack.c.l.b16 %v4302
    %v5035 = vunpack.c.h.b16 %v4302
    %v5036 = vunpack.c.l.b16 %v4303
    %v5037 = vunpack.c.h.b16 %v4303
    %v5038 = vunpack.c.l.b16 %v4304
    %v5039 = vunpack.c.h.b16 %v4304
    %v5040 = vunpack.c.l.b16 %v4305
    %v5041 = vunpack.c.h.b16 %v4305
    %v5042 = vunpack.c.l.b16 %v4306
    %v5043 = vunpack.c.h.b16 %v4306
    %v5044 = vunpack.c.l.b16 %v4307
    %v5045 = vunpack.c.h.b16 %v4307
    %v5046 = vunpack.c.l.b16 %v4308
    %v5047 = vunpack.c.h.b16 %v4308
    %v5048 = vunpack.c.l.b16 %v4309
    %v5049 = vunpack.c.h.b16 %v4309
    %v5050 = vunpack.c.l.b16 %v4310
    %v5051 = vunpack.c.h.b16 %v4310
    %v5052 = vunpack.c.l.b16 %v4311
    %v5053 = vunpack.c.h.b16 %v4311
    %v5054 = vunpack.c.l.b16 %v4312
    %v5055 = vunpack.c.h.b16 %v4312
    %v5056 = vunpack.c.l.b16 %v4313
    %v5057 = vunpack.c.h.b16 %v4313
    %v5058 = vunpack.c.l.b16 %v4314
    %v5059 = vunpack.c.h.b16 %v4314
    %v5060 = vunpack.c.l.b16 %v4315
    %v5061 = vunpack.c.h.b16 %v4315
    %v5062 = vunpack.c.l.b16 %v4316
    %v5063 = vunpack.c.h.b16 %v4316
    %v5064 = vunpack.c.l.b16 %v4317
    %v5065 = vunpack.c.h.b16 %v4317
    %v5066 = vunpack.c.l.b16 %v4318
    %v5067 = vunpack.c.h.b16 %v4318
    %v5068 = vunpack.c.l.b16 %v4319
    %v5069 = vunpack.c.h.b16 %v4319
    %v5070 = vunpack.c.l.b16 %v4320
    %v5071 = vunpack.c.h.b16 %v4320
    %v5072 = vunpack.c.l.b16 %v4321
    %v5073 = vunpack.c.h.b16 %v4321
    %v5074 = vunpack.c.l.b16 %v4322
    %v5075 = vunpack.c.h.b16 %v4322
    %v5076 = vunpack.c.l.b16 %v4323
    %v5077 = vunpack.c.h.b16 %v4323
    %v5078 = vunpack.c.l.b16 %v4324
    %v5079 = vunpack.c.h.b16 %v4324
    %v5080 = vunpack.c.l.b16 %v4325
    %v5081 = vunpack.c.h.b16 %v4325
    %v5082 = vunpack.c.l.b16 %v4326
    %v5083 = vunpack.c.h.b16 %v4326
    %v5084 = vunpack.c.l.b16 %v4327
    %v5085 = vunpack.c.h.b16 %v4327
    %v5086 = vunpack.c.l.b16 %v4328
    %v5087 = vunpack.c.h.b16 %v4328
    %v5088 = vunpack.c.l.b16 %v4329
    %v5089 = vunpack.c.h.b16 %v4329
    %v5090 = vunpack.c.l.b16 %v4330
    %v5091 = vunpack.c.h.b16 %v4330
    %v5092 = vunpack.c.l.b16 %v4331
    %v5093 = vunpack.c.h.b16 %v4331
    %v5094 = vunpack.c.l.b16 %v4332
    %v5095 = vunpack.c.h.b16 %v4332
    %v5096 = vunpack.c.l.b16 %v4333
    %v5097 = vunpack.c.h.b16 %v4333
    %v5098 = vunpack.c.l.b16 %v4334
    %v5099 = vunpack.c.h.b16 %v4334
    %v5100 = vunpack.c.l.b16 %v4335
    %v5101 = vunpack.c.h.b16 %v4335
    %v5102 = vunpack.c.l.b16 %v4336
    %v5103 = vunpack.c.h.b16 %v4336
    %v5104 = vunpack.c.l.b16 %v4337
    %v5105 = vunpack.c.h.b16 %v4337
    %v5106 = vunpack.c.l.b16 %v4338
    %v5107 = vunpack.c.h.b16 %v4338
    %v5108 = vunpack.c.l.b16 %v4339
    %v5109 = vunpack.c.h.b16 %v4339
    %v5110 = vunpack.c.l.b16 %v4340
    %v5111 = vunpack.c.h.b16 %v4340
    %v5112 = vunpack.c.l.b16 %v4341
    %v5113 = vunpack.c.h.b16 %v4341
    %v5114 = vunpack.c.l.b16 %v4342
    %v5115 = vunpack.c.h.b16 %v4342
    %v5116 = vunpack.c.l.b16 %v4343
    %v5117 = vunpack.c.h.b16 %v4343
    %v5118 = vunpack.c.l.b16 %v4344
    %v5119 = vunpack.c.h.b16 %v4344
    %v5120 = vunpack.c.l.b16 %v4345
    %v5121 = vunpack.c.h.b16 %v4345
    %v5122 = vunpack.c.l.b16 %v4346
    %v5123 = vunpack.c.h.b16 %v4346
    %v5124 = vunpack.c.l.b16 %v4347
    %v5125 = vunpack.c.h.b16 %v4347
    %v5126 = vunpack.c.l.b16 %v4348
    %v5127 = vunpack.c.h.b16 %v4348
    %v5128 = vunpack.c.l.b16 %v4349
    %v5129 = vunpack.c.h.b16 %v4349
    %v5130 = vunpack.c.l.b16 %v4350
    %v5131 = vunpack.c.h.b16 %v4350
    %v5132 = vunpack.c.l.b16 %v4351
    %v5133 = vunpack.c.h.b16 %v4351
    %v5134 = vunpack.c.l.b16 %v4352
    %v5135 = vunpack.c.h.b16 %v4352
    %v5136 = vunpack.c.l.b16 %v4353
    %v5137 = vunpack.c.h.b16 %v4353
    %v5138 = vunpack.c.l.b16 %v4354
    %v5139 = vunpack.c.h.b16 %v4354
    %v5140 = vunpack.c.l.b16 %v4355
    %v5141 = vunpack.c.h.b16 %v4355
    %v5142 = vunpack.c.l.b16 %v4356
    %v5143 = vunpack.c.h.b16 %v4356
    %v5144 = vunpack.c.l.b16 %v4357
    %v5145 = vunpack.c.h.b16 %v4357
    %v5146 = vunpack.c.l.b16 %v4358
    %v5147 = vunpack.c.h.b16 %v4358
    %v5148 = vunpack.c.l.b16 %v4359
    %v5149 = vunpack.c.h.b16 %v4359
    %v5150 = vunpack.c.l.b16 %v4360
    %v5151 = vunpack.c.h.b16 %v4360
    %v5152 = vunpack.c.l.b16 %v4361
    %v5153 = vunpack.c.h.b16 %v4361
    %v5154 = vunpack.c.l.b16 %v4362
    %v5155 = vunpack.c.h.b16 %v4362
    %v5156 = vunpack.c.l.b16 %v4363
    %v5157 = vunpack.c.h.b16 %v4363
    %v5158 = vunpack.c.l.b16 %v4364
    %v5159 = vunpack.c.h.b16 %v4364
    %v5160 = vunpack.c.l.b16 %v4365
    %v5161 = vunpack.c.h.b16 %v4365
    %v5162 = vunpack.c.l.b16 %v4366
    %v5163 = vunpack.c.h.b16 %v4366
    %v5164 = vunpack.c.l.b16 %v4367
    %v5165 = vunpack.c.h.b16 %v4367
    %v5166 = vunpack.c.l.b16 %v4368
    %v5167 = vunpack.c.h.b16 %v4368
    %v5168 = vunpack.c.l.b16 %v4369
    %v5169 = vunpack.c.h.b16 %v4369
    %v5170 = vunpack.c.l.b16 %v4370
    %v5171 = vunpack.c.h.b16 %v4370
    %v5172 = vunpack.c.l.b16 %v4371
    %v5173 = vunpack.c.h.b16 %v4371
    %v5174 = vunpack.c.l.b16 %v4372
    %v5175 = vunpack.c.h.b16 %v4372
    %v5176 = vunpack.c.l.b16 %v4373
    %v5177 = vunpack.c.h.b16 %v4373
    %v5178 = vunpack.c.l.b16 %v4374
    %v5179 = vunpack.c.h.b16 %v4374
    %v5180 = vunpack.c.l.b16 %v4375
    %v5181 = vunpack.c.h.b16 %v4375
    %v5182 = vunpack.c.l.b16 %v4376
    %v5183 = vunpack.c.h.b16 %v4376
    %v5184 = vunpack.c.l.b16 %v4377
    %v5185 = vunpack.c.h.b16 %v4377
    %v5186 = vunpack.c.l.b16 %v4378
    %v5187 = vunpack.c.h.b16 %v4378
    %v5188 = vunpack.c.l.b16 %v4379
    %v5189 = vunpack.c.h.b16 %v4379
    %v5190 = vunpack.c.l.b16 %v4380
    %v5191 = vunpack.c.h.b16 %v4380
    %v5192 = vunpack.c.l.b16 %v4381
    %v5193 = vunpack.c.h.b16 %v4381
    %v5194 = vunpack.c.l.b16 %v4382
    %v5195 = vunpack.c.h.b16 %v4382
    %v5196 = vunpack.c.l.b16 %v4383
    %v5197 = vunpack.c.h.b16 %v4383
    %v5198 = vunpack.c.l.b16 %v4384
    %v5199 = vunpack.c.h.b16 %v4384
    %v5200 = vunpack.c.l.b16 %v4385
    %v5201 = vunpack.c.h.b16 %v4385
    %v5202 = vunpack.c.l.b16 %v4386
    %v5203 = vunpack.c.h.b16 %v4386
    %v5204 = vunpack.c.l.b16 %v4387
    %v5205 = vunpack.c.h.b16 %v4387
    %v5206 = vunpack.c.l.b16 %v4388
    %v5207 = vunpack.c.h.b16 %v4388
    %v5208 = vunpack.c.l.b16 %v4389
    %v5209 = vunpack.c.h.b16 %v4389
    %v5210 = vunpack.c.l.b16 %v4390
    %v5211 = vunpack.c.h.b16 %v4390
    %v5212 = vunpack.c.l.b16 %v4391
    %v5213 = vunpack.c.h.b16 %v4391
    %v5214 = vunpack.c.l.b16 %v4392
    %v5215 = vunpack.c.h.b16 %v4392
    %v5216 = vunpack.c.l.b16 %v4393
    %v5217 = vunpack.c.h.b16 %v4393
    %v5218 = vunpack.c.l.b16 %v4394
    %v5219 = vunpack.c.h.b16 %v4394
    %v5220 = vunpack.c.l.b16 %v4395
    %v5221 = vunpack.c.h.b16 %v4395
    %v5222 = vunpack.c.l.b16 %v4396
    %v5223 = vunpack.c.h.b16 %v4396
    %v5224 = vunpack.c.l.b16 %v4397
    %v5225 = vunpack.c.h.b16 %v4397
    %v5226 = vunpack.c.l.b16 %v4398
    %v5227 = vunpack.c.h.b16 %v4398
    %v5228 = vunpack.c.l.b16 %v4399
    %v5229 = vunpack.c.h.b16 %v4399
    %v5230 = vunpack.c.l.b16 %v4400
    %v5231 = vunpack.c.h.b16 %v4400
    %v5232 = vunpack.c.l.b16 %v4401
    %v5233 = vunpack.c.h.b16 %v4401
    %v5234 = vunpack.c.l.b16 %v4402
    %v5235 = vunpack.c.h.b16 %v4402
    %v5236 = vunpack.c.l.b16 %v4403
    %v5237 = vunpack.c.h.b16 %v4403
    %v5238 = vunpack.c.l.b16 %v4404
    %v5239 = vunpack.c.h.b16 %v4404
    %v5240 = vunpack.c.l.b16 %v4405
    %v5241 = vunpack.c.h.b16 %v4405
    %v5242 = vunpack.c.l.b16 %v4406
    %v5243 = vunpack.c.h.b16 %v4406
    %v5244 = vunpack.c.l.b16 %v4407
    %v5245 = vunpack.c.h.b16 %v4407
    %v5246 = vunpack.c.l.b16 %v4408
    %v5247 = vunpack.c.h.b16 %v4408
    %v5248 = vunpack.c.l.b16 %v4409
    %v5249 = vunpack.c.h.b16 %v4409
    %v5250 = vunpack.c.l.b16 %v4410
    %v5251 = vunpack.c.h.b16 %v4410
    %v5252 = vunpack.c.l.b16 %v4411
    %v5253 = vunpack.c.h.b16 %v4411
    %v5254 = vpack.c.b16 %v4750, %v4742
    %v5255 = vpack.c.b16 %v4751, %v4743
    %v5256 = vpack.c.b16 %v4752, %v4744
    %v5257 = vpack.c.b16 %v4753, %v4745
    %v5258 = vpack.c.b16 %v4754, %v4746
    %v5259 = vpack.c.b16 %v4755, %v4747
    %v5260 = vpack.c.b16 %v4756, %v4748
    %v5261 = vpack.c.b16 %v4757, %v4749
    %v5262 = vpack.c.b16 %v4766, %v4758
    %v5263 = vpack.c.b16 %v4767, %v4759
    %v5264 = vpack.c.b16 %v4768, %v4760
    %v5265 = vpack.c.b16 %v4769, %v4761
    %v5266 = vpack.c.b16 %v4770, %v4762
    %v5267 = vpack.c.b16 %v4771, %v4763
    %v5268 = vpack.c.b16 %v4772, %v4764
    %v5269 = vpack.c.b16 %v4773, %v4765
    %v5270 = vpack.c.b16 %v4782, %v4774
    %v5271 = vpack.c.b16 %v4783, %v4775
    %v5272 = vpack.c.b16 %v4784, %v4776
    %v5273 = vpack.c.b16 %v4785, %v4777
    %v5274 = vpack.c.b16 %v4786, %v4778
    %v5275 = vpack.c.b16 %v4787, %v4779
    %v5276 = vpack.c.b16 %v4788, %v4780
    %v5277 = vpack.c.b16 %v4789, %v4781
    %v5278 = vpack.c.b16 %v4798, %v4790
    %v5279 = vpack.c.b16 %v4799, %v4791
    %v5280 = vpack.c.b16 %v4800, %v4792
    %v5281 = vpack.c.b16 %v4801, %v4793
    %v5282 = vpack.c.b16 %v4802, %v4794
    %v5283 = vpack.c.b16 %v4803, %v4795
    %v5284 = vpack.c.b16 %v4804, %v4796
    %v5285 = vpack.c.b16 %v4805, %v4797
    %v5286 = vpack.c.b16 %v4814, %v4806
    %v5287 = vpack.c.b16 %v4815, %v4807
    %v5288 = vpack.c.b16 %v4816, %v4808
    %v5289 = vpack.c.b16 %v4817, %v4809
    %v5290 = vpack.c.b16 %v4818, %v4810
    %v5291 = vpack.c.b16 %v4819, %v4811
    %v5292 = vpack.c.b16 %v4820, %v4812
    %v5293 = vpack.c.b16 %v4821, %v4813
    %v5294 = vpack.c.b16 %v4830, %v4822
    %v5295 = vpack.c.b16 %v4831, %v4823
    %v5296 = vpack.c.b16 %v4832, %v4824
    %v5297 = vpack.c.b16 %v4833, %v4825
    %v5298 = vpack.c.b16 %v4834, %v4826
    %v5299 = vpack.c.b16 %v4835, %v4827
    %v5300 = vpack.c.b16 %v4836, %v4828
    %v5301 = vpack.c.b16 %v4837, %v4829
    %v5302 = vpack.c.b16 %v4846, %v4838
    %v5303 = vpack.c.b16 %v4847, %v4839
    %v5304 = vpack.c.b16 %v4848, %v4840
    %v5305 = vpack.c.b16 %v4849, %v4841
    %v5306 = vpack.c.b16 %v4850, %v4842
    %v5307 = vpack.c.b16 %v4851, %v4843
    %v5308 = vpack.c.b16 %v4852, %v4844
    %v5309 = vpack.c.b16 %v4853, %v4845
    %v5310 = vpack.c.b16 %v4862, %v4854
    %v5311 = vpack.c.b16 %v4863, %v4855
    %v5312 = vpack.c.b16 %v4864, %v4856
    %v5313 = vpack.c.b16 %v4865, %v4857
    %v5314 = vpack.c.b16 %v4866, %v4858
    %v5315 = vpack.c.b16 %v4867, %v4859
    %v5316 = vpack.c.b16 %v4868, %v4860
    %v5317 = vpack.c.b16 %v4869, %v4861
    %v5318 = vpack.c.b16 %v4878, %v4870
    %v5319 = vpack.c.b16 %v4879, %v4871
    %v5320 = vpack.c.b16 %v4880, %v4872
    %v5321 = vpack.c.b16 %v4881, %v4873
    %v5322 = vpack.c.b16 %v4882, %v4874
    %v5323 = vpack.c.b16 %v4883, %v4875
    %v5324 = vpack.c.b16 %v4884, %v4876
    %v5325 = vpack.c.b16 %v4885, %v4877
    %v5326 = vpack.c.b16 %v4894, %v4886
    %v5327 = vpack.c.b16 %v4895, %v4887
    %v5328 = vpack.c.b16 %v4896, %v4888
    %v5329 = vpack.c.b16 %v4897, %v4889
    %v5330 = vpack.c.b16 %v4898, %v4890
    %v5331 = vpack.c.b16 %v4899, %v4891
    %v5332 = vpack.c.b16 %v4900, %v4892
    %v5333 = vpack.c.b16 %v4901, %v4893
    %v5334 = vpack.c.b16 %v4910, %v4902
    %v5335 = vpack.c.b16 %v4911, %v4903
    %v5336 = vpack.c.b16 %v4912, %v4904
    %v5337 = vpack.c.b16 %v4913, %v4905
    %v5338 = vpack.c.b16 %v4914, %v4906
    %v5339 = vpack.c.b16 %v4915, %v4907
    %v5340 = vpack.c.b16 %v4916, %v4908
    %v5341 = vpack.c.b16 %v4917, %v4909
    %v5342 = vpack.c.b16 %v4926, %v4918
    %v5343 = vpack.c.b16 %v4927, %v4919
    %v5344 = vpack.c.b16 %v4928, %v4920
    %v5345 = vpack.c.b16 %v4929, %v4921
    %v5346 = vpack.c.b16 %v4930, %v4922
    %v5347 = vpack.c.b16 %v4931, %v4923
    %v5348 = vpack.c.b16 %v4932, %v4924
    %v5349 = vpack.c.b16 %v4933, %v4925
    %v5350 = vpack.c.b16 %v4942, %v4934
    %v5351 = vpack.c.b16 %v4943, %v4935
    %v5352 = vpack.c.b16 %v4944, %v4936
    %v5353 = vpack.c.b16 %v4945, %v4937
    %v5354 = vpack.c.b16 %v4946, %v4938
    %v5355 = vpack.c.b16 %v4947, %v4939
    %v5356 = vpack.c.b16 %v4948, %v4940
    %v5357 = vpack.c.b16 %v4949, %v4941
    %v5358 = vpack.c.b16 %v4958, %v4950
    %v5359 = vpack.c.b16 %v4959, %v4951
    %v5360 = vpack.c.b16 %v4960, %v4952
    %v5361 = vpack.c.b16 %v4961, %v4953
    %v5362 = vpack.c.b16 %v4962, %v4954
    %v5363 = vpack.c.b16 %v4963, %v4955
    %v5364 = vpack.c.b16 %v4964, %v4956
    %v5365 = vpack.c.b16 %v4965, %v4957
    %v5366 = vpack.c.b16 %v4974, %v4966
    %v5367 = vpack.c.b16 %v4975, %v4967
    %v5368 = vpack.c.b16 %v4976, %v4968
    %v5369 = vpack.c.b16 %v4977, %v4969
    %v5370 = vpack.c.b16 %v4978, %v4970
    %v5371 = vpack.c.b16 %v4979, %v4971
    %v5372 = vpack.c.b16 %v4980, %v4972
    %v5373 = vpack.c.b16 %v4981, %v4973
    %v5374 = vpack.c.b16 %v4990, %v4982
    %v5375 = vpack.c.b16 %v4991, %v4983
    %v5376 = vpack.c.b16 %v4992, %v4984
    %v5377 = vpack.c.b16 %v4993, %v4985
    %v5378 = vpack.c.b16 %v4994, %v4986
    %v5379 = vpack.c.b16 %v4995, %v4987
    %v5380 = vpack.c.b16 %v4996, %v4988
    %v5381 = vpack.c.b16 %v4997, %v4989
    %v5382 = vpack.c.b16 %v5006, %v4998
    %v5383 = vpack.c.b16 %v5007, %v4999
    %v5384 = vpack.c.b16 %v5008, %v5000
    %v5385 = vpack.c.b16 %v5009, %v5001
    %v5386 = vpack.c.b16 %v5010, %v5002
    %v5387 = vpack.c.b16 %v5011, %v5003
    %v5388 = vpack.c.b16 %v5012, %v5004
    %v5389 = vpack.c.b16 %v5013, %v5005
    %v5390 = vpack.c.b16 %v5022, %v5014
    %v5391 = vpack.c.b16 %v5023, %v5015
    %v5392 = vpack.c.b16 %v5024, %v5016
    %v5393 = vpack.c.b16 %v5025, %v5017
    %v5394 = vpack.c.b16 %v5026, %v5018
    %v5395 = vpack.c.b16 %v5027, %v5019
    %v5396 = vpack.c.b16 %v5028, %v5020
    %v5397 = vpack.c.b16 %v5029, %v5021
    %v5398 = vpack.c.b16 %v5038, %v5030
    %v5399 = vpack.c.b16 %v5039, %v5031
    %v5400 = vpack.c.b16 %v5040, %v5032
    %v5401 = vpack.c.b16 %v5041, %v5033
    %v5402 = vpack.c.b16 %v5042, %v5034
    %v5403 = vpack.c.b16 %v5043, %v5035
    %v5404 = vpack.c.b16 %v5044, %v5036
    %v5405 = vpack.c.b16 %v5045, %v5037
    %v5406 = vpack.c.b16 %v5054, %v5046
    %v5407 = vpack.c.b16 %v5055, %v5047
    %v5408 = vpack.c.b16 %v5056, %v5048
    %v5409 = vpack.c.b16 %v5057, %v5049
    %v5410 = vpack.c.b16 %v5058, %v5050
    %v5411 = vpack.c.b16 %v5059, %v5051
    %v5412 = vpack.c.b16 %v5060, %v5052
    %v5413 = vpack.c.b16 %v5061, %v5053
    %v5414 = vpack.c.b16 %v5070, %v5062
    %v5415 = vpack.c.b16 %v5071, %v5063
    %v5416 = vpack.c.b16 %v5072, %v5064
    %v5417 = vpack.c.b16 %v5073, %v5065
    %v5418 = vpack.c.b16 %v5074, %v5066
    %v5419 = vpack.c.b16 %v5075, %v5067
    %v5420 = vpack.c.b16 %v5076, %v5068
    %v5421 = vpack.c.b16 %v5077, %v5069
    %v5422 = vpack.c.b16 %v5086, %v5078
    %v5423 = vpack.c.b16 %v5087, %v5079
    %v5424 = vpack.c.b16 %v5088, %v5080
    %v5425 = vpack.c.b16 %v5089, %v5081
    %v5426 = vpack.c.b16 %v5090, %v5082
    %v5427 = vpack.c.b16 %v5091, %v5083
    %v5428 = vpack.c.b16 %v5092, %v5084
    %v5429 = vpack.c.b16 %v5093, %v5085
    %v5430 = vpack.c.b16 %v5102, %v5094
    %v5431 = vpack.c.b16 %v5103, %v5095
    %v5432 = vpack.c.b16 %v5104, %v5096
    %v5433 = vpack.c.b16 %v5105, %v5097
    %v5434 = vpack.c.b16 %v5106, %v5098
    %v5435 = vpack.c.b16 %v5107, %v5099
    %v5436 = vpack.c.b16 %v5108, %v5100
    %v5437 = vpack.c.b16 %v5109, %v5101
    %v5438 = vpack.c.b16 %v5118, %v5110
    %v5439 = vpack.c.b16 %v5119, %v5111
    %v5440 = vpack.c.b16 %v5120, %v5112
    %v5441 = vpack.c.b16 %v5121, %v5113
    %v5442 = vpack.c.b16 %v5122, %v5114
    %v5443 = vpack.c.b16 %v5123, %v5115
    %v5444 = vpack.c.b16 %v5124, %v5116
    %v5445 = vpack.c.b16 %v5125, %v5117
    %v5446 = vpack.c.b16 %v5134, %v5126
    %v5447 = vpack.c.b16 %v5135, %v5127
    %v5448 = vpack.c.b16 %v5136, %v5128
    %v5449 = vpack.c.b16 %v5137, %v5129
    %v5450 = vpack.c.b16 %v5138, %v5130
    %v5451 = vpack.c.b16 %v5139, %v5131
    %v5452 = vpack.c.b16 %v5140, %v5132
    %v5453 = vpack.c.b16 %v5141, %v5133
    %v5454 = vpack.c.b16 %v5150, %v5142
    %v5455 = vpack.c.b16 %v5151, %v5143
    %v5456 = vpack.c.b16 %v5152, %v5144
    %v5457 = vpack.c.b16 %v5153, %v5145
    %v5458 = vpack.c.b16 %v5154, %v5146
    %v5459 = vpack.c.b16 %v5155, %v5147
    %v5460 = vpack.c.b16 %v5156, %v5148
    %v5461 = vpack.c.b16 %v5157, %v5149
    %v5462 = vpack.c.b16 %v5166, %v5158
    %v5463 = vpack.c.b16 %v5167, %v5159
    %v5464 = vpack.c.b16 %v5168, %v5160
    %v5465 = vpack.c.b16 %v5169, %v5161
    %v5466 = vpack.c.b16 %v5170, %v5162
    %v5467 = vpack.c.b16 %v5171, %v5163
    %v5468 = vpack.c.b16 %v5172, %v5164
    %v5469 = vpack.c.b16 %v5173, %v5165
    %v5470 = vpack.c.b16 %v5182, %v5174
    %v5471 = vpack.c.b16 %v5183, %v5175
    %v5472 = vpack.c.b16 %v5184, %v5176
    %v5473 = vpack.c.b16 %v5185, %v5177
    %v5474 = vpack.c.b16 %v5186, %v5178
    %v5475 = vpack.c.b16 %v5187, %v5179
    %v5476 = vpack.c.b16 %v5188, %v5180
    %v5477 = vpack.c.b16 %v5189, %v5181
    %v5478 = vpack.c.b16 %v5198, %v5190
    %v5479 = vpack.c.b16 %v5199, %v5191
    %v5480 = vpack.c.b16 %v5200, %v5192
    %v5481 = vpack.c.b16 %v5201, %v5193
    %v5482 = vpack.c.b16 %v5202, %v5194
    %v5483 = vpack.c.b16 %v5203, %v5195
    %v5484 = vpack.c.b16 %v5204, %v5196
    %v5485 = vpack.c.b16 %v5205, %v5197
    %v5486 = vpack.c.b16 %v5214, %v5206
    %v5487 = vpack.c.b16 %v5215, %v5207
    %v5488 = vpack.c.b16 %v5216, %v5208
    %v5489 = vpack.c.b16 %v5217, %v5209
    %v5490 = vpack.c.b16 %v5218, %v5210
    %v5491 = vpack.c.b16 %v5219, %v5211
    %v5492 = vpack.c.b16 %v5220, %v5212
    %v5493 = vpack.c.b16 %v5221, %v5213
    %v5494 = vpack.c.b16 %v5230, %v5222
    %v5495 = vpack.c.b16 %v5231, %v5223
    %v5496 = vpack.c.b16 %v5232, %v5224
    %v5497 = vpack.c.b16 %v5233, %v5225
    %v5498 = vpack.c.b16 %v5234, %v5226
    %v5499 = vpack.c.b16 %v5235, %v5227
    %v5500 = vpack.c.b16 %v5236, %v5228
    %v5501 = vpack.c.b16 %v5237, %v5229
    %v5502 = vpack.c.b16 %v5246, %v5238
    %v5503 = vpack.c.b16 %v5247, %v5239
    %v5504 = vpack.c.b16 %v5248, %v5240
    %v5505 = vpack.c.b16 %v5249, %v5241
    %v5506 = vpack.c.b16 %v5250, %v5242
    %v5507 = vpack.c.b16 %v5251, %v5243
    %v5508 = vpack.c.b16 %v5252, %v5244
    %v5509 = vpack.c.b16 %v5253, %v5245
    %5766 = vmatprep.subr.bf16.mxu0 %v5255
    %5767 = vmatpush1.bf16.msra.mxu0 %v5254
    %5768 = vmatprep.subr.bf16.mxu0 %v5263
    %5769 = vmatpush1.bf16.msra.mxu0 %v5262
    %5770 = vmatprep.subr.bf16.mxu0 %v5271
    %5771 = vmatpush1.bf16.msra.mxu0 %v5270
    %5772 = vmatprep.subr.bf16.mxu0 %v5279
    %5773 = vmatpush1.bf16.msra.mxu0 %v5278
    %5774 = vmatprep.subr.bf16.mxu0 %v5287
    %5775 = vmatpush1.bf16.msra.mxu0 %v5286
    %5776 = vmatprep.subr.bf16.mxu0 %v5295
    %5777 = vmatpush1.bf16.msra.mxu0 %v5294
    %5778 = vmatprep.subr.bf16.mxu0 %v5303
    %5779 = vmatpush1.bf16.msra.mxu0 %v5302
    %5780 = vmatprep.subr.bf16.mxu0 %v5311
    %5781 = vmatpush1.bf16.msra.mxu0 %v5310
    %5782 = vmatprep.subr.bf16.mxu0 %v5319
    %5783 = vmatpush1.bf16.msra.mxu0 %v5318
    %5784 = vmatprep.subr.bf16.mxu0 %v5327
    %5785 = vmatpush1.bf16.msra.mxu0 %v5326
    %5786 = vmatprep.subr.bf16.mxu0 %v5335
    %5787 = vmatpush1.bf16.msra.mxu0 %v5334
    %5788 = vmatprep.subr.bf16.mxu0 %v5343
    %5789 = vmatpush1.bf16.msra.mxu0 %v5342
    %5790 = vmatprep.subr.bf16.mxu0 %v5351
    %5791 = vmatpush1.bf16.msra.mxu0 %v5350
    %5792 = vmatprep.subr.bf16.mxu0 %v5359
    %5793 = vmatpush1.bf16.msra.mxu0 %v5358
    %5794 = vmatprep.subr.bf16.mxu0 %v5367
    %5795 = vmatpush1.bf16.msra.mxu0 %v5366
    %5796 = vmatprep.subr.bf16.mxu0 %v5375
    %5797 = vmatpush1.bf16.msra.mxu0 %v5374
    %5798 = vmatprep.mubr.bf16.mxu0 %v4413
    %5799 = vmatmul.mubr.bf16.gmra.mrb[0].mxu0 %v4412
    %v5800 = vpop.f32.mrb[0].mxu0
    %v5801 = vadd.f32 %v4449, %v5800
    %v5802 = vpop.f32.mrb[0].mxu0
    %v5803 = vadd.f32 %v4453, %v5802
    %v5804 = vpop.f32.mrb[0].mxu0
    %v5805 = vadd.f32 %v4449, %v5804
    %v5806 = vpop.f32.mrb[0].mxu0
    %v5807 = vadd.f32 %v4453, %v5806
    %5808 = vmatprep.mubr.bf16.mxu0 %v4417
    %5809 = vmatmul.mubr.bf16.gmra.mrb[0].mxu0 %v4416
    %v5810 = vpop.f32.mrb[0].mxu0
    %v5811 = vadd.f32 %v4449, %v5810
    %v5812 = vpop.f32.mrb[0].mxu0
    %v5813 = vadd.f32 %v4453, %v5812
    %v5814 = vpop.f32.mrb[0].mxu0
    %v5815 = vadd.f32 %v4449, %v5814
    %v5816 = vpop.f32.mrb[0].mxu0
    %v5817 = vadd.f32 %v4453, %v5816
    %5818 = vmatprep.mubr.bf16.mxu0 %v4421
    %5819 = vmatmul.mubr.bf16.gmra.mrb[0].mxu0 %v4420
    %v5820 = vpop.f32.mrb[0].mxu0
    %v5821 = vadd.f32 %v4449, %v5820
    %v5822 = vpop.f32.mrb[0].mxu0
    %v5823 = vadd.f32 %v4453, %v5822
    %v5824 = vpop.f32.mrb[0].mxu0
    %v5825 = vadd.f32 %v4449, %v5824
    %v5826 = vpop.f32.mrb[0].mxu0
    %v5827 = vadd.f32 %v4453, %v5826
    %5828 = vmatprep.mubr.bf16.mxu0 %v4425
    %5829 = vmatmul.mubr.bf16.gmra.mrb[0].mxu0 %v4424
    %v5830 = vpop.f32.mrb[0].mxu0
    %v5831 = vadd.f32 %v4449, %v5830
    %v5832 = vpop.f32.mrb[0].mxu0
    %v5833 = vadd.f32 %v4453, %v5832
    %v5834 = vpop.f32.mrb[0].mxu0
    %v5835 = vadd.f32 %v4449, %v5834
    %v5836 = vpop.f32.mrb[0].mxu0
    %v5837 = vadd.f32 %v4453, %v5836
    %5838 = vmatprep.mubr.bf16.mxu0 %v4429
    %5839 = vmatmul.mubr.bf16.gmra.mrb[0].mxu0 %v4428
    %v5840 = vpop.f32.mrb[0].mxu0
    %v5841 = vadd.f32 %v4449, %v5840
    %v5842 = vpop.f32.mrb[0].mxu0
    %v5843 = vadd.f32 %v4453, %v5842
    %v5844 = vpop.f32.mrb[0].mxu0
    %v5845 = vadd.f32 %v4449, %v5844
    %v5846 = vpop.f32.mrb[0].mxu0
    %v5847 = vadd.f32 %v4453, %v5846
    %5848 = vmatprep.mubr.bf16.mxu0 %v4433
    %5849 = vmatmul.mubr.bf16.gmra.mrb[0].mxu0 %v4432
    %v5850 = vpop.f32.mrb[0].mxu0
    %v5851 = vadd.f32 %v4449, %v5850
    %v5852 = vpop.f32.mrb[0].mxu0
    %v5853 = vadd.f32 %v4453, %v5852
    %v5854 = vpop.f32.mrb[0].mxu0
    %v5855 = vadd.f32 %v4449, %v5854
    %v5856 = vpop.f32.mrb[0].mxu0
    %v5857 = vadd.f32 %v4453, %v5856
    %5858 = vmatprep.mubr.bf16.mxu0 %v4437
    %5859 = vmatmul.mubr.bf16.gmra.mrb[0].mxu0 %v4436
    %v5860 = vpop.f32.mrb[0].mxu0
    %v5861 = vadd.f32 %v4449, %v5860
    %v5862 = vpop.f32.mrb[0].mxu0
    %v5863 = vadd.f32 %v4453, %v5862
    %v5864 = vpop.f32.mrb[0].mxu0
    %v5865 = vadd.f32 %v4449, %v5864
    %v5866 = vpop.f32.mrb[0].mxu0
    %v5867 = vadd.f32 %v4453, %v5866
    %5868 = vmatprep.mubr.bf16.mxu0 %v4441
    %5869 = vmatmul.mubr.bf16.gmra.mrb[0].mxu0 %v4440
    %v5870 = vpop.f32.mrb[0].mxu0
    %v5871 = vadd.f32 %v4449, %v5870
    %v5872 = vpop.f32.mrb[0].mxu0
    %v5873 = vadd.f32 %v4453, %v5872
    %v5874 = vpop.f32.mrb[0].mxu0
    %v5875 = vadd.f32 %v4449, %v5874
    %v5876 = vpop.f32.mrb[0].mxu0
    %v5877 = vadd.f32 %v4453, %v5876
    %5878 = vdwg.mxu0
    %5879 = vmatprep.subr.bf16.mxu0 %v5383
    %5880 = vmatpush1.bf16.msra.mxu0 %v5382
    %5881 = vmatprep.subr.bf16.mxu0 %v5391
    %5882 = vmatpush1.bf16.msra.mxu0 %v5390
    %5883 = vmatprep.subr.bf16.mxu0 %v5399
    %5884 = vmatpush1.bf16.msra.mxu0 %v5398
    %5885 = vmatprep.subr.bf16.mxu0 %v5407
    %5886 = vmatpush1.bf16.msra.mxu0 %v5406
    %5887 = vmatprep.subr.bf16.mxu0 %v5415
    %5888 = vmatpush1.bf16.msra.mxu0 %v5414
    %5889 = vmatprep.subr.bf16.mxu0 %v5423
    %5890 = vmatpush1.bf16.msra.mxu0 %v5422
    %5891 = vmatprep.subr.bf16.mxu0 %v5431
    %5892 = vmatpush1.bf16.msra.mxu0 %v5430
    %5893 = vmatprep.subr.bf16.mxu0 %v5439
    %5894 = vmatpush1.bf16.msra.mxu0 %v5438
    %5895 = vmatprep.subr.bf16.mxu0 %v5447
    %5896 = vmatpush1.bf16.msra.mxu0 %v5446
    %5897 = vmatprep.subr.bf16.mxu0 %v5455
    %5898 = vmatpush1.bf16.msra.mxu0 %v5454
    %5899 = vmatprep.subr.bf16.mxu0 %v5463
    %5900 = vmatpush1.bf16.msra.mxu0 %v5462
    %5901 = vmatprep.subr.bf16.mxu0 %v5471
    %5902 = vmatpush1.bf16.msra.mxu0 %v5470
    %5903 = vmatprep.subr.bf16.mxu0 %v5479
    %5904 = vmatpush1.bf16.msra.mxu0 %v5478
    %5905 = vmatprep.subr.bf16.mxu0 %v5487
    %5906 = vmatpush1.bf16.msra.mxu0 %v5486
    %5907 = vmatprep.subr.bf16.mxu0 %v5495
    %5908 = vmatpush1.bf16.msra.mxu0 %v5494
    %5909 = vmatprep.subr.bf16.mxu0 %v5503
    %5910 = vmatpush1.bf16.msra.mxu0 %v5502
    %5911 = vmatprep.mubr.bf16.mxu0 %v4415
    %5912 = vmatmul.mubr.bf16.gmra.mrb[0].mxu0 %v4414
    %v5913 = vpop.f32.mrb[0].mxu0
    %v5914 = vadd.f32 %v5801, %v5913
    %v5915 = vpop.f32.mrb[0].mxu0
    %v5916 = vadd.f32 %v5803, %v5915
    %v5917 = vpop.f32.mrb[0].mxu0
    %v5918 = vadd.f32 %v5805, %v5917
    %v5919 = vpop.f32.mrb[0].mxu0
    %v5920 = vadd.f32 %v5807, %v5919
    %5921 = vmatprep.mubr.bf16.mxu0 %v4419
    %5922 = vmatmul.mubr.bf16.gmra.mrb[0].mxu0 %v4418
    %v5923 = vpop.f32.mrb[0].mxu0
    %v5924 = vadd.f32 %v5811, %v5923
    %v5925 = vpop.f32.mrb[0].mxu0
    %v5926 = vadd.f32 %v5813, %v5925
    %v5927 = vpop.f32.mrb[0].mxu0
    %v5928 = vadd.f32 %v5815, %v5927
    %v5929 = vpop.f32.mrb[0].mxu0
    %v5930 = vadd.f32 %v5817, %v5929
    %5931 = vmatprep.mubr.bf16.mxu0 %v4423
    %5932 = vmatmul.mubr.bf16.gmra.mrb[0].mxu0 %v4422
    %v5933 = vpop.f32.mrb[0].mxu0
    %v5934 = vadd.f32 %v5821, %v5933
    %v5935 = vpop.f32.mrb[0].mxu0
    %v5936 = vadd.f32 %v5823, %v5935
    %v5937 = vpop.f32.mrb[0].mxu0
    %v5938 = vadd.f32 %v5825, %v5937
    %v5939 = vpop.f32.mrb[0].mxu0
    %v5940 = vadd.f32 %v5827, %v5939
    %5941 = vmatprep.mubr.bf16.mxu0 %v4427
    %5942 = vmatmul.mubr.bf16.gmra.mrb[0].mxu0 %v4426
    %v5943 = vpop.f32.mrb[0].mxu0
    %v5944 = vadd.f32 %v5831, %v5943
    %v5945 = vpop.f32.mrb[0].mxu0
    %v5946 = vadd.f32 %v5833, %v5945
    %v5947 = vpop.f32.mrb[0].mxu0
    %v5948 = vadd.f32 %v5835, %v5947
    %v5949 = vpop.f32.mrb[0].mxu0
    %v5950 = vadd.f32 %v5837, %v5949
    %5951 = vmatprep.mubr.bf16.mxu0 %v4431
    %5952 = vmatmul.mubr.bf16.gmra.mrb[0].mxu0 %v4430
    %v5953 = vpop.f32.mrb[0].mxu0
    %v5954 = vadd.f32 %v5841, %v5953
    %v5955 = vpop.f32.mrb[0].mxu0
    %v5956 = vadd.f32 %v5843, %v5955
    %v5957 = vpop.f32.mrb[0].mxu0
    %v5958 = vadd.f32 %v5845, %v5957
    %v5959 = vpop.f32.mrb[0].mxu0
    %v5960 = vadd.f32 %v5847, %v5959
    %5961 = vmatprep.mubr.bf16.mxu0 %v4435
    %5962 = vmatmul.mubr.bf16.gmra.mrb[0].mxu0 %v4434
    %v5963 = vpop.f32.mrb[0].mxu0
    %v5964 = vadd.f32 %v5851, %v5963
    %v5965 = vpop.f32.mrb[0].mxu0
    %v5966 = vadd.f32 %v5853, %v5965
    %v5967 = vpop.f32.mrb[0].mxu0
    %v5968 = vadd.f32 %v5855, %v5967
    %v5969 = vpop.f32.mrb[0].mxu0
    %v5970 = vadd.f32 %v5857, %v5969
    %5971 = vmatprep.mubr.bf16.mxu0 %v4439
    %5972 = vmatmul.mubr.bf16.gmra.mrb[0].mxu0 %v4438
    %v5973 = vpop.f32.mrb[0].mxu0
    %v5974 = vadd.f32 %v5861, %v5973
    %v5975 = vpop.f32.mrb[0].mxu0
    %v5976 = vadd.f32 %v5863, %v5975
    %v5977 = vpop.f32.mrb[0].mxu0
    %v5978 = vadd.f32 %v5865, %v5977
    %v5979 = vpop.f32.mrb[0].mxu0
    %v5980 = vadd.f32 %v5867, %v5979
    %5981 = vmatprep.mubr.bf16.mxu0 %v4443
    %5982 = vmatmul.mubr.bf16.gmra.mrb[0].mxu0 %v4442
    %v5983 = vpop.f32.mrb[0].mxu0
    %v5984 = vadd.f32 %v5871, %v5983
    %v5985 = vpop.f32.mrb[0].mxu0
    %v5986 = vadd.f32 %v5873, %v5985
    %v5987 = vpop.f32.mrb[0].mxu0
    %v5988 = vadd.f32 %v5875, %v5987
    %v5989 = vpop.f32.mrb[0].mxu0
    %v5990 = vadd.f32 %v5877, %v5989
    %5991 = vdwg.mxu0
    %5992 = vmatprep.subr.bf16.mxu0 %v5257
    %5993 = vmatpush1.bf16.msra.mxu0 %v5256
    %5994 = vmatprep.subr.bf16.mxu0 %v5265
    %5995 = vmatpush1.bf16.msra.mxu0 %v5264
    %5996 = vmatprep.subr.bf16.mxu0 %v5273
    %5997 = vmatpush1.bf16.msra.mxu0 %v5272
    %5998 = vmatprep.subr.bf16.mxu0 %v5281
    %5999 = vmatpush1.bf16.msra.mxu0 %v5280
    %6000 = vmatprep.subr.bf16.mxu0 %v5289
    %6001 = vmatpush1.bf16.msra.mxu0 %v5288
    %6002 = vmatprep.subr.bf16.mxu0 %v5297
    %6003 = vmatpush1.bf16.msra.mxu0 %v5296
    %6004 = vmatprep.subr.bf16.mxu0 %v5305
    %6005 = vmatpush1.bf16.msra.mxu0 %v5304
    %6006 = vmatprep.subr.bf16.mxu0 %v5313
    %6007 = vmatpush1.bf16.msra.mxu0 %v5312
    %6008 = vmatprep.subr.bf16.mxu0 %v5321
    %6009 = vmatpush1.bf16.msra.mxu0 %v5320
    %6010 = vmatprep.subr.bf16.mxu0 %v5329
    %6011 = vmatpush1.bf16.msra.mxu0 %v5328
    %6012 = vmatprep.subr.bf16.mxu0 %v5337
    %6013 = vmatpush1.bf16.msra.mxu0 %v5336
    %6014 = vmatprep.subr.bf16.mxu0 %v5345
    %6015 = vmatpush1.bf16.msra.mxu0 %v5344
    %6016 = vmatprep.subr.bf16.mxu0 %v5353
    %6017 = vmatpush1.bf16.msra.mxu0 %v5352
    %6018 = vmatprep.subr.bf16.mxu0 %v5361
    %6019 = vmatpush1.bf16.msra.mxu0 %v5360
    %6020 = vmatprep.subr.bf16.mxu0 %v5369
    %6021 = vmatpush1.bf16.msra.mxu0 %v5368
    %6022 = vmatprep.subr.bf16.mxu0 %v5377
    %6023 = vmatpush1.bf16.msra.mxu0 %v5376
    %6024 = vmatprep.mubr.bf16.mxu0 %v4413
    %6025 = vmatmul.mubr.bf16.gmra.mrb[0].mxu0 %v4412
    %v6026 = vpop.f32.mrb[0].mxu0
    %v6027 = vadd.f32 %v4457, %v6026
    %v6028 = vpop.f32.mrb[0].mxu0
    %v6029 = vadd.f32 %v4461, %v6028
    %v6030 = vpop.f32.mrb[0].mxu0
    %v6031 = vadd.f32 %v4457, %v6030
    %v6032 = vpop.f32.mrb[0].mxu0
    %v6033 = vadd.f32 %v4461, %v6032
    %6034 = vmatprep.mubr.bf16.mxu0 %v4417
    %6035 = vmatmul.mubr.bf16.gmra.mrb[0].mxu0 %v4416
    %v6036 = vpop.f32.mrb[0].mxu0
    %v6037 = vadd.f32 %v4457, %v6036
    %v6038 = vpop.f32.mrb[0].mxu0
    %v6039 = vadd.f32 %v4461, %v6038
    %v6040 = vpop.f32.mrb[0].mxu0
    %v6041 = vadd.f32 %v4457, %v6040
    %v6042 = vpop.f32.mrb[0].mxu0
    %v6043 = vadd.f32 %v4461, %v6042
    %6044 = vmatprep.mubr.bf16.mxu0 %v4421
    %6045 = vmatmul.mubr.bf16.gmra.mrb[0].mxu0 %v4420
    %v6046 = vpop.f32.mrb[0].mxu0
    %v6047 = vadd.f32 %v4457, %v6046
    %v6048 = vpop.f32.mrb[0].mxu0
    %v6049 = vadd.f32 %v4461, %v6048
    %v6050 = vpop.f32.mrb[0].mxu0
    %v6051 = vadd.f32 %v4457, %v6050
    %v6052 = vpop.f32.mrb[0].mxu0
    %v6053 = vadd.f32 %v4461, %v6052
    %6054 = vmatprep.mubr.bf16.mxu0 %v4425
    %6055 = vmatmul.mubr.bf16.gmra.mrb[0].mxu0 %v4424
    %v6056 = vpop.f32.mrb[0].mxu0
    %v6057 = vadd.f32 %v4457, %v6056
    %v6058 = vpop.f32.mrb[0].mxu0
    %v6059 = vadd.f32 %v4461, %v6058
    %v6060 = vpop.f32.mrb[0].mxu0
    %v6061 = vadd.f32 %v4457, %v6060
    %v6062 = vpop.f32.mrb[0].mxu0
    %v6063 = vadd.f32 %v4461, %v6062
    %6064 = vmatprep.mubr.bf16.mxu0 %v4429
    %6065 = vmatmul.mubr.bf16.gmra.mrb[0].mxu0 %v4428
    %v6066 = vpop.f32.mrb[0].mxu0
    %v6067 = vadd.f32 %v4457, %v6066
    %v6068 = vpop.f32.mrb[0].mxu0
    %v6069 = vadd.f32 %v4461, %v6068
    %v6070 = vpop.f32.mrb[0].mxu0
    %v6071 = vadd.f32 %v4457, %v6070
    %v6072 = vpop.f32.mrb[0].mxu0
    %v6073 = vadd.f32 %v4461, %v6072
    %6074 = vmatprep.mubr.bf16.mxu0 %v4433
    %6075 = vmatmul.mubr.bf16.gmra.mrb[0].mxu0 %v4432
    %v6076 = vpop.f32.mrb[0].mxu0
    %v6077 = vadd.f32 %v4457, %v6076
    %v6078 = vpop.f32.mrb[0].mxu0
    %v6079 = vadd.f32 %v4461, %v6078
    %v6080 = vpop.f32.mrb[0].mxu0
    %v6081 = vadd.f32 %v4457, %v6080
    %v6082 = vpop.f32.mrb[0].mxu0
    %v6083 = vadd.f32 %v4461, %v6082
    %6084 = vmatprep.mubr.bf16.mxu0 %v4437
    %6085 = vmatmul.mubr.bf16.gmra.mrb[0].mxu0 %v4436
    %v6086 = vpop.f32.mrb[0].mxu0
    %v6087 = vadd.f32 %v4457, %v6086
    %v6088 = vpop.f32.mrb[0].mxu0
    %v6089 = vadd.f32 %v4461, %v6088
    %v6090 = vpop.f32.mrb[0].mxu0
    %v6091 = vadd.f32 %v4457, %v6090
    %v6092 = vpop.f32.mrb[0].mxu0
    %v6093 = vadd.f32 %v4461, %v6092
    %6094 = vmatprep.mubr.bf16.mxu0 %v4441
    %6095 = vmatmul.mubr.bf16.gmra.mrb[0].mxu0 %v4440
    %v6096 = vpop.f32.mrb[0].mxu0
    %v6097 = vadd.f32 %v4457, %v6096
    %v6098 = vpop.f32.mrb[0].mxu0
    %v6099 = vadd.f32 %v4461, %v6098
    %v6100 = vpop.f32.mrb[0].mxu0
    %v6101 = vadd.f32 %v4457, %v6100
    %v6102 = vpop.f32.mrb[0].mxu0
    %v6103 = vadd.f32 %v4461, %v6102
    %6104 = vdwg.mxu0
    %6105 = vmatprep.subr.bf16.mxu0 %v5385
    %6106 = vmatpush1.bf16.msra.mxu0 %v5384
    %6107 = vmatprep.subr.bf16.mxu0 %v5393
    %6108 = vmatpush1.bf16.msra.mxu0 %v5392
    %6109 = vmatprep.subr.bf16.mxu0 %v5401
    %6110 = vmatpush1.bf16.msra.mxu0 %v5400
    %6111 = vmatprep.subr.bf16.mxu0 %v5409
    %6112 = vmatpush1.bf16.msra.mxu0 %v5408
    %6113 = vmatprep.subr.bf16.mxu0 %v5417
    %6114 = vmatpush1.bf16.msra.mxu0 %v5416
    %6115 = vmatprep.subr.bf16.mxu0 %v5425
    %6116 = vmatpush1.bf16.msra.mxu0 %v5424
    %6117 = vmatprep.subr.bf16.mxu0 %v5433
    %6118 = vmatpush1.bf16.msra.mxu0 %v5432
    %6119 = vmatprep.subr.bf16.mxu0 %v5441
    %6120 = vmatpush1.bf16.msra.mxu0 %v5440
    %6121 = vmatprep.subr.bf16.mxu0 %v5449
    %6122 = vmatpush1.bf16.msra.mxu0 %v5448
    %6123 = vmatprep.subr.bf16.mxu0 %v5457
    %6124 = vmatpush1.bf16.msra.mxu0 %v5456
    %6125 = vmatprep.subr.bf16.mxu0 %v5465
    %6126 = vmatpush1.bf16.msra.mxu0 %v5464
    %6127 = vmatprep.subr.bf16.mxu0 %v5473
    %6128 = vmatpush1.bf16.msra.mxu0 %v5472
    %6129 = vmatprep.subr.bf16.mxu0 %v5481
    %6130 = vmatpush1.bf16.msra.mxu0 %v5480
    %6131 = vmatprep.subr.bf16.mxu0 %v5489
    %6132 = vmatpush1.bf16.msra.mxu0 %v5488
    %6133 = vmatprep.subr.bf16.mxu0 %v5497
    %6134 = vmatpush1.bf16.msra.mxu0 %v5496
    %6135 = vmatprep.subr.bf16.mxu0 %v5505
    %6136 = vmatpush1.bf16.msra.mxu0 %v5504
    %6137 = vmatprep.mubr.bf16.mxu0 %v4415
    %6138 = vmatmul.mubr.bf16.gmra.mrb[0].mxu0 %v4414
    %v6139 = vpop.f32.mrb[0].mxu0
    %v6140 = vadd.f32 %v6027, %v6139
    %v6141 = vpop.f32.mrb[0].mxu0
    %v6142 = vadd.f32 %v6029, %v6141
    %v6143 = vpop.f32.mrb[0].mxu0
    %v6144 = vadd.f32 %v6031, %v6143
    %v6145 = vpop.f32.mrb[0].mxu0
    %v6146 = vadd.f32 %v6033, %v6145
    %6147 = vmatprep.mubr.bf16.mxu0 %v4419
    %6148 = vmatmul.mubr.bf16.gmra.mrb[0].mxu0 %v4418
    %v6149 = vpop.f32.mrb[0].mxu0
    %v6150 = vadd.f32 %v6037, %v6149
    %v6151 = vpop.f32.mrb[0].mxu0
    %v6152 = vadd.f32 %v6039, %v6151
    %v6153 = vpop.f32.mrb[0].mxu0
    %v6154 = vadd.f32 %v6041, %v6153
    %v6155 = vpop.f32.mrb[0].mxu0
    %v6156 = vadd.f32 %v6043, %v6155
    %6157 = vmatprep.mubr.bf16.mxu0 %v4423
    %6158 = vmatmul.mubr.bf16.gmra.mrb[0].mxu0 %v4422
    %v6159 = vpop.f32.mrb[0].mxu0
    %v6160 = vadd.f32 %v6047, %v6159
    %v6161 = vpop.f32.mrb[0].mxu0
    %v6162 = vadd.f32 %v6049, %v6161
    %v6163 = vpop.f32.mrb[0].mxu0
    %v6164 = vadd.f32 %v6051, %v6163
    %v6165 = vpop.f32.mrb[0].mxu0
    %v6166 = vadd.f32 %v6053, %v6165
    %6167 = vmatprep.mubr.bf16.mxu0 %v4427
    %6168 = vmatmul.mubr.bf16.gmra.mrb[0].mxu0 %v4426
    %v6169 = vpop.f32.mrb[0].mxu0
    %v6170 = vadd.f32 %v6057, %v6169
    %v6171 = vpop.f32.mrb[0].mxu0
    %v6172 = vadd.f32 %v6059, %v6171
    %v6173 = vpop.f32.mrb[0].mxu0
    %v6174 = vadd.f32 %v6061, %v6173
    %v6175 = vpop.f32.mrb[0].mxu0
    %v6176 = vadd.f32 %v6063, %v6175
    %6177 = vmatprep.mubr.bf16.mxu0 %v4431
    %6178 = vmatmul.mubr.bf16.gmra.mrb[0].mxu0 %v4430
    %v6179 = vpop.f32.mrb[0].mxu0
    %v6180 = vadd.f32 %v6067, %v6179
    %v6181 = vpop.f32.mrb[0].mxu0
    %v6182 = vadd.f32 %v6069, %v6181
    %v6183 = vpop.f32.mrb[0].mxu0
    %v6184 = vadd.f32 %v6071, %v6183
    %v6185 = vpop.f32.mrb[0].mxu0
    %v6186 = vadd.f32 %v6073, %v6185
    %6187 = vmatprep.mubr.bf16.mxu0 %v4435
    %6188 = vmatmul.mubr.bf16.gmra.mrb[0].mxu0 %v4434
    %v6189 = vpop.f32.mrb[0].mxu0
    %v6190 = vadd.f32 %v6077, %v6189
    %v6191 = vpop.f32.mrb[0].mxu0
    %v6192 = vadd.f32 %v6079, %v6191
    %v6193 = vpop.f32.mrb[0].mxu0
    %v6194 = vadd.f32 %v6081, %v6193
    %v6195 = vpop.f32.mrb[0].mxu0
    %v6196 = vadd.f32 %v6083, %v6195
    %6197 = vmatprep.mubr.bf16.mxu0 %v4439
    %6198 = vmatmul.mubr.bf16.gmra.mrb[0].mxu0 %v4438
    %v6199 = vpop.f32.mrb[0].mxu0
    %v6200 = vadd.f32 %v6087, %v6199
    %v6201 = vpop.f32.mrb[0].mxu0
    %v6202 = vadd.f32 %v6089, %v6201
    %v6203 = vpop.f32.mrb[0].mxu0
    %v6204 = vadd.f32 %v6091, %v6203
    %v6205 = vpop.f32.mrb[0].mxu0
    %v6206 = vadd.f32 %v6093, %v6205
    %6207 = vmatprep.mubr.bf16.mxu0 %v4443
    %6208 = vmatmul.mubr.bf16.gmra.mrb[0].mxu0 %v4442
    %v6209 = vpop.f32.mrb[0].mxu0
    %v6210 = vadd.f32 %v6097, %v6209
    %v6211 = vpop.f32.mrb[0].mxu0
    %v6212 = vadd.f32 %v6099, %v6211
    %v6213 = vpop.f32.mrb[0].mxu0
    %v6214 = vadd.f32 %v6101, %v6213
    %v6215 = vpop.f32.mrb[0].mxu0
    %v6216 = vadd.f32 %v6103, %v6215
    %6217 = vdwg.mxu0
    %6218 = vmatprep.subr.bf16.mxu0 %v5259
    %6219 = vmatpush1.bf16.msra.mxu0 %v5258
    %6220 = vmatprep.subr.bf16.mxu0 %v5267
    %6221 = vmatpush1.bf16.msra.mxu0 %v5266
    %6222 = vmatprep.subr.bf16.mxu0 %v5275
    %6223 = vmatpush1.bf16.msra.mxu0 %v5274
    %6224 = vmatprep.subr.bf16.mxu0 %v5283
    %6225 = vmatpush1.bf16.msra.mxu0 %v5282
    %6226 = vmatprep.subr.bf16.mxu0 %v5291
    %6227 = vmatpush1.bf16.msra.mxu0 %v5290
    %6228 = vmatprep.subr.bf16.mxu0 %v5299
    %6229 = vmatpush1.bf16.msra.mxu0 %v5298
    %6230 = vmatprep.subr.bf16.mxu0 %v5307
    %6231 = vmatpush1.bf16.msra.mxu0 %v5306
    %6232 = vmatprep.subr.bf16.mxu0 %v5315
    %6233 = vmatpush1.bf16.msra.mxu0 %v5314
    %6234 = vmatprep.subr.bf16.mxu0 %v5323
    %6235 = vmatpush1.bf16.msra.mxu0 %v5322
    %6236 = vmatprep.subr.bf16.mxu0 %v5331
    %6237 = vmatpush1.bf16.msra.mxu0 %v5330
    %6238 = vmatprep.subr.bf16.mxu0 %v5339
    %6239 = vmatpush1.bf16.msra.mxu0 %v5338
    %6240 = vmatprep.subr.bf16.mxu0 %v5347
    %6241 = vmatpush1.bf16.msra.mxu0 %v5346
    %6242 = vmatprep.subr.bf16.mxu0 %v5355
    %6243 = vmatpush1.bf16.msra.mxu0 %v5354
    %6244 = vmatprep.subr.bf16.mxu0 %v5363
    %6245 = vmatpush1.bf16.msra.mxu0 %v5362
    %6246 = vmatprep.subr.bf16.mxu0 %v5371
    %6247 = vmatpush1.bf16.msra.mxu0 %v5370
    %6248 = vmatprep.subr.bf16.mxu0 %v5379
    %6249 = vmatpush1.bf16.msra.mxu0 %v5378
    %6250 = vmatprep.mubr.bf16.mxu0 %v4413
    %6251 = vmatmul.mubr.bf16.gmra.mrb[0].mxu0 %v4412
    %v6252 = vpop.f32.mrb[0].mxu0
    %v6253 = vadd.f32 %v4465, %v6252
    %v6254 = vpop.f32.mrb[0].mxu0
    %v6255 = vadd.f32 %v4469, %v6254
    %v6256 = vpop.f32.mrb[0].mxu0
    %v6257 = vadd.f32 %v4465, %v6256
    %v6258 = vpop.f32.mrb[0].mxu0
    %v6259 = vadd.f32 %v4469, %v6258
    %6260 = vmatprep.mubr.bf16.mxu0 %v4417
    %6261 = vmatmul.mubr.bf16.gmra.mrb[0].mxu0 %v4416
    %v6262 = vpop.f32.mrb[0].mxu0
    %v6263 = vadd.f32 %v4465, %v6262
    %v6264 = vpop.f32.mrb[0].mxu0
    %v6265 = vadd.f32 %v4469, %v6264
    %v6266 = vpop.f32.mrb[0].mxu0
    %v6267 = vadd.f32 %v4465, %v6266
    %v6268 = vpop.f32.mrb[0].mxu0
    %v6269 = vadd.f32 %v4469, %v6268
    %6270 = vmatprep.mubr.bf16.mxu0 %v4421
    %6271 = vmatmul.mubr.bf16.gmra.mrb[0].mxu0 %v4420
    %v6272 = vpop.f32.mrb[0].mxu0
    %v6273 = vadd.f32 %v4465, %v6272
    %v6274 = vpop.f32.mrb[0].mxu0
    %v6275 = vadd.f32 %v4469, %v6274
    %v6276 = vpop.f32.mrb[0].mxu0
    %v6277 = vadd.f32 %v4465, %v6276
    %v6278 = vpop.f32.mrb[0].mxu0
    %v6279 = vadd.f32 %v4469, %v6278
    %6280 = vmatprep.mubr.bf16.mxu0 %v4425
    %6281 = vmatmul.mubr.bf16.gmra.mrb[0].mxu0 %v4424
    %v6282 = vpop.f32.mrb[0].mxu0
    %v6283 = vadd.f32 %v4465, %v6282
    %v6284 = vpop.f32.mrb[0].mxu0
    %v6285 = vadd.f32 %v4469, %v6284
    %v6286 = vpop.f32.mrb[0].mxu0
    %v6287 = vadd.f32 %v4465, %v6286
    %v6288 = vpop.f32.mrb[0].mxu0
    %v6289 = vadd.f32 %v4469, %v6288
    %6290 = vmatprep.mubr.bf16.mxu0 %v4429
    %6291 = vmatmul.mubr.bf16.gmra.mrb[0].mxu0 %v4428
    %v6292 = vpop.f32.mrb[0].mxu0
    %v6293 = vadd.f32 %v4465, %v6292
    %v6294 = vpop.f32.mrb[0].mxu0
    %v6295 = vadd.f32 %v4469, %v6294
    %v6296 = vpop.f32.mrb[0].mxu0
    %v6297 = vadd.f32 %v4465, %v6296
    %v6298 = vpop.f32.mrb[0].mxu0
    %v6299 = vadd.f32 %v4469, %v6298
    %6300 = vmatprep.mubr.bf16.mxu0 %v4433
    %6301 = vmatmul.mubr.bf16.gmra.mrb[0].mxu0 %v4432
    %v6302 = vpop.f32.mrb[0].mxu0
    %v6303 = vadd.f32 %v4465, %v6302
    %v6304 = vpop.f32.mrb[0].mxu0
    %v6305 = vadd.f32 %v4469, %v6304
    %v6306 = vpop.f32.mrb[0].mxu0
    %v6307 = vadd.f32 %v4465, %v6306
    %v6308 = vpop.f32.mrb[0].mxu0
    %v6309 = vadd.f32 %v4469, %v6308
    %6310 = vmatprep.mubr.bf16.mxu0 %v4437
    %6311 = vmatmul.mubr.bf16.gmra.mrb[0].mxu0 %v4436
    %v6312 = vpop.f32.mrb[0].mxu0
    %v6313 = vadd.f32 %v4465, %v6312
    %v6314 = vpop.f32.mrb[0].mxu0
    %v6315 = vadd.f32 %v4469, %v6314
    %v6316 = vpop.f32.mrb[0].mxu0
    %v6317 = vadd.f32 %v4465, %v6316
    %v6318 = vpop.f32.mrb[0].mxu0
    %v6319 = vadd.f32 %v4469, %v6318
    %6320 = vmatprep.mubr.bf16.mxu0 %v4441
    %6321 = vmatmul.mubr.bf16.gmra.mrb[0].mxu0 %v4440
    %v6322 = vpop.f32.mrb[0].mxu0
    %v6323 = vadd.f32 %v4465, %v6322
    %v6324 = vpop.f32.mrb[0].mxu0
    %v6325 = vadd.f32 %v4469, %v6324
    %v6326 = vpop.f32.mrb[0].mxu0
    %v6327 = vadd.f32 %v4465, %v6326
    %v6328 = vpop.f32.mrb[0].mxu0
    %v6329 = vadd.f32 %v4469, %v6328
    %6330 = vdwg.mxu0
    %6331 = vmatprep.subr.bf16.mxu0 %v5387
    %6332 = vmatpush1.bf16.msra.mxu0 %v5386
    %6333 = vmatprep.subr.bf16.mxu0 %v5395
    %6334 = vmatpush1.bf16.msra.mxu0 %v5394
    %6335 = vmatprep.subr.bf16.mxu0 %v5403
    %6336 = vmatpush1.bf16.msra.mxu0 %v5402
    %6337 = vmatprep.subr.bf16.mxu0 %v5411
    %6338 = vmatpush1.bf16.msra.mxu0 %v5410
    %6339 = vmatprep.subr.bf16.mxu0 %v5419
    %6340 = vmatpush1.bf16.msra.mxu0 %v5418
    %6341 = vmatprep.subr.bf16.mxu0 %v5427
    %6342 = vmatpush1.bf16.msra.mxu0 %v5426
    %6343 = vmatprep.subr.bf16.mxu0 %v5435
    %6344 = vmatpush1.bf16.msra.mxu0 %v5434
    %6345 = vmatprep.subr.bf16.mxu0 %v5443
    %6346 = vmatpush1.bf16.msra.mxu0 %v5442
    %6347 = vmatprep.subr.bf16.mxu0 %v5451
    %6348 = vmatpush1.bf16.msra.mxu0 %v5450
    %6349 = vmatprep.subr.bf16.mxu0 %v5459
    %6350 = vmatpush1.bf16.msra.mxu0 %v5458
    %6351 = vmatprep.subr.bf16.mxu0 %v5467
    %6352 = vmatpush1.bf16.msra.mxu0 %v5466
    %6353 = vmatprep.subr.bf16.mxu0 %v5475
    %6354 = vmatpush1.bf16.msra.mxu0 %v5474
    %6355 = vmatprep.subr.bf16.mxu0 %v5483
    %6356 = vmatpush1.bf16.msra.mxu0 %v5482
    %6357 = vmatprep.subr.bf16.mxu0 %v5491
    %6358 = vmatpush1.bf16.msra.mxu0 %v5490
    %6359 = vmatprep.subr.bf16.mxu0 %v5499
    %6360 = vmatpush1.bf16.msra.mxu0 %v5498
    %6361 = vmatprep.subr.bf16.mxu0 %v5507
    %6362 = vmatpush1.bf16.msra.mxu0 %v5506
    %6363 = vmatprep.mubr.bf16.mxu0 %v4415
    %6364 = vmatmul.mubr.bf16.gmra.mrb[0].mxu0 %v4414
    %v6365 = vpop.f32.mrb[0].mxu0
    %v6366 = vadd.f32 %v6253, %v6365
    %v6367 = vpop.f32.mrb[0].mxu0
    %v6368 = vadd.f32 %v6255, %v6367
    %v6369 = vpop.f32.mrb[0].mxu0
    %v6370 = vadd.f32 %v6257, %v6369
    %v6371 = vpop.f32.mrb[0].mxu0
    %v6372 = vadd.f32 %v6259, %v6371
    %6373 = vmatprep.mubr.bf16.mxu0 %v4419
    %6374 = vmatmul.mubr.bf16.gmra.mrb[0].mxu0 %v4418
    %v6375 = vpop.f32.mrb[0].mxu0
    %v6376 = vadd.f32 %v6263, %v6375
    %v6377 = vpop.f32.mrb[0].mxu0
    %v6378 = vadd.f32 %v6265, %v6377
    %v6379 = vpop.f32.mrb[0].mxu0
    %v6380 = vadd.f32 %v6267, %v6379
    %v6381 = vpop.f32.mrb[0].mxu0
    %v6382 = vadd.f32 %v6269, %v6381
    %6383 = vmatprep.mubr.bf16.mxu0 %v4423
    %6384 = vmatmul.mubr.bf16.gmra.mrb[0].mxu0 %v4422
    %v6385 = vpop.f32.mrb[0].mxu0
    %v6386 = vadd.f32 %v6273, %v6385
    %v6387 = vpop.f32.mrb[0].mxu0
    %v6388 = vadd.f32 %v6275, %v6387
    %v6389 = vpop.f32.mrb[0].mxu0
    %v6390 = vadd.f32 %v6277, %v6389
    %v6391 = vpop.f32.mrb[0].mxu0
    %v6392 = vadd.f32 %v6279, %v6391
    %6393 = vmatprep.mubr.bf16.mxu0 %v4427
    %6394 = vmatmul.mubr.bf16.gmra.mrb[0].mxu0 %v4426
    %v6395 = vpop.f32.mrb[0].mxu0
    %v6396 = vadd.f32 %v6283, %v6395
    %v6397 = vpop.f32.mrb[0].mxu0
    %v6398 = vadd.f32 %v6285, %v6397
    %v6399 = vpop.f32.mrb[0].mxu0
    %v6400 = vadd.f32 %v6287, %v6399
    %v6401 = vpop.f32.mrb[0].mxu0
    %v6402 = vadd.f32 %v6289, %v6401
    %6403 = vmatprep.mubr.bf16.mxu0 %v4431
    %6404 = vmatmul.mubr.bf16.gmra.mrb[0].mxu0 %v4430
    %v6405 = vpop.f32.mrb[0].mxu0
    %v6406 = vadd.f32 %v6293, %v6405
    %v6407 = vpop.f32.mrb[0].mxu0
    %v6408 = vadd.f32 %v6295, %v6407
    %v6409 = vpop.f32.mrb[0].mxu0
    %v6410 = vadd.f32 %v6297, %v6409
    %v6411 = vpop.f32.mrb[0].mxu0
    %v6412 = vadd.f32 %v6299, %v6411
    %6413 = vmatprep.mubr.bf16.mxu0 %v4435
    %6414 = vmatmul.mubr.bf16.gmra.mrb[0].mxu0 %v4434
    %v6415 = vpop.f32.mrb[0].mxu0
    %v6416 = vadd.f32 %v6303, %v6415
    %v6417 = vpop.f32.mrb[0].mxu0
    %v6418 = vadd.f32 %v6305, %v6417
    %v6419 = vpop.f32.mrb[0].mxu0
    %v6420 = vadd.f32 %v6307, %v6419
    %v6421 = vpop.f32.mrb[0].mxu0
    %v6422 = vadd.f32 %v6309, %v6421
    %6423 = vmatprep.mubr.bf16.mxu0 %v4439
    %6424 = vmatmul.mubr.bf16.gmra.mrb[0].mxu0 %v4438
    %v6425 = vpop.f32.mrb[0].mxu0
    %v6426 = vadd.f32 %v6313, %v6425
    %v6427 = vpop.f32.mrb[0].mxu0
    %v6428 = vadd.f32 %v6315, %v6427
    %v6429 = vpop.f32.mrb[0].mxu0
    %v6430 = vadd.f32 %v6317, %v6429
    %v6431 = vpop.f32.mrb[0].mxu0
    %v6432 = vadd.f32 %v6319, %v6431
    %6433 = vmatprep.mubr.bf16.mxu0 %v4443
    %6434 = vmatmul.mubr.bf16.gmra.mrb[0].mxu0 %v4442
    %v6435 = vpop.f32.mrb[0].mxu0
    %v6436 = vadd.f32 %v6323, %v6435
    %v6437 = vpop.f32.mrb[0].mxu0
    %v6438 = vadd.f32 %v6325, %v6437
    %v6439 = vpop.f32.mrb[0].mxu0
    %v6440 = vadd.f32 %v6327, %v6439
    %v6441 = vpop.f32.mrb[0].mxu0
    %v6442 = vadd.f32 %v6329, %v6441
    %6443 = vdwg.mxu0
    %6444 = vmatprep.subr.bf16.mxu0 %v5261
    %6445 = vmatpush1.bf16.msra.mxu0 %v5260
    %6446 = vmatprep.subr.bf16.mxu0 %v5269
    %6447 = vmatpush1.bf16.msra.mxu0 %v5268
    %6448 = vmatprep.subr.bf16.mxu0 %v5277
    %6449 = vmatpush1.bf16.msra.mxu0 %v5276
    %6450 = vmatprep.subr.bf16.mxu0 %v5285
    %6451 = vmatpush1.bf16.msra.mxu0 %v5284
    %6452 = vmatprep.subr.bf16.mxu0 %v5293
    %6453 = vmatpush1.bf16.msra.mxu0 %v5292
    %6454 = vmatprep.subr.bf16.mxu0 %v5301
    %6455 = vmatpush1.bf16.msra.mxu0 %v5300
    %6456 = vmatprep.subr.bf16.mxu0 %v5309
    %6457 = vmatpush1.bf16.msra.mxu0 %v5308
    %6458 = vmatprep.subr.bf16.mxu0 %v5317
    %6459 = vmatpush1.bf16.msra.mxu0 %v5316
    %6460 = vmatprep.subr.bf16.mxu0 %v5325
    %6461 = vmatpush1.bf16.msra.mxu0 %v5324
    %6462 = vmatprep.subr.bf16.mxu0 %v5333
    %6463 = vmatpush1.bf16.msra.mxu0 %v5332
    %6464 = vmatprep.subr.bf16.mxu0 %v5341
    %6465 = vmatpush1.bf16.msra.mxu0 %v5340
    %6466 = vmatprep.subr.bf16.mxu0 %v5349
    %6467 = vmatpush1.bf16.msra.mxu0 %v5348
    %6468 = vmatprep.subr.bf16.mxu0 %v5357
    %6469 = vmatpush1.bf16.msra.mxu0 %v5356
    %6470 = vmatprep.subr.bf16.mxu0 %v5365
    %6471 = vmatpush1.bf16.msra.mxu0 %v5364
    %6472 = vmatprep.subr.bf16.mxu0 %v5373
    %6473 = vmatpush1.bf16.msra.mxu0 %v5372
    %6474 = vmatprep.subr.bf16.mxu0 %v5381
    %6475 = vmatpush1.bf16.msra.mxu0 %v5380
    %6476 = vmatprep.mubr.bf16.mxu0 %v4413
    %6477 = vmatmul.mubr.bf16.gmra.mrb[0].mxu0 %v4412
    %v6478 = vpop.f32.mrb[0].mxu0
    %v6479 = vadd.f32 %v4473, %v6478
    %v6480 = vpop.f32.mrb[0].mxu0
    %v6481 = vadd.f32 %v4477, %v6480
    %v6482 = vpop.f32.mrb[0].mxu0
    %v6483 = vadd.f32 %v4473, %v6482
    %v6484 = vpop.f32.mrb[0].mxu0
    %v6485 = vadd.f32 %v4477, %v6484
    %6486 = vmatprep.mubr.bf16.mxu0 %v4417
    %6487 = vmatmul.mubr.bf16.gmra.mrb[0].mxu0 %v4416
    %v6488 = vpop.f32.mrb[0].mxu0
    %v6489 = vadd.f32 %v4473, %v6488
    %v6490 = vpop.f32.mrb[0].mxu0
    %v6491 = vadd.f32 %v4477, %v6490
    %v6492 = vpop.f32.mrb[0].mxu0
    %v6493 = vadd.f32 %v4473, %v6492
    %v6494 = vpop.f32.mrb[0].mxu0
    %v6495 = vadd.f32 %v4477, %v6494
    %6496 = vmatprep.mubr.bf16.mxu0 %v4421
    %6497 = vmatmul.mubr.bf16.gmra.mrb[0].mxu0 %v4420
    %v6498 = vpop.f32.mrb[0].mxu0
    %v6499 = vadd.f32 %v4473, %v6498
    %v6500 = vpop.f32.mrb[0].mxu0
    %v6501 = vadd.f32 %v4477, %v6500
    %v6502 = vpop.f32.mrb[0].mxu0
    %v6503 = vadd.f32 %v4473, %v6502
    %v6504 = vpop.f32.mrb[0].mxu0
    %v6505 = vadd.f32 %v4477, %v6504
    %6506 = vmatprep.mubr.bf16.mxu0 %v4425
    %6507 = vmatmul.mubr.bf16.gmra.mrb[0].mxu0 %v4424
    %v6508 = vpop.f32.mrb[0].mxu0
    %v6509 = vadd.f32 %v4473, %v6508
    %v6510 = vpop.f32.mrb[0].mxu0
    %v6511 = vadd.f32 %v4477, %v6510
    %v6512 = vpop.f32.mrb[0].mxu0
    %v6513 = vadd.f32 %v4473, %v6512
    %v6514 = vpop.f32.mrb[0].mxu0
    %v6515 = vadd.f32 %v4477, %v6514
    %6516 = vmatprep.mubr.bf16.mxu0 %v4429
    %6517 = vmatmul.mubr.bf16.gmra.mrb[0].mxu0 %v4428
    %v6518 = vpop.f32.mrb[0].mxu0
    %v6519 = vadd.f32 %v4473, %v6518
    %v6520 = vpop.f32.mrb[0].mxu0
    %v6521 = vadd.f32 %v4477, %v6520
    %v6522 = vpop.f32.mrb[0].mxu0
    %v6523 = vadd.f32 %v4473, %v6522
    %v6524 = vpop.f32.mrb[0].mxu0
    %v6525 = vadd.f32 %v4477, %v6524
    %6526 = vmatprep.mubr.bf16.mxu0 %v4433
    %6527 = vmatmul.mubr.bf16.gmra.mrb[0].mxu0 %v4432
    %v6528 = vpop.f32.mrb[0].mxu0
    %v6529 = vadd.f32 %v4473, %v6528
    %v6530 = vpop.f32.mrb[0].mxu0
    %v6531 = vadd.f32 %v4477, %v6530
    %v6532 = vpop.f32.mrb[0].mxu0
    %v6533 = vadd.f32 %v4473, %v6532
    %v6534 = vpop.f32.mrb[0].mxu0
    %v6535 = vadd.f32 %v4477, %v6534
    %6536 = vmatprep.mubr.bf16.mxu0 %v4437
    %6537 = vmatmul.mubr.bf16.gmra.mrb[0].mxu0 %v4436
    %v6538 = vpop.f32.mrb[0].mxu0
    %v6539 = vadd.f32 %v4473, %v6538
    %v6540 = vpop.f32.mrb[0].mxu0
    %v6541 = vadd.f32 %v4477, %v6540
    %v6542 = vpop.f32.mrb[0].mxu0
    %v6543 = vadd.f32 %v4473, %v6542
    %v6544 = vpop.f32.mrb[0].mxu0
    %v6545 = vadd.f32 %v4477, %v6544
    %6546 = vmatprep.mubr.bf16.mxu0 %v4441
    %6547 = vmatmul.mubr.bf16.gmra.mrb[0].mxu0 %v4440
    %v6548 = vpop.f32.mrb[0].mxu0
    %v6549 = vadd.f32 %v4473, %v6548
    %v6550 = vpop.f32.mrb[0].mxu0
    %v6551 = vadd.f32 %v4477, %v6550
    %v6552 = vpop.f32.mrb[0].mxu0
    %v6553 = vadd.f32 %v4473, %v6552
    %v6554 = vpop.f32.mrb[0].mxu0
    %v6555 = vadd.f32 %v4477, %v6554
    %6556 = vdwg.mxu0
    %6557 = vmatprep.subr.bf16.mxu0 %v5389
    %6558 = vmatpush1.bf16.msra.mxu0 %v5388
    %6559 = vmatprep.subr.bf16.mxu0 %v5397
    %6560 = vmatpush1.bf16.msra.mxu0 %v5396
    %6561 = vmatprep.subr.bf16.mxu0 %v5405
    %6562 = vmatpush1.bf16.msra.mxu0 %v5404
    %6563 = vmatprep.subr.bf16.mxu0 %v5413
    %6564 = vmatpush1.bf16.msra.mxu0 %v5412
    %6565 = vmatprep.subr.bf16.mxu0 %v5421
    %6566 = vmatpush1.bf16.msra.mxu0 %v5420
    %6567 = vmatprep.subr.bf16.mxu0 %v5429
    %6568 = vmatpush1.bf16.msra.mxu0 %v5428
    %6569 = vmatprep.subr.bf16.mxu0 %v5437
    %6570 = vmatpush1.bf16.msra.mxu0 %v5436
    %6571 = vmatprep.subr.bf16.mxu0 %v5445
    %6572 = vmatpush1.bf16.msra.mxu0 %v5444
    %6573 = vmatprep.subr.bf16.mxu0 %v5453
    %6574 = vmatpush1.bf16.msra.mxu0 %v5452
    %6575 = vmatprep.subr.bf16.mxu0 %v5461
    %6576 = vmatpush1.bf16.msra.mxu0 %v5460
    %6577 = vmatprep.subr.bf16.mxu0 %v5469
    %6578 = vmatpush1.bf16.msra.mxu0 %v5468
    %6579 = vmatprep.subr.bf16.mxu0 %v5477
    %6580 = vmatpush1.bf16.msra.mxu0 %v5476
    %6581 = vmatprep.subr.bf16.mxu0 %v5485
    %6582 = vmatpush1.bf16.msra.mxu0 %v5484
    %6583 = vmatprep.subr.bf16.mxu0 %v5493
    %6584 = vmatpush1.bf16.msra.mxu0 %v5492
    %6585 = vmatprep.subr.bf16.mxu0 %v5501
    %6586 = vmatpush1.bf16.msra.mxu0 %v5500
    %6587 = vmatprep.subr.bf16.mxu0 %v5509
    %6588 = vmatpush1.bf16.msra.mxu0 %v5508
    %6589 = vmatprep.mubr.bf16.mxu0 %v4415
    %6590 = vmatmul.mubr.bf16.gmra.mrb[0].mxu0 %v4414
    %v6591 = vpop.f32.mrb[0].mxu0
    %v6592 = vadd.f32 %v6479, %v6591
    %v6593 = vpop.f32.mrb[0].mxu0
    %v6594 = vadd.f32 %v6481, %v6593
    %v6595 = vpop.f32.mrb[0].mxu0
    %v6596 = vadd.f32 %v6483, %v6595
    %v6597 = vpop.f32.mrb[0].mxu0
    %v6598 = vadd.f32 %v6485, %v6597
    %6599 = vmatprep.mubr.bf16.mxu0 %v4419
    %6600 = vmatmul.mubr.bf16.gmra.mrb[0].mxu0 %v4418
    %v6601 = vpop.f32.mrb[0].mxu0
    %v6602 = vadd.f32 %v6489, %v6601
    %v6603 = vpop.f32.mrb[0].mxu0
    %v6604 = vadd.f32 %v6491, %v6603
    %v6605 = vpop.f32.mrb[0].mxu0
    %v6606 = vadd.f32 %v6493, %v6605
    %v6607 = vpop.f32.mrb[0].mxu0
    %v6608 = vadd.f32 %v6495, %v6607
    %6609 = vmatprep.mubr.bf16.mxu0 %v4423
    %6610 = vmatmul.mubr.bf16.gmra.mrb[0].mxu0 %v4422
    %v6611 = vpop.f32.mrb[0].mxu0
    %v6612 = vadd.f32 %v6499, %v6611
    %v6613 = vpop.f32.mrb[0].mxu0
    %v6614 = vadd.f32 %v6501, %v6613
    %v6615 = vpop.f32.mrb[0].mxu0
    %v6616 = vadd.f32 %v6503, %v6615
    %v6617 = vpop.f32.mrb[0].mxu0
    %v6618 = vadd.f32 %v6505, %v6617
    %6619 = vmatprep.mubr.bf16.mxu0 %v4427
    %6620 = vmatmul.mubr.bf16.gmra.mrb[0].mxu0 %v4426
    %v6621 = vpop.f32.mrb[0].mxu0
    %v6622 = vadd.f32 %v6509, %v6621
    %v6623 = vpop.f32.mrb[0].mxu0
    %v6624 = vadd.f32 %v6511, %v6623
    %v6625 = vpop.f32.mrb[0].mxu0
    %v6626 = vadd.f32 %v6513, %v6625
    %v6627 = vpop.f32.mrb[0].mxu0
    %v6628 = vadd.f32 %v6515, %v6627
    %6629 = vmatprep.mubr.bf16.mxu0 %v4431
    %6630 = vmatmul.mubr.bf16.gmra.mrb[0].mxu0 %v4430
    %v6631 = vpop.f32.mrb[0].mxu0
    %v6632 = vadd.f32 %v6519, %v6631
    %v6633 = vpop.f32.mrb[0].mxu0
    %v6634 = vadd.f32 %v6521, %v6633
    %v6635 = vpop.f32.mrb[0].mxu0
    %v6636 = vadd.f32 %v6523, %v6635
    %v6637 = vpop.f32.mrb[0].mxu0
    %v6638 = vadd.f32 %v6525, %v6637
    %6639 = vmatprep.mubr.bf16.mxu0 %v4435
    %6640 = vmatmul.mubr.bf16.gmra.mrb[0].mxu0 %v4434
    %v6641 = vpop.f32.mrb[0].mxu0
    %v6642 = vadd.f32 %v6529, %v6641
    %v6643 = vpop.f32.mrb[0].mxu0
    %v6644 = vadd.f32 %v6531, %v6643
    %v6645 = vpop.f32.mrb[0].mxu0
    %v6646 = vadd.f32 %v6533, %v6645
    %v6647 = vpop.f32.mrb[0].mxu0
    %v6648 = vadd.f32 %v6535, %v6647
    %6649 = vmatprep.mubr.bf16.mxu0 %v4439
    %6650 = vmatmul.mubr.bf16.gmra.mrb[0].mxu0 %v4438
    %v6651 = vpop.f32.mrb[0].mxu0
    %v6652 = vadd.f32 %v6539, %v6651
    %v6653 = vpop.f32.mrb[0].mxu0
    %v6654 = vadd.f32 %v6541, %v6653
    %v6655 = vpop.f32.mrb[0].mxu0
    %v6656 = vadd.f32 %v6543, %v6655
    %v6657 = vpop.f32.mrb[0].mxu0
    %v6658 = vadd.f32 %v6545, %v6657
    %6659 = vmatprep.mubr.bf16.mxu0 %v4443
    %6660 = vmatmul.mubr.bf16.gmra.mrb[0].mxu0 %v4442
    %v6661 = vpop.f32.mrb[0].mxu0
    %v6662 = vadd.f32 %v6549, %v6661
    %v6663 = vpop.f32.mrb[0].mxu0
    %v6664 = vadd.f32 %v6551, %v6663
    %v6665 = vpop.f32.mrb[0].mxu0
    %v6666 = vadd.f32 %v6553, %v6665
    %v6667 = vpop.f32.mrb[0].mxu0
    %v6668 = vadd.f32 %v6555, %v6667
    %6669 = vdwg.mxu0
    %v6670 = vmax.f32 %v5914, %v5918
    %v6671 = vmax.f32 %v6670, %v5924
    %v6672 = vmax.f32 %v6671, %v5928
    %v6673 = vmax.f32 %v6672, %v5934
    %v6674 = vmax.f32 %v6673, %v5938
    %v6675 = vmax.f32 %v6674, %v5944
    %v6676 = vmax.f32 %v6675, %v5948
    %v6677 = vrot.slane %v6676, 4
    %v6678 = vmax.f32 %v6676, %v6677
    %v6679 = vrot.slane %v6678, 2
    %v6680 = vmax.f32 %v6678, %v6679
    %v6681 = vrot.slane %v6680, 1
    %v6682 = vmax.f32 %v6680, %v6681
    %v6683 = vmax.f32 %v5916, %v5920
    %v6684 = vmax.f32 %v6683, %v5926
    %v6685 = vmax.f32 %v6684, %v5930
    %v6686 = vmax.f32 %v6685, %v5936
    %v6687 = vmax.f32 %v6686, %v5940
    %v6688 = vmax.f32 %v6687, %v5946
    %v6689 = vmax.f32 %v6688, %v5950
    %v6690 = vrot.slane %v6689, 4
    %v6691 = vmax.f32 %v6689, %v6690
    %v6692 = vrot.slane %v6691, 2
    %v6693 = vmax.f32 %v6691, %v6692
    %v6694 = vrot.slane %v6693, 1
    %v6695 = vmax.f32 %v6693, %v6694
    %v6696 = vmax.f32 %v6140, %v6144
    %v6697 = vmax.f32 %v6696, %v6150
    %v6698 = vmax.f32 %v6697, %v6154
    %v6699 = vmax.f32 %v6698, %v6160
    %v6700 = vmax.f32 %v6699, %v6164
    %v6701 = vmax.f32 %v6700, %v6170
    %v6702 = vmax.f32 %v6701, %v6174
    %v6703 = vrot.slane %v6702, 4
    %v6704 = vmax.f32 %v6702, %v6703
    %v6705 = vrot.slane %v6704, 2
    %v6706 = vmax.f32 %v6704, %v6705
    %v6707 = vrot.slane %v6706, 1
    %v6708 = vmax.f32 %v6706, %v6707
    %v6709 = vmax.f32 %v6142, %v6146
    %v6710 = vmax.f32 %v6709, %v6152
    %v6711 = vmax.f32 %v6710, %v6156
    %v6712 = vmax.f32 %v6711, %v6162
    %v6713 = vmax.f32 %v6712, %v6166
    %v6714 = vmax.f32 %v6713, %v6172
    %v6715 = vmax.f32 %v6714, %v6176
    %v6716 = vrot.slane %v6715, 4
    %v6717 = vmax.f32 %v6715, %v6716
    %v6718 = vrot.slane %v6717, 2
    %v6719 = vmax.f32 %v6717, %v6718
    %v6720 = vrot.slane %v6719, 1
    %v6721 = vmax.f32 %v6719, %v6720
    %v6722 = vmax.f32 %v6366, %v6370
    %v6723 = vmax.f32 %v6722, %v6376
    %v6724 = vmax.f32 %v6723, %v6380
    %v6725 = vmax.f32 %v6724, %v6386
    %v6726 = vmax.f32 %v6725, %v6390
    %v6727 = vmax.f32 %v6726, %v6396
    %v6728 = vmax.f32 %v6727, %v6400
    %v6729 = vrot.slane %v6728, 4
    %v6730 = vmax.f32 %v6728, %v6729
    %v6731 = vrot.slane %v6730, 2
    %v6732 = vmax.f32 %v6730, %v6731
    %v6733 = vrot.slane %v6732, 1
    %v6734 = vmax.f32 %v6732, %v6733
    %v6735 = vmax.f32 %v6368, %v6372
    %v6736 = vmax.f32 %v6735, %v6378
    %v6737 = vmax.f32 %v6736, %v6382
    %v6738 = vmax.f32 %v6737, %v6388
    %v6739 = vmax.f32 %v6738, %v6392
    %v6740 = vmax.f32 %v6739, %v6398
    %v6741 = vmax.f32 %v6740, %v6402
    %v6742 = vrot.slane %v6741, 4
    %v6743 = vmax.f32 %v6741, %v6742
    %v6744 = vrot.slane %v6743, 2
    %v6745 = vmax.f32 %v6743, %v6744
    %v6746 = vrot.slane %v6745, 1
    %v6747 = vmax.f32 %v6745, %v6746
    %v6748 = vmax.f32 %v6592, %v6596
    %v6749 = vmax.f32 %v6748, %v6602
    %v6750 = vmax.f32 %v6749, %v6606
    %v6751 = vmax.f32 %v6750, %v6612
    %v6752 = vmax.f32 %v6751, %v6616
    %v6753 = vmax.f32 %v6752, %v6622
    %v6754 = vmax.f32 %v6753, %v6626
    %v6755 = vrot.slane %v6754, 4
    %v6756 = vmax.f32 %v6754, %v6755
    %v6757 = vrot.slane %v6756, 2
    %v6758 = vmax.f32 %v6756, %v6757
    %v6759 = vrot.slane %v6758, 1
    %v6760 = vmax.f32 %v6758, %v6759
    %v6761 = vmax.f32 %v6594, %v6598
    %v6762 = vmax.f32 %v6761, %v6604
    %v6763 = vmax.f32 %v6762, %v6608
    %v6764 = vmax.f32 %v6763, %v6614
    %v6765 = vmax.f32 %v6764, %v6618
    %v6766 = vmax.f32 %v6765, %v6624
    %v6767 = vmax.f32 %v6766, %v6628
    %v6768 = vrot.slane %v6767, 4
    %v6769 = vmax.f32 %v6767, %v6768
    %v6770 = vrot.slane %v6769, 2
    %v6771 = vmax.f32 %v6769, %v6770
    %v6772 = vrot.slane %v6771, 1
    %v6773 = vmax.f32 %v6771, %v6772
    %v6774 = vmax.f32 %v5954, %v5958
    %v6775 = vmax.f32 %v6774, %v5964
    %v6776 = vmax.f32 %v6775, %v5968
    %v6777 = vmax.f32 %v6776, %v5974
    %v6778 = vmax.f32 %v6777, %v5978
    %v6779 = vmax.f32 %v6778, %v5984
    %v6780 = vmax.f32 %v6779, %v5988
    %v6781 = vrot.slane %v6780, 4
    %v6782 = vmax.f32 %v6780, %v6781
    %v6783 = vrot.slane %v6782, 2
    %v6784 = vmax.f32 %v6782, %v6783
    %v6785 = vrot.slane %v6784, 1
    %v6786 = vmax.f32 %v6784, %v6785
    %v6787 = vmax.f32 %v5956, %v5960
    %v6788 = vmax.f32 %v6787, %v5966
    %v6789 = vmax.f32 %v6788, %v5970
    %v6790 = vmax.f32 %v6789, %v5976
    %v6791 = vmax.f32 %v6790, %v5980
    %v6792 = vmax.f32 %v6791, %v5986
    %v6793 = vmax.f32 %v6792, %v5990
    %v6794 = vrot.slane %v6793, 4
    %v6795 = vmax.f32 %v6793, %v6794
    %v6796 = vrot.slane %v6795, 2
    %v6797 = vmax.f32 %v6795, %v6796
    %v6798 = vrot.slane %v6797, 1
    %v6799 = vmax.f32 %v6797, %v6798
    %v6800 = vmax.f32 %v6180, %v6184
    %v6801 = vmax.f32 %v6800, %v6190
    %v6802 = vmax.f32 %v6801, %v6194
    %v6803 = vmax.f32 %v6802, %v6200
    %v6804 = vmax.f32 %v6803, %v6204
    %v6805 = vmax.f32 %v6804, %v6210
    %v6806 = vmax.f32 %v6805, %v6214
    %v6807 = vrot.slane %v6806, 4
    %v6808 = vmax.f32 %v6806, %v6807
    %v6809 = vrot.slane %v6808, 2
    %v6810 = vmax.f32 %v6808, %v6809
    %v6811 = vrot.slane %v6810, 1
    %v6812 = vmax.f32 %v6810, %v6811
    %v6813 = vmax.f32 %v6182, %v6186
    %v6814 = vmax.f32 %v6813, %v6192
    %v6815 = vmax.f32 %v6814, %v6196
    %v6816 = vmax.f32 %v6815, %v6202
    %v6817 = vmax.f32 %v6816, %v6206
    %v6818 = vmax.f32 %v6817, %v6212
    %v6819 = vmax.f32 %v6818, %v6216
    %v6820 = vrot.slane %v6819, 4
    %v6821 = vmax.f32 %v6819, %v6820
    %v6822 = vrot.slane %v6821, 2
    %v6823 = vmax.f32 %v6821, %v6822
    %v6824 = vrot.slane %v6823, 1
    %v6825 = vmax.f32 %v6823, %v6824
    %v6826 = vmax.f32 %v6406, %v6410
    %v6827 = vmax.f32 %v6826, %v6416
    %v6828 = vmax.f32 %v6827, %v6420
    %v6829 = vmax.f32 %v6828, %v6426
    %v6830 = vmax.f32 %v6829, %v6430
    %v6831 = vmax.f32 %v6830, %v6436
    %v6832 = vmax.f32 %v6831, %v6440
    %v6833 = vrot.slane %v6832, 4
    %v6834 = vmax.f32 %v6832, %v6833
    %v6835 = vrot.slane %v6834, 2
    %v6836 = vmax.f32 %v6834, %v6835
    %v6837 = vrot.slane %v6836, 1
    %v6838 = vmax.f32 %v6836, %v6837
    %v6839 = vmax.f32 %v6408, %v6412
    %v6840 = vmax.f32 %v6839, %v6418
    %v6841 = vmax.f32 %v6840, %v6422
    %v6842 = vmax.f32 %v6841, %v6428
    %v6843 = vmax.f32 %v6842, %v6432
    %v6844 = vmax.f32 %v6843, %v6438
    %v6845 = vmax.f32 %v6844, %v6442
    %v6846 = vrot.slane %v6845, 4
    %v6847 = vmax.f32 %v6845, %v6846
    %v6848 = vrot.slane %v6847, 2
    %v6849 = vmax.f32 %v6847, %v6848
    %v6850 = vrot.slane %v6849, 1
    %v6851 = vmax.f32 %v6849, %v6850
    %v6852 = vmax.f32 %v6632, %v6636
    %v6853 = vmax.f32 %v6852, %v6642
    %v6854 = vmax.f32 %v6853, %v6646
    %v6855 = vmax.f32 %v6854, %v6652
    %v6856 = vmax.f32 %v6855, %v6656
    %v6857 = vmax.f32 %v6856, %v6662
    %v6858 = vmax.f32 %v6857, %v6666
    %v6859 = vrot.slane %v6858, 4
    %v6860 = vmax.f32 %v6858, %v6859
    %v6861 = vrot.slane %v6860, 2
    %v6862 = vmax.f32 %v6860, %v6861
    %v6863 = vrot.slane %v6862, 1
    %v6864 = vmax.f32 %v6862, %v6863
    %v6865 = vmax.f32 %v6634, %v6638
    %v6866 = vmax.f32 %v6865, %v6644
    %v6867 = vmax.f32 %v6866, %v6648
    %v6868 = vmax.f32 %v6867, %v6654
    %v6869 = vmax.f32 %v6868, %v6658
    %v6870 = vmax.f32 %v6869, %v6664
    %v6871 = vmax.f32 %v6870, %v6668
    %v6872 = vrot.slane %v6871, 4
    %v6873 = vmax.f32 %v6871, %v6872
    %v6874 = vrot.slane %v6873, 2
    %v6875 = vmax.f32 %v6873, %v6874
    %v6876 = vrot.slane %v6875, 1
    %v6877 = vmax.f32 %v6875, %v6876
    %v6878 = vsel %vm2750, %v6786, %v6682
    %v6879 = vsel %vm2750, %v6799, %v6695
    %v6880 = vsel %vm2750, %v6812, %v6708
    %v6881 = vsel %vm2750, %v6825, %v6721
    %v6882 = vsel %vm2750, %v6838, %v6734
    %v6883 = vsel %vm2750, %v6851, %v6747
    %v6884 = vsel %vm2750, %v6864, %v6760
    %v6885 = vsel %vm2750, %v6877, %v6773
    %s6886 = smul.u32 4, 128
    %s6887 = smul.u32 %s6886, 2
    %s6888 = sshll.u32 %s6887, 4
    %6889 = dma.done [#allocation5], %s6888
    %s6890 = smul.u32 4, 129
    %s6891 = smul.u32 %s6890, 2
    %s6892 = sshll.u32 %s6891, 4
    %6893 = dma.done %s96, %s6892
    %s6894 = smul.u32 4, 32
    %s6895 = smul.u32 %s6894, 13
    %s6896 = sshll.u32 %s6895, 4
    %6897 = dma.done %s395, %s6896
    %v6898 = vld [vmem:[#allocation2] sm:$0xff]
    %v6899 = vld [vmem:[#allocation2 + $0x8] sm:$0xff]
    %v6900 = vld [vmem:[#allocation2 + $0x10] sm:$0xff]
    %v6901 = vld [vmem:[#allocation2 + $0x18] sm:$0xff]
    %v6902 = vld [vmem:[#allocation2 + $0x20] sm:$0xff]
    %v6903 = vld [vmem:[#allocation2 + $0x28] sm:$0xff]
    %v6904 = vld [vmem:[#allocation2 + $0x30] sm:$0xff]
    %v6905 = vld [vmem:[#allocation2 + $0x38] sm:$0xff]
    %v6906 = vld [vmem:[#allocation2 + $0x40] sm:$0xff]
    %v6907 = vld [vmem:[#allocation2 + $0x48] sm:$0xff]
    %v6908 = vld [vmem:[#allocation2 + $0x50] sm:$0xff]
    %v6909 = vld [vmem:[#allocation2 + $0x58] sm:$0xff]
    %v6910 = vld [vmem:[#allocation2 + $0x60] sm:$0xff]
    %v6911 = vld [vmem:[#allocation2 + $0x68] sm:$0xff]
    %v6912 = vld [vmem:[#allocation2 + $0x70] sm:$0xff]
    %v6913 = vld [vmem:[#allocation2 + $0x78] sm:$0xff]
    %v6914 = vld [vmem:[#allocation2 + $0x80] sm:$0xff]
    %v6915 = vld [vmem:[#allocation2 + $0x88] sm:$0xff]
    %v6916 = vld [vmem:[#allocation2 + $0x90] sm:$0xff]
    %v6917 = vld [vmem:[#allocation2 + $0x98] sm:$0xff]
    %v6918 = vld [vmem:[#allocation2 + $0xa0] sm:$0xff]
    %v6919 = vld [vmem:[#allocation2 + $0xa8] sm:$0xff]
    %v6920 = vld [vmem:[#allocation2 + $0xb0] sm:$0xff]
    %v6921 = vld [vmem:[#allocation2 + $0xb8] sm:$0xff]
    %v6922 = vld [vmem:[#allocation2 + $0xc0] sm:$0xff]
    %v6923 = vld [vmem:[#allocation2 + $0xc8] sm:$0xff]
    %v6924 = vld [vmem:[#allocation2 + $0xd0] sm:$0xff]
    %v6925 = vld [vmem:[#allocation2 + $0xd8] sm:$0xff]
    %v6926 = vld [vmem:[#allocation2 + $0xe0] sm:$0xff]
    %v6927 = vld [vmem:[#allocation2 + $0xe8] sm:$0xff]
    %v6928 = vld [vmem:[#allocation2 + $0xf0] sm:$0xff]
    %v6929 = vld [vmem:[#allocation2 + $0xf8] sm:$0xff]
    %v6930 = vld [vmem:[#allocation2 + $0x100] sm:$0xff]
    %v6931 = vld [vmem:[#allocation2 + $0x108] sm:$0xff]
    %v6932 = vld [vmem:[#allocation2 + $0x110] sm:$0xff]
    %v6933 = vld [vmem:[#allocation2 + $0x118] sm:$0xff]
    %v6934 = vld [vmem:[#allocation2 + $0x120] sm:$0xff]
    %v6935 = vld [vmem:[#allocation2 + $0x128] sm:$0xff]
    %v6936 = vld [vmem:[#allocation2 + $0x130] sm:$0xff]
    %v6937 = vld [vmem:[#allocation2 + $0x138] sm:$0xff]
    %v6938 = vld [vmem:[#allocation2 + $0x140] sm:$0xff]
    %v6939 = vld [vmem:[#allocation2 + $0x148] sm:$0xff]
    %v6940 = vld [vmem:[#allocation2 + $0x150] sm:$0xff]
    %v6941 = vld [vmem:[#allocation2 + $0x158] sm:$0xff]
    %v6942 = vld [vmem:[#allocation2 + $0x160] sm:$0xff]
    %v6943 = vld [vmem:[#allocation2 + $0x168] sm:$0xff]
    %v6944 = vld [vmem:[#allocation2 + $0x170] sm:$0xff]
    %v6945 = vld [vmem:[#allocation2 + $0x178] sm:$0xff]
    %v6946 = vld [vmem:[#allocation2 + $0x180] sm:$0xff]
    %v6947 = vld [vmem:[#allocation2 + $0x188] sm:$0xff]
    %v6948 = vld [vmem:[#allocation2 + $0x190] sm:$0xff]
    %v6949 = vld [vmem:[#allocation2 + $0x198] sm:$0xff]
    %v6950 = vld [vmem:[#allocation2 + $0x1a0] sm:$0xff]
    %v6951 = vld [vmem:[#allocation2 + $0x1a8] sm:$0xff]
    %v6952 = vld [vmem:[#allocation2 + $0x1b0] sm:$0xff]
    %v6953 = vld [vmem:[#allocation2 + $0x1b8] sm:$0xff]
    %v6954 = vld [vmem:[#allocation2 + $0x1c0] sm:$0xff]
    %v6955 = vld [vmem:[#allocation2 + $0x1c8] sm:$0xff]
    %v6956 = vld [vmem:[#allocation2 + $0x1d0] sm:$0xff]
    %v6957 = vld [vmem:[#allocation2 + $0x1d8] sm:$0xff]
    %v6958 = vld [vmem:[#allocation2 + $0x1e0] sm:$0xff]
    %v6959 = vld [vmem:[#allocation2 + $0x1e8] sm:$0xff]
    %v6960 = vld [vmem:[#allocation2 + $0x1f0] sm:$0xff]
    %v6961 = vld [vmem:[#allocation2 + $0x1f8] sm:$0xff]
    %v6962 = vld [vmem:[#allocation2 + $0x200] sm:$0xff]
    %v6963 = vld [vmem:[#allocation2 + $0x208] sm:$0xff]
    %v6964 = vld [vmem:[#allocation2 + $0x210] sm:$0xff]
    %v6965 = vld [vmem:[#allocation2 + $0x218] sm:$0xff]
    %v6966 = vld [vmem:[#allocation2 + $0x220] sm:$0xff]
    %v6967 = vld [vmem:[#allocation2 + $0x228] sm:$0xff]
    %v6968 = vld [vmem:[#allocation2 + $0x230] sm:$0xff]
    %v6969 = vld [vmem:[#allocation2 + $0x238] sm:$0xff]
    %v6970 = vld [vmem:[#allocation2 + $0x240] sm:$0xff]
    %v6971 = vld [vmem:[#allocation2 + $0x248] sm:$0xff]
    %v6972 = vld [vmem:[#allocation2 + $0x250] sm:$0xff]
    %v6973 = vld [vmem:[#allocation2 + $0x258] sm:$0xff]
    %v6974 = vld [vmem:[#allocation2 + $0x260] sm:$0xff]
    %v6975 = vld [vmem:[#allocation2 + $0x268] sm:$0xff]
    %v6976 = vld [vmem:[#allocation2 + $0x270] sm:$0xff]
    %v6977 = vld [vmem:[#allocation2 + $0x278] sm:$0xff]
    %v6978 = vld [vmem:[#allocation2 + $0x280] sm:$0xff]
    %v6979 = vld [vmem:[#allocation2 + $0x288] sm:$0xff]
    %v6980 = vld [vmem:[#allocation2 + $0x290] sm:$0xff]
    %v6981 = vld [vmem:[#allocation2 + $0x298] sm:$0xff]
    %v6982 = vld [vmem:[#allocation2 + $0x2a0] sm:$0xff]
    %v6983 = vld [vmem:[#allocation2 + $0x2a8] sm:$0xff]
    %v6984 = vld [vmem:[#allocation2 + $0x2b0] sm:$0xff]
    %v6985 = vld [vmem:[#allocation2 + $0x2b8] sm:$0xff]
    %v6986 = vld [vmem:[#allocation2 + $0x2c0] sm:$0xff]
    %v6987 = vld [vmem:[#allocation2 + $0x2c8] sm:$0xff]
    %v6988 = vld [vmem:[#allocation2 + $0x2d0] sm:$0xff]
    %v6989 = vld [vmem:[#allocation2 + $0x2d8] sm:$0xff]
    %v6990 = vld [vmem:[#allocation2 + $0x2e0] sm:$0xff]
    %v6991 = vld [vmem:[#allocation2 + $0x2e8] sm:$0xff]
    %v6992 = vld [vmem:[#allocation2 + $0x2f0] sm:$0xff]
    %v6993 = vld [vmem:[#allocation2 + $0x2f8] sm:$0xff]
    %v6994 = vld [vmem:[#allocation2 + $0x300] sm:$0xff]
    %v6995 = vld [vmem:[#allocation2 + $0x308] sm:$0xff]
    %v6996 = vld [vmem:[#allocation2 + $0x310] sm:$0xff]
    %v6997 = vld [vmem:[#allocation2 + $0x318] sm:$0xff]
    %v6998 = vld [vmem:[#allocation2 + $0x320] sm:$0xff]
    %v6999 = vld [vmem:[#allocation2 + $0x328] sm:$0xff]
    %v7000 = vld [vmem:[#allocation2 + $0x330] sm:$0xff]
    %v7001 = vld [vmem:[#allocation2 + $0x338] sm:$0xff]
    %v7002 = vld [vmem:[#allocation2 + $0x340] sm:$0xff]
    %v7003 = vld [vmem:[#allocation2 + $0x348] sm:$0xff]
    %v7004 = vld [vmem:[#allocation2 + $0x350] sm:$0xff]
    %v7005 = vld [vmem:[#allocation2 + $0x358] sm:$0xff]
    %v7006 = vld [vmem:[#allocation2 + $0x360] sm:$0xff]
    %v7007 = vld [vmem:[#allocation2 + $0x368] sm:$0xff]
    %v7008 = vld [vmem:[#allocation2 + $0x370] sm:$0xff]
    %v7009 = vld [vmem:[#allocation2 + $0x378] sm:$0xff]
    %v7010 = vld [vmem:[#allocation2 + $0x380] sm:$0xff]
    %v7011 = vld [vmem:[#allocation2 + $0x388] sm:$0xff]
    %v7012 = vld [vmem:[#allocation2 + $0x390] sm:$0xff]
    %v7013 = vld [vmem:[#allocation2 + $0x398] sm:$0xff]
    %v7014 = vld [vmem:[#allocation2 + $0x3a0] sm:$0xff]
    %v7015 = vld [vmem:[#allocation2 + $0x3a8] sm:$0xff]
    %v7016 = vld [vmem:[#allocation2 + $0x3b0] sm:$0xff]
    %v7017 = vld [vmem:[#allocation2 + $0x3b8] sm:$0xff]
    %v7018 = vld [vmem:[#allocation2 + $0x3c0] sm:$0xff]
    %v7019 = vld [vmem:[#allocation2 + $0x3c8] sm:$0xff]
    %v7020 = vld [vmem:[#allocation2 + $0x3d0] sm:$0xff]
    %v7021 = vld [vmem:[#allocation2 + $0x3d8] sm:$0xff]
    %v7022 = vld [vmem:[#allocation2 + $0x3e0] sm:$0xff]
    %v7023 = vld [vmem:[#allocation2 + $0x3e8] sm:$0xff]
    %v7024 = vld [vmem:[#allocation2 + $0x3f0] sm:$0xff]
    %v7025 = vld [vmem:[#allocation2 + $0x3f8] sm:$0xff]
    %v7026 = vpack.c.bf16 %v6878, %v6878
    %v7027 = vpack.c.bf16 %v6879, %v6879
    %v7028 = vpack.c.bf16 %v6880, %v6880
    %v7029 = vpack.c.bf16 %v6881, %v6881
    %v7030 = vpack.c.bf16 %v6882, %v6882
    %v7031 = vpack.c.bf16 %v6883, %v6883
    %v7032 = vpack.c.bf16 %v6884, %v6884
    %v7033 = vpack.c.bf16 %v6885, %v6885
    %v7034 = vld [vmem:[%s1] sm:$0xff]
    %v7035 = vld [vmem:[%s1 + $0x8] sm:$0xff]
    %v7036 = vld [vmem:[%s1 + $0x10] sm:$0x3]
    %v7037 = vld [vmem:[#allocation3] sm:$0xff]
    %v7038 = vld [vmem:[#allocation3 + $0x8] sm:$0xff]
    %v7039 = vld [vmem:[#allocation3 + $0x10] sm:$0xff]
    %v7040 = vld [vmem:[#allocation3 + $0x18] sm:$0xff]
    %v7041 = vld [vmem:[#allocation3 + $0x20] sm:$0xff]
    %v7042 = vld [vmem:[#allocation3 + $0x28] sm:$0xff]
    %v7043 = vld [vmem:[#allocation3 + $0x30] sm:$0xff]
    %v7044 = vld [vmem:[#allocation3 + $0x38] sm:$0xff]
    %v7045 = vld [vmem:[#allocation3 + $0x40] sm:$0xff]
    %v7046 = vld [vmem:[#allocation3 + $0x48] sm:$0xff]
    %v7047 = vld [vmem:[#allocation3 + $0x50] sm:$0xff]
    %v7048 = vld [vmem:[#allocation3 + $0x58] sm:$0xff]
    %v7049 = vld [vmem:[#allocation3 + $0x60] sm:$0xff]
    %v7050 = vld [vmem:[#allocation3 + $0x68] sm:$0xff]
    %v7051 = vld [vmem:[#allocation3 + $0x70] sm:$0xff]
    %v7052 = vld [vmem:[#allocation3 + $0x78] sm:$0xff]
    %v7053 = vld [vmem:[#allocation3 + $0x80] sm:$0xff]
    %v7054 = vld [vmem:[#allocation3 + $0x88] sm:$0xff]
    %v7055 = vld [vmem:[#allocation3 + $0x90] sm:$0xff]
    %v7056 = vld [vmem:[#allocation3 + $0x98] sm:$0xff]
    %v7057 = vld [vmem:[#allocation3 + $0xa0] sm:$0xff]
    %v7058 = vld [vmem:[#allocation3 + $0xa8] sm:$0xff]
    %v7059 = vld [vmem:[#allocation3 + $0xb0] sm:$0xff]
    %v7060 = vld [vmem:[#allocation3 + $0xb8] sm:$0xff]
    %v7061 = vld [vmem:[#allocation3 + $0xc0] sm:$0xff]
    %v7062 = vld [vmem:[#allocation3 + $0xc8] sm:$0xff]
    %v7063 = vld [vmem:[#allocation3 + $0xd0] sm:$0xff]
    %v7064 = vld [vmem:[#allocation3 + $0xd8] sm:$0xff]
    %v7065 = vld [vmem:[#allocation3 + $0xe0] sm:$0xff]
    %v7066 = vld [vmem:[#allocation3 + $0xe8] sm:$0xff]
    %v7067 = vld [vmem:[#allocation3 + $0xf0] sm:$0xff]
    %v7068 = vld [vmem:[#allocation3 + $0xf8] sm:$0xff]
    %v7069 = vld [vmem:[#allocation3 + $0x100] sm:$0xff]
    %v7070 = vld [vmem:[#allocation3 + $0x108] sm:$0xff]
    %v7071 = vld [vmem:[#allocation3 + $0x110] sm:$0xff]
    %v7072 = vld [vmem:[#allocation3 + $0x118] sm:$0xff]
    %v7073 = vld [vmem:[#allocation3 + $0x120] sm:$0xff]
    %v7074 = vld [vmem:[#allocation3 + $0x128] sm:$0xff]
    %v7075 = vld [vmem:[#allocation3 + $0x130] sm:$0xff]
    %v7076 = vld [vmem:[#allocation3 + $0x138] sm:$0xff]
    %v7077 = vld [vmem:[#allocation3 + $0x140] sm:$0xff]
    %v7078 = vld [vmem:[#allocation3 + $0x148] sm:$0xff]
    %v7079 = vld [vmem:[#allocation3 + $0x150] sm:$0xff]
    %v7080 = vld [vmem:[#allocation3 + $0x158] sm:$0xff]
    %v7081 = vld [vmem:[#allocation3 + $0x160] sm:$0xff]
    %v7082 = vld [vmem:[#allocation3 + $0x168] sm:$0xff]
    %v7083 = vld [vmem:[#allocation3 + $0x170] sm:$0xff]
    %v7084 = vld [vmem:[#allocation3 + $0x178] sm:$0xff]
    %v7085 = vld [vmem:[#allocation3 + $0x180] sm:$0xff]
    %v7086 = vld [vmem:[#allocation3 + $0x188] sm:$0xff]
    %v7087 = vld [vmem:[#allocation3 + $0x190] sm:$0xff]
    %v7088 = vld [vmem:[#allocation3 + $0x198] sm:$0xff]
    %v7089 = vld [vmem:[#allocation3 + $0x1a0] sm:$0xff]
    %v7090 = vld [vmem:[#allocation3 + $0x1a8] sm:$0xff]
    %v7091 = vld [vmem:[#allocation3 + $0x1b0] sm:$0xff]
    %v7092 = vld [vmem:[#allocation3 + $0x1b8] sm:$0xff]
    %v7093 = vld [vmem:[#allocation3 + $0x1c0] sm:$0xff]
    %v7094 = vld [vmem:[#allocation3 + $0x1c8] sm:$0xff]
    %v7095 = vld [vmem:[#allocation3 + $0x1d0] sm:$0xff]
    %v7096 = vld [vmem:[#allocation3 + $0x1d8] sm:$0xff]
    %v7097 = vld [vmem:[#allocation3 + $0x1e0] sm:$0xff]
    %v7098 = vld [vmem:[#allocation3 + $0x1e8] sm:$0xff]
    %v7099 = vld [vmem:[#allocation3 + $0x1f0] sm:$0xff]
    %v7100 = vld [vmem:[#allocation3 + $0x1f8] sm:$0xff]
    %v7101 = vld [vmem:[#allocation3 + $0x200] sm:$0xff]
    %v7102 = vld [vmem:[#allocation3 + $0x208] sm:$0xff]
    %v7103 = vld [vmem:[#allocation3 + $0x210] sm:$0xff]
    %v7104 = vld [vmem:[#allocation3 + $0x218] sm:$0xff]
    %v7105 = vld [vmem:[#allocation3 + $0x220] sm:$0xff]
    %v7106 = vld [vmem:[#allocation3 + $0x228] sm:$0xff]
    %v7107 = vld [vmem:[#allocation3 + $0x230] sm:$0xff]
    %v7108 = vld [vmem:[#allocation3 + $0x238] sm:$0xff]
    %v7109 = vld [vmem:[#allocation3 + $0x240] sm:$0xff]
    %v7110 = vld [vmem:[#allocation3 + $0x248] sm:$0xff]
    %v7111 = vld [vmem:[#allocation3 + $0x250] sm:$0xff]
    %v7112 = vld [vmem:[#allocation3 + $0x258] sm:$0xff]
    %v7113 = vld [vmem:[#allocation3 + $0x260] sm:$0xff]
    %v7114 = vld [vmem:[#allocation3 + $0x268] sm:$0xff]
    %v7115 = vld [vmem:[#allocation3 + $0x270] sm:$0xff]
    %v7116 = vld [vmem:[#allocation3 + $0x278] sm:$0xff]
    %v7117 = vld [vmem:[#allocation3 + $0x280] sm:$0xff]
    %v7118 = vld [vmem:[#allocation3 + $0x288] sm:$0xff]
    %v7119 = vld [vmem:[#allocation3 + $0x290] sm:$0xff]
    %v7120 = vld [vmem:[#allocation3 + $0x298] sm:$0xff]
    %v7121 = vld [vmem:[#allocation3 + $0x2a0] sm:$0xff]
    %v7122 = vld [vmem:[#allocation3 + $0x2a8] sm:$0xff]
    %v7123 = vld [vmem:[#allocation3 + $0x2b0] sm:$0xff]
    %v7124 = vld [vmem:[#allocation3 + $0x2b8] sm:$0xff]
    %v7125 = vld [vmem:[#allocation3 + $0x2c0] sm:$0xff]
    %v7126 = vld [vmem:[#allocation3 + $0x2c8] sm:$0xff]
    %v7127 = vld [vmem:[#allocation3 + $0x2d0] sm:$0xff]
    %v7128 = vld [vmem:[#allocation3 + $0x2d8] sm:$0xff]
    %v7129 = vld [vmem:[#allocation3 + $0x2e0] sm:$0xff]
    %v7130 = vld [vmem:[#allocation3 + $0x2e8] sm:$0xff]
    %v7131 = vld [vmem:[#allocation3 + $0x2f0] sm:$0xff]
    %v7132 = vld [vmem:[#allocation3 + $0x2f8] sm:$0xff]
    %v7133 = vld [vmem:[#allocation3 + $0x300] sm:$0xff]
    %v7134 = vld [vmem:[#allocation3 + $0x308] sm:$0xff]
    %v7135 = vld [vmem:[#allocation3 + $0x310] sm:$0xff]
    %v7136 = vld [vmem:[#allocation3 + $0x318] sm:$0xff]
    %v7137 = vld [vmem:[#allocation3 + $0x320] sm:$0xff]
    %v7138 = vld [vmem:[#allocation3 + $0x328] sm:$0xff]
    %v7139 = vld [vmem:[#allocation3 + $0x330] sm:$0xff]
    %v7140 = vld [vmem:[#allocation3 + $0x338] sm:$0xff]
    %v7141 = vld [vmem:[#allocation3 + $0x340] sm:$0xff]
    %v7142 = vld [vmem:[#allocation3 + $0x348] sm:$0xff]
    %v7143 = vld [vmem:[#allocation3 + $0x350] sm:$0xff]
    %v7144 = vld [vmem:[#allocation3 + $0x358] sm:$0xff]
    %v7145 = vld [vmem:[#allocation3 + $0x360] sm:$0xff]
    %v7146 = vld [vmem:[#allocation3 + $0x368] sm:$0xff]
    %v7147 = vld [vmem:[#allocation3 + $0x370] sm:$0xff]
    %v7148 = vld [vmem:[#allocation3 + $0x378] sm:$0xff]
    %v7149 = vld [vmem:[#allocation3 + $0x380] sm:$0xff]
    %v7150 = vld [vmem:[#allocation3 + $0x388] sm:$0xff]
    %v7151 = vld [vmem:[#allocation3 + $0x390] sm:$0xff]
    %v7152 = vld [vmem:[#allocation3 + $0x398] sm:$0xff]
    %v7153 = vld [vmem:[#allocation3 + $0x3a0] sm:$0xff]
    %v7154 = vld [vmem:[#allocation3 + $0x3a8] sm:$0xff]
    %v7155 = vld [vmem:[#allocation3 + $0x3b0] sm:$0xff]
    %v7156 = vld [vmem:[#allocation3 + $0x3b8] sm:$0xff]
    %v7157 = vld [vmem:[#allocation3 + $0x3c0] sm:$0xff]
    %v7158 = vld [vmem:[#allocation3 + $0x3c8] sm:$0xff]
    %v7159 = vld [vmem:[#allocation3 + $0x3d0] sm:$0xff]
    %v7160 = vld [vmem:[#allocation3 + $0x3d8] sm:$0xff]
    %v7161 = vld [vmem:[#allocation3 + $0x3e0] sm:$0xff]
    %v7162 = vld [vmem:[#allocation3 + $0x3e8] sm:$0xff]
    %v7163 = vld [vmem:[#allocation3 + $0x3f0] sm:$0xff]
    %v7164 = vld [vmem:[#allocation3 + $0x3f8] sm:$0xff]
    %v7165 = vld [vmem:[#allocation3 + $0x400] sm:$0x77]
    %v7169 = vcombine.high %v7034, %v7034
    %v7171 = vunpack.c.l.s4 1983009808
    %v7172 = vunpack.c.0.s8 %v7171
    %v7173 = vlaneseq
    %v7174 = vshrl.u32 %v7173, 7
    %v7175 = vsub.s32 %v7172, %v7174
    %v7176 = vrot.slane %v7034, %v7175
    %v7178 = vunpack.c.l.s4 1983009808
    %v7179 = vunpack.c.0.s8 %v7178
    %v7180 = vlaneseq
    %v7181 = vshrl.u32 %v7180, 7
    %v7182 = vsub.s32 %v7179, %v7181
    %v7183 = vrot.slane %v7169, %v7182
    %v7184 = vcombine.high %v7176, %v7176
    %v7185 = vcombine.high %v7183, %v7183
    %v7186 = vcombine.high %v7035, %v7035
    %v7188 = vunpack.c.l.s4 1983009808
    %v7189 = vunpack.c.0.s8 %v7188
    %v7190 = vlaneseq
    %v7191 = vshrl.u32 %v7190, 7
    %v7192 = vsub.s32 %v7189, %v7191
    %v7193 = vrot.slane %v7035, %v7192
    %v7195 = vunpack.c.l.s4 1983009808
    %v7196 = vunpack.c.0.s8 %v7195
    %v7197 = vlaneseq
    %v7198 = vshrl.u32 %v7197, 7
    %v7199 = vsub.s32 %v7196, %v7198
    %v7200 = vrot.slane %v7186, %v7199
    %v7201 = vcombine.high %v7193, %v7193
    %v7202 = vcombine.high %v7200, %v7200
    %v7204 = vunpack.c.l.s4 1983009808
    %v7205 = vunpack.c.0.s8 %v7204
    %v7206 = vlaneseq
    %v7207 = vshrl.u32 %v7206, 7
    %v7208 = vsub.s32 %v7205, %v7207
    %v7209 = vrot.slane %v7036, %v7208
    %v7219 = vpack.c.bf16 %v7176, %v7176
    %v7220 = vpack.c.bf16 %v7184, %v7184
    %v7221 = vpack.c.bf16 %v7183, %v7183
    %v7222 = vpack.c.bf16 %v7185, %v7185
    %v7223 = vpack.c.bf16 %v7193, %v7193
    %v7224 = vpack.c.bf16 %v7201, %v7201
    %v7225 = vpack.c.bf16 %v7200, %v7200
    %v7226 = vpack.c.bf16 %v7202, %v7202
    %v7227 = vpack.c.bf16 %v7209, %v7209
    %v7357 = vunpack.c.l.b16 %v7037
    %v7358 = vunpack.c.h.b16 %v7037
    %v7359 = vunpack.c.l.b16 %v7038
    %v7360 = vunpack.c.h.b16 %v7038
    %v7361 = vunpack.c.l.b16 %v7039
    %v7362 = vunpack.c.h.b16 %v7039
    %v7363 = vunpack.c.l.b16 %v7040
    %v7364 = vunpack.c.h.b16 %v7040
    %v7365 = vunpack.c.l.b16 %v7041
    %v7366 = vunpack.c.h.b16 %v7041
    %v7367 = vunpack.c.l.b16 %v7042
    %v7368 = vunpack.c.h.b16 %v7042
    %v7369 = vunpack.c.l.b16 %v7043
    %v7370 = vunpack.c.h.b16 %v7043
    %v7371 = vunpack.c.l.b16 %v7044
    %v7372 = vunpack.c.h.b16 %v7044
    %v7373 = vunpack.c.l.b16 %v7045
    %v7374 = vunpack.c.h.b16 %v7045
    %v7375 = vunpack.c.l.b16 %v7046
    %v7376 = vunpack.c.h.b16 %v7046
    %v7377 = vunpack.c.l.b16 %v7047
    %v7378 = vunpack.c.h.b16 %v7047
    %v7379 = vunpack.c.l.b16 %v7048
    %v7380 = vunpack.c.h.b16 %v7048
    %v7381 = vunpack.c.l.b16 %v7049
    %v7382 = vunpack.c.h.b16 %v7049
    %v7383 = vunpack.c.l.b16 %v7050
    %v7384 = vunpack.c.h.b16 %v7050
    %v7385 = vunpack.c.l.b16 %v7051
    %v7386 = vunpack.c.h.b16 %v7051
    %v7387 = vunpack.c.l.b16 %v7052
    %v7388 = vunpack.c.h.b16 %v7052
    %v7389 = vunpack.c.l.b16 %v7053
    %v7390 = vunpack.c.h.b16 %v7053
    %v7391 = vunpack.c.l.b16 %v7054
    %v7392 = vunpack.c.h.b16 %v7054
    %v7393 = vunpack.c.l.b16 %v7055
    %v7394 = vunpack.c.h.b16 %v7055
    %v7395 = vunpack.c.l.b16 %v7056
    %v7396 = vunpack.c.h.b16 %v7056
    %v7397 = vunpack.c.l.b16 %v7057
    %v7398 = vunpack.c.h.b16 %v7057
    %v7399 = vunpack.c.l.b16 %v7058
    %v7400 = vunpack.c.h.b16 %v7058
    %v7401 = vunpack.c.l.b16 %v7059
    %v7402 = vunpack.c.h.b16 %v7059
    %v7403 = vunpack.c.l.b16 %v7060
    %v7404 = vunpack.c.h.b16 %v7060
    %v7405 = vunpack.c.l.b16 %v7061
    %v7406 = vunpack.c.h.b16 %v7061
    %v7407 = vunpack.c.l.b16 %v7062
    %v7408 = vunpack.c.h.b16 %v7062
    %v7409 = vunpack.c.l.b16 %v7063
    %v7410 = vunpack.c.h.b16 %v7063
    %v7411 = vunpack.c.l.b16 %v7064
    %v7412 = vunpack.c.h.b16 %v7064
    %v7413 = vunpack.c.l.b16 %v7065
    %v7414 = vunpack.c.h.b16 %v7065
    %v7415 = vunpack.c.l.b16 %v7066
    %v7416 = vunpack.c.h.b16 %v7066
    %v7417 = vunpack.c.l.b16 %v7067
    %v7418 = vunpack.c.h.b16 %v7067
    %v7419 = vunpack.c.l.b16 %v7068
    %v7420 = vunpack.c.h.b16 %v7068
    %v7421 = vunpack.c.l.b16 %v7069
    %v7422 = vunpack.c.h.b16 %v7069
    %v7423 = vunpack.c.l.b16 %v7070
    %v7424 = vunpack.c.h.b16 %v7070
    %v7425 = vunpack.c.l.b16 %v7071
    %v7426 = vunpack.c.h.b16 %v7071
    %v7427 = vunpack.c.l.b16 %v7072
    %v7428 = vunpack.c.h.b16 %v7072
    %v7429 = vunpack.c.l.b16 %v7073
    %v7430 = vunpack.c.h.b16 %v7073
    %v7431 = vunpack.c.l.b16 %v7074
    %v7432 = vunpack.c.h.b16 %v7074
    %v7433 = vunpack.c.l.b16 %v7075
    %v7434 = vunpack.c.h.b16 %v7075
    %v7435 = vunpack.c.l.b16 %v7076
    %v7436 = vunpack.c.h.b16 %v7076
    %v7437 = vunpack.c.l.b16 %v7077
    %v7438 = vunpack.c.h.b16 %v7077
    %v7439 = vunpack.c.l.b16 %v7078
    %v7440 = vunpack.c.h.b16 %v7078
    %v7441 = vunpack.c.l.b16 %v7079
    %v7442 = vunpack.c.h.b16 %v7079
    %v7443 = vunpack.c.l.b16 %v7080
    %v7444 = vunpack.c.h.b16 %v7080
    %v7445 = vunpack.c.l.b16 %v7081
    %v7446 = vunpack.c.h.b16 %v7081
    %v7447 = vunpack.c.l.b16 %v7082
    %v7448 = vunpack.c.h.b16 %v7082
    %v7449 = vunpack.c.l.b16 %v7083
    %v7450 = vunpack.c.h.b16 %v7083
    %v7451 = vunpack.c.l.b16 %v7084
    %v7452 = vunpack.c.h.b16 %v7084
    %v7453 = vunpack.c.l.b16 %v7085
    %v7454 = vunpack.c.h.b16 %v7085
    %v7455 = vunpack.c.l.b16 %v7086
    %v7456 = vunpack.c.h.b16 %v7086
    %v7457 = vunpack.c.l.b16 %v7087
    %v7458 = vunpack.c.h.b16 %v7087
    %v7459 = vunpack.c.l.b16 %v7088
    %v7460 = vunpack.c.h.b16 %v7088
    %v7461 = vunpack.c.l.b16 %v7089
    %v7462 = vunpack.c.h.b16 %v7089
    %v7463 = vunpack.c.l.b16 %v7090
    %v7464 = vunpack.c.h.b16 %v7090
    %v7465 = vunpack.c.l.b16 %v7091
    %v7466 = vunpack.c.h.b16 %v7091
    %v7467 = vunpack.c.l.b16 %v7092
    %v7468 = vunpack.c.h.b16 %v7092
    %v7469 = vunpack.c.l.b16 %v7093
    %v7470 = vunpack.c.h.b16 %v7093
    %v7471 = vunpack.c.l.b16 %v7094
    %v7472 = vunpack.c.h.b16 %v7094
    %v7473 = vunpack.c.l.b16 %v7095
    %v7474 = vunpack.c.h.b16 %v7095
    %v7475 = vunpack.c.l.b16 %v7096
    %v7476 = vunpack.c.h.b16 %v7096
    %v7477 = vunpack.c.l.b16 %v7097
    %v7478 = vunpack.c.h.b16 %v7097
    %v7479 = vunpack.c.l.b16 %v7098
    %v7480 = vunpack.c.h.b16 %v7098
    %v7481 = vunpack.c.l.b16 %v7099
    %v7482 = vunpack.c.h.b16 %v7099
    %v7483 = vunpack.c.l.b16 %v7100
    %v7484 = vunpack.c.h.b16 %v7100
    %v7485 = vunpack.c.l.b16 %v7101
    %v7486 = vunpack.c.h.b16 %v7101
    %v7487 = vunpack.c.l.b16 %v7102
    %v7488 = vunpack.c.h.b16 %v7102
    %v7489 = vunpack.c.l.b16 %v7103
    %v7490 = vunpack.c.h.b16 %v7103
    %v7491 = vunpack.c.l.b16 %v7104
    %v7492 = vunpack.c.h.b16 %v7104
    %v7493 = vunpack.c.l.b16 %v7105
    %v7494 = vunpack.c.h.b16 %v7105
    %v7495 = vunpack.c.l.b16 %v7106
    %v7496 = vunpack.c.h.b16 %v7106
    %v7497 = vunpack.c.l.b16 %v7107
    %v7498 = vunpack.c.h.b16 %v7107
    %v7499 = vunpack.c.l.b16 %v7108
    %v7500 = vunpack.c.h.b16 %v7108
    %v7501 = vunpack.c.l.b16 %v7109
    %v7502 = vunpack.c.h.b16 %v7109
    %v7503 = vunpack.c.l.b16 %v7110
    %v7504 = vunpack.c.h.b16 %v7110
    %v7505 = vunpack.c.l.b16 %v7111
    %v7506 = vunpack.c.h.b16 %v7111
    %v7507 = vunpack.c.l.b16 %v7112
    %v7508 = vunpack.c.h.b16 %v7112
    %v7509 = vunpack.c.l.b16 %v7113
    %v7510 = vunpack.c.h.b16 %v7113
    %v7511 = vunpack.c.l.b16 %v7114
    %v7512 = vunpack.c.h.b16 %v7114
    %v7513 = vunpack.c.l.b16 %v7115
    %v7514 = vunpack.c.h.b16 %v7115
    %v7515 = vunpack.c.l.b16 %v7116
    %v7516 = vunpack.c.h.b16 %v7116
    %v7517 = vunpack.c.l.b16 %v7117
    %v7518 = vunpack.c.h.b16 %v7117
    %v7519 = vunpack.c.l.b16 %v7118
    %v7520 = vunpack.c.h.b16 %v7118
    %v7521 = vunpack.c.l.b16 %v7119
    %v7522 = vunpack.c.h.b16 %v7119
    %v7523 = vunpack.c.l.b16 %v7120
    %v7524 = vunpack.c.h.b16 %v7120
    %v7525 = vunpack.c.l.b16 %v7121
    %v7526 = vunpack.c.h.b16 %v7121
    %v7527 = vunpack.c.l.b16 %v7122
    %v7528 = vunpack.c.h.b16 %v7122
    %v7529 = vunpack.c.l.b16 %v7123
    %v7530 = vunpack.c.h.b16 %v7123
    %v7531 = vunpack.c.l.b16 %v7124
    %v7532 = vunpack.c.h.b16 %v7124
    %v7533 = vunpack.c.l.b16 %v7125
    %v7534 = vunpack.c.h.b16 %v7125
    %v7535 = vunpack.c.l.b16 %v7126
    %v7536 = vunpack.c.h.b16 %v7126
    %v7537 = vunpack.c.l.b16 %v7127
    %v7538 = vunpack.c.h.b16 %v7127
    %v7539 = vunpack.c.l.b16 %v7128
    %v7540 = vunpack.c.h.b16 %v7128
    %v7541 = vunpack.c.l.b16 %v7129
    %v7542 = vunpack.c.h.b16 %v7129
    %v7543 = vunpack.c.l.b16 %v7130
    %v7544 = vunpack.c.h.b16 %v7130
    %v7545 = vunpack.c.l.b16 %v7131
    %v7546 = vunpack.c.h.b16 %v7131
    %v7547 = vunpack.c.l.b16 %v7132
    %v7548 = vunpack.c.h.b16 %v7132
    %v7549 = vunpack.c.l.b16 %v7133
    %v7550 = vunpack.c.h.b16 %v7133
    %v7551 = vunpack.c.l.b16 %v7134
    %v7552 = vunpack.c.h.b16 %v7134
    %v7553 = vunpack.c.l.b16 %v7135
    %v7554 = vunpack.c.h.b16 %v7135
    %v7555 = vunpack.c.l.b16 %v7136
    %v7556 = vunpack.c.h.b16 %v7136
    %v7557 = vunpack.c.l.b16 %v7137
    %v7558 = vunpack.c.h.b16 %v7137
    %v7559 = vunpack.c.l.b16 %v7138
    %v7560 = vunpack.c.h.b16 %v7138
    %v7561 = vunpack.c.l.b16 %v7139
    %v7562 = vunpack.c.h.b16 %v7139
    %v7563 = vunpack.c.l.b16 %v7140
    %v7564 = vunpack.c.h.b16 %v7140
    %v7565 = vunpack.c.l.b16 %v7141
    %v7566 = vunpack.c.h.b16 %v7141
    %v7567 = vunpack.c.l.b16 %v7142
    %v7568 = vunpack.c.h.b16 %v7142
    %v7569 = vunpack.c.l.b16 %v7143
    %v7570 = vunpack.c.h.b16 %v7143
    %v7571 = vunpack.c.l.b16 %v7144
    %v7572 = vunpack.c.h.b16 %v7144
    %v7573 = vunpack.c.l.b16 %v7145
    %v7574 = vunpack.c.h.b16 %v7145
    %v7575 = vunpack.c.l.b16 %v7146
    %v7576 = vunpack.c.h.b16 %v7146
    %v7577 = vunpack.c.l.b16 %v7147
    %v7578 = vunpack.c.h.b16 %v7147
    %v7579 = vunpack.c.l.b16 %v7148
    %v7580 = vunpack.c.h.b16 %v7148
    %v7581 = vunpack.c.l.b16 %v7149
    %v7582 = vunpack.c.h.b16 %v7149
    %v7583 = vunpack.c.l.b16 %v7150
    %v7584 = vunpack.c.h.b16 %v7150
    %v7585 = vunpack.c.l.b16 %v7151
    %v7586 = vunpack.c.h.b16 %v7151
    %v7587 = vunpack.c.l.b16 %v7152
    %v7588 = vunpack.c.h.b16 %v7152
    %v7589 = vunpack.c.l.b16 %v7153
    %v7590 = vunpack.c.h.b16 %v7153
    %v7591 = vunpack.c.l.b16 %v7154
    %v7592 = vunpack.c.h.b16 %v7154
    %v7593 = vunpack.c.l.b16 %v7155
    %v7594 = vunpack.c.h.b16 %v7155
    %v7595 = vunpack.c.l.b16 %v7156
    %v7596 = vunpack.c.h.b16 %v7156
    %v7597 = vunpack.c.l.b16 %v7157
    %v7598 = vunpack.c.h.b16 %v7157
    %v7599 = vunpack.c.l.b16 %v7158
    %v7600 = vunpack.c.h.b16 %v7158
    %v7601 = vunpack.c.l.b16 %v7159
    %v7602 = vunpack.c.h.b16 %v7159
    %v7603 = vunpack.c.l.b16 %v7160
    %v7604 = vunpack.c.h.b16 %v7160
    %v7605 = vunpack.c.l.b16 %v7161
    %v7606 = vunpack.c.h.b16 %v7161
    %v7607 = vunpack.c.l.b16 %v7162
    %v7608 = vunpack.c.h.b16 %v7162
    %v7609 = vunpack.c.l.b16 %v7163
    %v7610 = vunpack.c.h.b16 %v7163
    %v7611 = vunpack.c.l.b16 %v7164
    %v7612 = vunpack.c.h.b16 %v7164
    %v7613 = vunpack.c.l.b16 %v7165
    %v7614 = vunpack.c.h.b16 %v7165
    %v7615 = vpack.c.b16 %v7359, %v7357
    %v7616 = vpack.c.b16 %v7360, %v7358
    %v7617 = vpack.c.b16 %v7363, %v7361
    %v7618 = vpack.c.b16 %v7364, %v7362
    %v7619 = vpack.c.b16 %v7367, %v7365
    %v7620 = vpack.c.b16 %v7368, %v7366
    %v7621 = vpack.c.b16 %v7371, %v7369
    %v7622 = vpack.c.b16 %v7372, %v7370
    %v7623 = vpack.c.b16 %v7375, %v7373
    %v7624 = vpack.c.b16 %v7376, %v7374
    %v7625 = vpack.c.b16 %v7379, %v7377
    %v7626 = vpack.c.b16 %v7380, %v7378
    %v7627 = vpack.c.b16 %v7383, %v7381
    %v7628 = vpack.c.b16 %v7384, %v7382
    %v7629 = vpack.c.b16 %v7387, %v7385
    %v7630 = vpack.c.b16 %v7388, %v7386
    %v7631 = vpack.c.b16 %v7391, %v7389
    %v7632 = vpack.c.b16 %v7392, %v7390
    %v7633 = vpack.c.b16 %v7395, %v7393
    %v7634 = vpack.c.b16 %v7396, %v7394
    %v7635 = vpack.c.b16 %v7399, %v7397
    %v7636 = vpack.c.b16 %v7400, %v7398
    %v7637 = vpack.c.b16 %v7403, %v7401
    %v7638 = vpack.c.b16 %v7404, %v7402
    %v7639 = vpack.c.b16 %v7407, %v7405
    %v7640 = vpack.c.b16 %v7408, %v7406
    %v7641 = vpack.c.b16 %v7411, %v7409
    %v7642 = vpack.c.b16 %v7412, %v7410
    %v7643 = vpack.c.b16 %v7415, %v7413
    %v7644 = vpack.c.b16 %v7416, %v7414
    %v7645 = vpack.c.b16 %v7419, %v7417
    %v7646 = vpack.c.b16 %v7420, %v7418
    %v7647 = vpack.c.b16 %v7423, %v7421
    %v7648 = vpack.c.b16 %v7424, %v7422
    %v7649 = vpack.c.b16 %v7427, %v7425
    %v7650 = vpack.c.b16 %v7428, %v7426
    %v7651 = vpack.c.b16 %v7431, %v7429
    %v7652 = vpack.c.b16 %v7432, %v7430
    %v7653 = vpack.c.b16 %v7435, %v7433
    %v7654 = vpack.c.b16 %v7436, %v7434
    %v7655 = vpack.c.b16 %v7439, %v7437
    %v7656 = vpack.c.b16 %v7440, %v7438
    %v7657 = vpack.c.b16 %v7443, %v7441
    %v7658 = vpack.c.b16 %v7444, %v7442
    %v7659 = vpack.c.b16 %v7447, %v7445
    %v7660 = vpack.c.b16 %v7448, %v7446
    %v7661 = vpack.c.b16 %v7451, %v7449
    %v7662 = vpack.c.b16 %v7452, %v7450
    %v7663 = vpack.c.b16 %v7455, %v7453
    %v7664 = vpack.c.b16 %v7456, %v7454
    %v7665 = vpack.c.b16 %v7459, %v7457
    %v7666 = vpack.c.b16 %v7460, %v7458
    %v7667 = vpack.c.b16 %v7463, %v7461
    %v7668 = vpack.c.b16 %v7464, %v7462
    %v7669 = vpack.c.b16 %v7467, %v7465
    %v7670 = vpack.c.b16 %v7468, %v7466
    %v7671 = vpack.c.b16 %v7471, %v7469
    %v7672 = vpack.c.b16 %v7472, %v7470
    %v7673 = vpack.c.b16 %v7475, %v7473
    %v7674 = vpack.c.b16 %v7476, %v7474
    %v7675 = vpack.c.b16 %v7479, %v7477
    %v7676 = vpack.c.b16 %v7480, %v7478
    %v7677 = vpack.c.b16 %v7483, %v7481
    %v7678 = vpack.c.b16 %v7484, %v7482
    %v7679 = vpack.c.b16 %v7487, %v7485
    %v7680 = vpack.c.b16 %v7488, %v7486
    %v7681 = vpack.c.b16 %v7491, %v7489
    %v7682 = vpack.c.b16 %v7492, %v7490
    %v7683 = vpack.c.b16 %v7495, %v7493
    %v7684 = vpack.c.b16 %v7496, %v7494
    %v7685 = vpack.c.b16 %v7499, %v7497
    %v7686 = vpack.c.b16 %v7500, %v7498
    %v7687 = vpack.c.b16 %v7503, %v7501
    %v7688 = vpack.c.b16 %v7504, %v7502
    %v7689 = vpack.c.b16 %v7507, %v7505
    %v7690 = vpack.c.b16 %v7508, %v7506
    %v7691 = vpack.c.b16 %v7511, %v7509
    %v7692 = vpack.c.b16 %v7512, %v7510
    %v7693 = vpack.c.b16 %v7515, %v7513
    %v7694 = vpack.c.b16 %v7516, %v7514
    %v7695 = vpack.c.b16 %v7519, %v7517
    %v7696 = vpack.c.b16 %v7520, %v7518
    %v7697 = vpack.c.b16 %v7523, %v7521
    %v7698 = vpack.c.b16 %v7524, %v7522
    %v7699 = vpack.c.b16 %v7527, %v7525
    %v7700 = vpack.c.b16 %v7528, %v7526
    %v7701 = vpack.c.b16 %v7531, %v7529
    %v7702 = vpack.c.b16 %v7532, %v7530
    %v7703 = vpack.c.b16 %v7535, %v7533
    %v7704 = vpack.c.b16 %v7536, %v7534
    %v7705 = vpack.c.b16 %v7539, %v7537
    %v7706 = vpack.c.b16 %v7540, %v7538
    %v7707 = vpack.c.b16 %v7543, %v7541
    %v7708 = vpack.c.b16 %v7544, %v7542
    %v7709 = vpack.c.b16 %v7547, %v7545
    %v7710 = vpack.c.b16 %v7548, %v7546
    %v7711 = vpack.c.b16 %v7551, %v7549
    %v7712 = vpack.c.b16 %v7552, %v7550
    %v7713 = vpack.c.b16 %v7555, %v7553
    %v7714 = vpack.c.b16 %v7556, %v7554
    %v7715 = vpack.c.b16 %v7559, %v7557
    %v7716 = vpack.c.b16 %v7560, %v7558
    %v7717 = vpack.c.b16 %v7563, %v7561
    %v7718 = vpack.c.b16 %v7564, %v7562
    %v7719 = vpack.c.b16 %v7567, %v7565
    %v7720 = vpack.c.b16 %v7568, %v7566
    %v7721 = vpack.c.b16 %v7571, %v7569
    %v7722 = vpack.c.b16 %v7572, %v7570
    %v7723 = vpack.c.b16 %v7575, %v7573
    %v7724 = vpack.c.b16 %v7576, %v7574
    %v7725 = vpack.c.b16 %v7579, %v7577
    %v7726 = vpack.c.b16 %v7580, %v7578
    %v7727 = vpack.c.b16 %v7583, %v7581
    %v7728 = vpack.c.b16 %v7584, %v7582
    %v7729 = vpack.c.b16 %v7587, %v7585
    %v7730 = vpack.c.b16 %v7588, %v7586
    %v7731 = vpack.c.b16 %v7591, %v7589
    %v7732 = vpack.c.b16 %v7592, %v7590
    %v7733 = vpack.c.b16 %v7595, %v7593
    %v7734 = vpack.c.b16 %v7596, %v7594
    %v7735 = vpack.c.b16 %v7599, %v7597
    %v7736 = vpack.c.b16 %v7600, %v7598
    %v7737 = vpack.c.b16 %v7603, %v7601
    %v7738 = vpack.c.b16 %v7604, %v7602
    %v7739 = vpack.c.b16 %v7607, %v7605
    %v7740 = vpack.c.b16 %v7608, %v7606
    %v7741 = vpack.c.b16 %v7611, %v7609
    %v7742 = vpack.c.b16 %v7612, %v7610
    %v7743 = vpack.c.b16 %v7613, %v7613
    %v7744 = vpack.c.b16 %v7614, %v7614
    %vm7873 = vcmask 48128
    %v7875 = vsel %vm7873, %v7227, 0
    %vm7877 = vcmask 1042432
    %v7879 = vsel %vm7877, %v7743, 0
    %v7882 = vsel %vm7877, %v7744, 0
    %7884 = vmatprep.subr.bf16.mxu0 %v7616
    %7885 = vmatpush1.bf16.msra.mxu0 %v7615
    %7886 = vmatprep.subr.bf16.mxu0 %v7618
    %7887 = vmatpush1.bf16.msra.mxu0 %v7617
    %7888 = vmatprep.subr.bf16.mxu0 %v7620
    %7889 = vmatpush1.bf16.msra.mxu0 %v7619
    %7890 = vmatprep.subr.bf16.mxu0 %v7622
    %7891 = vmatpush1.bf16.msra.mxu0 %v7621
    %7892 = vmatprep.subr.bf16.mxu0 %v7624
    %7893 = vmatpush1.bf16.msra.mxu0 %v7623
    %7894 = vmatprep.subr.bf16.mxu0 %v7626
    %7895 = vmatpush1.bf16.msra.mxu0 %v7625
    %7896 = vmatprep.subr.bf16.mxu0 %v7628
    %7897 = vmatpush1.bf16.msra.mxu0 %v7627
    %7898 = vmatprep.subr.bf16.mxu0 %v7630
    %7899 = vmatpush1.bf16.msra.mxu0 %v7629
    %7900 = vmatprep.subr.bf16.mxu0 %v7632
    %7901 = vmatpush1.bf16.msra.mxu0 %v7631
    %7902 = vmatprep.subr.bf16.mxu0 %v7634
    %7903 = vmatpush1.bf16.msra.mxu0 %v7633
    %7904 = vmatprep.subr.bf16.mxu0 %v7636
    %7905 = vmatpush1.bf16.msra.mxu0 %v7635
    %7906 = vmatprep.subr.bf16.mxu0 %v7638
    %7907 = vmatpush1.bf16.msra.mxu0 %v7637
    %7908 = vmatprep.subr.bf16.mxu0 %v7640
    %7909 = vmatpush1.bf16.msra.mxu0 %v7639
    %7910 = vmatprep.subr.bf16.mxu0 %v7642
    %7911 = vmatpush1.bf16.msra.mxu0 %v7641
    %7912 = vmatprep.subr.bf16.mxu0 %v7644
    %7913 = vmatpush1.bf16.msra.mxu0 %v7643
    %7914 = vmatprep.subr.bf16.mxu0 %v7646
    %7915 = vmatpush1.bf16.msra.mxu0 %v7645
    %7916 = vmatprep.mubr.bf16.mxu0 %v7220
    %7917 = vmatmul.mubr.bf16.gmra.mrb[0].mxu0 %v7219
    %v7918 = vpop.f32.mrb[0].mxu0
    %v7919 = vadd.f32 0.0, %v7918
    %v7920 = vpop.f32.mrb[0].mxu0
    %v7921 = vadd.f32 0.0, %v7920
    %v7922 = vpop.f32.mrb[0].mxu0
    %v7923 = vpop.f32.mrb[0].mxu0
    %7924 = vdwg.mxu0
    %7925 = vmatprep.subr.bf16.mxu0 %v7648
    %7926 = vmatpush1.bf16.msra.mxu0 %v7647
    %7927 = vmatprep.subr.bf16.mxu0 %v7650
    %7928 = vmatpush1.bf16.msra.mxu0 %v7649
    %7929 = vmatprep.subr.bf16.mxu0 %v7652
    %7930 = vmatpush1.bf16.msra.mxu0 %v7651
    %7931 = vmatprep.subr.bf16.mxu0 %v7654
    %7932 = vmatpush1.bf16.msra.mxu0 %v7653
    %7933 = vmatprep.subr.bf16.mxu0 %v7656
    %7934 = vmatpush1.bf16.msra.mxu0 %v7655
    %7935 = vmatprep.subr.bf16.mxu0 %v7658
    %7936 = vmatpush1.bf16.msra.mxu0 %v7657
    %7937 = vmatprep.subr.bf16.mxu0 %v7660
    %7938 = vmatpush1.bf16.msra.mxu0 %v7659
    %7939 = vmatprep.subr.bf16.mxu0 %v7662
    %7940 = vmatpush1.bf16.msra.mxu0 %v7661
    %7941 = vmatprep.subr.bf16.mxu0 %v7664
    %7942 = vmatpush1.bf16.msra.mxu0 %v7663
    %7943 = vmatprep.subr.bf16.mxu0 %v7666
    %7944 = vmatpush1.bf16.msra.mxu0 %v7665
    %7945 = vmatprep.subr.bf16.mxu0 %v7668
    %7946 = vmatpush1.bf16.msra.mxu0 %v7667
    %7947 = vmatprep.subr.bf16.mxu0 %v7670
    %7948 = vmatpush1.bf16.msra.mxu0 %v7669
    %7949 = vmatprep.subr.bf16.mxu0 %v7672
    %7950 = vmatpush1.bf16.msra.mxu0 %v7671
    %7951 = vmatprep.subr.bf16.mxu0 %v7674
    %7952 = vmatpush1.bf16.msra.mxu0 %v7673
    %7953 = vmatprep.subr.bf16.mxu0 %v7676
    %7954 = vmatpush1.bf16.msra.mxu0 %v7675
    %7955 = vmatprep.subr.bf16.mxu0 %v7678
    %7956 = vmatpush1.bf16.msra.mxu0 %v7677
    %7957 = vmatprep.mubr.bf16.mxu0 %v7222
    %7958 = vmatmul.mubr.bf16.gmra.mrb[0].mxu0 %v7221
    %v7959 = vpop.f32.mrb[0].mxu0
    %v7960 = vadd.f32 %v7919, %v7959
    %v7961 = vpop.f32.mrb[0].mxu0
    %v7962 = vadd.f32 %v7921, %v7961
    %v7963 = vpop.f32.mrb[0].mxu0
    %v7964 = vpop.f32.mrb[0].mxu0
    %7965 = vdwg.mxu0
    %7966 = vmatprep.subr.bf16.mxu0 %v7680
    %7967 = vmatpush1.bf16.msra.mxu0 %v7679
    %7968 = vmatprep.subr.bf16.mxu0 %v7682
    %7969 = vmatpush1.bf16.msra.mxu0 %v7681
    %7970 = vmatprep.subr.bf16.mxu0 %v7684
    %7971 = vmatpush1.bf16.msra.mxu0 %v7683
    %7972 = vmatprep.subr.bf16.mxu0 %v7686
    %7973 = vmatpush1.bf16.msra.mxu0 %v7685
    %7974 = vmatprep.subr.bf16.mxu0 %v7688
    %7975 = vmatpush1.bf16.msra.mxu0 %v7687
    %7976 = vmatprep.subr.bf16.mxu0 %v7690
    %7977 = vmatpush1.bf16.msra.mxu0 %v7689
    %7978 = vmatprep.subr.bf16.mxu0 %v7692
    %7979 = vmatpush1.bf16.msra.mxu0 %v7691
    %7980 = vmatprep.subr.bf16.mxu0 %v7694
    %7981 = vmatpush1.bf16.msra.mxu0 %v7693
    %7982 = vmatprep.subr.bf16.mxu0 %v7696
    %7983 = vmatpush1.bf16.msra.mxu0 %v7695
    %7984 = vmatprep.subr.bf16.mxu0 %v7698
    %7985 = vmatpush1.bf16.msra.mxu0 %v7697
    %7986 = vmatprep.subr.bf16.mxu0 %v7700
    %7987 = vmatpush1.bf16.msra.mxu0 %v7699
    %7988 = vmatprep.subr.bf16.mxu0 %v7702
    %7989 = vmatpush1.bf16.msra.mxu0 %v7701
    %7990 = vmatprep.subr.bf16.mxu0 %v7704
    %7991 = vmatpush1.bf16.msra.mxu0 %v7703
    %7992 = vmatprep.subr.bf16.mxu0 %v7706
    %7993 = vmatpush1.bf16.msra.mxu0 %v7705
    %7994 = vmatprep.subr.bf16.mxu0 %v7708
    %7995 = vmatpush1.bf16.msra.mxu0 %v7707
    %7996 = vmatprep.subr.bf16.mxu0 %v7710
    %7997 = vmatpush1.bf16.msra.mxu0 %v7709
    %7998 = vmatprep.mubr.bf16.mxu0 %v7224
    %7999 = vmatmul.mubr.bf16.gmra.mrb[0].mxu0 %v7223
    %v8000 = vpop.f32.mrb[0].mxu0
    %v8001 = vadd.f32 %v7960, %v8000
    %v8002 = vpop.f32.mrb[0].mxu0
    %v8003 = vadd.f32 %v7962, %v8002
    %v8004 = vpop.f32.mrb[0].mxu0
    %v8005 = vpop.f32.mrb[0].mxu0
    %8006 = vdwg.mxu0
    %8007 = vmatprep.subr.bf16.mxu0 %v7712
    %8008 = vmatpush1.bf16.msra.mxu0 %v7711
    %8009 = vmatprep.subr.bf16.mxu0 %v7714
    %8010 = vmatpush1.bf16.msra.mxu0 %v7713
    %8011 = vmatprep.subr.bf16.mxu0 %v7716
    %8012 = vmatpush1.bf16.msra.mxu0 %v7715
    %8013 = vmatprep.subr.bf16.mxu0 %v7718
    %8014 = vmatpush1.bf16.msra.mxu0 %v7717
    %8015 = vmatprep.subr.bf16.mxu0 %v7720
    %8016 = vmatpush1.bf16.msra.mxu0 %v7719
    %8017 = vmatprep.subr.bf16.mxu0 %v7722
    %8018 = vmatpush1.bf16.msra.mxu0 %v7721
    %8019 = vmatprep.subr.bf16.mxu0 %v7724
    %8020 = vmatpush1.bf16.msra.mxu0 %v7723
    %8021 = vmatprep.subr.bf16.mxu0 %v7726
    %8022 = vmatpush1.bf16.msra.mxu0 %v7725
    %8023 = vmatprep.subr.bf16.mxu0 %v7728
    %8024 = vmatpush1.bf16.msra.mxu0 %v7727
    %8025 = vmatprep.subr.bf16.mxu0 %v7730
    %8026 = vmatpush1.bf16.msra.mxu0 %v7729
    %8027 = vmatprep.subr.bf16.mxu0 %v7732
    %8028 = vmatpush1.bf16.msra.mxu0 %v7731
    %8029 = vmatprep.subr.bf16.mxu0 %v7734
    %8030 = vmatpush1.bf16.msra.mxu0 %v7733
    %8031 = vmatprep.subr.bf16.mxu0 %v7736
    %8032 = vmatpush1.bf16.msra.mxu0 %v7735
    %8033 = vmatprep.subr.bf16.mxu0 %v7738
    %8034 = vmatpush1.bf16.msra.mxu0 %v7737
    %8035 = vmatprep.subr.bf16.mxu0 %v7740
    %8036 = vmatpush1.bf16.msra.mxu0 %v7739
    %8037 = vmatprep.subr.bf16.mxu0 %v7742
    %8038 = vmatpush1.bf16.msra.mxu0 %v7741
    %8039 = vmatprep.mubr.bf16.mxu0 %v7226
    %8040 = vmatmul.mubr.bf16.gmra.mrb[0].mxu0 %v7225
    %v8041 = vpop.f32.mrb[0].mxu0
    %v8042 = vadd.f32 %v8001, %v8041
    %v8043 = vpop.f32.mrb[0].mxu0
    %v8044 = vadd.f32 %v8003, %v8043
    %v8045 = vpop.f32.mrb[0].mxu0
    %v8046 = vpop.f32.mrb[0].mxu0
    %8047 = vdwg.mxu0
    %8048 = vmatprep.subr.bf16.mxu0 %v7882
    %8049 = vmatpush1.bf16.msra.mxu0 %v7879
    %8050 = vmatprep.subr.bf16.mxu0 0
    %8051 = vmatpush1.bf16.msra.mxu0 0
    %8052 = vmatprep.subr.bf16.mxu0 0
    %8053 = vmatpush1.bf16.msra.mxu0 0
    %8054 = vmatprep.subr.bf16.mxu0 0
    %8055 = vmatpush1.bf16.msra.mxu0 0
    %8056 = vmatprep.subr.bf16.mxu0 0
    %8057 = vmatpush1.bf16.msra.mxu0 0
    %8058 = vmatprep.subr.bf16.mxu0 0
    %8059 = vmatpush1.bf16.msra.mxu0 0
    %8060 = vmatprep.subr.bf16.mxu0 0
    %8061 = vmatpush1.bf16.msra.mxu0 0
    %8062 = vmatprep.subr.bf16.mxu0 0
    %8063 = vmatpush1.bf16.msra.mxu0 0
    %8064 = vmatprep.subr.bf16.mxu0 0
    %8065 = vmatpush1.bf16.msra.mxu0 0
    %8066 = vmatprep.subr.bf16.mxu0 0
    %8067 = vmatpush1.bf16.msra.mxu0 0
    %8068 = vmatprep.subr.bf16.mxu0 0
    %8069 = vmatpush1.bf16.msra.mxu0 0
    %8070 = vmatprep.subr.bf16.mxu0 0
    %8071 = vmatpush1.bf16.msra.mxu0 0
    %8072 = vmatprep.subr.bf16.mxu0 0
    %8073 = vmatpush1.bf16.msra.mxu0 0
    %8074 = vmatprep.subr.bf16.mxu0 0
    %8075 = vmatpush1.bf16.msra.mxu0 0
    %8076 = vmatprep.subr.bf16.mxu0 0
    %8077 = vmatpush1.bf16.msra.mxu0 0
    %8078 = vmatprep.subr.bf16.mxu0 0
    %8079 = vmatpush1.bf16.msra.mxu0 0
    %8080 = vmatprep.mubr.bf16.mxu0 0
    %8081 = vmatmul.mubr.bf16.gmra.mrb[0].mxu0 %v7875
    %v8082 = vpop.f32.mrb[0].mxu0
    %v8083 = vadd.f32 %v8042, %v8082
    %v8084 = vpop.f32.mrb[0].mxu0
    %v8085 = vadd.f32 %v8044, %v8084
    %v8086 = vpop.f32.mrb[0].mxu0
    %v8087 = vpop.f32.mrb[0].mxu0
    %8088 = vdwg.mxu0
    %8089 = vmatprep.subr.bf16.mxu0 %v6899
    %8090 = vmatpush1.bf16.msra.mxu0 %v6898
    %8091 = vmatprep.subr.bf16.mxu0 %v6901
    %8092 = vmatpush1.bf16.msra.mxu0 %v6900
    %8093 = vmatprep.subr.bf16.mxu0 %v6903
    %8094 = vmatpush1.bf16.msra.mxu0 %v6902
    %8095 = vmatprep.subr.bf16.mxu0 %v6905
    %8096 = vmatpush1.bf16.msra.mxu0 %v6904
    %8097 = vmatprep.subr.bf16.mxu0 %v6907
    %8098 = vmatpush1.bf16.msra.mxu0 %v6906
    %8099 = vmatprep.subr.bf16.mxu0 %v6909
    %8100 = vmatpush1.bf16.msra.mxu0 %v6908
    %8101 = vmatprep.subr.bf16.mxu0 %v6911
    %8102 = vmatpush1.bf16.msra.mxu0 %v6910
    %8103 = vmatprep.subr.bf16.mxu0 %v6913
    %8104 = vmatpush1.bf16.msra.mxu0 %v6912
    %8105 = vmatprep.subr.bf16.mxu0 %v6915
    %8106 = vmatpush1.bf16.msra.mxu0 %v6914
    %8107 = vmatprep.subr.bf16.mxu0 %v6917
    %8108 = vmatpush1.bf16.msra.mxu0 %v6916
    %8109 = vmatprep.subr.bf16.mxu0 %v6919
    %8110 = vmatpush1.bf16.msra.mxu0 %v6918
    %8111 = vmatprep.subr.bf16.mxu0 %v6921
    %8112 = vmatpush1.bf16.msra.mxu0 %v6920
    %8113 = vmatprep.subr.bf16.mxu0 %v6923
    %8114 = vmatpush1.bf16.msra.mxu0 %v6922
    %8115 = vmatprep.subr.bf16.mxu0 %v6925
    %8116 = vmatpush1.bf16.msra.mxu0 %v6924
    %8117 = vmatprep.subr.bf16.mxu0 %v6927
    %8118 = vmatpush1.bf16.msra.mxu0 %v6926
    %8119 = vmatprep.subr.bf16.mxu0 %v6929
    %8120 = vmatpush1.bf16.msra.mxu0 %v6928
    %8121 = vmatprep.mubr.bf16.mxu0 %v7027
    %8122 = vmatmul.mubr.bf16.gmra.mrb[0].mxu0 %v7026
    %v8123 = vpop.f32.mrb[0].mxu0
    %v8124 = vadd.f32 %v8083, %v8123
    %v8125 = vpop.f32.mrb[0].mxu0
    %v8126 = vadd.f32 %v8085, %v8125
    %v8127 = vpop.f32.mrb[0].mxu0
    %v8128 = vpop.f32.mrb[0].mxu0
    %8129 = vdwg.mxu0
    %8130 = vmatprep.subr.bf16.mxu0 %v6931
    %8131 = vmatpush1.bf16.msra.mxu0 %v6930
    %8132 = vmatprep.subr.bf16.mxu0 %v6933
    %8133 = vmatpush1.bf16.msra.mxu0 %v6932
    %8134 = vmatprep.subr.bf16.mxu0 %v6935
    %8135 = vmatpush1.bf16.msra.mxu0 %v6934
    %8136 = vmatprep.subr.bf16.mxu0 %v6937
    %8137 = vmatpush1.bf16.msra.mxu0 %v6936
    %8138 = vmatprep.subr.bf16.mxu0 %v6939
    %8139 = vmatpush1.bf16.msra.mxu0 %v6938
    %8140 = vmatprep.subr.bf16.mxu0 %v6941
    %8141 = vmatpush1.bf16.msra.mxu0 %v6940
    %8142 = vmatprep.subr.bf16.mxu0 %v6943
    %8143 = vmatpush1.bf16.msra.mxu0 %v6942
    %8144 = vmatprep.subr.bf16.mxu0 %v6945
    %8145 = vmatpush1.bf16.msra.mxu0 %v6944
    %8146 = vmatprep.subr.bf16.mxu0 %v6947
    %8147 = vmatpush1.bf16.msra.mxu0 %v6946
    %8148 = vmatprep.subr.bf16.mxu0 %v6949
    %8149 = vmatpush1.bf16.msra.mxu0 %v6948
    %8150 = vmatprep.subr.bf16.mxu0 %v6951
    %8151 = vmatpush1.bf16.msra.mxu0 %v6950
    %8152 = vmatprep.subr.bf16.mxu0 %v6953
    %8153 = vmatpush1.bf16.msra.mxu0 %v6952
    %8154 = vmatprep.subr.bf16.mxu0 %v6955
    %8155 = vmatpush1.bf16.msra.mxu0 %v6954
    %8156 = vmatprep.subr.bf16.mxu0 %v6957
    %8157 = vmatpush1.bf16.msra.mxu0 %v6956
    %8158 = vmatprep.subr.bf16.mxu0 %v6959
    %8159 = vmatpush1.bf16.msra.mxu0 %v6958
    %8160 = vmatprep.subr.bf16.mxu0 %v6961
    %8161 = vmatpush1.bf16.msra.mxu0 %v6960
    %8162 = vmatprep.mubr.bf16.mxu0 %v7029
    %8163 = vmatmul.mubr.bf16.gmra.mrb[0].mxu0 %v7028
    %v8164 = vpop.f32.mrb[0].mxu0
    %v8165 = vadd.f32 %v8124, %v8164
    %v8166 = vpop.f32.mrb[0].mxu0
    %v8167 = vadd.f32 %v8126, %v8166
    %v8168 = vpop.f32.mrb[0].mxu0
    %v8169 = vpop.f32.mrb[0].mxu0
    %8170 = vdwg.mxu0
    %8171 = vmatprep.subr.bf16.mxu0 %v6963
    %8172 = vmatpush1.bf16.msra.mxu0 %v6962
    %8173 = vmatprep.subr.bf16.mxu0 %v6965
    %8174 = vmatpush1.bf16.msra.mxu0 %v6964
    %8175 = vmatprep.subr.bf16.mxu0 %v6967
    %8176 = vmatpush1.bf16.msra.mxu0 %v6966
    %8177 = vmatprep.subr.bf16.mxu0 %v6969
    %8178 = vmatpush1.bf16.msra.mxu0 %v6968
    %8179 = vmatprep.subr.bf16.mxu0 %v6971
    %8180 = vmatpush1.bf16.msra.mxu0 %v6970
    %8181 = vmatprep.subr.bf16.mxu0 %v6973
    %8182 = vmatpush1.bf16.msra.mxu0 %v6972
    %8183 = vmatprep.subr.bf16.mxu0 %v6975
    %8184 = vmatpush1.bf16.msra.mxu0 %v6974
    %8185 = vmatprep.subr.bf16.mxu0 %v6977
    %8186 = vmatpush1.bf16.msra.mxu0 %v6976
    %8187 = vmatprep.subr.bf16.mxu0 %v6979
    %8188 = vmatpush1.bf16.msra.mxu0 %v6978
    %8189 = vmatprep.subr.bf16.mxu0 %v6981
    %8190 = vmatpush1.bf16.msra.mxu0 %v6980
    %8191 = vmatprep.subr.bf16.mxu0 %v6983
    %8192 = vmatpush1.bf16.msra.mxu0 %v6982
    %8193 = vmatprep.subr.bf16.mxu0 %v6985
    %8194 = vmatpush1.bf16.msra.mxu0 %v6984
    %8195 = vmatprep.subr.bf16.mxu0 %v6987
    %8196 = vmatpush1.bf16.msra.mxu0 %v6986
    %8197 = vmatprep.subr.bf16.mxu0 %v6989
    %8198 = vmatpush1.bf16.msra.mxu0 %v6988
    %8199 = vmatprep.subr.bf16.mxu0 %v6991
    %8200 = vmatpush1.bf16.msra.mxu0 %v6990
    %8201 = vmatprep.subr.bf16.mxu0 %v6993
    %8202 = vmatpush1.bf16.msra.mxu0 %v6992
    %8203 = vmatprep.mubr.bf16.mxu0 %v7031
    %8204 = vmatmul.mubr.bf16.gmra.mrb[0].mxu0 %v7030
    %v8205 = vpop.f32.mrb[0].mxu0
    %v8206 = vadd.f32 %v8165, %v8205
    %v8207 = vpop.f32.mrb[0].mxu0
    %v8208 = vadd.f32 %v8167, %v8207
    %v8209 = vpop.f32.mrb[0].mxu0
    %v8210 = vpop.f32.mrb[0].mxu0
    %8211 = vdwg.mxu0
    %8212 = vmatprep.subr.bf16.mxu0 %v6995
    %8213 = vmatpush1.bf16.msra.mxu0 %v6994
    %8214 = vmatprep.subr.bf16.mxu0 %v6997
    %8215 = vmatpush1.bf16.msra.mxu0 %v6996
    %8216 = vmatprep.subr.bf16.mxu0 %v6999
    %8217 = vmatpush1.bf16.msra.mxu0 %v6998
    %8218 = vmatprep.subr.bf16.mxu0 %v7001
    %8219 = vmatpush1.bf16.msra.mxu0 %v7000
    %8220 = vmatprep.subr.bf16.mxu0 %v7003
    %8221 = vmatpush1.bf16.msra.mxu0 %v7002
    %8222 = vmatprep.subr.bf16.mxu0 %v7005
    %8223 = vmatpush1.bf16.msra.mxu0 %v7004
    %8224 = vmatprep.subr.bf16.mxu0 %v7007
    %8225 = vmatpush1.bf16.msra.mxu0 %v7006
    %8226 = vmatprep.subr.bf16.mxu0 %v7009
    %8227 = vmatpush1.bf16.msra.mxu0 %v7008
    %8228 = vmatprep.subr.bf16.mxu0 %v7011
    %8229 = vmatpush1.bf16.msra.mxu0 %v7010
    %8230 = vmatprep.subr.bf16.mxu0 %v7013
    %8231 = vmatpush1.bf16.msra.mxu0 %v7012
    %8232 = vmatprep.subr.bf16.mxu0 %v7015
    %8233 = vmatpush1.bf16.msra.mxu0 %v7014
    %8234 = vmatprep.subr.bf16.mxu0 %v7017
    %8235 = vmatpush1.bf16.msra.mxu0 %v7016
    %8236 = vmatprep.subr.bf16.mxu0 %v7019
    %8237 = vmatpush1.bf16.msra.mxu0 %v7018
    %8238 = vmatprep.subr.bf16.mxu0 %v7021
    %8239 = vmatpush1.bf16.msra.mxu0 %v7020
    %8240 = vmatprep.subr.bf16.mxu0 %v7023
    %8241 = vmatpush1.bf16.msra.mxu0 %v7022
    %8242 = vmatprep.subr.bf16.mxu0 %v7025
    %8243 = vmatpush1.bf16.msra.mxu0 %v7024
    %8244 = vmatprep.mubr.bf16.mxu0 %v7033
    %8245 = vmatmul.mubr.bf16.gmra.mrb[0].mxu0 %v7032
    %v8246 = vpop.f32.mrb[0].mxu0
    %v8247 = vadd.f32 %v8206, %v8246
    %v8248 = vpop.f32.mrb[0].mxu0
    %v8249 = vadd.f32 %v8208, %v8248
    %v8250 = vpop.f32.mrb[0].mxu0
    %v8251 = vpop.f32.mrb[0].mxu0
    %8252 = vdwg.mxu0
    %v8253 = vld [vmem:[%s7 + $0xf] sm:$0x3]
    %v8255 = vlaneseq
    %v8256 = vshrl.u32 %v8255, 7
    %v8257 = vsub.s32 0, %v8256
    %v8258 = vrot.slane %v8253, %v8257
    %v8259 = vlaneseq
    %v8260 = vshrl.u32 %v8259, 7
    %v8261 = vsub.s32 1, %v8260
    %v8262 = vrot.slane %v8253, %v8261
    %v8265 = vadd.f32 %v8247, %v8258
    %v8266 = vadd.f32 %v8249, %v8262
    %v8267 = vld [vmem:[#allocation4] sm:$0xff]
    %v8268 = vld [vmem:[#allocation4 + $0x8] sm:$0xff]
    %v8269 = vld [vmem:[#allocation4 + $0x68] sm:$0xff]
    %v8270 = vld [vmem:[#allocation4 + $0x70] sm:$0xff]
    %v8271 = vld [vmem:[#allocation4 + $0xd0] sm:$0xff]
    %v8272 = vld [vmem:[#allocation4 + $0xd8] sm:$0xff]
    %v8273 = vld [vmem:[#allocation4 + $0x138] sm:$0xff]
    %v8274 = vld [vmem:[#allocation4 + $0x140] sm:$0xff]
    %v8275 = vld [vmem:[#allocation4 + $0x1a0] sm:$0xff]
    %v8276 = vld [vmem:[#allocation4 + $0x1a8] sm:$0xff]
    %v8277 = vld [vmem:[#allocation4 + $0x208] sm:$0xff]
    %v8278 = vld [vmem:[#allocation4 + $0x210] sm:$0xff]
    %v8279 = vld [vmem:[#allocation4 + $0x270] sm:$0xff]
    %v8280 = vld [vmem:[#allocation4 + $0x278] sm:$0xff]
    %v8281 = vld [vmem:[#allocation4 + $0x2d8] sm:$0xff]
    %v8282 = vld [vmem:[#allocation4 + $0x2e0] sm:$0xff]
    %v8283 = vld [vmem:[#allocation4 + $0x340] sm:$0xff]
    %v8284 = vld [vmem:[#allocation4 + $0x348] sm:$0xff]
    %v8285 = vld [vmem:[#allocation4 + $0x3a8] sm:$0xff]
    %v8286 = vld [vmem:[#allocation4 + $0x3b0] sm:$0xff]
    %v8287 = vld [vmem:[#allocation4 + $0x410] sm:$0xff]
    %v8288 = vld [vmem:[#allocation4 + $0x418] sm:$0xff]
    %v8289 = vld [vmem:[#allocation4 + $0x478] sm:$0xff]
    %v8290 = vld [vmem:[#allocation4 + $0x480] sm:$0xff]
    %v8291 = vld [vmem:[#allocation4 + $0x4e0] sm:$0xff]
    %v8292 = vld [vmem:[#allocation4 + $0x4e8] sm:$0xff]
    %v8293 = vld [vmem:[#allocation4 + $0x548] sm:$0xff]
    %v8294 = vld [vmem:[#allocation4 + $0x550] sm:$0xff]
    %v8295 = vld [vmem:[#allocation4 + $0x5b0] sm:$0xff]
    %v8296 = vld [vmem:[#allocation4 + $0x5b8] sm:$0xff]
    %v8297 = vld [vmem:[#allocation4 + $0x618] sm:$0xff]
    %v8298 = vld [vmem:[#allocation4 + $0x620] sm:$0xff]
    %v8299 = vpack.c.bf16 %v8265, %v8265
    %v8300 = vpack.c.bf16 %v8266, %v8266
    %v8301 = vld [vmem:[%s7 + $0x11] sm:$0x3]
    %v8303 = vlaneseq
    %v8304 = vshrl.u32 %v8303, 7
    %v8305 = vsub.s32 0, %v8304
    %v8306 = vrot.slane %v8301, %v8305
    %v8307 = vlaneseq
    %v8308 = vshrl.u32 %v8307, 7
    %v8309 = vsub.s32 1, %v8308
    %v8310 = vrot.slane %v8301, %v8309
    %8313 = vmatprep.subr.bf16.mxu0 %v8268
    %8314 = vmatpush1.bf16.msra.mxu0 %v8267
    %8315 = vmatprep.subr.bf16.mxu0 %v8270
    %8316 = vmatpush1.bf16.msra.mxu0 %v8269
    %8317 = vmatprep.subr.bf16.mxu0 %v8272
    %8318 = vmatpush1.bf16.msra.mxu0 %v8271
    %8319 = vmatprep.subr.bf16.mxu0 %v8274
    %8320 = vmatpush1.bf16.msra.mxu0 %v8273
    %8321 = vmatprep.subr.bf16.mxu0 %v8276
    %8322 = vmatpush1.bf16.msra.mxu0 %v8275
    %8323 = vmatprep.subr.bf16.mxu0 %v8278
    %8324 = vmatpush1.bf16.msra.mxu0 %v8277
    %8325 = vmatprep.subr.bf16.mxu0 %v8280
    %8326 = vmatpush1.bf16.msra.mxu0 %v8279
    %8327 = vmatprep.subr.bf16.mxu0 %v8282
    %8328 = vmatpush1.bf16.msra.mxu0 %v8281
    %8329 = vmatprep.subr.bf16.mxu0 %v8284
    %8330 = vmatpush1.bf16.msra.mxu0 %v8283
    %8331 = vmatprep.subr.bf16.mxu0 %v8286
    %8332 = vmatpush1.bf16.msra.mxu0 %v8285
    %8333 = vmatprep.subr.bf16.mxu0 %v8288
    %8334 = vmatpush1.bf16.msra.mxu0 %v8287
    %8335 = vmatprep.subr.bf16.mxu0 %v8290
    %8336 = vmatpush1.bf16.msra.mxu0 %v8289
    %8337 = vmatprep.subr.bf16.mxu0 %v8292
    %8338 = vmatpush1.bf16.msra.mxu0 %v8291
    %8339 = vmatprep.subr.bf16.mxu0 %v8294
    %8340 = vmatpush1.bf16.msra.mxu0 %v8293
    %8341 = vmatprep.subr.bf16.mxu0 %v8296
    %8342 = vmatpush1.bf16.msra.mxu0 %v8295
    %8343 = vmatprep.subr.bf16.mxu0 %v8298
    %8344 = vmatpush1.bf16.msra.mxu0 %v8297
    %8345 = vmatprep.mubr.bf16.mxu0 %v8300
    %8346 = vmatmul.mubr.bf16.gmra.mrb[0].mxu0 %v8299
    %v8347 = vpop.f32.mrb[0].mxu0
    %v8348 = vadd.f32 %v8306, %v8347
    %v8349 = vpop.f32.mrb[0].mxu0
    %v8350 = vadd.f32 %v8310, %v8349
    %v8351 = vpop.f32.mrb[0].mxu0
    %v8352 = vpop.f32.mrb[0].mxu0
    %8353 = vdwg.mxu0
    %v8354 = vmax.f32 %v8348, 0.0
    %v8355 = vmax.f32 %v8350, 0.0
    %v8356 = vld [vmem:[#allocation4 + $0x10] sm:$0xff]
    %v8357 = vld [vmem:[#allocation4 + $0x18] sm:$0xff]
    %v8358 = vld [vmem:[#allocation4 + $0x78] sm:$0xff]
    %v8359 = vld [vmem:[#allocation4 + $0x80] sm:$0xff]
    %v8360 = vld [vmem:[#allocation4 + $0xe0] sm:$0xff]
    %v8361 = vld [vmem:[#allocation4 + $0xe8] sm:$0xff]
    %v8362 = vld [vmem:[#allocation4 + $0x148] sm:$0xff]
    %v8363 = vld [vmem:[#allocation4 + $0x150] sm:$0xff]
    %v8364 = vld [vmem:[#allocation4 + $0x1b0] sm:$0xff]
    %v8365 = vld [vmem:[#allocation4 + $0x1b8] sm:$0xff]
    %v8366 = vld [vmem:[#allocation4 + $0x218] sm:$0xff]
    %v8367 = vld [vmem:[#allocation4 + $0x220] sm:$0xff]
    %v8368 = vld [vmem:[#allocation4 + $0x280] sm:$0xff]
    %v8369 = vld [vmem:[#allocation4 + $0x288] sm:$0xff]
    %v8370 = vld [vmem:[#allocation4 + $0x2e8] sm:$0xff]
    %v8371 = vld [vmem:[#allocation4 + $0x2f0] sm:$0xff]
    %v8372 = vld [vmem:[#allocation4 + $0x350] sm:$0xff]
    %v8373 = vld [vmem:[#allocation4 + $0x358] sm:$0xff]
    %v8374 = vld [vmem:[#allocation4 + $0x3b8] sm:$0xff]
    %v8375 = vld [vmem:[#allocation4 + $0x3c0] sm:$0xff]
    %v8376 = vld [vmem:[#allocation4 + $0x420] sm:$0xff]
    %v8377 = vld [vmem:[#allocation4 + $0x428] sm:$0xff]
    %v8378 = vld [vmem:[#allocation4 + $0x488] sm:$0xff]
    %v8379 = vld [vmem:[#allocation4 + $0x490] sm:$0xff]
    %v8380 = vld [vmem:[#allocation4 + $0x4f0] sm:$0xff]
    %v8381 = vld [vmem:[#allocation4 + $0x4f8] sm:$0xff]
    %v8382 = vld [vmem:[#allocation4 + $0x558] sm:$0xff]
    %v8383 = vld [vmem:[#allocation4 + $0x560] sm:$0xff]
    %v8384 = vld [vmem:[#allocation4 + $0x5c0] sm:$0xff]
    %v8385 = vld [vmem:[#allocation4 + $0x5c8] sm:$0xff]
    %v8386 = vld [vmem:[#allocation4 + $0x628] sm:$0xff]
    %v8387 = vld [vmem:[#allocation4 + $0x630] sm:$0xff]
    %v8388 = vpack.c.bf16 %v8354, %v8354
    %v8389 = vpack.c.bf16 %v8355, %v8355
    %v8390 = vld [vmem:[%s7 + $0x13] sm:$0x3]
    %v8392 = vlaneseq
    %v8393 = vshrl.u32 %v8392, 7
    %v8394 = vsub.s32 0, %v8393
    %v8395 = vrot.slane %v8390, %v8394
    %v8396 = vlaneseq
    %v8397 = vshrl.u32 %v8396, 7
    %v8398 = vsub.s32 1, %v8397
    %v8399 = vrot.slane %v8390, %v8398
    %8402 = vmatprep.subr.bf16.mxu0 %v8357
    %8403 = vmatpush1.bf16.msra.mxu0 %v8356
    %8404 = vmatprep.subr.bf16.mxu0 %v8359
    %8405 = vmatpush1.bf16.msra.mxu0 %v8358
    %8406 = vmatprep.subr.bf16.mxu0 %v8361
    %8407 = vmatpush1.bf16.msra.mxu0 %v8360
    %8408 = vmatprep.subr.bf16.mxu0 %v8363
    %8409 = vmatpush1.bf16.msra.mxu0 %v8362
    %8410 = vmatprep.subr.bf16.mxu0 %v8365
    %8411 = vmatpush1.bf16.msra.mxu0 %v8364
    %8412 = vmatprep.subr.bf16.mxu0 %v8367
    %8413 = vmatpush1.bf16.msra.mxu0 %v8366
    %8414 = vmatprep.subr.bf16.mxu0 %v8369
    %8415 = vmatpush1.bf16.msra.mxu0 %v8368
    %8416 = vmatprep.subr.bf16.mxu0 %v8371
    %8417 = vmatpush1.bf16.msra.mxu0 %v8370
    %8418 = vmatprep.subr.bf16.mxu0 %v8373
    %8419 = vmatpush1.bf16.msra.mxu0 %v8372
    %8420 = vmatprep.subr.bf16.mxu0 %v8375
    %8421 = vmatpush1.bf16.msra.mxu0 %v8374
    %8422 = vmatprep.subr.bf16.mxu0 %v8377
    %8423 = vmatpush1.bf16.msra.mxu0 %v8376
    %8424 = vmatprep.subr.bf16.mxu0 %v8379
    %8425 = vmatpush1.bf16.msra.mxu0 %v8378
    %8426 = vmatprep.subr.bf16.mxu0 %v8381
    %8427 = vmatpush1.bf16.msra.mxu0 %v8380
    %8428 = vmatprep.subr.bf16.mxu0 %v8383
    %8429 = vmatpush1.bf16.msra.mxu0 %v8382
    %8430 = vmatprep.subr.bf16.mxu0 %v8385
    %8431 = vmatpush1.bf16.msra.mxu0 %v8384
    %8432 = vmatprep.subr.bf16.mxu0 %v8387
    %8433 = vmatpush1.bf16.msra.mxu0 %v8386
    %8434 = vmatprep.mubr.bf16.mxu0 %v8389
    %8435 = vmatmul.mubr.bf16.gmra.mrb[0].mxu0 %v8388
    %v8436 = vpop.f32.mrb[0].mxu0
    %v8437 = vadd.f32 %v8395, %v8436
    %v8438 = vpop.f32.mrb[0].mxu0
    %v8439 = vadd.f32 %v8399, %v8438
    %v8440 = vpop.f32.mrb[0].mxu0
    %v8441 = vpop.f32.mrb[0].mxu0
    %8442 = vdwg.mxu0
    %v8443 = vmax.f32 %v8437, 0.0
    %v8444 = vmax.f32 %v8439, 0.0
    %v8445 = vld [vmem:[#allocation4 + $0x20] sm:$0xff]
    %v8446 = vld [vmem:[#allocation4 + $0x28] sm:$0xff]
    %v8447 = vld [vmem:[#allocation4 + $0x88] sm:$0xff]
    %v8448 = vld [vmem:[#allocation4 + $0x90] sm:$0xff]
    %v8449 = vld [vmem:[#allocation4 + $0xf0] sm:$0xff]
    %v8450 = vld [vmem:[#allocation4 + $0xf8] sm:$0xff]
    %v8451 = vld [vmem:[#allocation4 + $0x158] sm:$0xff]
    %v8452 = vld [vmem:[#allocation4 + $0x160] sm:$0xff]
    %v8453 = vld [vmem:[#allocation4 + $0x1c0] sm:$0xff]
    %v8454 = vld [vmem:[#allocation4 + $0x1c8] sm:$0xff]
    %v8455 = vld [vmem:[#allocation4 + $0x228] sm:$0xff]
    %v8456 = vld [vmem:[#allocation4 + $0x230] sm:$0xff]
    %v8457 = vld [vmem:[#allocation4 + $0x290] sm:$0xff]
    %v8458 = vld [vmem:[#allocation4 + $0x298] sm:$0xff]
    %v8459 = vld [vmem:[#allocation4 + $0x2f8] sm:$0xff]
    %v8460 = vld [vmem:[#allocation4 + $0x300] sm:$0xff]
    %v8461 = vld [vmem:[#allocation4 + $0x360] sm:$0xff]
    %v8462 = vld [vmem:[#allocation4 + $0x368] sm:$0xff]
    %v8463 = vld [vmem:[#allocation4 + $0x3c8] sm:$0xff]
    %v8464 = vld [vmem:[#allocation4 + $0x3d0] sm:$0xff]
    %v8465 = vld [vmem:[#allocation4 + $0x430] sm:$0xff]
    %v8466 = vld [vmem:[#allocation4 + $0x438] sm:$0xff]
    %v8467 = vld [vmem:[#allocation4 + $0x498] sm:$0xff]
    %v8468 = vld [vmem:[#allocation4 + $0x4a0] sm:$0xff]
    %v8469 = vld [vmem:[#allocation4 + $0x500] sm:$0xff]
    %v8470 = vld [vmem:[#allocation4 + $0x508] sm:$0xff]
    %v8471 = vld [vmem:[#allocation4 + $0x568] sm:$0xff]
    %v8472 = vld [vmem:[#allocation4 + $0x570] sm:$0xff]
    %v8473 = vld [vmem:[#allocation4 + $0x5d0] sm:$0xff]
    %v8474 = vld [vmem:[#allocation4 + $0x5d8] sm:$0xff]
    %v8475 = vld [vmem:[#allocation4 + $0x638] sm:$0xff]
    %v8476 = vld [vmem:[#allocation4 + $0x640] sm:$0xff]
    %v8477 = vpack.c.bf16 %v8443, %v8443
    %v8478 = vpack.c.bf16 %v8444, %v8444
    %v8479 = vld [vmem:[%s7 + $0x15] sm:$0x3]
    %v8481 = vlaneseq
    %v8482 = vshrl.u32 %v8481, 7
    %v8483 = vsub.s32 0, %v8482
    %v8484 = vrot.slane %v8479, %v8483
    %v8485 = vlaneseq
    %v8486 = vshrl.u32 %v8485, 7
    %v8487 = vsub.s32 1, %v8486
    %v8488 = vrot.slane %v8479, %v8487
    %8491 = vmatprep.subr.bf16.mxu0 %v8446
    %8492 = vmatpush1.bf16.msra.mxu0 %v8445
    %8493 = vmatprep.subr.bf16.mxu0 %v8448
    %8494 = vmatpush1.bf16.msra.mxu0 %v8447
    %8495 = vmatprep.subr.bf16.mxu0 %v8450
    %8496 = vmatpush1.bf16.msra.mxu0 %v8449
    %8497 = vmatprep.subr.bf16.mxu0 %v8452
    %8498 = vmatpush1.bf16.msra.mxu0 %v8451
    %8499 = vmatprep.subr.bf16.mxu0 %v8454
    %8500 = vmatpush1.bf16.msra.mxu0 %v8453
    %8501 = vmatprep.subr.bf16.mxu0 %v8456
    %8502 = vmatpush1.bf16.msra.mxu0 %v8455
    %8503 = vmatprep.subr.bf16.mxu0 %v8458
    %8504 = vmatpush1.bf16.msra.mxu0 %v8457
    %8505 = vmatprep.subr.bf16.mxu0 %v8460
    %8506 = vmatpush1.bf16.msra.mxu0 %v8459
    %8507 = vmatprep.subr.bf16.mxu0 %v8462
    %8508 = vmatpush1.bf16.msra.mxu0 %v8461
    %8509 = vmatprep.subr.bf16.mxu0 %v8464
    %8510 = vmatpush1.bf16.msra.mxu0 %v8463
    %8511 = vmatprep.subr.bf16.mxu0 %v8466
    %8512 = vmatpush1.bf16.msra.mxu0 %v8465
    %8513 = vmatprep.subr.bf16.mxu0 %v8468
    %8514 = vmatpush1.bf16.msra.mxu0 %v8467
    %8515 = vmatprep.subr.bf16.mxu0 %v8470
    %8516 = vmatpush1.bf16.msra.mxu0 %v8469
    %8517 = vmatprep.subr.bf16.mxu0 %v8472
    %8518 = vmatpush1.bf16.msra.mxu0 %v8471
    %8519 = vmatprep.subr.bf16.mxu0 %v8474
    %8520 = vmatpush1.bf16.msra.mxu0 %v8473
    %8521 = vmatprep.subr.bf16.mxu0 %v8476
    %8522 = vmatpush1.bf16.msra.mxu0 %v8475
    %8523 = vmatprep.mubr.bf16.mxu0 %v8478
    %8524 = vmatmul.mubr.bf16.gmra.mrb[0].mxu0 %v8477
    %v8525 = vpop.f32.mrb[0].mxu0
    %v8526 = vadd.f32 %v8484, %v8525
    %v8527 = vpop.f32.mrb[0].mxu0
    %v8528 = vadd.f32 %v8488, %v8527
    %v8529 = vpop.f32.mrb[0].mxu0
    %v8530 = vpop.f32.mrb[0].mxu0
    %8531 = vdwg.mxu0
    %v8532 = vmax.f32 %v8526, 0.0
    %v8533 = vmax.f32 %v8528, 0.0
    %v8534 = vld [vmem:[#allocation4 + $0x30] sm:$0xff]
    %v8535 = vld [vmem:[#allocation4 + $0x38] sm:$0xff]
    %v8536 = vld [vmem:[#allocation4 + $0x98] sm:$0xff]
    %v8537 = vld [vmem:[#allocation4 + $0xa0] sm:$0xff]
    %v8538 = vld [vmem:[#allocation4 + $0x100] sm:$0xff]
    %v8539 = vld [vmem:[#allocation4 + $0x108] sm:$0xff]
    %v8540 = vld [vmem:[#allocation4 + $0x168] sm:$0xff]
    %v8541 = vld [vmem:[#allocation4 + $0x170] sm:$0xff]
    %v8542 = vld [vmem:[#allocation4 + $0x1d0] sm:$0xff]
    %v8543 = vld [vmem:[#allocation4 + $0x1d8] sm:$0xff]
    %v8544 = vld [vmem:[#allocation4 + $0x238] sm:$0xff]
    %v8545 = vld [vmem:[#allocation4 + $0x240] sm:$0xff]
    %v8546 = vld [vmem:[#allocation4 + $0x2a0] sm:$0xff]
    %v8547 = vld [vmem:[#allocation4 + $0x2a8] sm:$0xff]
    %v8548 = vld [vmem:[#allocation4 + $0x308] sm:$0xff]
    %v8549 = vld [vmem:[#allocation4 + $0x310] sm:$0xff]
    %v8550 = vld [vmem:[#allocation4 + $0x370] sm:$0xff]
    %v8551 = vld [vmem:[#allocation4 + $0x378] sm:$0xff]
    %v8552 = vld [vmem:[#allocation4 + $0x3d8] sm:$0xff]
    %v8553 = vld [vmem:[#allocation4 + $0x3e0] sm:$0xff]
    %v8554 = vld [vmem:[#allocation4 + $0x440] sm:$0xff]
    %v8555 = vld [vmem:[#allocation4 + $0x448] sm:$0xff]
    %v8556 = vld [vmem:[#allocation4 + $0x4a8] sm:$0xff]
    %v8557 = vld [vmem:[#allocation4 + $0x4b0] sm:$0xff]
    %v8558 = vld [vmem:[#allocation4 + $0x510] sm:$0xff]
    %v8559 = vld [vmem:[#allocation4 + $0x518] sm:$0xff]
    %v8560 = vld [vmem:[#allocation4 + $0x578] sm:$0xff]
    %v8561 = vld [vmem:[#allocation4 + $0x580] sm:$0xff]
    %v8562 = vld [vmem:[#allocation4 + $0x5e0] sm:$0xff]
    %v8563 = vld [vmem:[#allocation4 + $0x5e8] sm:$0xff]
    %v8564 = vld [vmem:[#allocation4 + $0x648] sm:$0xff]
    %v8565 = vld [vmem:[#allocation4 + $0x650] sm:$0xff]
    %v8566 = vpack.c.bf16 %v8532, %v8532
    %v8567 = vpack.c.bf16 %v8533, %v8533
    %v8568 = vld [vmem:[%s7 + $0x17] sm:$0x3]
    %v8570 = vlaneseq
    %v8571 = vshrl.u32 %v8570, 7
    %v8572 = vsub.s32 0, %v8571
    %v8573 = vrot.slane %v8568, %v8572
    %v8574 = vlaneseq
    %v8575 = vshrl.u32 %v8574, 7
    %v8576 = vsub.s32 1, %v8575
    %v8577 = vrot.slane %v8568, %v8576
    %8580 = vmatprep.subr.bf16.mxu0 %v8535
    %8581 = vmatpush1.bf16.msra.mxu0 %v8534
    %8582 = vmatprep.subr.bf16.mxu0 %v8537
    %8583 = vmatpush1.bf16.msra.mxu0 %v8536
    %8584 = vmatprep.subr.bf16.mxu0 %v8539
    %8585 = vmatpush1.bf16.msra.mxu0 %v8538
    %8586 = vmatprep.subr.bf16.mxu0 %v8541
    %8587 = vmatpush1.bf16.msra.mxu0 %v8540
    %8588 = vmatprep.subr.bf16.mxu0 %v8543
    %8589 = vmatpush1.bf16.msra.mxu0 %v8542
    %8590 = vmatprep.subr.bf16.mxu0 %v8545
    %8591 = vmatpush1.bf16.msra.mxu0 %v8544
    %8592 = vmatprep.subr.bf16.mxu0 %v8547
    %8593 = vmatpush1.bf16.msra.mxu0 %v8546
    %8594 = vmatprep.subr.bf16.mxu0 %v8549
    %8595 = vmatpush1.bf16.msra.mxu0 %v8548
    %8596 = vmatprep.subr.bf16.mxu0 %v8551
    %8597 = vmatpush1.bf16.msra.mxu0 %v8550
    %8598 = vmatprep.subr.bf16.mxu0 %v8553
    %8599 = vmatpush1.bf16.msra.mxu0 %v8552
    %8600 = vmatprep.subr.bf16.mxu0 %v8555
    %8601 = vmatpush1.bf16.msra.mxu0 %v8554
    %8602 = vmatprep.subr.bf16.mxu0 %v8557
    %8603 = vmatpush1.bf16.msra.mxu0 %v8556
    %8604 = vmatprep.subr.bf16.mxu0 %v8559
    %8605 = vmatpush1.bf16.msra.mxu0 %v8558
    %8606 = vmatprep.subr.bf16.mxu0 %v8561
    %8607 = vmatpush1.bf16.msra.mxu0 %v8560
    %8608 = vmatprep.subr.bf16.mxu0 %v8563
    %8609 = vmatpush1.bf16.msra.mxu0 %v8562
    %8610 = vmatprep.subr.bf16.mxu0 %v8565
    %8611 = vmatpush1.bf16.msra.mxu0 %v8564
    %8612 = vmatprep.mubr.bf16.mxu0 %v8567
    %8613 = vmatmul.mubr.bf16.gmra.mrb[0].mxu0 %v8566
    %v8614 = vpop.f32.mrb[0].mxu0
    %v8615 = vadd.f32 %v8573, %v8614
    %v8616 = vpop.f32.mrb[0].mxu0
    %v8617 = vadd.f32 %v8577, %v8616
    %v8618 = vpop.f32.mrb[0].mxu0
    %v8619 = vpop.f32.mrb[0].mxu0
    %8620 = vdwg.mxu0
    %v8621 = vmax.f32 %v8615, 0.0
    %v8622 = vmax.f32 %v8617, 0.0
    %v8623 = vld [vmem:[#allocation4 + $0x40] sm:$0xff]
    %v8624 = vld [vmem:[#allocation4 + $0x48] sm:$0xff]
    %v8625 = vld [vmem:[#allocation4 + $0xa8] sm:$0xff]
    %v8626 = vld [vmem:[#allocation4 + $0xb0] sm:$0xff]
    %v8627 = vld [vmem:[#allocation4 + $0x110] sm:$0xff]
    %v8628 = vld [vmem:[#allocation4 + $0x118] sm:$0xff]
    %v8629 = vld [vmem:[#allocation4 + $0x178] sm:$0xff]
    %v8630 = vld [vmem:[#allocation4 + $0x180] sm:$0xff]
    %v8631 = vld [vmem:[#allocation4 + $0x1e0] sm:$0xff]
    %v8632 = vld [vmem:[#allocation4 + $0x1e8] sm:$0xff]
    %v8633 = vld [vmem:[#allocation4 + $0x248] sm:$0xff]
    %v8634 = vld [vmem:[#allocation4 + $0x250] sm:$0xff]
    %v8635 = vld [vmem:[#allocation4 + $0x2b0] sm:$0xff]
    %v8636 = vld [vmem:[#allocation4 + $0x2b8] sm:$0xff]
    %v8637 = vld [vmem:[#allocation4 + $0x318] sm:$0xff]
    %v8638 = vld [vmem:[#allocation4 + $0x320] sm:$0xff]
    %v8639 = vld [vmem:[#allocation4 + $0x380] sm:$0xff]
    %v8640 = vld [vmem:[#allocation4 + $0x388] sm:$0xff]
    %v8641 = vld [vmem:[#allocation4 + $0x3e8] sm:$0xff]
    %v8642 = vld [vmem:[#allocation4 + $0x3f0] sm:$0xff]
    %v8643 = vld [vmem:[#allocation4 + $0x450] sm:$0xff]
    %v8644 = vld [vmem:[#allocation4 + $0x458] sm:$0xff]
    %v8645 = vld [vmem:[#allocation4 + $0x4b8] sm:$0xff]
    %v8646 = vld [vmem:[#allocation4 + $0x4c0] sm:$0xff]
    %v8647 = vld [vmem:[#allocation4 + $0x520] sm:$0xff]
    %v8648 = vld [vmem:[#allocation4 + $0x528] sm:$0xff]
    %v8649 = vld [vmem:[#allocation4 + $0x588] sm:$0xff]
    %v8650 = vld [vmem:[#allocation4 + $0x590] sm:$0xff]
    %v8651 = vld [vmem:[#allocation4 + $0x5f0] sm:$0xff]
    %v8652 = vld [vmem:[#allocation4 + $0x5f8] sm:$0xff]
    %v8653 = vld [vmem:[#allocation4 + $0x658] sm:$0xff]
    %v8654 = vld [vmem:[#allocation4 + $0x660] sm:$0xff]
    %v8655 = vpack.c.bf16 %v8621, %v8621
    %v8656 = vpack.c.bf16 %v8622, %v8622
    %v8657 = vld [vmem:[%s7 + $0x19] sm:$0x3]
    %v8659 = vlaneseq
    %v8660 = vshrl.u32 %v8659, 7
    %v8661 = vsub.s32 0, %v8660
    %v8662 = vrot.slane %v8657, %v8661
    %v8663 = vlaneseq
    %v8664 = vshrl.u32 %v8663, 7
    %v8665 = vsub.s32 1, %v8664
    %v8666 = vrot.slane %v8657, %v8665
    %8669 = vmatprep.subr.bf16.mxu0 %v8624
    %8670 = vmatpush1.bf16.msra.mxu0 %v8623
    %8671 = vmatprep.subr.bf16.mxu0 %v8626
    %8672 = vmatpush1.bf16.msra.mxu0 %v8625
    %8673 = vmatprep.subr.bf16.mxu0 %v8628
    %8674 = vmatpush1.bf16.msra.mxu0 %v8627
    %8675 = vmatprep.subr.bf16.mxu0 %v8630
    %8676 = vmatpush1.bf16.msra.mxu0 %v8629
    %8677 = vmatprep.subr.bf16.mxu0 %v8632
    %8678 = vmatpush1.bf16.msra.mxu0 %v8631
    %8679 = vmatprep.subr.bf16.mxu0 %v8634
    %8680 = vmatpush1.bf16.msra.mxu0 %v8633
    %8681 = vmatprep.subr.bf16.mxu0 %v8636
    %8682 = vmatpush1.bf16.msra.mxu0 %v8635
    %8683 = vmatprep.subr.bf16.mxu0 %v8638
    %8684 = vmatpush1.bf16.msra.mxu0 %v8637
    %8685 = vmatprep.subr.bf16.mxu0 %v8640
    %8686 = vmatpush1.bf16.msra.mxu0 %v8639
    %8687 = vmatprep.subr.bf16.mxu0 %v8642
    %8688 = vmatpush1.bf16.msra.mxu0 %v8641
    %8689 = vmatprep.subr.bf16.mxu0 %v8644
    %8690 = vmatpush1.bf16.msra.mxu0 %v8643
    %8691 = vmatprep.subr.bf16.mxu0 %v8646
    %8692 = vmatpush1.bf16.msra.mxu0 %v8645
    %8693 = vmatprep.subr.bf16.mxu0 %v8648
    %8694 = vmatpush1.bf16.msra.mxu0 %v8647
    %8695 = vmatprep.subr.bf16.mxu0 %v8650
    %8696 = vmatpush1.bf16.msra.mxu0 %v8649
    %8697 = vmatprep.subr.bf16.mxu0 %v8652
    %8698 = vmatpush1.bf16.msra.mxu0 %v8651
    %8699 = vmatprep.subr.bf16.mxu0 %v8654
    %8700 = vmatpush1.bf16.msra.mxu0 %v8653
    %8701 = vmatprep.mubr.bf16.mxu0 %v8656
    %8702 = vmatmul.mubr.bf16.gmra.mrb[0].mxu0 %v8655
    %v8703 = vpop.f32.mrb[0].mxu0
    %v8704 = vadd.f32 %v8662, %v8703
    %v8705 = vpop.f32.mrb[0].mxu0
    %v8706 = vadd.f32 %v8666, %v8705
    %v8707 = vpop.f32.mrb[0].mxu0
    %v8708 = vpop.f32.mrb[0].mxu0
    %8709 = vdwg.mxu0
    %v8710 = vmax.f32 %v8704, 0.0
    %v8711 = vmax.f32 %v8706, 0.0
    %v8712 = vld [vmem:[#allocation4 + $0x50] sm:$0xff]
    %v8713 = vld [vmem:[#allocation4 + $0x58] sm:$0xff]
    %v8714 = vld [vmem:[#allocation4 + $0xb8] sm:$0xff]
    %v8715 = vld [vmem:[#allocation4 + $0xc0] sm:$0xff]
    %v8716 = vld [vmem:[#allocation4 + $0x120] sm:$0xff]
    %v8717 = vld [vmem:[#allocation4 + $0x128] sm:$0xff]
    %v8718 = vld [vmem:[#allocation4 + $0x188] sm:$0xff]
    %v8719 = vld [vmem:[#allocation4 + $0x190] sm:$0xff]
    %v8720 = vld [vmem:[#allocation4 + $0x1f0] sm:$0xff]
    %v8721 = vld [vmem:[#allocation4 + $0x1f8] sm:$0xff]
    %v8722 = vld [vmem:[#allocation4 + $0x258] sm:$0xff]
    %v8723 = vld [vmem:[#allocation4 + $0x260] sm:$0xff]
    %v8724 = vld [vmem:[#allocation4 + $0x2c0] sm:$0xff]
    %v8725 = vld [vmem:[#allocation4 + $0x2c8] sm:$0xff]
    %v8726 = vld [vmem:[#allocation4 + $0x328] sm:$0xff]
    %v8727 = vld [vmem:[#allocation4 + $0x330] sm:$0xff]
    %v8728 = vld [vmem:[#allocation4 + $0x390] sm:$0xff]
    %v8729 = vld [vmem:[#allocation4 + $0x398] sm:$0xff]
    %v8730 = vld [vmem:[#allocation4 + $0x3f8] sm:$0xff]
    %v8731 = vld [vmem:[#allocation4 + $0x400] sm:$0xff]
    %v8732 = vld [vmem:[#allocation4 + $0x460] sm:$0xff]
    %v8733 = vld [vmem:[#allocation4 + $0x468] sm:$0xff]
    %v8734 = vld [vmem:[#allocation4 + $0x4c8] sm:$0xff]
    %v8735 = vld [vmem:[#allocation4 + $0x4d0] sm:$0xff]
    %v8736 = vld [vmem:[#allocation4 + $0x530] sm:$0xff]
    %v8737 = vld [vmem:[#allocation4 + $0x538] sm:$0xff]
    %v8738 = vld [vmem:[#allocation4 + $0x598] sm:$0xff]
    %v8739 = vld [vmem:[#allocation4 + $0x5a0] sm:$0xff]
    %v8740 = vld [vmem:[#allocation4 + $0x600] sm:$0xff]
    %v8741 = vld [vmem:[#allocation4 + $0x608] sm:$0xff]
    %v8742 = vld [vmem:[#allocation4 + $0x668] sm:$0xff]
    %v8743 = vld [vmem:[#allocation4 + $0x670] sm:$0xff]
    %v8744 = vpack.c.bf16 %v8710, %v8710
    %v8745 = vpack.c.bf16 %v8711, %v8711
    %v8746 = vld [vmem:[%s7 + $0x1b] sm:$0x3]
    %v8748 = vlaneseq
    %v8749 = vshrl.u32 %v8748, 7
    %v8750 = vsub.s32 0, %v8749
    %v8751 = vrot.slane %v8746, %v8750
    %v8752 = vlaneseq
    %v8753 = vshrl.u32 %v8752, 7
    %v8754 = vsub.s32 1, %v8753
    %v8755 = vrot.slane %v8746, %v8754
    %8758 = vmatprep.subr.bf16.mxu0 %v8713
    %8759 = vmatpush1.bf16.msra.mxu0 %v8712
    %8760 = vmatprep.subr.bf16.mxu0 %v8715
    %8761 = vmatpush1.bf16.msra.mxu0 %v8714
    %8762 = vmatprep.subr.bf16.mxu0 %v8717
    %8763 = vmatpush1.bf16.msra.mxu0 %v8716
    %8764 = vmatprep.subr.bf16.mxu0 %v8719
    %8765 = vmatpush1.bf16.msra.mxu0 %v8718
    %8766 = vmatprep.subr.bf16.mxu0 %v8721
    %8767 = vmatpush1.bf16.msra.mxu0 %v8720
    %8768 = vmatprep.subr.bf16.mxu0 %v8723
    %8769 = vmatpush1.bf16.msra.mxu0 %v8722
    %8770 = vmatprep.subr.bf16.mxu0 %v8725
    %8771 = vmatpush1.bf16.msra.mxu0 %v8724
    %8772 = vmatprep.subr.bf16.mxu0 %v8727
    %8773 = vmatpush1.bf16.msra.mxu0 %v8726
    %8774 = vmatprep.subr.bf16.mxu0 %v8729
    %8775 = vmatpush1.bf16.msra.mxu0 %v8728
    %8776 = vmatprep.subr.bf16.mxu0 %v8731
    %8777 = vmatpush1.bf16.msra.mxu0 %v8730
    %8778 = vmatprep.subr.bf16.mxu0 %v8733
    %8779 = vmatpush1.bf16.msra.mxu0 %v8732
    %8780 = vmatprep.subr.bf16.mxu0 %v8735
    %8781 = vmatpush1.bf16.msra.mxu0 %v8734
    %8782 = vmatprep.subr.bf16.mxu0 %v8737
    %8783 = vmatpush1.bf16.msra.mxu0 %v8736
    %8784 = vmatprep.subr.bf16.mxu0 %v8739
    %8785 = vmatpush1.bf16.msra.mxu0 %v8738
    %8786 = vmatprep.subr.bf16.mxu0 %v8741
    %8787 = vmatpush1.bf16.msra.mxu0 %v8740
    %8788 = vmatprep.subr.bf16.mxu0 %v8743
    %8789 = vmatpush1.bf16.msra.mxu0 %v8742
    %8790 = vmatprep.mubr.bf16.mxu0 %v8745
    %8791 = vmatmul.mubr.bf16.gmra.mrb[0].mxu0 %v8744
    %v8792 = vpop.f32.mrb[0].mxu0
    %v8793 = vadd.f32 %v8751, %v8792
    %v8794 = vpop.f32.mrb[0].mxu0
    %v8795 = vadd.f32 %v8755, %v8794
    %v8796 = vpop.f32.mrb[0].mxu0
    %v8797 = vpop.f32.mrb[0].mxu0
    %8798 = vdwg.mxu0
    %v8799 = vmax.f32 %v8793, 0.0
    %v8800 = vmax.f32 %v8795, 0.0
    %v8801 = vld [vmem:[#allocation4 + $0x60] sm:$0xff]
    %v8802 = vld [vmem:[#allocation4 + $0xc8] sm:$0xff]
    %v8803 = vld [vmem:[#allocation4 + $0x130] sm:$0xff]
    %v8804 = vld [vmem:[#allocation4 + $0x198] sm:$0xff]
    %v8805 = vld [vmem:[#allocation4 + $0x200] sm:$0xff]
    %v8806 = vld [vmem:[#allocation4 + $0x268] sm:$0xff]
    %v8807 = vld [vmem:[#allocation4 + $0x2d0] sm:$0xff]
    %v8808 = vld [vmem:[#allocation4 + $0x338] sm:$0xff]
    %v8809 = vld [vmem:[#allocation4 + $0x3a0] sm:$0xff]
    %v8810 = vld [vmem:[#allocation4 + $0x408] sm:$0xff]
    %v8811 = vld [vmem:[#allocation4 + $0x470] sm:$0xff]
    %v8812 = vld [vmem:[#allocation4 + $0x4d8] sm:$0xff]
    %v8813 = vld [vmem:[#allocation4 + $0x540] sm:$0xff]
    %v8814 = vld [vmem:[#allocation4 + $0x5a8] sm:$0xff]
    %v8815 = vld [vmem:[#allocation4 + $0x610] sm:$0xff]
    %v8816 = vld [vmem:[#allocation4 + $0x678] sm:$0xff]
    %v8817 = vpack.c.bf16 %v8799, %v8799
    %v8818 = vpack.c.bf16 %v8800, %v8800
    %v8819 = vld [vmem:[%s7 + $0x1d] sm:$0x1]
    %v8821 = vlaneseq
    %v8822 = vshrl.u32 %v8821, 7
    %v8823 = vsub.s32 0, %v8822
    %v8824 = vrot.slane %v8819, %v8823
    %8826 = vmatprep.subr.bf16.mxu0 0
    %8827 = vmatpush1.bf16.msra.mxu0 %v8801
    %8828 = vmatprep.subr.bf16.mxu0 0
    %8829 = vmatpush1.bf16.msra.mxu0 %v8802
    %8830 = vmatprep.subr.bf16.mxu0 0
    %8831 = vmatpush1.bf16.msra.mxu0 %v8803
    %8832 = vmatprep.subr.bf16.mxu0 0
    %8833 = vmatpush1.bf16.msra.mxu0 %v8804
    %8834 = vmatprep.subr.bf16.mxu0 0
    %8835 = vmatpush1.bf16.msra.mxu0 %v8805
    %8836 = vmatprep.subr.bf16.mxu0 0
    %8837 = vmatpush1.bf16.msra.mxu0 %v8806
    %8838 = vmatprep.subr.bf16.mxu0 0
    %8839 = vmatpush1.bf16.msra.mxu0 %v8807
    %8840 = vmatprep.subr.bf16.mxu0 0
    %8841 = vmatpush1.bf16.msra.mxu0 %v8808
    %8842 = vmatprep.subr.bf16.mxu0 0
    %8843 = vmatpush1.bf16.msra.mxu0 %v8809
    %8844 = vmatprep.subr.bf16.mxu0 0
    %8845 = vmatpush1.bf16.msra.mxu0 %v8810
    %8846 = vmatprep.subr.bf16.mxu0 0
    %8847 = vmatpush1.bf16.msra.mxu0 %v8811
    %8848 = vmatprep.subr.bf16.mxu0 0
    %8849 = vmatpush1.bf16.msra.mxu0 %v8812
    %8850 = vmatprep.subr.bf16.mxu0 0
    %8851 = vmatpush1.bf16.msra.mxu0 %v8813
    %8852 = vmatprep.subr.bf16.mxu0 0
    %8853 = vmatpush1.bf16.msra.mxu0 %v8814
    %8854 = vmatprep.subr.bf16.mxu0 0
    %8855 = vmatpush1.bf16.msra.mxu0 %v8815
    %8856 = vmatprep.subr.bf16.mxu0 0
    %8857 = vmatpush1.bf16.msra.mxu0 %v8816
    %8858 = vmatprep.mubr.bf16.mxu0 %v8818
    %8859 = vmatmul.mubr.bf16.gmra.mrb[0].mxu0 %v8817
    %v8860 = vpop.f32.mrb[0].mxu0
    %v8861 = vadd.f32 %v8824, %v8860
    %v8862 = vpop.f32.mrb[0].mxu0
    %v8863 = vpop.f32.mrb[0].mxu0
    %v8864 = vpop.f32.mrb[0].mxu0
    %8865 = vdwg.mxu0
    %v8866 = vmin.f32 %v8861, 20.0
    %vm8867 = vcmp.gt.f32.partialorder %v8861, 20.0
    %v8868 = vmul.f32 %v8866, 1.442695
    %v8869 = vpow.pop %v8868
    %v8870 = vadd.f32 %v8869, 1.0
    %v8871 = vlog2.pop %v8870
    %v8872 = vmul.f32 %v8871, 0.6931472
    %v8873 = vmul.f32 -0.5, %v8869
    %v8874 = vadd.f32 %v8873, 1.0
    %v8875 = vmul.f32 %v8874, %v8869
    %v8876 = vand.u32 2147483647, %v8869
    %vm8877 = vcmp.lt.f32.partialorder %v8876, 0.0004427343
    %v8878 = vsel %vm8877, %v8875, %v8872
    %v8879 = vsel %vm8867, %v8861, %v8878
    %vm8880 = vcmask 1024
    %8881 = vst.msk [vmem:[%s11] sm:$0x3] %vm8880, %v8879
    // Predicated region
    $region113: #{_grasp_dist_field_impl.1} parent=1 // pred_check
      _
    $region114: #{_grasp_dist_field_impl.1} parent=1 // pred_check_branch
      %8883 = sbr.rel (0) target = $region116
    $region115: #{_grasp_dist_field_impl.1} parent=1 // pred_region
      _
    $region116: #{_grasp_dist_field_impl.1} parent=1 // pred_fallthru
      _
    // Predicated region
    $region117: #{_grasp_dist_field_impl.1} parent=1 // pred_check
      _
    $region118: #{_grasp_dist_field_impl.1} parent=1 // pred_check_branch
      %8885 = sbr.rel (0) target = $region120
    $region119: #{_grasp_dist_field_impl.1} parent=1 // pred_region
      _
    $region120: #{_grasp_dist_field_impl.1} parent=1 // pred_fallthru
      _
    %8886 = vsyncpa [#allocation7], 1
    %8887 = vsyncpa [#allocation9], 1
  %8888 = vsyncmov [#allocation5]
  %s8889 = vpop.sfrf %8888
  %p8890 = scmp.eq.s32.totalorder %s8889, 0
  %p8891 = pneg %p8890
  %8893 = shalt.err (%p8891)
  %s8894 = scalar_lea.sflag [#allocation5], 1
  %8895 = vsyncmov %s8894
  %s8896 = vpop.sfrf %8895
  %p8897 = scmp.eq.s32.totalorder %s8896, 0
  %p8898 = pneg %p8897
  %8900 = shalt.err (%p8898)
  %s8901 = scalar_lea.sflag [#allocation5], 2
  %8902 = vsyncmov %s8901
  %s8903 = vpop.sfrf %8902
  %p8904 = scmp.eq.s32.totalorder %s8903, 0
  %p8905 = pneg %p8904
  %8907 = shalt.err (%p8905)

</llo_original>
